<compile_context>
chip_gen: v7x
topology: tpu7x:2x2x1
jax: 0.10.0
libtpu: 0.0.40
codegen_flags: <defaults>
</compile_context>

<pallas_src>
import functools

import jax
import jax.numpy as jnp
from jax.experimental import pallas as pl
from jax.experimental.pallas import tpu as pltpu


def _round_up(n, m):
    return ((n + m - 1) // m) * m


def _leaky_relu(x, negative_slope=0.2):
    return jnp.where(x > 0, x, negative_slope * x)


def generator_mlp_kernel(x_ref,
                         w1_ref, b1_ref,
                         w2_ref, b2_ref,
                         w3_ref, b3_ref,
                         w4_ref, b4_ref,
                         o_ref):
    # Fused 4-layer MLP on one (TB, K_pad) bf16 activation block.
    # Weights are bf16 and VMEM-resident across the batch grid; every matmul
    # runs on the MXU with f32 accumulation. LeakyReLU -> VPU, tanh -> EUP.
    # The output block is bf16 to halve HBM writeback.
    h = jnp.dot(x_ref[...], w1_ref[...], preferred_element_type=jnp.float32)
    h = _leaky_relu(h + b1_ref[...])

    h = jnp.dot(h.astype(jnp.bfloat16), w2_ref[...],
                preferred_element_type=jnp.float32)
    h = _leaky_relu(h + b2_ref[...])

    h = jnp.dot(h.astype(jnp.bfloat16), w3_ref[...],
                preferred_element_type=jnp.float32)
    h = _leaky_relu(h + b3_ref[...])

    h = jnp.dot(h.astype(jnp.bfloat16), w4_ref[...],
                preferred_element_type=jnp.float32)
    h = jnp.tanh(h + b4_ref[...])

    o_ref[...] = h.astype(o_ref.dtype)


@functools.lru_cache(maxsize=1)
def _single_buffered_weights_supported():
    """Probe whether pipeline_mode=pl.Buffered(1) is accepted on a top-level
    pallas_call operand on this jax/libtpu build.  If yes, the grid-resident
    weights are single-buffered (saves ~3 MiB VMEM); if not, we silently fall
    back to the default double-buffering so the kernel always compiles."""
    def _copy_kernel(x_ref, o_ref):
        o_ref[...] = x_ref[...]

    try:
        spec = pl.BlockSpec((8, 128), lambda i: (0, 0),
                            pipeline_mode=pl.Buffered(1))
        probe = pl.pallas_call(
            _copy_kernel,
            out_shape=jax.ShapeDtypeStruct((8, 128), jnp.float32),
            grid=(2,),
            in_specs=[spec],
            out_specs=pl.BlockSpec((8, 128), lambda i: (0, 0)),
        )
        jax.block_until_ready(probe(jnp.zeros((8, 128), jnp.float32)))
        return True
    except Exception:
        return False


def generator_forward(noise, labels, params, *, image_size=28, channels=1):
    """noise: (B, gen_noise_input) f32, labels: (B,) int32 -> (B, C, H, W) bf16."""
    return _generator_forward_impl(
        noise, labels, params, image_size=image_size, channels=channels,
        single_buffer_weights=_single_buffered_weights_supported())


@functools.partial(jax.jit, static_argnames=("image_size", "channels",
                                             "single_buffer_weights"))
def _generator_forward_impl(noise, labels, params, *, image_size, channels,
                            single_buffer_weights):
    emb = jnp.take(params["label_emb"], labels, axis=0)   # (B, num_classes) glue
    x = jnp.concatenate([noise, emb], axis=-1)            # (B, 110) f32

    B, K = x.shape
    k_pad = params["w1"].shape[0]                          # 128 (lane-dense)
    h1 = params["w1"].shape[1]
    h2 = params["w2"].shape[1]
    h3 = params["w3"].shape[1]
    out_pad = params["w4"].shape[1]                        # 896 (7*128)
    out_dim = channels * image_size * image_size           # 784

    # Batch tiling.  TB <= 512: M = 2x the 256-row systolic height, amortizes
    # the ~0.35 us/step grid overhead, and fits VMEM comfortably on all chips.
    # Small B -> single grid step (splitting would duplicate the ~3 MB weight
    # DMA per TensorCore).  Large B -> even number of steps so the "parallel"
    # batch axis can shard across v7x's 2 TensorCores.
    MAX_TB = 512
    if B <= MAX_TB:
        TB = _round_up(B, 8)
        num_steps = 1
    else:
        num_steps = -(-B // MAX_TB)          # ceil
        if num_steps % 2 == 1:
            num_steps += 1                   # v7x megacore friendliness
        TB = _round_up(-(-B // num_steps), 8)
    B_pad = TB * num_steps

    # Zero-pad rows (batch) and contraction columns (110 -> 128) and cast the
    # activation input to bf16 (it is fed to a bf16 MXU matmul anyway): halves
    # the per-step input DMA, numerics unchanged.
    x_pad = (jnp.zeros((B_pad, k_pad), jnp.bfloat16)
             .at[:B, :K].set(x.astype(jnp.bfloat16)))

    weight_keys = ("w1", "b1", "w2", "b2", "w3", "b3", "w4", "b4")
    weight_bytes = sum(int(params[k].size) * params[k].dtype.itemsize
                       for k in weight_keys)
    flops = 2 * B_pad * (k_pad * h1 + h1 * h2 + h2 * h3 + h3 * out_pad)
    # HBM traffic: bf16 weights (once) + bf16 input blocks + bf16 output blocks.
    bytes_accessed = weight_bytes + B_pad * k_pad * 2 + B_pad * out_pad * 2

    # Right-sized VMEM limit: resident weights (x buffer count) +
    # double-buffered bf16 in/out blocks + f32 intermediates (+ bf16 copies)
    # + headroom for Mosaic internal scratch.  Capped below v7x's 64 MiB.
    weight_bufs = 1 if single_buffer_weights else 2
    io_vmem = 2 * TB * (k_pad + out_pad) * 2                 # double-buffered bf16 I/O
    inter_vmem = TB * (h1 + h2 + h3 + out_pad) * 6           # f32 + bf16 intermediates
    vmem_limit = int(min(56 * 1024 * 1024,
                         weight_bufs * weight_bytes + io_vmem + inter_vmem
                         + 8 * 1024 * 1024))

    resident = lambda i: (0, 0)   # weights/biases: same block every grid step
    w_kwargs = ({"pipeline_mode": pl.Buffered(1)}
                if single_buffer_weights else {})
    in_specs = [
        pl.BlockSpec((TB, k_pad), lambda i: (i, 0)),          # activation block
        pl.BlockSpec(params["w1"].shape, resident, **w_kwargs),
        pl.BlockSpec(params["b1"].shape, resident, **w_kwargs),
        pl.BlockSpec(params["w2"].shape, resident, **w_kwargs),
        pl.BlockSpec(params["b2"].shape, resident, **w_kwargs),
        pl.BlockSpec(params["w3"].shape, resident, **w_kwargs),
        pl.BlockSpec(params["b3"].shape, resident, **w_kwargs),
        pl.BlockSpec(params["w4"].shape, resident, **w_kwargs),
        pl.BlockSpec(params["b4"].shape, resident, **w_kwargs),
    ]
    out_specs = pl.BlockSpec((TB, out_pad), lambda i: (i, 0))

    out_flat = pl.pallas_call(
        generator_mlp_kernel,
        out_shape=jax.ShapeDtypeStruct((B_pad, out_pad), jnp.bfloat16),
        grid=(num_steps,),
        in_specs=in_specs,
        out_specs=out_specs,
        compiler_params=pltpu.CompilerParams(
            dimension_semantics=("parallel",),   # shards batch across v7x's 2 TCs
            vmem_limit_bytes=vmem_limit,
        ),
        cost_estimate=pl.CostEstimate(
            flops=int(flops),
            transcendentals=int(B_pad * out_pad),
            bytes_accessed=int(bytes_accessed),
        ),
    )(x_pad,
      params["w1"], params["b1"],
      params["w2"], params["b2"],
      params["w3"], params["b3"],
      params["w4"], params["b4"])

    # Drop batch / lane padding, then PyTorch NCHW reshape (kept in bf16;
    # upcast at the consumer only if f32 is required).
    out = out_flat[:B, :out_dim]
    return out.reshape(B, channels, image_size, image_size)


def init_generator_params(key, image_size=28, channels=1, num_classes=10,
                          gen_noise_input=100):
    """Synthetic init matching the PyTorch module's shapes.

    nn.Linear default init: U(-1/sqrt(fan_in), 1/sqrt(fan_in));
    nn.Embedding default init: N(0, 1).
    Weights stored as (in, out), zero-padded to lane-dense shapes
    (K: 110->128, last layer: 784->896) and cast to bfloat16 for the kernel.
    Biases stay f32, shape (1, out_pad).
    """
    in0 = gen_noise_input + num_classes
    out_dim = channels * image_size * image_size
    k_pad = _round_up(in0, 128)
    out_pad = _round_up(out_dim, 128)

    dims = [(in0, 256), (256, 512), (512, 1024), (1024, out_dim)]
    pad_dims = [(k_pad, 256), (256, 512), (512, 1024), (1024, out_pad)]
    keys = jax.random.split(key, 2 * len(dims) + 1)

    params = {"label_emb": jax.random.normal(
        keys[0], (num_classes, num_classes), dtype=jnp.float32)}
    for li, ((fan_in, fan_out), (pin, pout)) in enumerate(zip(dims, pad_dims)):
        bound = 1.0 / (fan_in ** 0.5)
        kw, kb = keys[1 + 2 * li], keys[2 + 2 * li]
        w = jax.random.uniform(kw, (fan_in, fan_out),
                               minval=-bound, maxval=bound, dtype=jnp.float32)
        b = jax.random.uniform(kb, (fan_out,),
                               minval=-bound, maxval=bound, dtype=jnp.float32)
        w_pad = jnp.zeros((pin, pout), jnp.float32).at[:fan_in, :fan_out].set(w)
        b_pad = jnp.zeros((1, pout), jnp.float32).at[0, :fan_out].set(b)
        params[f"w{li + 1}"] = w_pad.astype(jnp.bfloat16)
        params[f"b{li + 1}"] = b_pad
    return params


def _reference_forward(noise, labels, params, image_size=28, channels=1):
    """Pure-JAX f32 reference using the same (bf16-quantized) weights."""
    emb = jnp.take(params["label_emb"], labels, axis=0)
    x = jnp.concatenate([noise, emb], axis=-1)
    k_pad = params["w1"].shape[0]
    x = jnp.pad(x, ((0, 0), (0, k_pad - x.shape[1])))
    for li in range(1, 4):
        x = x @ params[f"w{li}"].astype(jnp.float32) + params[f"b{li}"]
        x = jnp.where(x > 0, x, 0.2 * x)
    x = jnp.tanh(x @ params["w4"].astype(jnp.float32) + params["b4"])
    out_dim = channels * image_size * image_size
    return x[:, :out_dim].reshape(x.shape[0], channels, image_size, image_size)


if __name__ == "__main__":
    image_size, channels, num_classes, gen_noise_input = 28, 1, 10, 100
    batch = 64

    key = jax.random.PRNGKey(0)
    k_params, k_noise, k_labels = jax.random.split(key, 3)

    params = init_generator_params(k_params, image_size, channels,
                                   num_classes, gen_noise_input)
    noise = jax.random.normal(k_noise, (batch, gen_noise_input), dtype=jnp.float32)
    labels = jax.random.randint(k_labels, (batch,), 0, num_classes, dtype=jnp.int32)

    out = generator_forward(noise, labels, params,
                            image_size=image_size, channels=channels)
    out = jax.block_until_ready(out)

    assert out.shape == (batch, channels, image_size, image_size), out.shape
    assert out.dtype == jnp.bfloat16, out.dtype

    ref = jax.block_until_ready(
        _reference_forward(noise, labels, params, image_size, channels))
    # Kernel is bf16 end-to-end (bf16 weights + bf16 activation inputs to the
    # MXU + bf16 output store); the reference keeps activations in f32, so
    # allow ~bf16-level drift on a [-1, 1] tanh output.
    max_err = float(jnp.max(jnp.abs(out.astype(jnp.float32) - ref)))
    assert max_err < 5e-2, max_err

    print("KERNEL_OK")
</pallas_src>

<mosaic_0001>
module attributes {stable_mosaic.version = 11 : i64} {
  func.func @_copy_kernel(%arg0: i32, %arg1: memref<8x128xf32, #tpu.memory_space<vmem>>, %arg2: memref<8x128xf32, #tpu.memory_space<vmem>>) attributes {dimension_semantics = [#tpu.dimension_semantics<arbitrary>], iteration_bounds = array<i64: 2>, scalar_prefetch = 0 : i64, scratch_operands = 0 : i64, tpu.core_type = #tpu.core_type<tc>, window_params = [{pipeline_mode = #tpu.pipeline_mode<synchronous>, transform_indices = @transform_0, window_bounds = array<i64: 8, 128>}, {pipeline_mode = #tpu.pipeline_mode<synchronous>, transform_indices = @transform_1, window_bounds = array<i64: 8, 128>}]} {
    %c0 = arith.constant 0 : index
    %c0_0 = arith.constant 0 : index
    %0 = vector.load %arg1[%c0, %c0_0] : memref<8x128xf32, #tpu.memory_space<vmem>>, vector<8x128xf32>
    %c0_1 = arith.constant 0 : index
    %c0_2 = arith.constant 0 : index
    %1 = vector.load %arg2[%c0_1, %c0_2] : memref<8x128xf32, #tpu.memory_space<vmem>>, vector<8x128xf32>
    tpu.vector_store %arg2[%c0_1, %c0_2], %0 {strides = array<i32>} : memref<8x128xf32, #tpu.memory_space<vmem>>, vector<8x128xf32>,
    return
  }
  func.func @transform_0(%arg0: i32) -> (i32, i32) {
    %c0_i32 = arith.constant 0 : i32
    %c0_i32_0 = arith.constant 0 : i32
    %c0_i32_1 = arith.constant 0 : i32
    return %c0_i32, %c0_i32_0 : i32, i32
  }
  func.func @transform_1(%arg0: i32) -> (i32, i32) {
    %c0_i32 = arith.constant 0 : i32
    %c0_i32_0 = arith.constant 0 : i32
    %c0_i32_1 = arith.constant 0 : i32
    return %c0_i32, %c0_i32_0 : i32, i32
  }
}

module attributes {stable_mosaic.version = 11 : i64} {
  func.func @generator_mlp_kernel(%arg0: i32, %arg1: memref<64x128xbf16, #tpu.memory_space<vmem>>, %arg2: memref<128x256xbf16, #tpu.memory_space<vmem>>, %arg3: memref<1x256xf32, #tpu.memory_space<vmem>>, %arg4: memref<256x512xbf16, #tpu.memory_space<vmem>>, %arg5: memref<1x512xf32, #tpu.memory_space<vmem>>, %arg6: memref<512x1024xbf16, #tpu.memory_space<vmem>>, %arg7: memref<1x1024xf32, #tpu.memory_space<vmem>>, %arg8: memref<1024x896xbf16, #tpu.memory_space<vmem>>, %arg9: memref<1x896xf32, #tpu.memory_space<vmem>>, %arg10: memref<64x896xbf16, #tpu.memory_space<vmem>>) attributes {dimension_semantics = [#tpu.dimension_semantics<parallel>], iteration_bounds = array<i64: 1>, scalar_prefetch = 0 : i64, scratch_operands = 0 : i64, tpu.core_type = #tpu.core_type<tc>, window_params = [{transform_indices = @transform_0, window_bounds = array<i64: 64, 128>}, {pipeline_mode = #tpu.pipeline_mode<synchronous>, transform_indices = @transform_1, window_bounds = array<i64: 128, 256>}, {pipeline_mode = #tpu.pipeline_mode<synchronous>, transform_indices = @transform_2, window_bounds = array<i64: 1, 256>}, {pipeline_mode = #tpu.pipeline_mode<synchronous>, transform_indices = @transform_3, window_bounds = array<i64: 256, 512>}, {pipeline_mode = #tpu.pipeline_mode<synchronous>, transform_indices = @transform_4, window_bounds = array<i64: 1, 512>}, {pipeline_mode = #tpu.pipeline_mode<synchronous>, transform_indices = @transform_5, window_bounds = array<i64: 512, 1024>}, {pipeline_mode = #tpu.pipeline_mode<synchronous>, transform_indices = @transform_6, window_bounds = array<i64: 1, 1024>}, {pipeline_mode = #tpu.pipeline_mode<synchronous>, transform_indices = @transform_7, window_bounds = array<i64: 1024, 896>}, {pipeline_mode = #tpu.pipeline_mode<synchronous>, transform_indices = @transform_8, window_bounds = array<i64: 1, 896>}, {transform_indices = @transform_9, window_bounds = array<i64: 64, 896>}]} {
    %c0 = arith.constant 0 : index
    %c0_0 = arith.constant 0 : index
    %0 = vector.load %arg1[%c0, %c0_0] : memref<64x128xbf16, #tpu.memory_space<vmem>>, vector<64x128xbf16>
    %c0_1 = arith.constant 0 : index
    %c0_2 = arith.constant 0 : index
    %1 = vector.load %arg2[%c0_1, %c0_2] : memref<128x256xbf16, #tpu.memory_space<vmem>>, vector<128x256xbf16>
    %cst = arith.constant dense<0.000000e+00> : vector<64x256xf32>
    %2 = tpu.matmul %0, %1, %cst {dimension_numbers = #tpu.dot_dimension_numbers<[1], [0], [0], [1], [0, 0, 1, 1], [], []>} : vector<64x128xbf16>, vector<128x256xbf16>, vector<64x256xf32> -> vector<64x256xf32>
    %c0_3 = arith.constant 0 : index
    %c0_4 = arith.constant 0 : index
    %3 = vector.load %arg3[%c0_3, %c0_4] : memref<1x256xf32, #tpu.memory_space<vmem>>, vector<1x256xf32>
    %4 = vector.broadcast %3 : vector<1x256xf32> to vector<64x256xf32>
    %5 = arith.addf %2, %4 : vector<64x256xf32>
    %cst_5 = arith.constant 0.000000e+00 : f32
    %6 = vector.broadcast %cst_5 : f32 to vector<64x256xf32>
    %7 = arith.cmpf ogt, %5, %6 : vector<64x256xf32>
    %cst_6 = arith.constant 2.000000e-01 : f32
    %8 = vector.broadcast %cst_6 : f32 to vector<64x256xf32>
    %9 = arith.mulf %8, %5 : vector<64x256xf32>
    %10 = arith.select %7, %5, %9 : vector<64x256xi1>, vector<64x256xf32>
    %11 = arith.truncf %10 : vector<64x256xf32> to vector<64x256xbf16>
    %c0_7 = arith.constant 0 : index
    %c0_8 = arith.constant 0 : index
    %12 = vector.load %arg4[%c0_7, %c0_8] : memref<256x512xbf16, #tpu.memory_space<vmem>>, vector<256x512xbf16>
    %cst_9 = arith.constant dense<0.000000e+00> : vector<64x512xf32>
    %13 = tpu.matmul %11, %12, %cst_9 {dimension_numbers = #tpu.dot_dimension_numbers<[1], [0], [0], [1], [0, 0, 1, 1], [], []>} : vector<64x256xbf16>, vector<256x512xbf16>, vector<64x512xf32> -> vector<64x512xf32>
    %c0_10 = arith.constant 0 : index
    %c0_11 = arith.constant 0 : index
    %14 = vector.load %arg5[%c0_10, %c0_11] : memref<1x512xf32, #tpu.memory_space<vmem>>, vector<1x512xf32>
    %15 = vector.broadcast %14 : vector<1x512xf32> to vector<64x512xf32>
    %16 = arith.addf %13, %15 : vector<64x512xf32>
    %cst_12 = arith.constant 0.000000e+00 : f32
    %17 = vector.broadcast %cst_12 : f32 to vector<64x512xf32>
    %18 = arith.cmpf ogt, %16, %17 : vector<64x512xf32>
    %cst_13 = arith.constant 2.000000e-01 : f32
    %19 = vector.broadcast %cst_13 : f32 to vector<64x512xf32>
    %20 = arith.mulf %19, %16 : vector<64x512xf32>
    %21 = arith.select %18, %16, %20 : vector<64x512xi1>, vector<64x512xf32>
    %22 = arith.truncf %21 : vector<64x512xf32> to vector<64x512xbf16>
    %c0_14 = arith.constant 0 : index
    %c0_15 = arith.constant 0 : index
    %23 = vector.load %arg6[%c0_14, %c0_15] : memref<512x1024xbf16, #tpu.memory_space<vmem>>, vector<512x1024xbf16>
    %cst_16 = arith.constant dense<0.000000e+00> : vector<64x1024xf32>
    %24 = tpu.matmul %22, %23, %cst_16 {dimension_numbers = #tpu.dot_dimension_numbers<[1], [0], [0], [1], [0, 0, 1, 1], [], []>} : vector<64x512xbf16>, vector<512x1024xbf16>, vector<64x1024xf32> -> vector<64x1024xf32>
    %c0_17 = arith.constant 0 : index
    %c0_18 = arith.constant 0 : index
    %25 = vector.load %arg7[%c0_17, %c0_18] : memref<1x1024xf32, #tpu.memory_space<vmem>>, vector<1x1024xf32>
    %26 = vector.broadcast %25 : vector<1x1024xf32> to vector<64x1024xf32>
    %27 = arith.addf %24, %26 : vector<64x1024xf32>
    %cst_19 = arith.constant 0.000000e+00 : f32
    %28 = vector.broadcast %cst_19 : f32 to vector<64x1024xf32>
    %29 = arith.cmpf ogt, %27, %28 : vector<64x1024xf32>
    %cst_20 = arith.constant 2.000000e-01 : f32
    %30 = vector.broadcast %cst_20 : f32 to vector<64x1024xf32>
    %31 = arith.mulf %30, %27 : vector<64x1024xf32>
    %32 = arith.select %29, %27, %31 : vector<64x1024xi1>, vector<64x1024xf32>
    %33 = arith.truncf %32 : vector<64x1024xf32> to vector<64x1024xbf16>
    %c0_21 = arith.constant 0 : index
    %c0_22 = arith.constant 0 : index
    %34 = vector.load %arg8[%c0_21, %c0_22] : memref<1024x896xbf16, #tpu.memory_space<vmem>>, vector<1024x896xbf16>
    %cst_23 = arith.constant dense<0.000000e+00> : vector<64x896xf32>
    %35 = tpu.matmul %33, %34, %cst_23 {dimension_numbers = #tpu.dot_dimension_numbers<[1], [0], [0], [1], [0, 0, 1, 1], [], []>} : vector<64x1024xbf16>, vector<1024x896xbf16>, vector<64x896xf32> -> vector<64x896xf32>
    %c0_24 = arith.constant 0 : index
    %c0_25 = arith.constant 0 : index
    %36 = vector.load %arg9[%c0_24, %c0_25] : memref<1x896xf32, #tpu.memory_space<vmem>>, vector<1x896xf32>
    %37 = vector.broadcast %36 : vector<1x896xf32> to vector<64x896xf32>
    %38 = arith.addf %35, %37 : vector<64x896xf32>
    %39 = math.tanh %38 : vector<64x896xf32>
    %40 = arith.truncf %39 : vector<64x896xf32> to vector<64x896xbf16>
    %c0_26 = arith.constant 0 : index
    %c0_27 = arith.constant 0 : index
    %41 = vector.load %arg10[%c0_26, %c0_27] : memref<64x896xbf16, #tpu.memory_space<vmem>>, vector<64x896xbf16>
    tpu.vector_store %arg10[%c0_26, %c0_27], %40 {strides = array<i32>} : memref<64x896xbf16, #tpu.memory_space<vmem>>, vector<64x896xbf16>,
    return
  }
  func.func @transform_0(%arg0: i32) -> (i32, i32) {
    %c0_i32 = arith.constant 0 : i32
    %c0_i32_0 = arith.constant 0 : i32
    return %arg0, %c0_i32 : i32, i32
  }
  func.func @transform_1(%arg0: i32) -> (i32, i32) {
    %c0_i32 = arith.constant 0 : i32
    %c0_i32_0 = arith.constant 0 : i32
    %c0_i32_1 = arith.constant 0 : i32
    return %c0_i32, %c0_i32_0 : i32, i32
  }
  func.func @transform_2(%arg0: i32) -> (i32, i32) {
    %c0_i32 = arith.constant 0 : i32
    %c0_i32_0 = arith.constant 0 : i32
    %c0_i32_1 = arith.constant 0 : i32
    return %c0_i32, %c0_i32_0 : i32, i32
  }
  func.func @transform_3(%arg0: i32) -> (i32, i32) {
    %c0_i32 = arith.constant 0 : i32
    %c0_i32_0 = arith.constant 0 : i32
    %c0_i32_1 = arith.constant 0 : i32
    return %c0_i32, %c0_i32_0 : i32, i32
  }
  func.func @transform_4(%arg0: i32) -> (i32, i32) {
    %c0_i32 = arith.constant 0 : i32
    %c0_i32_0 = arith.constant 0 : i32
    %c0_i32_1 = arith.constant 0 : i32
    return %c0_i32, %c0_i32_0 : i32, i32
  }
  func.func @transform_5(%arg0: i32) -> (i32, i32) {
    %c0_i32 = arith.constant 0 : i32
    %c0_i32_0 = arith.constant 0 : i32
    %c0_i32_1 = arith.constant 0 : i32
    return %c0_i32, %c0_i32_0 : i32, i32
  }
  func.func @transform_6(%arg0: i32) -> (i32, i32) {
    %c0_i32 = arith.constant 0 : i32
    %c0_i32_0 = arith.constant 0 : i32
    %c0_i32_1 = arith.constant 0 : i32
    return %c0_i32, %c0_i32_0 : i32, i32
  }
  func.func @transform_7(%arg0: i32) -> (i32, i32) {
    %c0_i32 = arith.constant 0 : i32
    %c0_i32_0 = arith.constant 0 : i32
    %c0_i32_1 = arith.constant 0 : i32
    return %c0_i32, %c0_i32_0 : i32, i32
  }
  func.func @transform_8(%arg0: i32) -> (i32, i32) {
    %c0_i32 = arith.constant 0 : i32
    %c0_i32_0 = arith.constant 0 : i32
    %c0_i32_1 = arith.constant 0 : i32
    return %c0_i32, %c0_i32_0 : i32, i32
  }
  func.func @transform_9(%arg0: i32) -> (i32, i32) {
    %c0_i32 = arith.constant 0 : i32
    %c0_i32_0 = arith.constant 0 : i32
    return %arg0, %c0_i32 : i32, i32
  }
}

</mosaic_0001>

<llo_original>
// kernel: tpu_custom_call.1
$region0: #{tpu_custom_call.1}
  #allocation0 [shape = 'u32[]', space=smem, size = 0x4, offset = 0x4, fixed_abs, tag = 'smem constant byte address 0x4 - core index']
  #allocation1 [shape = 'u32[144,128]{1,0:T(1,128)}', space=vmem, size = 0x12000, scoped, tag = 'internal scratch']
  %s0 = inlined_call_operand.hbm [shape: f32[8,128], index: 0, kind: input, shape index: {}]
  %s1 = inlined_call_operand.hbm [shape: f32[8,128], index: 1, kind: output, shape index: {}]
  %s2 = sld [smem:[#allocation0]]
  $region41: #{tpu_custom_call.1} parent=0
    _
  %s4 = ssub.s32 1, %s2
  %s5 = scalar_select 0, %s4, %s2
  $region1: #{tpu_custom_call.1} parent=0
    #allocation2 [shape = 'u8[4096]{0}', space=vmem, size = 0x1000, scoped, tag = 'input window, operand 0, single buffered']
    #allocation3 [shape = 's32[2]{0}', space=sflag, size = 0x8, scoped, tag = 'scoped memory for tpu_custom_call.1']
    #allocation4 [shape = 's32[2]{0}', space=sflag, size = 0x8, scoped, tag = 'scoped memory for tpu_custom_call.1']
    #allocation5 [shape = 'u8[4096]{0}', space=vmem, size = 0x1000, scoped, tag = 'output window, operand 0, single buffered']
    %6 = vsyncpa [#allocation3], 0
    %7 = vsyncpa [#allocation4], 0
    loop: start=0, step=1, limit=4
    $region2: #{tpu_custom_call.1} parent=1 // loop_pre_header
      _
    $region3: #{tpu_custom_call.1} parent=1 // loop_header
      %s9 = sphi 0, %s13
      %p10 = scmp.ge.s32.totalorder %s9, 4
      %s17 = sphi 0, %s17
      %s19 = sphi 0, %s17
      %s20 = sphi 0, %s19
      %s34 = sphi 0, %s20
      %s38 = sphi 0, %s38
      %s40 = sphi 0, %s38
      %s41 = sphi 0, %s40
      %s55 = sphi 0, %s41
    $region4: #{tpu_custom_call.1} parent=1 // loop_header_branch
      %12 = sbr.rel (%p10) target = $region8
    $region5: #{tpu_custom_call.1} parent=1 // loop_body
      %s14 = ssub.s32 %s9, 1
      %s15 = ssub.s32 %s9, 2
      %s16 = sadd.s32 %s9, 1
      %s18 = sadd.s32 %s17, 1
      %p21 = scmp.eq.s32.totalorder %s9, 1
      %p22 = scmp.ne.s32.totalorder %s17, %s19
      %p23 = scmp.eq.s32.totalorder %s9, 0
      %p24 = por %p22, %p23
      %p25 = scmp.ne.s32.totalorder %s17, %s19
      %p26 = scmp.eq.s32.totalorder %s14, 1
      %p27 = por %p25, %p26
      %p28 = scmp.ne.s32.totalorder %s19, %s20
      %p29 = scmp.eq.s32.totalorder %s14, 0
      %p30 = por %p28, %p29
      %p31 = scmp.ne.s32.totalorder %s19, %s20
      %p32 = scmp.eq.s32.totalorder %s15, 1
      %p33 = por %p31, %p32
      %p35 = scmp.ne.s32.totalorder %s20, %s34
      %p36 = scmp.eq.s32.totalorder %s15, 0
      %p37 = por %p35, %p36
      %s39 = sadd.s32 %s38, 1
      %p42 = scmp.eq.s32.totalorder %s9, 1
      %p43 = scmp.ne.s32.totalorder %s38, %s40
      %p44 = scmp.eq.s32.totalorder %s9, 0
      %p45 = por %p43, %p44
      %p46 = scmp.ne.s32.totalorder %s38, %s40
      %p47 = scmp.eq.s32.totalorder %s14, 1
      %p48 = por %p46, %p47
      %p49 = scmp.ne.s32.totalorder %s40, %s41
      %p50 = scmp.eq.s32.totalorder %s14, 0
      %p51 = por %p49, %p50
      %p52 = scmp.ne.s32.totalorder %s40, %s41
      %p53 = scmp.eq.s32.totalorder %s15, 1
      %p54 = por %p52, %p53
      %p56 = scmp.ne.s32.totalorder %s41, %s55
      %p57 = scmp.eq.s32.totalorder %s15, 0
      %p58 = por %p56, %p57
      %p59 = scmp.le.s32.totalorder 1, %s9
      %p60 = scmp.lt.s32.totalorder %s9, 3
      %p61 = pnand %p59, %p60
      %p62 = pneg %p61
      // Predicated region
      $region9: #{tpu_custom_call.1} parent=5 // pred_check
        _
      $region10: #{tpu_custom_call.1} parent=5 // pred_check_branch
        %64 = sbr.rel (%p61) target = $region12
      $region11: #{tpu_custom_call.1} parent=5 // pred_region
        %s65 = ssub.s32 %s9, 1
        // Predicated region
        $region13: #{tpu_custom_call.1} parent=11 // pred_check
          %p66 = pneg %p30
        $region14: #{tpu_custom_call.1} parent=11 // pred_check_branch
          %68 = sbr.rel (%p66) target = $region16
        $region15: #{tpu_custom_call.1} parent=11 // pred_region
          %s70 = ssub.s32 128, 128
          %71 = vsyncadd [#allocation3], %s70
          %s73 = sshll.u32 [#allocation2], 4
          %s74 = int_to_ptr.vmem [resolvable:$true] %s73
          %76 = dma.hbm_to_vmem [thread:$0]  %s0, 128, %s74, [#allocation3]
        $region16: #{tpu_custom_call.1} parent=11 // pred_fallthru
          _
      $region12: #{tpu_custom_call.1} parent=5 // pred_fallthru
        _
      %p77 = scmp.lt.s32.totalorder %s9, 2
      // Predicated region
      $region17: #{tpu_custom_call.1} parent=5 // pred_check
        %p78 = pneg %p77
      $region18: #{tpu_custom_call.1} parent=5 // pred_check_branch
        %80 = sbr.rel (%p78) target = $region20
      $region19: #{tpu_custom_call.1} parent=5 // pred_region
        _
      $region20: #{tpu_custom_call.1} parent=5 // pred_fallthru
        _
      %p81 = scmp.le.s32.totalorder 1, %s9
      %p82 = scmp.lt.s32.totalorder %s9, 3
      %p83 = pnand %p81, %p82
      %p84 = pneg %p83
      // Predicated region
      $region21: #{tpu_custom_call.1} parent=5 // pred_check
        _
      $region22: #{tpu_custom_call.1} parent=5 // pred_check_branch
        %86 = sbr.rel (%p83) target = $region24
      $region23: #{tpu_custom_call.1} parent=5 // pred_region
        %s87 = ssub.s32 %s9, 1
        // Predicated region
        $region25: #{tpu_custom_call.1} parent=23 // pred_check
          %p88 = pneg %p30
        $region26: #{tpu_custom_call.1} parent=23 // pred_check_branch
          %90 = sbr.rel (%p88) target = $region28
        $region27: #{tpu_custom_call.1} parent=23 // pred_region
          %91 = dma.done [#allocation3], 128
        $region28: #{tpu_custom_call.1} parent=23 // pred_fallthru
          _
        %p92 = pneg %p30
        %p93 = pneg %p27
        %p94 = pneg %p51
        %p95 = pneg %p48
        %v96 = vld [vmem:[#allocation2] sm:$0xff]
        %97 = vst [vmem:[#allocation5] sm:$0xff] %v96
        // Predicated region
        $region29: #{tpu_custom_call.1} parent=23 // pred_check
          %p98 = pneg %p48
        $region30: #{tpu_custom_call.1} parent=23 // pred_check_branch
          %100 = sbr.rel (%p98) target = $region32
        $region31: #{tpu_custom_call.1} parent=23 // pred_region
          %s102 = ssub.s32 128, 128
          %103 = vsyncadd [#allocation4], %s102
          %s105 = sshll.u32 [#allocation5], 4
          %s106 = int_to_ptr.vmem [resolvable:$true] %s105
          %108 = dma.vmem_to_hbm [thread:$0]  %s106, 128, %s1, [#allocation4]
        $region32: #{tpu_custom_call.1} parent=23 // pred_fallthru
          _
        // Predicated region
        $region33: #{tpu_custom_call.1} parent=23 // pred_check
          %p109 = pneg %p48
        $region34: #{tpu_custom_call.1} parent=23 // pred_check_branch
          %111 = sbr.rel (%p109) target = $region36
        $region35: #{tpu_custom_call.1} parent=23 // pred_region
          %112 = dma.done [#allocation4], 128
        $region36: #{tpu_custom_call.1} parent=23 // pred_fallthru
          _
      $region24: #{tpu_custom_call.1} parent=5 // pred_fallthru
        _
      %p113 = scmp.le.s32.totalorder 2, %s9
      // Predicated region
      $region37: #{tpu_custom_call.1} parent=5 // pred_check
        %p114 = pneg %p113
      $region38: #{tpu_custom_call.1} parent=5 // pred_check_branch
        %116 = sbr.rel (%p114) target = $region40
      $region39: #{tpu_custom_call.1} parent=5 // pred_region
        %s117 = ssub.s32 %s9, 2
      $region40: #{tpu_custom_call.1} parent=5 // pred_fallthru
        _
    $region6: #{tpu_custom_call.1} parent=1 // loop_footer
      %s13 = sadd.s32 1, %s9
    $region7: #{tpu_custom_call.1} parent=1 // loop_footer_branch
      %8 = sbr.rel target = $region3
    $region8: #{tpu_custom_call.1} parent=1 // loop_exit
      _
    %118 = vsyncpa [#allocation3], 1
    %s119 = scalar_lea.sflag [#allocation3], 1
    %120 = vsyncpa %s119, 1
    %121 = vsyncpa [#allocation4], 1
    %s122 = scalar_lea.sflag [#allocation4], 1
    %123 = vsyncpa %s122, 1

// kernel: _generator_forward_impl.1
$region0: #{_generator_forward_impl.1}
  #allocation0 [shape = 'u32[]', space=smem, size = 0x4, offset = 0x4, fixed_abs, tag = 'smem constant byte address 0x4 - core index']
  #allocation1 [shape = 'u32[144,128]{1,0:T(1,128)}', space=vmem, size = 0x12000, scoped, tag = 'internal scratch']
  %s0 = inlined_call_operand.vmem [shape: bf16[64,128], index: 0, kind: input, shape index: {}]
  %s1 = inlined_call_operand.hbm [shape: bf16[128,256], index: 1, kind: input, shape index: {}]
  %s2 = inlined_call_operand.hbm [shape: f32[1,256], index: 2, kind: input, shape index: {}]
  %s3 = inlined_call_operand.hbm [shape: bf16[256,512], index: 3, kind: input, shape index: {}]
  %s4 = inlined_call_operand.hbm [shape: f32[1,512], index: 4, kind: input, shape index: {}]
  %s5 = inlined_call_operand.hbm [shape: bf16[512,1024], index: 5, kind: input, shape index: {}]
  %s6 = inlined_call_operand.hbm [shape: f32[1,1024], index: 6, kind: input, shape index: {}]
  %s7 = inlined_call_operand.hbm [shape: bf16[1024,896], index: 7, kind: input, shape index: {}]
  %s8 = inlined_call_operand.hbm [shape: f32[1,896], index: 8, kind: input, shape index: {}]
  %s9 = inlined_call_operand.vmem [shape: bf16[64,896], index: 9, kind: output, shape index: {}]
  %s10 = sld [smem:[#allocation0]]
  $region78: #{_generator_forward_impl.1} parent=0
    _
  %s12 = ssub.s32 1, %s10
  %s13 = scalar_select 0, %s12, %s10
  $region1: #{_generator_forward_impl.1} parent=0
    #allocation2 [shape = 'u8[65536]{0}', space=vmem, size = 0x10000, scoped, tag = 'input window, operand 1, single buffered']
    #allocation3 [shape = 's32[1]{0}', space=sflag, size = 0x4, scoped, tag = 'scoped memory for _generator_forward_impl.1']
    #allocation4 [shape = 'u8[1024]{0}', space=vmem, size = 0x400, scoped, tag = 'input window, operand 2, single buffered']
    #allocation5 [shape = 's32[1]{0}', space=sflag, size = 0x4, scoped, tag = 'scoped memory for _generator_forward_impl.1']
    #allocation6 [shape = 'u8[262144]{0}', space=vmem, size = 0x40000, scoped, tag = 'input window, operand 3, single buffered']
    #allocation7 [shape = 'u8[2048]{0}', space=vmem, size = 0x800, scoped, tag = 'input window, operand 4, single buffered']
    #allocation8 [shape = 's32[1]{0}', space=sflag, size = 0x4, scoped, tag = 'scoped memory for _generator_forward_impl.1']
    #allocation9 [shape = 'u8[1048576]{0}', space=vmem, size = 0x100000, scoped, tag = 'input window, operand 5, single buffered']
    #allocation10 [shape = 'u8[4096]{0}', space=vmem, size = 0x1000, scoped, tag = 'input window, operand 6, single buffered']
    #allocation11 [shape = 's32[1]{0}', space=sflag, size = 0x4, scoped, tag = 'scoped memory for _generator_forward_impl.1']
    #allocation12 [shape = 'u8[1835008]{0}', space=vmem, size = 0x1c0000, scoped, tag = 'input window, operand 7, single buffered']
    #allocation13 [shape = 'u8[3584]{0}', space=vmem, size = 0x1000, scoped, tag = 'input window, operand 8, single buffered']
    #allocation14 [shape = 's32[1]{0}', space=sflag, size = 0x4, scoped, tag = 'scoped memory for _generator_forward_impl.1']
    %14 = vsyncpa [#allocation3], 0
    %15 = vsyncpa [#allocation5], 0
    %16 = vsyncpa [#allocation8], 0
    %17 = vsyncpa [#allocation11], 0
    %18 = vsyncpa [#allocation14], 0
    // Predicated region
    $region2: #{_generator_forward_impl.1} parent=1 // pred_check
      _
    $region3: #{_generator_forward_impl.1} parent=1 // pred_check_branch
      %20 = sbr.rel (0) target = $region5
    $region4: #{_generator_forward_impl.1} parent=1 // pred_region
      _
    $region5: #{_generator_forward_impl.1} parent=1 // pred_fallthru
      _
    // Predicated region
    $region6: #{_generator_forward_impl.1} parent=1 // pred_check
      _
    $region7: #{_generator_forward_impl.1} parent=1 // pred_check_branch
      %22 = sbr.rel (0) target = $region9
    $region8: #{_generator_forward_impl.1} parent=1 // pred_region
      %s24 = ssub.s32 2048, 2048
      %25 = vsyncadd [#allocation3], %s24
      %s26 = sshll.u32 [#allocation2], 4
      %s27 = int_to_ptr.vmem [resolvable:$true] %s26
      %32 = dma.hbm_to_vmem [thread:$0]  %s1, 2048, %s27, [#allocation3], 128, 128, 8
    $region9: #{_generator_forward_impl.1} parent=1 // pred_fallthru
      _
    // Predicated region
    $region10: #{_generator_forward_impl.1} parent=1 // pred_check
      _
    $region11: #{_generator_forward_impl.1} parent=1 // pred_check_branch
      %34 = sbr.rel (0) target = $region13
    $region12: #{_generator_forward_impl.1} parent=1 // pred_region
      %s36 = ssub.s32 32, 32
      %37 = vsyncadd [#allocation5], %s36
      %s39 = sshll.u32 [#allocation4], 4
      %s40 = int_to_ptr.vmem [resolvable:$true] %s39
      %42 = dma.hbm_to_vmem [thread:$0]  %s2, 32, %s40, [#allocation5]
    $region13: #{_generator_forward_impl.1} parent=1 // pred_fallthru
      _
    // Predicated region
    $region14: #{_generator_forward_impl.1} parent=1 // pred_check
      _
    $region15: #{_generator_forward_impl.1} parent=1 // pred_check_branch
      %44 = sbr.rel (0) target = $region17
    $region16: #{_generator_forward_impl.1} parent=1 // pred_region
      %s46 = ssub.s32 8192, 8192
      %47 = vsyncadd [#allocation5], %s46
      %s48 = sshll.u32 [#allocation6], 4
      %s49 = int_to_ptr.vmem [resolvable:$true] %s48
      %54 = dma.hbm_to_vmem [thread:$0]  %s3, 8192, %s49, [#allocation5], 256, 256, 16
    $region17: #{_generator_forward_impl.1} parent=1 // pred_fallthru
      _
    // Predicated region
    $region18: #{_generator_forward_impl.1} parent=1 // pred_check
      _
    $region19: #{_generator_forward_impl.1} parent=1 // pred_check_branch
      %56 = sbr.rel (0) target = $region21
    $region20: #{_generator_forward_impl.1} parent=1 // pred_region
      %s58 = ssub.s32 64, 64
      %59 = vsyncadd [#allocation8], %s58
      %s61 = sshll.u32 [#allocation7], 4
      %s62 = int_to_ptr.vmem [resolvable:$true] %s61
      %64 = dma.hbm_to_vmem [thread:$0]  %s4, 64, %s62, [#allocation8]
    $region21: #{_generator_forward_impl.1} parent=1 // pred_fallthru
      _
    // Predicated region
    $region22: #{_generator_forward_impl.1} parent=1 // pred_check
      _
    $region23: #{_generator_forward_impl.1} parent=1 // pred_check_branch
      %66 = sbr.rel (0) target = $region25
    $region24: #{_generator_forward_impl.1} parent=1 // pred_region
      %s68 = ssub.s32 32768, 32768
      %69 = vsyncadd [#allocation8], %s68
      %s70 = sshll.u32 [#allocation9], 4
      %s71 = int_to_ptr.vmem [resolvable:$true] %s70
      %76 = dma.hbm_to_vmem [thread:$0]  %s5, 32768, %s71, [#allocation8], 512, 512, 32
    $region25: #{_generator_forward_impl.1} parent=1 // pred_fallthru
      _
    // Predicated region
    $region26: #{_generator_forward_impl.1} parent=1 // pred_check
      _
    $region27: #{_generator_forward_impl.1} parent=1 // pred_check_branch
      %78 = sbr.rel (0) target = $region29
    $region28: #{_generator_forward_impl.1} parent=1 // pred_region
      %s80 = ssub.s32 128, 128
      %81 = vsyncadd [#allocation11], %s80
      %s83 = sshll.u32 [#allocation10], 4
      %s84 = int_to_ptr.vmem [resolvable:$true] %s83
      %86 = dma.hbm_to_vmem [thread:$0]  %s6, 128, %s84, [#allocation11]
    $region29: #{_generator_forward_impl.1} parent=1 // pred_fallthru
      _
    // Predicated region
    $region30: #{_generator_forward_impl.1} parent=1 // pred_check
      _
    $region31: #{_generator_forward_impl.1} parent=1 // pred_check_branch
      %88 = sbr.rel (0) target = $region33
    $region32: #{_generator_forward_impl.1} parent=1 // pred_region
      %s90 = ssub.s32 57344, 57344
      %91 = vsyncadd [#allocation11], %s90
      %s92 = sshll.u32 [#allocation12], 4
      %s93 = int_to_ptr.vmem [resolvable:$true] %s92
      %98 = dma.hbm_to_vmem [thread:$0]  %s7, 57344, %s93, [#allocation11], 448, 448, 28
    $region33: #{_generator_forward_impl.1} parent=1 // pred_fallthru
      _
    // Predicated region
    $region34: #{_generator_forward_impl.1} parent=1 // pred_check
      _
    $region35: #{_generator_forward_impl.1} parent=1 // pred_check_branch
      %100 = sbr.rel (0) target = $region37
    $region36: #{_generator_forward_impl.1} parent=1 // pred_region
      %s102 = ssub.s32 112, 112
      %103 = vsyncadd [#allocation14], %s102
      %s105 = sshll.u32 [#allocation13], 4
      %s106 = int_to_ptr.vmem [resolvable:$true] %s105
      %108 = dma.hbm_to_vmem [thread:$0]  %s8, 112, %s106, [#allocation14]
    $region37: #{_generator_forward_impl.1} parent=1 // pred_fallthru
      _
    // Predicated region
    $region38: #{_generator_forward_impl.1} parent=1 // pred_check
      _
    $region39: #{_generator_forward_impl.1} parent=1 // pred_check_branch
      %110 = sbr.rel (0) target = $region41
    $region40: #{_generator_forward_impl.1} parent=1 // pred_region
      %111 = dma.done [#allocation3], 2048
    $region41: #{_generator_forward_impl.1} parent=1 // pred_fallthru
      _
    // Predicated region
    $region42: #{_generator_forward_impl.1} parent=1 // pred_check
      _
    $region43: #{_generator_forward_impl.1} parent=1 // pred_check_branch
      %113 = sbr.rel (0) target = $region45
    $region44: #{_generator_forward_impl.1} parent=1 // pred_region
      %114 = dma.done [#allocation5], 32
    $region45: #{_generator_forward_impl.1} parent=1 // pred_fallthru
      _
    // Predicated region
    $region46: #{_generator_forward_impl.1} parent=1 // pred_check
      _
    $region47: #{_generator_forward_impl.1} parent=1 // pred_check_branch
      %116 = sbr.rel (0) target = $region49
    $region48: #{_generator_forward_impl.1} parent=1 // pred_region
      %117 = dma.done [#allocation5], 8192
    $region49: #{_generator_forward_impl.1} parent=1 // pred_fallthru
      _
    // Predicated region
    $region50: #{_generator_forward_impl.1} parent=1 // pred_check
      _
    $region51: #{_generator_forward_impl.1} parent=1 // pred_check_branch
      %119 = sbr.rel (0) target = $region53
    $region52: #{_generator_forward_impl.1} parent=1 // pred_region
      %120 = dma.done [#allocation8], 64
    $region53: #{_generator_forward_impl.1} parent=1 // pred_fallthru
      _
    // Predicated region
    $region54: #{_generator_forward_impl.1} parent=1 // pred_check
      _
    $region55: #{_generator_forward_impl.1} parent=1 // pred_check_branch
      %122 = sbr.rel (0) target = $region57
    $region56: #{_generator_forward_impl.1} parent=1 // pred_region
      %123 = dma.done [#allocation8], 32768
    $region57: #{_generator_forward_impl.1} parent=1 // pred_fallthru
      _
    // Predicated region
    $region58: #{_generator_forward_impl.1} parent=1 // pred_check
      _
    $region59: #{_generator_forward_impl.1} parent=1 // pred_check_branch
      %125 = sbr.rel (0) target = $region61
    $region60: #{_generator_forward_impl.1} parent=1 // pred_region
      %126 = dma.done [#allocation11], 128
    $region61: #{_generator_forward_impl.1} parent=1 // pred_fallthru
      _
    // Predicated region
    $region62: #{_generator_forward_impl.1} parent=1 // pred_check
      _
    $region63: #{_generator_forward_impl.1} parent=1 // pred_check_branch
      %128 = sbr.rel (0) target = $region65
    $region64: #{_generator_forward_impl.1} parent=1 // pred_region
      %129 = dma.done [#allocation11], 57344
    $region65: #{_generator_forward_impl.1} parent=1 // pred_fallthru
      _
    // Predicated region
    $region66: #{_generator_forward_impl.1} parent=1 // pred_check
      _
    $region67: #{_generator_forward_impl.1} parent=1 // pred_check_branch
      %131 = sbr.rel (0) target = $region69
    $region68: #{_generator_forward_impl.1} parent=1 // pred_region
      %132 = dma.done [#allocation14], 112
    $region69: #{_generator_forward_impl.1} parent=1 // pred_fallthru
      _
    %v134 = vld [vmem:[%s0] sm:$0xf]
    %v135 = vld [vmem:[%s0 + $0x4] sm:$0xf]
    %v136 = vld [vmem:[%s0 + $0x8] sm:$0xf]
    %v137 = vld [vmem:[%s0 + $0xc] sm:$0xf]
    %v138 = vld [vmem:[%s0 + $0x10] sm:$0xf]
    %v139 = vld [vmem:[%s0 + $0x14] sm:$0xf]
    %v140 = vld [vmem:[%s0 + $0x18] sm:$0xf]
    %v141 = vld [vmem:[%s0 + $0x1c] sm:$0xf]
    %v142 = vld [vmem:[#allocation2] sm:$0xff]
    %v143 = vld [vmem:[#allocation2 + $0x8] sm:$0xff]
    %v144 = vld [vmem:[#allocation2 + $0x10] sm:$0xff]
    %v145 = vld [vmem:[#allocation2 + $0x18] sm:$0xff]
    %v146 = vld [vmem:[#allocation2 + $0x20] sm:$0xff]
    %v147 = vld [vmem:[#allocation2 + $0x28] sm:$0xff]
    %v148 = vld [vmem:[#allocation2 + $0x30] sm:$0xff]
    %v149 = vld [vmem:[#allocation2 + $0x38] sm:$0xff]
    %v150 = vld [vmem:[#allocation2 + $0x40] sm:$0xff]
    %v151 = vld [vmem:[#allocation2 + $0x48] sm:$0xff]
    %v152 = vld [vmem:[#allocation2 + $0x50] sm:$0xff]
    %v153 = vld [vmem:[#allocation2 + $0x58] sm:$0xff]
    %v154 = vld [vmem:[#allocation2 + $0x60] sm:$0xff]
    %v155 = vld [vmem:[#allocation2 + $0x68] sm:$0xff]
    %v156 = vld [vmem:[#allocation2 + $0x70] sm:$0xff]
    %v157 = vld [vmem:[#allocation2 + $0x78] sm:$0xff]
    %v158 = vld [vmem:[#allocation4] sm:$0x3]
    %v160 = vlaneseq
    %v161 = vshrl.u32 %v160, 7
    %v162 = vsub.s32 0, %v161
    %v163 = vrot.slane %v158, %v162
    %v164 = vlaneseq
    %v165 = vshrl.u32 %v164, 7
    %v166 = vsub.s32 1, %v165
    %v167 = vrot.slane %v158, %v166
    %v178 = vunpack.c.l.b16 %v134
    %v179 = vunpack.c.l.b16 %v135
    %v180 = vunpack.c.l.b16 %v136
    %v181 = vunpack.c.l.b16 %v137
    %v182 = vunpack.c.l.b16 %v138
    %v183 = vunpack.c.l.b16 %v139
    %v184 = vunpack.c.l.b16 %v140
    %v185 = vunpack.c.l.b16 %v141
    %v186 = vpack.c.b16 %v179, %v178
    %v187 = vpack.c.b16 %v181, %v180
    %v188 = vpack.c.b16 %v183, %v182
    %v189 = vpack.c.b16 %v185, %v184
    %v210 = vunpack.c.l.b16 %v142
    %v211 = vunpack.c.h.b16 %v142
    %v212 = vunpack.c.l.b16 %v143
    %v213 = vunpack.c.h.b16 %v143
    %v214 = vunpack.c.l.b16 %v144
    %v215 = vunpack.c.h.b16 %v144
    %v216 = vunpack.c.l.b16 %v145
    %v217 = vunpack.c.h.b16 %v145
    %v218 = vunpack.c.l.b16 %v146
    %v219 = vunpack.c.h.b16 %v146
    %v220 = vunpack.c.l.b16 %v147
    %v221 = vunpack.c.h.b16 %v147
    %v222 = vunpack.c.l.b16 %v148
    %v223 = vunpack.c.h.b16 %v148
    %v224 = vunpack.c.l.b16 %v149
    %v225 = vunpack.c.h.b16 %v149
    %v226 = vunpack.c.l.b16 %v150
    %v227 = vunpack.c.h.b16 %v150
    %v228 = vunpack.c.l.b16 %v151
    %v229 = vunpack.c.h.b16 %v151
    %v230 = vunpack.c.l.b16 %v152
    %v231 = vunpack.c.h.b16 %v152
    %v232 = vunpack.c.l.b16 %v153
    %v233 = vunpack.c.h.b16 %v153
    %v234 = vunpack.c.l.b16 %v154
    %v235 = vunpack.c.h.b16 %v154
    %v236 = vunpack.c.l.b16 %v155
    %v237 = vunpack.c.h.b16 %v155
    %v238 = vunpack.c.l.b16 %v156
    %v239 = vunpack.c.h.b16 %v156
    %v240 = vunpack.c.l.b16 %v157
    %v241 = vunpack.c.h.b16 %v157
    %v242 = vpack.c.b16 %v212, %v210
    %v243 = vpack.c.b16 %v213, %v211
    %v244 = vpack.c.b16 %v216, %v214
    %v245 = vpack.c.b16 %v217, %v215
    %v246 = vpack.c.b16 %v220, %v218
    %v247 = vpack.c.b16 %v221, %v219
    %v248 = vpack.c.b16 %v224, %v222
    %v249 = vpack.c.b16 %v225, %v223
    %v250 = vpack.c.b16 %v228, %v226
    %v251 = vpack.c.b16 %v229, %v227
    %v252 = vpack.c.b16 %v232, %v230
    %v253 = vpack.c.b16 %v233, %v231
    %v254 = vpack.c.b16 %v236, %v234
    %v255 = vpack.c.b16 %v237, %v235
    %v256 = vpack.c.b16 %v240, %v238
    %v257 = vpack.c.b16 %v241, %v239
    %274 = vmatprep.subr.bf16.mxu0 %v243
    %275 = vmatpush1.bf16.msra.mxu0 %v242
    %276 = vmatprep.subr.bf16.mxu0 %v245
    %277 = vmatpush1.bf16.msra.mxu0 %v244
    %278 = vmatprep.subr.bf16.mxu0 %v247
    %279 = vmatpush1.bf16.msra.mxu0 %v246
    %280 = vmatprep.subr.bf16.mxu0 %v249
    %281 = vmatpush1.bf16.msra.mxu0 %v248
    %282 = vmatprep.subr.bf16.mxu0 %v251
    %283 = vmatpush1.bf16.msra.mxu0 %v250
    %284 = vmatprep.subr.bf16.mxu0 %v253
    %285 = vmatpush1.bf16.msra.mxu0 %v252
    %286 = vmatprep.subr.bf16.mxu0 %v255
    %287 = vmatpush1.bf16.msra.mxu0 %v254
    %288 = vmatprep.subr.bf16.mxu0 %v257
    %289 = vmatpush1.bf16.msra.mxu0 %v256
    %290 = vmatprep.subr.bf16.mxu0 0
    %291 = vmatpush1.bf16.msra.mxu0 0
    %292 = vmatprep.subr.bf16.mxu0 0
    %293 = vmatpush1.bf16.msra.mxu0 0
    %294 = vmatprep.subr.bf16.mxu0 0
    %295 = vmatpush1.bf16.msra.mxu0 0
    %296 = vmatprep.subr.bf16.mxu0 0
    %297 = vmatpush1.bf16.msra.mxu0 0
    %298 = vmatprep.subr.bf16.mxu0 0
    %299 = vmatpush1.bf16.msra.mxu0 0
    %300 = vmatprep.subr.bf16.mxu0 0
    %301 = vmatpush1.bf16.msra.mxu0 0
    %302 = vmatprep.subr.bf16.mxu0 0
    %303 = vmatpush1.bf16.msra.mxu0 0
    %304 = vmatprep.subr.bf16.mxu0 0
    %305 = vmatpush1.bf16.msra.mxu0 0
    %306 = vmatprep.mubr.bf16.mxu0 0
    %307 = vmatmul.mubr.bf16.gmra.mrb[0].mxu0 %v186
    %v308 = vpop.f32.mrb[0].mxu0
    %v309 = vadd.f32 %v163, %v308
    %v310 = vpop.f32.mrb[0].mxu0
    %v311 = vadd.f32 %v167, %v310
    %v312 = vpop.f32.mrb[0].mxu0
    %v313 = vadd.f32 %v163, %v312
    %v314 = vpop.f32.mrb[0].mxu0
    %v315 = vadd.f32 %v167, %v314
    %316 = vmatprep.mubr.bf16.mxu0 0
    %317 = vmatmul.mubr.bf16.gmra.mrb[0].mxu0 %v187
    %v318 = vpop.f32.mrb[0].mxu0
    %v319 = vadd.f32 %v163, %v318
    %v320 = vpop.f32.mrb[0].mxu0
    %v321 = vadd.f32 %v167, %v320
    %v322 = vpop.f32.mrb[0].mxu0
    %v323 = vadd.f32 %v163, %v322
    %v324 = vpop.f32.mrb[0].mxu0
    %v325 = vadd.f32 %v167, %v324
    %326 = vmatprep.mubr.bf16.mxu0 0
    %327 = vmatmul.mubr.bf16.gmra.mrb[0].mxu0 %v188
    %v328 = vpop.f32.mrb[0].mxu0
    %v329 = vadd.f32 %v163, %v328
    %v330 = vpop.f32.mrb[0].mxu0
    %v331 = vadd.f32 %v167, %v330
    %v332 = vpop.f32.mrb[0].mxu0
    %v333 = vadd.f32 %v163, %v332
    %v334 = vpop.f32.mrb[0].mxu0
    %v335 = vadd.f32 %v167, %v334
    %336 = vmatprep.mubr.bf16.mxu0 0
    %337 = vmatmul.mubr.bf16.gmra.mrb[0].mxu0 %v189
    %v338 = vpop.f32.mrb[0].mxu0
    %v339 = vadd.f32 %v163, %v338
    %v340 = vpop.f32.mrb[0].mxu0
    %v341 = vadd.f32 %v167, %v340
    %v342 = vpop.f32.mrb[0].mxu0
    %v343 = vadd.f32 %v163, %v342
    %v344 = vpop.f32.mrb[0].mxu0
    %v345 = vadd.f32 %v167, %v344
    %346 = vdwg.mxu0
    %vm347 = vcmp.gt.f32.partialorder %v309, 0.0
    %vm348 = vcmp.gt.f32.partialorder %v311, 0.0
    %vm349 = vcmp.gt.f32.partialorder %v313, 0.0
    %vm350 = vcmp.gt.f32.partialorder %v315, 0.0
    %vm351 = vcmp.gt.f32.partialorder %v319, 0.0
    %vm352 = vcmp.gt.f32.partialorder %v321, 0.0
    %vm353 = vcmp.gt.f32.partialorder %v323, 0.0
    %vm354 = vcmp.gt.f32.partialorder %v325, 0.0
    %vm355 = vcmp.gt.f32.partialorder %v329, 0.0
    %vm356 = vcmp.gt.f32.partialorder %v331, 0.0
    %vm357 = vcmp.gt.f32.partialorder %v333, 0.0
    %vm358 = vcmp.gt.f32.partialorder %v335, 0.0
    %vm359 = vcmp.gt.f32.partialorder %v339, 0.0
    %vm360 = vcmp.gt.f32.partialorder %v341, 0.0
    %vm361 = vcmp.gt.f32.partialorder %v343, 0.0
    %vm362 = vcmp.gt.f32.partialorder %v345, 0.0
    %v363 = vmul.f32 %v309, 0.2
    %v364 = vmul.f32 %v311, 0.2
    %v365 = vmul.f32 %v313, 0.2
    %v366 = vmul.f32 %v315, 0.2
    %v367 = vmul.f32 %v319, 0.2
    %v368 = vmul.f32 %v321, 0.2
    %v369 = vmul.f32 %v323, 0.2
    %v370 = vmul.f32 %v325, 0.2
    %v371 = vmul.f32 %v329, 0.2
    %v372 = vmul.f32 %v331, 0.2
    %v373 = vmul.f32 %v333, 0.2
    %v374 = vmul.f32 %v335, 0.2
    %v375 = vmul.f32 %v339, 0.2
    %v376 = vmul.f32 %v341, 0.2
    %v377 = vmul.f32 %v343, 0.2
    %v378 = vmul.f32 %v345, 0.2
    %v379 = vsel %vm347, %v309, %v363
    %v380 = vsel %vm348, %v311, %v364
    %v381 = vsel %vm349, %v313, %v365
    %v382 = vsel %vm350, %v315, %v366
    %v383 = vsel %vm351, %v319, %v367
    %v384 = vsel %vm352, %v321, %v368
    %v385 = vsel %vm353, %v323, %v369
    %v386 = vsel %vm354, %v325, %v370
    %v387 = vsel %vm355, %v329, %v371
    %v388 = vsel %vm356, %v331, %v372
    %v389 = vsel %vm357, %v333, %v373
    %v390 = vsel %vm358, %v335, %v374
    %v391 = vsel %vm359, %v339, %v375
    %v392 = vsel %vm360, %v341, %v376
    %v393 = vsel %vm361, %v343, %v377
    %v394 = vsel %vm362, %v345, %v378
    %v395 = vpack.c.bf16 %v381, %v379
    %v396 = vpack.c.bf16 %v382, %v380
    %v397 = vpack.c.bf16 %v385, %v383
    %v398 = vpack.c.bf16 %v386, %v384
    %v399 = vpack.c.bf16 %v389, %v387
    %v400 = vpack.c.bf16 %v390, %v388
    %v401 = vpack.c.bf16 %v393, %v391
    %v402 = vpack.c.bf16 %v394, %v392
    %v403 = vld [vmem:[#allocation6] sm:$0xff]
    %v404 = vld [vmem:[#allocation6 + $0x8] sm:$0xff]
    %v405 = vld [vmem:[#allocation6 + $0x10] sm:$0xff]
    %v406 = vld [vmem:[#allocation6 + $0x18] sm:$0xff]
    %v407 = vld [vmem:[#allocation6 + $0x20] sm:$0xff]
    %v408 = vld [vmem:[#allocation6 + $0x28] sm:$0xff]
    %v409 = vld [vmem:[#allocation6 + $0x30] sm:$0xff]
    %v410 = vld [vmem:[#allocation6 + $0x38] sm:$0xff]
    %v411 = vld [vmem:[#allocation6 + $0x40] sm:$0xff]
    %v412 = vld [vmem:[#allocation6 + $0x48] sm:$0xff]
    %v413 = vld [vmem:[#allocation6 + $0x50] sm:$0xff]
    %v414 = vld [vmem:[#allocation6 + $0x58] sm:$0xff]
    %v415 = vld [vmem:[#allocation6 + $0x60] sm:$0xff]
    %v416 = vld [vmem:[#allocation6 + $0x68] sm:$0xff]
    %v417 = vld [vmem:[#allocation6 + $0x70] sm:$0xff]
    %v418 = vld [vmem:[#allocation6 + $0x78] sm:$0xff]
    %v419 = vld [vmem:[#allocation6 + $0x80] sm:$0xff]
    %v420 = vld [vmem:[#allocation6 + $0x88] sm:$0xff]
    %v421 = vld [vmem:[#allocation6 + $0x90] sm:$0xff]
    %v422 = vld [vmem:[#allocation6 + $0x98] sm:$0xff]
    %v423 = vld [vmem:[#allocation6 + $0xa0] sm:$0xff]
    %v424 = vld [vmem:[#allocation6 + $0xa8] sm:$0xff]
    %v425 = vld [vmem:[#allocation6 + $0xb0] sm:$0xff]
    %v426 = vld [vmem:[#allocation6 + $0xb8] sm:$0xff]
    %v427 = vld [vmem:[#allocation6 + $0xc0] sm:$0xff]
    %v428 = vld [vmem:[#allocation6 + $0xc8] sm:$0xff]
    %v429 = vld [vmem:[#allocation6 + $0xd0] sm:$0xff]
    %v430 = vld [vmem:[#allocation6 + $0xd8] sm:$0xff]
    %v431 = vld [vmem:[#allocation6 + $0xe0] sm:$0xff]
    %v432 = vld [vmem:[#allocation6 + $0xe8] sm:$0xff]
    %v433 = vld [vmem:[#allocation6 + $0xf0] sm:$0xff]
    %v434 = vld [vmem:[#allocation6 + $0xf8] sm:$0xff]
    %v435 = vld [vmem:[#allocation6 + $0x100] sm:$0xff]
    %v436 = vld [vmem:[#allocation6 + $0x108] sm:$0xff]
    %v437 = vld [vmem:[#allocation6 + $0x110] sm:$0xff]
    %v438 = vld [vmem:[#allocation6 + $0x118] sm:$0xff]
    %v439 = vld [vmem:[#allocation6 + $0x120] sm:$0xff]
    %v440 = vld [vmem:[#allocation6 + $0x128] sm:$0xff]
    %v441 = vld [vmem:[#allocation6 + $0x130] sm:$0xff]
    %v442 = vld [vmem:[#allocation6 + $0x138] sm:$0xff]
    %v443 = vld [vmem:[#allocation6 + $0x140] sm:$0xff]
    %v444 = vld [vmem:[#allocation6 + $0x148] sm:$0xff]
    %v445 = vld [vmem:[#allocation6 + $0x150] sm:$0xff]
    %v446 = vld [vmem:[#allocation6 + $0x158] sm:$0xff]
    %v447 = vld [vmem:[#allocation6 + $0x160] sm:$0xff]
    %v448 = vld [vmem:[#allocation6 + $0x168] sm:$0xff]
    %v449 = vld [vmem:[#allocation6 + $0x170] sm:$0xff]
    %v450 = vld [vmem:[#allocation6 + $0x178] sm:$0xff]
    %v451 = vld [vmem:[#allocation6 + $0x180] sm:$0xff]
    %v452 = vld [vmem:[#allocation6 + $0x188] sm:$0xff]
    %v453 = vld [vmem:[#allocation6 + $0x190] sm:$0xff]
    %v454 = vld [vmem:[#allocation6 + $0x198] sm:$0xff]
    %v455 = vld [vmem:[#allocation6 + $0x1a0] sm:$0xff]
    %v456 = vld [vmem:[#allocation6 + $0x1a8] sm:$0xff]
    %v457 = vld [vmem:[#allocation6 + $0x1b0] sm:$0xff]
    %v458 = vld [vmem:[#allocation6 + $0x1b8] sm:$0xff]
    %v459 = vld [vmem:[#allocation6 + $0x1c0] sm:$0xff]
    %v460 = vld [vmem:[#allocation6 + $0x1c8] sm:$0xff]
    %v461 = vld [vmem:[#allocation6 + $0x1d0] sm:$0xff]
    %v462 = vld [vmem:[#allocation6 + $0x1d8] sm:$0xff]
    %v463 = vld [vmem:[#allocation6 + $0x1e0] sm:$0xff]
    %v464 = vld [vmem:[#allocation6 + $0x1e8] sm:$0xff]
    %v465 = vld [vmem:[#allocation6 + $0x1f0] sm:$0xff]
    %v466 = vld [vmem:[#allocation6 + $0x1f8] sm:$0xff]
    %v467 = vld [vmem:[#allocation7] sm:$0xf]
    %v469 = vlaneseq
    %v470 = vshrl.u32 %v469, 7
    %v471 = vsub.s32 0, %v470
    %v472 = vrot.slane %v467, %v471
    %v473 = vlaneseq
    %v474 = vshrl.u32 %v473, 7
    %v475 = vsub.s32 1, %v474
    %v476 = vrot.slane %v467, %v475
    %v477 = vlaneseq
    %v478 = vshrl.u32 %v477, 7
    %v479 = vsub.s32 2, %v478
    %v480 = vrot.slane %v467, %v479
    %v481 = vlaneseq
    %v482 = vshrl.u32 %v481, 7
    %v483 = vsub.s32 3, %v482
    %v484 = vrot.slane %v467, %v483
    %v553 = vunpack.c.l.b16 %v403
    %v554 = vunpack.c.h.b16 %v403
    %v555 = vunpack.c.l.b16 %v404
    %v556 = vunpack.c.h.b16 %v404
    %v557 = vunpack.c.l.b16 %v405
    %v558 = vunpack.c.h.b16 %v405
    %v559 = vunpack.c.l.b16 %v406
    %v560 = vunpack.c.h.b16 %v406
    %v561 = vunpack.c.l.b16 %v407
    %v562 = vunpack.c.h.b16 %v407
    %v563 = vunpack.c.l.b16 %v408
    %v564 = vunpack.c.h.b16 %v408
    %v565 = vunpack.c.l.b16 %v409
    %v566 = vunpack.c.h.b16 %v409
    %v567 = vunpack.c.l.b16 %v410
    %v568 = vunpack.c.h.b16 %v410
    %v569 = vunpack.c.l.b16 %v411
    %v570 = vunpack.c.h.b16 %v411
    %v571 = vunpack.c.l.b16 %v412
    %v572 = vunpack.c.h.b16 %v412
    %v573 = vunpack.c.l.b16 %v413
    %v574 = vunpack.c.h.b16 %v413
    %v575 = vunpack.c.l.b16 %v414
    %v576 = vunpack.c.h.b16 %v414
    %v577 = vunpack.c.l.b16 %v415
    %v578 = vunpack.c.h.b16 %v415
    %v579 = vunpack.c.l.b16 %v416
    %v580 = vunpack.c.h.b16 %v416
    %v581 = vunpack.c.l.b16 %v417
    %v582 = vunpack.c.h.b16 %v417
    %v583 = vunpack.c.l.b16 %v418
    %v584 = vunpack.c.h.b16 %v418
    %v585 = vunpack.c.l.b16 %v419
    %v586 = vunpack.c.h.b16 %v419
    %v587 = vunpack.c.l.b16 %v420
    %v588 = vunpack.c.h.b16 %v420
    %v589 = vunpack.c.l.b16 %v421
    %v590 = vunpack.c.h.b16 %v421
    %v591 = vunpack.c.l.b16 %v422
    %v592 = vunpack.c.h.b16 %v422
    %v593 = vunpack.c.l.b16 %v423
    %v594 = vunpack.c.h.b16 %v423
    %v595 = vunpack.c.l.b16 %v424
    %v596 = vunpack.c.h.b16 %v424
    %v597 = vunpack.c.l.b16 %v425
    %v598 = vunpack.c.h.b16 %v425
    %v599 = vunpack.c.l.b16 %v426
    %v600 = vunpack.c.h.b16 %v426
    %v601 = vunpack.c.l.b16 %v427
    %v602 = vunpack.c.h.b16 %v427
    %v603 = vunpack.c.l.b16 %v428
    %v604 = vunpack.c.h.b16 %v428
    %v605 = vunpack.c.l.b16 %v429
    %v606 = vunpack.c.h.b16 %v429
    %v607 = vunpack.c.l.b16 %v430
    %v608 = vunpack.c.h.b16 %v430
    %v609 = vunpack.c.l.b16 %v431
    %v610 = vunpack.c.h.b16 %v431
    %v611 = vunpack.c.l.b16 %v432
    %v612 = vunpack.c.h.b16 %v432
    %v613 = vunpack.c.l.b16 %v433
    %v614 = vunpack.c.h.b16 %v433
    %v615 = vunpack.c.l.b16 %v434
    %v616 = vunpack.c.h.b16 %v434
    %v617 = vunpack.c.l.b16 %v435
    %v618 = vunpack.c.h.b16 %v435
    %v619 = vunpack.c.l.b16 %v436
    %v620 = vunpack.c.h.b16 %v436
    %v621 = vunpack.c.l.b16 %v437
    %v622 = vunpack.c.h.b16 %v437
    %v623 = vunpack.c.l.b16 %v438
    %v624 = vunpack.c.h.b16 %v438
    %v625 = vunpack.c.l.b16 %v439
    %v626 = vunpack.c.h.b16 %v439
    %v627 = vunpack.c.l.b16 %v440
    %v628 = vunpack.c.h.b16 %v440
    %v629 = vunpack.c.l.b16 %v441
    %v630 = vunpack.c.h.b16 %v441
    %v631 = vunpack.c.l.b16 %v442
    %v632 = vunpack.c.h.b16 %v442
    %v633 = vunpack.c.l.b16 %v443
    %v634 = vunpack.c.h.b16 %v443
    %v635 = vunpack.c.l.b16 %v444
    %v636 = vunpack.c.h.b16 %v444
    %v637 = vunpack.c.l.b16 %v445
    %v638 = vunpack.c.h.b16 %v445
    %v639 = vunpack.c.l.b16 %v446
    %v640 = vunpack.c.h.b16 %v446
    %v641 = vunpack.c.l.b16 %v447
    %v642 = vunpack.c.h.b16 %v447
    %v643 = vunpack.c.l.b16 %v448
    %v644 = vunpack.c.h.b16 %v448
    %v645 = vunpack.c.l.b16 %v449
    %v646 = vunpack.c.h.b16 %v449
    %v647 = vunpack.c.l.b16 %v450
    %v648 = vunpack.c.h.b16 %v450
    %v649 = vunpack.c.l.b16 %v451
    %v650 = vunpack.c.h.b16 %v451
    %v651 = vunpack.c.l.b16 %v452
    %v652 = vunpack.c.h.b16 %v452
    %v653 = vunpack.c.l.b16 %v453
    %v654 = vunpack.c.h.b16 %v453
    %v655 = vunpack.c.l.b16 %v454
    %v656 = vunpack.c.h.b16 %v454
    %v657 = vunpack.c.l.b16 %v455
    %v658 = vunpack.c.h.b16 %v455
    %v659 = vunpack.c.l.b16 %v456
    %v660 = vunpack.c.h.b16 %v456
    %v661 = vunpack.c.l.b16 %v457
    %v662 = vunpack.c.h.b16 %v457
    %v663 = vunpack.c.l.b16 %v458
    %v664 = vunpack.c.h.b16 %v458
    %v665 = vunpack.c.l.b16 %v459
    %v666 = vunpack.c.h.b16 %v459
    %v667 = vunpack.c.l.b16 %v460
    %v668 = vunpack.c.h.b16 %v460
    %v669 = vunpack.c.l.b16 %v461
    %v670 = vunpack.c.h.b16 %v461
    %v671 = vunpack.c.l.b16 %v462
    %v672 = vunpack.c.h.b16 %v462
    %v673 = vunpack.c.l.b16 %v463
    %v674 = vunpack.c.h.b16 %v463
    %v675 = vunpack.c.l.b16 %v464
    %v676 = vunpack.c.h.b16 %v464
    %v677 = vunpack.c.l.b16 %v465
    %v678 = vunpack.c.h.b16 %v465
    %v679 = vunpack.c.l.b16 %v466
    %v680 = vunpack.c.h.b16 %v466
    %v681 = vpack.c.b16 %v557, %v553
    %v682 = vpack.c.b16 %v558, %v554
    %v683 = vpack.c.b16 %v559, %v555
    %v684 = vpack.c.b16 %v560, %v556
    %v685 = vpack.c.b16 %v565, %v561
    %v686 = vpack.c.b16 %v566, %v562
    %v687 = vpack.c.b16 %v567, %v563
    %v688 = vpack.c.b16 %v568, %v564
    %v689 = vpack.c.b16 %v573, %v569
    %v690 = vpack.c.b16 %v574, %v570
    %v691 = vpack.c.b16 %v575, %v571
    %v692 = vpack.c.b16 %v576, %v572
    %v693 = vpack.c.b16 %v581, %v577
    %v694 = vpack.c.b16 %v582, %v578
    %v695 = vpack.c.b16 %v583, %v579
    %v696 = vpack.c.b16 %v584, %v580
    %v697 = vpack.c.b16 %v589, %v585
    %v698 = vpack.c.b16 %v590, %v586
    %v699 = vpack.c.b16 %v591, %v587
    %v700 = vpack.c.b16 %v592, %v588
    %v701 = vpack.c.b16 %v597, %v593
    %v702 = vpack.c.b16 %v598, %v594
    %v703 = vpack.c.b16 %v599, %v595
    %v704 = vpack.c.b16 %v600, %v596
    %v705 = vpack.c.b16 %v605, %v601
    %v706 = vpack.c.b16 %v606, %v602
    %v707 = vpack.c.b16 %v607, %v603
    %v708 = vpack.c.b16 %v608, %v604
    %v709 = vpack.c.b16 %v613, %v609
    %v710 = vpack.c.b16 %v614, %v610
    %v711 = vpack.c.b16 %v615, %v611
    %v712 = vpack.c.b16 %v616, %v612
    %v713 = vpack.c.b16 %v621, %v617
    %v714 = vpack.c.b16 %v622, %v618
    %v715 = vpack.c.b16 %v623, %v619
    %v716 = vpack.c.b16 %v624, %v620
    %v717 = vpack.c.b16 %v629, %v625
    %v718 = vpack.c.b16 %v630, %v626
    %v719 = vpack.c.b16 %v631, %v627
    %v720 = vpack.c.b16 %v632, %v628
    %v721 = vpack.c.b16 %v637, %v633
    %v722 = vpack.c.b16 %v638, %v634
    %v723 = vpack.c.b16 %v639, %v635
    %v724 = vpack.c.b16 %v640, %v636
    %v725 = vpack.c.b16 %v645, %v641
    %v726 = vpack.c.b16 %v646, %v642
    %v727 = vpack.c.b16 %v647, %v643
    %v728 = vpack.c.b16 %v648, %v644
    %v729 = vpack.c.b16 %v653, %v649
    %v730 = vpack.c.b16 %v654, %v650
    %v731 = vpack.c.b16 %v655, %v651
    %v732 = vpack.c.b16 %v656, %v652
    %v733 = vpack.c.b16 %v661, %v657
    %v734 = vpack.c.b16 %v662, %v658
    %v735 = vpack.c.b16 %v663, %v659
    %v736 = vpack.c.b16 %v664, %v660
    %v737 = vpack.c.b16 %v669, %v665
    %v738 = vpack.c.b16 %v670, %v666
    %v739 = vpack.c.b16 %v671, %v667
    %v740 = vpack.c.b16 %v672, %v668
    %v741 = vpack.c.b16 %v677, %v673
    %v742 = vpack.c.b16 %v678, %v674
    %v743 = vpack.c.b16 %v679, %v675
    %v744 = vpack.c.b16 %v680, %v676
    %809 = vmatprep.subr.bf16.mxu0 %v682
    %810 = vmatpush1.bf16.msra.mxu0 %v681
    %811 = vmatprep.subr.bf16.mxu0 %v686
    %812 = vmatpush1.bf16.msra.mxu0 %v685
    %813 = vmatprep.subr.bf16.mxu0 %v690
    %814 = vmatpush1.bf16.msra.mxu0 %v689
    %815 = vmatprep.subr.bf16.mxu0 %v694
    %816 = vmatpush1.bf16.msra.mxu0 %v693
    %817 = vmatprep.subr.bf16.mxu0 %v698
    %818 = vmatpush1.bf16.msra.mxu0 %v697
    %819 = vmatprep.subr.bf16.mxu0 %v702
    %820 = vmatpush1.bf16.msra.mxu0 %v701
    %821 = vmatprep.subr.bf16.mxu0 %v706
    %822 = vmatpush1.bf16.msra.mxu0 %v705
    %823 = vmatprep.subr.bf16.mxu0 %v710
    %824 = vmatpush1.bf16.msra.mxu0 %v709
    %825 = vmatprep.subr.bf16.mxu0 %v714
    %826 = vmatpush1.bf16.msra.mxu0 %v713
    %827 = vmatprep.subr.bf16.mxu0 %v718
    %828 = vmatpush1.bf16.msra.mxu0 %v717
    %829 = vmatprep.subr.bf16.mxu0 %v722
    %830 = vmatpush1.bf16.msra.mxu0 %v721
    %831 = vmatprep.subr.bf16.mxu0 %v726
    %832 = vmatpush1.bf16.msra.mxu0 %v725
    %833 = vmatprep.subr.bf16.mxu0 %v730
    %834 = vmatpush1.bf16.msra.mxu0 %v729
    %835 = vmatprep.subr.bf16.mxu0 %v734
    %836 = vmatpush1.bf16.msra.mxu0 %v733
    %837 = vmatprep.subr.bf16.mxu0 %v738
    %838 = vmatpush1.bf16.msra.mxu0 %v737
    %839 = vmatprep.subr.bf16.mxu0 %v742
    %840 = vmatpush1.bf16.msra.mxu0 %v741
    %841 = vmatprep.mubr.bf16.mxu0 %v396
    %842 = vmatmul.mubr.bf16.gmra.mrb[0].mxu0 %v395
    %v843 = vpop.f32.mrb[0].mxu0
    %v844 = vadd.f32 %v472, %v843
    %v845 = vpop.f32.mrb[0].mxu0
    %v846 = vadd.f32 %v476, %v845
    %v847 = vpop.f32.mrb[0].mxu0
    %v848 = vadd.f32 %v472, %v847
    %v849 = vpop.f32.mrb[0].mxu0
    %v850 = vadd.f32 %v476, %v849
    %851 = vmatprep.mubr.bf16.mxu0 %v398
    %852 = vmatmul.mubr.bf16.gmra.mrb[0].mxu0 %v397
    %v853 = vpop.f32.mrb[0].mxu0
    %v854 = vadd.f32 %v472, %v853
    %v855 = vpop.f32.mrb[0].mxu0
    %v856 = vadd.f32 %v476, %v855
    %v857 = vpop.f32.mrb[0].mxu0
    %v858 = vadd.f32 %v472, %v857
    %v859 = vpop.f32.mrb[0].mxu0
    %v860 = vadd.f32 %v476, %v859
    %861 = vmatprep.mubr.bf16.mxu0 %v400
    %862 = vmatmul.mubr.bf16.gmra.mrb[0].mxu0 %v399
    %v863 = vpop.f32.mrb[0].mxu0
    %v864 = vadd.f32 %v472, %v863
    %v865 = vpop.f32.mrb[0].mxu0
    %v866 = vadd.f32 %v476, %v865
    %v867 = vpop.f32.mrb[0].mxu0
    %v868 = vadd.f32 %v472, %v867
    %v869 = vpop.f32.mrb[0].mxu0
    %v870 = vadd.f32 %v476, %v869
    %871 = vmatprep.mubr.bf16.mxu0 %v402
    %872 = vmatmul.mubr.bf16.gmra.mrb[0].mxu0 %v401
    %v873 = vpop.f32.mrb[0].mxu0
    %v874 = vadd.f32 %v472, %v873
    %v875 = vpop.f32.mrb[0].mxu0
    %v876 = vadd.f32 %v476, %v875
    %v877 = vpop.f32.mrb[0].mxu0
    %v878 = vadd.f32 %v472, %v877
    %v879 = vpop.f32.mrb[0].mxu0
    %v880 = vadd.f32 %v476, %v879
    %881 = vdwg.mxu0
    %882 = vmatprep.subr.bf16.mxu0 %v684
    %883 = vmatpush1.bf16.msra.mxu0 %v683
    %884 = vmatprep.subr.bf16.mxu0 %v688
    %885 = vmatpush1.bf16.msra.mxu0 %v687
    %886 = vmatprep.subr.bf16.mxu0 %v692
    %887 = vmatpush1.bf16.msra.mxu0 %v691
    %888 = vmatprep.subr.bf16.mxu0 %v696
    %889 = vmatpush1.bf16.msra.mxu0 %v695
    %890 = vmatprep.subr.bf16.mxu0 %v700
    %891 = vmatpush1.bf16.msra.mxu0 %v699
    %892 = vmatprep.subr.bf16.mxu0 %v704
    %893 = vmatpush1.bf16.msra.mxu0 %v703
    %894 = vmatprep.subr.bf16.mxu0 %v708
    %895 = vmatpush1.bf16.msra.mxu0 %v707
    %896 = vmatprep.subr.bf16.mxu0 %v712
    %897 = vmatpush1.bf16.msra.mxu0 %v711
    %898 = vmatprep.subr.bf16.mxu0 %v716
    %899 = vmatpush1.bf16.msra.mxu0 %v715
    %900 = vmatprep.subr.bf16.mxu0 %v720
    %901 = vmatpush1.bf16.msra.mxu0 %v719
    %902 = vmatprep.subr.bf16.mxu0 %v724
    %903 = vmatpush1.bf16.msra.mxu0 %v723
    %904 = vmatprep.subr.bf16.mxu0 %v728
    %905 = vmatpush1.bf16.msra.mxu0 %v727
    %906 = vmatprep.subr.bf16.mxu0 %v732
    %907 = vmatpush1.bf16.msra.mxu0 %v731
    %908 = vmatprep.subr.bf16.mxu0 %v736
    %909 = vmatpush1.bf16.msra.mxu0 %v735
    %910 = vmatprep.subr.bf16.mxu0 %v740
    %911 = vmatpush1.bf16.msra.mxu0 %v739
    %912 = vmatprep.subr.bf16.mxu0 %v744
    %913 = vmatpush1.bf16.msra.mxu0 %v743
    %914 = vmatprep.mubr.bf16.mxu0 %v396
    %915 = vmatmul.mubr.bf16.gmra.mrb[0].mxu0 %v395
    %v916 = vpop.f32.mrb[0].mxu0
    %v917 = vadd.f32 %v480, %v916
    %v918 = vpop.f32.mrb[0].mxu0
    %v919 = vadd.f32 %v484, %v918
    %v920 = vpop.f32.mrb[0].mxu0
    %v921 = vadd.f32 %v480, %v920
    %v922 = vpop.f32.mrb[0].mxu0
    %v923 = vadd.f32 %v484, %v922
    %924 = vmatprep.mubr.bf16.mxu0 %v398
    %925 = vmatmul.mubr.bf16.gmra.mrb[0].mxu0 %v397
    %v926 = vpop.f32.mrb[0].mxu0
    %v927 = vadd.f32 %v480, %v926
    %v928 = vpop.f32.mrb[0].mxu0
    %v929 = vadd.f32 %v484, %v928
    %v930 = vpop.f32.mrb[0].mxu0
    %v931 = vadd.f32 %v480, %v930
    %v932 = vpop.f32.mrb[0].mxu0
    %v933 = vadd.f32 %v484, %v932
    %934 = vmatprep.mubr.bf16.mxu0 %v400
    %935 = vmatmul.mubr.bf16.gmra.mrb[0].mxu0 %v399
    %v936 = vpop.f32.mrb[0].mxu0
    %v937 = vadd.f32 %v480, %v936
    %v938 = vpop.f32.mrb[0].mxu0
    %v939 = vadd.f32 %v484, %v938
    %v940 = vpop.f32.mrb[0].mxu0
    %v941 = vadd.f32 %v480, %v940
    %v942 = vpop.f32.mrb[0].mxu0
    %v943 = vadd.f32 %v484, %v942
    %944 = vmatprep.mubr.bf16.mxu0 %v402
    %945 = vmatmul.mubr.bf16.gmra.mrb[0].mxu0 %v401
    %v946 = vpop.f32.mrb[0].mxu0
    %v947 = vadd.f32 %v480, %v946
    %v948 = vpop.f32.mrb[0].mxu0
    %v949 = vadd.f32 %v484, %v948
    %v950 = vpop.f32.mrb[0].mxu0
    %v951 = vadd.f32 %v480, %v950
    %v952 = vpop.f32.mrb[0].mxu0
    %v953 = vadd.f32 %v484, %v952
    %954 = vdwg.mxu0
    %vm955 = vcmp.gt.f32.partialorder %v844, 0.0
    %vm956 = vcmp.gt.f32.partialorder %v846, 0.0
    %vm957 = vcmp.gt.f32.partialorder %v917, 0.0
    %vm958 = vcmp.gt.f32.partialorder %v919, 0.0
    %vm959 = vcmp.gt.f32.partialorder %v848, 0.0
    %vm960 = vcmp.gt.f32.partialorder %v850, 0.0
    %vm961 = vcmp.gt.f32.partialorder %v921, 0.0
    %vm962 = vcmp.gt.f32.partialorder %v923, 0.0
    %vm963 = vcmp.gt.f32.partialorder %v854, 0.0
    %vm964 = vcmp.gt.f32.partialorder %v856, 0.0
    %vm965 = vcmp.gt.f32.partialorder %v927, 0.0
    %vm966 = vcmp.gt.f32.partialorder %v929, 0.0
    %vm967 = vcmp.gt.f32.partialorder %v858, 0.0
    %vm968 = vcmp.gt.f32.partialorder %v860, 0.0
    %vm969 = vcmp.gt.f32.partialorder %v931, 0.0
    %vm970 = vcmp.gt.f32.partialorder %v933, 0.0
    %vm971 = vcmp.gt.f32.partialorder %v864, 0.0
    %vm972 = vcmp.gt.f32.partialorder %v866, 0.0
    %vm973 = vcmp.gt.f32.partialorder %v937, 0.0
    %vm974 = vcmp.gt.f32.partialorder %v939, 0.0
    %vm975 = vcmp.gt.f32.partialorder %v868, 0.0
    %vm976 = vcmp.gt.f32.partialorder %v870, 0.0
    %vm977 = vcmp.gt.f32.partialorder %v941, 0.0
    %vm978 = vcmp.gt.f32.partialorder %v943, 0.0
    %vm979 = vcmp.gt.f32.partialorder %v874, 0.0
    %vm980 = vcmp.gt.f32.partialorder %v876, 0.0
    %vm981 = vcmp.gt.f32.partialorder %v947, 0.0
    %vm982 = vcmp.gt.f32.partialorder %v949, 0.0
    %vm983 = vcmp.gt.f32.partialorder %v878, 0.0
    %vm984 = vcmp.gt.f32.partialorder %v880, 0.0
    %vm985 = vcmp.gt.f32.partialorder %v951, 0.0
    %vm986 = vcmp.gt.f32.partialorder %v953, 0.0
    %v987 = vmul.f32 %v844, 0.2
    %v988 = vmul.f32 %v846, 0.2
    %v989 = vmul.f32 %v917, 0.2
    %v990 = vmul.f32 %v919, 0.2
    %v991 = vmul.f32 %v848, 0.2
    %v992 = vmul.f32 %v850, 0.2
    %v993 = vmul.f32 %v921, 0.2
    %v994 = vmul.f32 %v923, 0.2
    %v995 = vmul.f32 %v854, 0.2
    %v996 = vmul.f32 %v856, 0.2
    %v997 = vmul.f32 %v927, 0.2
    %v998 = vmul.f32 %v929, 0.2
    %v999 = vmul.f32 %v858, 0.2
    %v1000 = vmul.f32 %v860, 0.2
    %v1001 = vmul.f32 %v931, 0.2
    %v1002 = vmul.f32 %v933, 0.2
    %v1003 = vmul.f32 %v864, 0.2
    %v1004 = vmul.f32 %v866, 0.2
    %v1005 = vmul.f32 %v937, 0.2
    %v1006 = vmul.f32 %v939, 0.2
    %v1007 = vmul.f32 %v868, 0.2
    %v1008 = vmul.f32 %v870, 0.2
    %v1009 = vmul.f32 %v941, 0.2
    %v1010 = vmul.f32 %v943, 0.2
    %v1011 = vmul.f32 %v874, 0.2
    %v1012 = vmul.f32 %v876, 0.2
    %v1013 = vmul.f32 %v947, 0.2
    %v1014 = vmul.f32 %v949, 0.2
    %v1015 = vmul.f32 %v878, 0.2
    %v1016 = vmul.f32 %v880, 0.2
    %v1017 = vmul.f32 %v951, 0.2
    %v1018 = vmul.f32 %v953, 0.2
    %v1019 = vsel %vm955, %v844, %v987
    %v1020 = vsel %vm956, %v846, %v988
    %v1021 = vsel %vm957, %v917, %v989
    %v1022 = vsel %vm958, %v919, %v990
    %v1023 = vsel %vm959, %v848, %v991
    %v1024 = vsel %vm960, %v850, %v992
    %v1025 = vsel %vm961, %v921, %v993
    %v1026 = vsel %vm962, %v923, %v994
    %v1027 = vsel %vm963, %v854, %v995
    %v1028 = vsel %vm964, %v856, %v996
    %v1029 = vsel %vm965, %v927, %v997
    %v1030 = vsel %vm966, %v929, %v998
    %v1031 = vsel %vm967, %v858, %v999
    %v1032 = vsel %vm968, %v860, %v1000
    %v1033 = vsel %vm969, %v931, %v1001
    %v1034 = vsel %vm970, %v933, %v1002
    %v1035 = vsel %vm971, %v864, %v1003
    %v1036 = vsel %vm972, %v866, %v1004
    %v1037 = vsel %vm973, %v937, %v1005
    %v1038 = vsel %vm974, %v939, %v1006
    %v1039 = vsel %vm975, %v868, %v1007
    %v1040 = vsel %vm976, %v870, %v1008
    %v1041 = vsel %vm977, %v941, %v1009
    %v1042 = vsel %vm978, %v943, %v1010
    %v1043 = vsel %vm979, %v874, %v1011
    %v1044 = vsel %vm980, %v876, %v1012
    %v1045 = vsel %vm981, %v947, %v1013
    %v1046 = vsel %vm982, %v949, %v1014
    %v1047 = vsel %vm983, %v878, %v1015
    %v1048 = vsel %vm984, %v880, %v1016
    %v1049 = vsel %vm985, %v951, %v1017
    %v1050 = vsel %vm986, %v953, %v1018
    %v1051 = vpack.c.bf16 %v1023, %v1019
    %v1052 = vpack.c.bf16 %v1024, %v1020
    %v1053 = vpack.c.bf16 %v1025, %v1021
    %v1054 = vpack.c.bf16 %v1026, %v1022
    %v1055 = vpack.c.bf16 %v1031, %v1027
    %v1056 = vpack.c.bf16 %v1032, %v1028
    %v1057 = vpack.c.bf16 %v1033, %v1029
    %v1058 = vpack.c.bf16 %v1034, %v1030
    %v1059 = vpack.c.bf16 %v1039, %v1035
    %v1060 = vpack.c.bf16 %v1040, %v1036
    %v1061 = vpack.c.bf16 %v1041, %v1037
    %v1062 = vpack.c.bf16 %v1042, %v1038
    %v1063 = vpack.c.bf16 %v1047, %v1043
    %v1064 = vpack.c.bf16 %v1048, %v1044
    %v1065 = vpack.c.bf16 %v1049, %v1045
    %v1066 = vpack.c.bf16 %v1050, %v1046
    %v1067 = vld [vmem:[#allocation9] sm:$0xff]
    %v1068 = vld [vmem:[#allocation9 + $0x8] sm:$0xff]
    %v1069 = vld [vmem:[#allocation9 + $0x10] sm:$0xff]
    %v1070 = vld [vmem:[#allocation9 + $0x18] sm:$0xff]
    %v1071 = vld [vmem:[#allocation9 + $0x20] sm:$0xff]
    %v1072 = vld [vmem:[#allocation9 + $0x28] sm:$0xff]
    %v1073 = vld [vmem:[#allocation9 + $0x30] sm:$0xff]
    %v1074 = vld [vmem:[#allocation9 + $0x38] sm:$0xff]
    %v1075 = vld [vmem:[#allocation9 + $0x40] sm:$0xff]
    %v1076 = vld [vmem:[#allocation9 + $0x48] sm:$0xff]
    %v1077 = vld [vmem:[#allocation9 + $0x50] sm:$0xff]
    %v1078 = vld [vmem:[#allocation9 + $0x58] sm:$0xff]
    %v1079 = vld [vmem:[#allocation9 + $0x60] sm:$0xff]
    %v1080 = vld [vmem:[#allocation9 + $0x68] sm:$0xff]
    %v1081 = vld [vmem:[#allocation9 + $0x70] sm:$0xff]
    %v1082 = vld [vmem:[#allocation9 + $0x78] sm:$0xff]
    %v1083 = vld [vmem:[#allocation9 + $0x80] sm:$0xff]
    %v1084 = vld [vmem:[#allocation9 + $0x88] sm:$0xff]
    %v1085 = vld [vmem:[#allocation9 + $0x90] sm:$0xff]
    %v1086 = vld [vmem:[#allocation9 + $0x98] sm:$0xff]
    %v1087 = vld [vmem:[#allocation9 + $0xa0] sm:$0xff]
    %v1088 = vld [vmem:[#allocation9 + $0xa8] sm:$0xff]
    %v1089 = vld [vmem:[#allocation9 + $0xb0] sm:$0xff]
    %v1090 = vld [vmem:[#allocation9 + $0xb8] sm:$0xff]
    %v1091 = vld [vmem:[#allocation9 + $0xc0] sm:$0xff]
    %v1092 = vld [vmem:[#allocation9 + $0xc8] sm:$0xff]
    %v1093 = vld [vmem:[#allocation9 + $0xd0] sm:$0xff]
    %v1094 = vld [vmem:[#allocation9 + $0xd8] sm:$0xff]
    %v1095 = vld [vmem:[#allocation9 + $0xe0] sm:$0xff]
    %v1096 = vld [vmem:[#allocation9 + $0xe8] sm:$0xff]
    %v1097 = vld [vmem:[#allocation9 + $0xf0] sm:$0xff]
    %v1098 = vld [vmem:[#allocation9 + $0xf8] sm:$0xff]
    %v1099 = vld [vmem:[#allocation9 + $0x100] sm:$0xff]
    %v1100 = vld [vmem:[#allocation9 + $0x108] sm:$0xff]
    %v1101 = vld [vmem:[#allocation9 + $0x110] sm:$0xff]
    %v1102 = vld [vmem:[#allocation9 + $0x118] sm:$0xff]
    %v1103 = vld [vmem:[#allocation9 + $0x120] sm:$0xff]
    %v1104 = vld [vmem:[#allocation9 + $0x128] sm:$0xff]
    %v1105 = vld [vmem:[#allocation9 + $0x130] sm:$0xff]
    %v1106 = vld [vmem:[#allocation9 + $0x138] sm:$0xff]
    %v1107 = vld [vmem:[#allocation9 + $0x140] sm:$0xff]
    %v1108 = vld [vmem:[#allocation9 + $0x148] sm:$0xff]
    %v1109 = vld [vmem:[#allocation9 + $0x150] sm:$0xff]
    %v1110 = vld [vmem:[#allocation9 + $0x158] sm:$0xff]
    %v1111 = vld [vmem:[#allocation9 + $0x160] sm:$0xff]
    %v1112 = vld [vmem:[#allocation9 + $0x168] sm:$0xff]
    %v1113 = vld [vmem:[#allocation9 + $0x170] sm:$0xff]
    %v1114 = vld [vmem:[#allocation9 + $0x178] sm:$0xff]
    %v1115 = vld [vmem:[#allocation9 + $0x180] sm:$0xff]
    %v1116 = vld [vmem:[#allocation9 + $0x188] sm:$0xff]
    %v1117 = vld [vmem:[#allocation9 + $0x190] sm:$0xff]
    %v1118 = vld [vmem:[#allocation9 + $0x198] sm:$0xff]
    %v1119 = vld [vmem:[#allocation9 + $0x1a0] sm:$0xff]
    %v1120 = vld [vmem:[#allocation9 + $0x1a8] sm:$0xff]
    %v1121 = vld [vmem:[#allocation9 + $0x1b0] sm:$0xff]
    %v1122 = vld [vmem:[#allocation9 + $0x1b8] sm:$0xff]
    %v1123 = vld [vmem:[#allocation9 + $0x1c0] sm:$0xff]
    %v1124 = vld [vmem:[#allocation9 + $0x1c8] sm:$0xff]
    %v1125 = vld [vmem:[#allocation9 + $0x1d0] sm:$0xff]
    %v1126 = vld [vmem:[#allocation9 + $0x1d8] sm:$0xff]
    %v1127 = vld [vmem:[#allocation9 + $0x1e0] sm:$0xff]
    %v1128 = vld [vmem:[#allocation9 + $0x1e8] sm:$0xff]
    %v1129 = vld [vmem:[#allocation9 + $0x1f0] sm:$0xff]
    %v1130 = vld [vmem:[#allocation9 + $0x1f8] sm:$0xff]
    %v1131 = vld [vmem:[#allocation9 + $0x200] sm:$0xff]
    %v1132 = vld [vmem:[#allocation9 + $0x208] sm:$0xff]
    %v1133 = vld [vmem:[#allocation9 + $0x210] sm:$0xff]
    %v1134 = vld [vmem:[#allocation9 + $0x218] sm:$0xff]
    %v1135 = vld [vmem:[#allocation9 + $0x220] sm:$0xff]
    %v1136 = vld [vmem:[#allocation9 + $0x228] sm:$0xff]
    %v1137 = vld [vmem:[#allocation9 + $0x230] sm:$0xff]
    %v1138 = vld [vmem:[#allocation9 + $0x238] sm:$0xff]
    %v1139 = vld [vmem:[#allocation9 + $0x240] sm:$0xff]
    %v1140 = vld [vmem:[#allocation9 + $0x248] sm:$0xff]
    %v1141 = vld [vmem:[#allocation9 + $0x250] sm:$0xff]
    %v1142 = vld [vmem:[#allocation9 + $0x258] sm:$0xff]
    %v1143 = vld [vmem:[#allocation9 + $0x260] sm:$0xff]
    %v1144 = vld [vmem:[#allocation9 + $0x268] sm:$0xff]
    %v1145 = vld [vmem:[#allocation9 + $0x270] sm:$0xff]
    %v1146 = vld [vmem:[#allocation9 + $0x278] sm:$0xff]
    %v1147 = vld [vmem:[#allocation9 + $0x280] sm:$0xff]
    %v1148 = vld [vmem:[#allocation9 + $0x288] sm:$0xff]
    %v1149 = vld [vmem:[#allocation9 + $0x290] sm:$0xff]
    %v1150 = vld [vmem:[#allocation9 + $0x298] sm:$0xff]
    %v1151 = vld [vmem:[#allocation9 + $0x2a0] sm:$0xff]
    %v1152 = vld [vmem:[#allocation9 + $0x2a8] sm:$0xff]
    %v1153 = vld [vmem:[#allocation9 + $0x2b0] sm:$0xff]
    %v1154 = vld [vmem:[#allocation9 + $0x2b8] sm:$0xff]
    %v1155 = vld [vmem:[#allocation9 + $0x2c0] sm:$0xff]
    %v1156 = vld [vmem:[#allocation9 + $0x2c8] sm:$0xff]
    %v1157 = vld [vmem:[#allocation9 + $0x2d0] sm:$0xff]
    %v1158 = vld [vmem:[#allocation9 + $0x2d8] sm:$0xff]
    %v1159 = vld [vmem:[#allocation9 + $0x2e0] sm:$0xff]
    %v1160 = vld [vmem:[#allocation9 + $0x2e8] sm:$0xff]
    %v1161 = vld [vmem:[#allocation9 + $0x2f0] sm:$0xff]
    %v1162 = vld [vmem:[#allocation9 + $0x2f8] sm:$0xff]
    %v1163 = vld [vmem:[#allocation9 + $0x300] sm:$0xff]
    %v1164 = vld [vmem:[#allocation9 + $0x308] sm:$0xff]
    %v1165 = vld [vmem:[#allocation9 + $0x310] sm:$0xff]
    %v1166 = vld [vmem:[#allocation9 + $0x318] sm:$0xff]
    %v1167 = vld [vmem:[#allocation9 + $0x320] sm:$0xff]
    %v1168 = vld [vmem:[#allocation9 + $0x328] sm:$0xff]
    %v1169 = vld [vmem:[#allocation9 + $0x330] sm:$0xff]
    %v1170 = vld [vmem:[#allocation9 + $0x338] sm:$0xff]
    %v1171 = vld [vmem:[#allocation9 + $0x340] sm:$0xff]
    %v1172 = vld [vmem:[#allocation9 + $0x348] sm:$0xff]
    %v1173 = vld [vmem:[#allocation9 + $0x350] sm:$0xff]
    %v1174 = vld [vmem:[#allocation9 + $0x358] sm:$0xff]
    %v1175 = vld [vmem:[#allocation9 + $0x360] sm:$0xff]
    %v1176 = vld [vmem:[#allocation9 + $0x368] sm:$0xff]
    %v1177 = vld [vmem:[#allocation9 + $0x370] sm:$0xff]
    %v1178 = vld [vmem:[#allocation9 + $0x378] sm:$0xff]
    %v1179 = vld [vmem:[#allocation9 + $0x380] sm:$0xff]
    %v1180 = vld [vmem:[#allocation9 + $0x388] sm:$0xff]
    %v1181 = vld [vmem:[#allocation9 + $0x390] sm:$0xff]
    %v1182 = vld [vmem:[#allocation9 + $0x398] sm:$0xff]
    %v1183 = vld [vmem:[#allocation9 + $0x3a0] sm:$0xff]
    %v1184 = vld [vmem:[#allocation9 + $0x3a8] sm:$0xff]
    %v1185 = vld [vmem:[#allocation9 + $0x3b0] sm:$0xff]
    %v1186 = vld [vmem:[#allocation9 + $0x3b8] sm:$0xff]
    %v1187 = vld [vmem:[#allocation9 + $0x3c0] sm:$0xff]
    %v1188 = vld [vmem:[#allocation9 + $0x3c8] sm:$0xff]
    %v1189 = vld [vmem:[#allocation9 + $0x3d0] sm:$0xff]
    %v1190 = vld [vmem:[#allocation9 + $0x3d8] sm:$0xff]
    %v1191 = vld [vmem:[#allocation9 + $0x3e0] sm:$0xff]
    %v1192 = vld [vmem:[#allocation9 + $0x3e8] sm:$0xff]
    %v1193 = vld [vmem:[#allocation9 + $0x3f0] sm:$0xff]
    %v1194 = vld [vmem:[#allocation9 + $0x3f8] sm:$0xff]
    %v1195 = vld [vmem:[#allocation9 + $0x400] sm:$0xff]
    %v1196 = vld [vmem:[#allocation9 + $0x408] sm:$0xff]
    %v1197 = vld [vmem:[#allocation9 + $0x410] sm:$0xff]
    %v1198 = vld [vmem:[#allocation9 + $0x418] sm:$0xff]
    %v1199 = vld [vmem:[#allocation9 + $0x420] sm:$0xff]
    %v1200 = vld [vmem:[#allocation9 + $0x428] sm:$0xff]
    %v1201 = vld [vmem:[#allocation9 + $0x430] sm:$0xff]
    %v1202 = vld [vmem:[#allocation9 + $0x438] sm:$0xff]
    %v1203 = vld [vmem:[#allocation9 + $0x440] sm:$0xff]
    %v1204 = vld [vmem:[#allocation9 + $0x448] sm:$0xff]
    %v1205 = vld [vmem:[#allocation9 + $0x450] sm:$0xff]
    %v1206 = vld [vmem:[#allocation9 + $0x458] sm:$0xff]
    %v1207 = vld [vmem:[#allocation9 + $0x460] sm:$0xff]
    %v1208 = vld [vmem:[#allocation9 + $0x468] sm:$0xff]
    %v1209 = vld [vmem:[#allocation9 + $0x470] sm:$0xff]
    %v1210 = vld [vmem:[#allocation9 + $0x478] sm:$0xff]
    %v1211 = vld [vmem:[#allocation9 + $0x480] sm:$0xff]
    %v1212 = vld [vmem:[#allocation9 + $0x488] sm:$0xff]
    %v1213 = vld [vmem:[#allocation9 + $0x490] sm:$0xff]
    %v1214 = vld [vmem:[#allocation9 + $0x498] sm:$0xff]
    %v1215 = vld [vmem:[#allocation9 + $0x4a0] sm:$0xff]
    %v1216 = vld [vmem:[#allocation9 + $0x4a8] sm:$0xff]
    %v1217 = vld [vmem:[#allocation9 + $0x4b0] sm:$0xff]
    %v1218 = vld [vmem:[#allocation9 + $0x4b8] sm:$0xff]
    %v1219 = vld [vmem:[#allocation9 + $0x4c0] sm:$0xff]
    %v1220 = vld [vmem:[#allocation9 + $0x4c8] sm:$0xff]
    %v1221 = vld [vmem:[#allocation9 + $0x4d0] sm:$0xff]
    %v1222 = vld [vmem:[#allocation9 + $0x4d8] sm:$0xff]
    %v1223 = vld [vmem:[#allocation9 + $0x4e0] sm:$0xff]
    %v1224 = vld [vmem:[#allocation9 + $0x4e8] sm:$0xff]
    %v1225 = vld [vmem:[#allocation9 + $0x4f0] sm:$0xff]
    %v1226 = vld [vmem:[#allocation9 + $0x4f8] sm:$0xff]
    %v1227 = vld [vmem:[#allocation9 + $0x500] sm:$0xff]
    %v1228 = vld [vmem:[#allocation9 + $0x508] sm:$0xff]
    %v1229 = vld [vmem:[#allocation9 + $0x510] sm:$0xff]
    %v1230 = vld [vmem:[#allocation9 + $0x518] sm:$0xff]
    %v1231 = vld [vmem:[#allocation9 + $0x520] sm:$0xff]
    %v1232 = vld [vmem:[#allocation9 + $0x528] sm:$0xff]
    %v1233 = vld [vmem:[#allocation9 + $0x530] sm:$0xff]
    %v1234 = vld [vmem:[#allocation9 + $0x538] sm:$0xff]
    %v1235 = vld [vmem:[#allocation9 + $0x540] sm:$0xff]
    %v1236 = vld [vmem:[#allocation9 + $0x548] sm:$0xff]
    %v1237 = vld [vmem:[#allocation9 + $0x550] sm:$0xff]
    %v1238 = vld [vmem:[#allocation9 + $0x558] sm:$0xff]
    %v1239 = vld [vmem:[#allocation9 + $0x560] sm:$0xff]
    %v1240 = vld [vmem:[#allocation9 + $0x568] sm:$0xff]
    %v1241 = vld [vmem:[#allocation9 + $0x570] sm:$0xff]
    %v1242 = vld [vmem:[#allocation9 + $0x578] sm:$0xff]
    %v1243 = vld [vmem:[#allocation9 + $0x580] sm:$0xff]
    %v1244 = vld [vmem:[#allocation9 + $0x588] sm:$0xff]
    %v1245 = vld [vmem:[#allocation9 + $0x590] sm:$0xff]
    %v1246 = vld [vmem:[#allocation9 + $0x598] sm:$0xff]
    %v1247 = vld [vmem:[#allocation9 + $0x5a0] sm:$0xff]
    %v1248 = vld [vmem:[#allocation9 + $0x5a8] sm:$0xff]
    %v1249 = vld [vmem:[#allocation9 + $0x5b0] sm:$0xff]
    %v1250 = vld [vmem:[#allocation9 + $0x5b8] sm:$0xff]
    %v1251 = vld [vmem:[#allocation9 + $0x5c0] sm:$0xff]
    %v1252 = vld [vmem:[#allocation9 + $0x5c8] sm:$0xff]
    %v1253 = vld [vmem:[#allocation9 + $0x5d0] sm:$0xff]
    %v1254 = vld [vmem:[#allocation9 + $0x5d8] sm:$0xff]
    %v1255 = vld [vmem:[#allocation9 + $0x5e0] sm:$0xff]
    %v1256 = vld [vmem:[#allocation9 + $0x5e8] sm:$0xff]
    %v1257 = vld [vmem:[#allocation9 + $0x5f0] sm:$0xff]
    %v1258 = vld [vmem:[#allocation9 + $0x5f8] sm:$0xff]
    %v1259 = vld [vmem:[#allocation9 + $0x600] sm:$0xff]
    %v1260 = vld [vmem:[#allocation9 + $0x608] sm:$0xff]
    %v1261 = vld [vmem:[#allocation9 + $0x610] sm:$0xff]
    %v1262 = vld [vmem:[#allocation9 + $0x618] sm:$0xff]
    %v1263 = vld [vmem:[#allocation9 + $0x620] sm:$0xff]
    %v1264 = vld [vmem:[#allocation9 + $0x628] sm:$0xff]
    %v1265 = vld [vmem:[#allocation9 + $0x630] sm:$0xff]
    %v1266 = vld [vmem:[#allocation9 + $0x638] sm:$0xff]
    %v1267 = vld [vmem:[#allocation9 + $0x640] sm:$0xff]
    %v1268 = vld [vmem:[#allocation9 + $0x648] sm:$0xff]
    %v1269 = vld [vmem:[#allocation9 + $0x650] sm:$0xff]
    %v1270 = vld [vmem:[#allocation9 + $0x658] sm:$0xff]
    %v1271 = vld [vmem:[#allocation9 + $0x660] sm:$0xff]
    %v1272 = vld [vmem:[#allocation9 + $0x668] sm:$0xff]
    %v1273 = vld [vmem:[#allocation9 + $0x670] sm:$0xff]
    %v1274 = vld [vmem:[#allocation9 + $0x678] sm:$0xff]
    %v1275 = vld [vmem:[#allocation9 + $0x680] sm:$0xff]
    %v1276 = vld [vmem:[#allocation9 + $0x688] sm:$0xff]
    %v1277 = vld [vmem:[#allocation9 + $0x690] sm:$0xff]
    %v1278 = vld [vmem:[#allocation9 + $0x698] sm:$0xff]
    %v1279 = vld [vmem:[#allocation9 + $0x6a0] sm:$0xff]
    %v1280 = vld [vmem:[#allocation9 + $0x6a8] sm:$0xff]
    %v1281 = vld [vmem:[#allocation9 + $0x6b0] sm:$0xff]
    %v1282 = vld [vmem:[#allocation9 + $0x6b8] sm:$0xff]
    %v1283 = vld [vmem:[#allocation9 + $0x6c0] sm:$0xff]
    %v1284 = vld [vmem:[#allocation9 + $0x6c8] sm:$0xff]
    %v1285 = vld [vmem:[#allocation9 + $0x6d0] sm:$0xff]
    %v1286 = vld [vmem:[#allocation9 + $0x6d8] sm:$0xff]
    %v1287 = vld [vmem:[#allocation9 + $0x6e0] sm:$0xff]
    %v1288 = vld [vmem:[#allocation9 + $0x6e8] sm:$0xff]
    %v1289 = vld [vmem:[#allocation9 + $0x6f0] sm:$0xff]
    %v1290 = vld [vmem:[#allocation9 + $0x6f8] sm:$0xff]
    %v1291 = vld [vmem:[#allocation9 + $0x700] sm:$0xff]
    %v1292 = vld [vmem:[#allocation9 + $0x708] sm:$0xff]
    %v1293 = vld [vmem:[#allocation9 + $0x710] sm:$0xff]
    %v1294 = vld [vmem:[#allocation9 + $0x718] sm:$0xff]
    %v1295 = vld [vmem:[#allocation9 + $0x720] sm:$0xff]
    %v1296 = vld [vmem:[#allocation9 + $0x728] sm:$0xff]
    %v1297 = vld [vmem:[#allocation9 + $0x730] sm:$0xff]
    %v1298 = vld [vmem:[#allocation9 + $0x738] sm:$0xff]
    %v1299 = vld [vmem:[#allocation9 + $0x740] sm:$0xff]
    %v1300 = vld [vmem:[#allocation9 + $0x748] sm:$0xff]
    %v1301 = vld [vmem:[#allocation9 + $0x750] sm:$0xff]
    %v1302 = vld [vmem:[#allocation9 + $0x758] sm:$0xff]
    %v1303 = vld [vmem:[#allocation9 + $0x760] sm:$0xff]
    %v1304 = vld [vmem:[#allocation9 + $0x768] sm:$0xff]
    %v1305 = vld [vmem:[#allocation9 + $0x770] sm:$0xff]
    %v1306 = vld [vmem:[#allocation9 + $0x778] sm:$0xff]
    %v1307 = vld [vmem:[#allocation9 + $0x780] sm:$0xff]
    %v1308 = vld [vmem:[#allocation9 + $0x788] sm:$0xff]
    %v1309 = vld [vmem:[#allocation9 + $0x790] sm:$0xff]
    %v1310 = vld [vmem:[#allocation9 + $0x798] sm:$0xff]
    %v1311 = vld [vmem:[#allocation9 + $0x7a0] sm:$0xff]
    %v1312 = vld [vmem:[#allocation9 + $0x7a8] sm:$0xff]
    %v1313 = vld [vmem:[#allocation9 + $0x7b0] sm:$0xff]
    %v1314 = vld [vmem:[#allocation9 + $0x7b8] sm:$0xff]
    %v1315 = vld [vmem:[#allocation9 + $0x7c0] sm:$0xff]
    %v1316 = vld [vmem:[#allocation9 + $0x7c8] sm:$0xff]
    %v1317 = vld [vmem:[#allocation9 + $0x7d0] sm:$0xff]
    %v1318 = vld [vmem:[#allocation9 + $0x7d8] sm:$0xff]
    %v1319 = vld [vmem:[#allocation9 + $0x7e0] sm:$0xff]
    %v1320 = vld [vmem:[#allocation9 + $0x7e8] sm:$0xff]
    %v1321 = vld [vmem:[#allocation9 + $0x7f0] sm:$0xff]
    %v1322 = vld [vmem:[#allocation9 + $0x7f8] sm:$0xff]
    %v1323 = vld [vmem:[#allocation10] sm:$0xff]
    %v1325 = vlaneseq
    %v1326 = vshrl.u32 %v1325, 7
    %v1327 = vsub.s32 0, %v1326
    %v1328 = vrot.slane %v1323, %v1327
    %v1329 = vlaneseq
    %v1330 = vshrl.u32 %v1329, 7
    %v1331 = vsub.s32 1, %v1330
    %v1332 = vrot.slane %v1323, %v1331
    %v1333 = vlaneseq
    %v1334 = vshrl.u32 %v1333, 7
    %v1335 = vsub.s32 2, %v1334
    %v1336 = vrot.slane %v1323, %v1335
    %v1337 = vlaneseq
    %v1338 = vshrl.u32 %v1337, 7
    %v1339 = vsub.s32 3, %v1338
    %v1340 = vrot.slane %v1323, %v1339
    %v1341 = vlaneseq
    %v1342 = vshrl.u32 %v1341, 7
    %v1343 = vsub.s32 4, %v1342
    %v1344 = vrot.slane %v1323, %v1343
    %v1345 = vlaneseq
    %v1346 = vshrl.u32 %v1345, 7
    %v1347 = vsub.s32 5, %v1346
    %v1348 = vrot.slane %v1323, %v1347
    %v1349 = vlaneseq
    %v1350 = vshrl.u32 %v1349, 7
    %v1351 = vsub.s32 6, %v1350
    %v1352 = vrot.slane %v1323, %v1351
    %v1353 = vlaneseq
    %v1354 = vshrl.u32 %v1353, 7
    %v1355 = vsub.s32 7, %v1354
    %v1356 = vrot.slane %v1323, %v1355
    %v1621 = vunpack.c.l.b16 %v1067
    %v1622 = vunpack.c.h.b16 %v1067
    %v1623 = vunpack.c.l.b16 %v1068
    %v1624 = vunpack.c.h.b16 %v1068
    %v1625 = vunpack.c.l.b16 %v1069
    %v1626 = vunpack.c.h.b16 %v1069
    %v1627 = vunpack.c.l.b16 %v1070
    %v1628 = vunpack.c.h.b16 %v1070
    %v1629 = vunpack.c.l.b16 %v1071
    %v1630 = vunpack.c.h.b16 %v1071
    %v1631 = vunpack.c.l.b16 %v1072
    %v1632 = vunpack.c.h.b16 %v1072
    %v1633 = vunpack.c.l.b16 %v1073
    %v1634 = vunpack.c.h.b16 %v1073
    %v1635 = vunpack.c.l.b16 %v1074
    %v1636 = vunpack.c.h.b16 %v1074
    %v1637 = vunpack.c.l.b16 %v1075
    %v1638 = vunpack.c.h.b16 %v1075
    %v1639 = vunpack.c.l.b16 %v1076
    %v1640 = vunpack.c.h.b16 %v1076
    %v1641 = vunpack.c.l.b16 %v1077
    %v1642 = vunpack.c.h.b16 %v1077
    %v1643 = vunpack.c.l.b16 %v1078
    %v1644 = vunpack.c.h.b16 %v1078
    %v1645 = vunpack.c.l.b16 %v1079
    %v1646 = vunpack.c.h.b16 %v1079
    %v1647 = vunpack.c.l.b16 %v1080
    %v1648 = vunpack.c.h.b16 %v1080
    %v1649 = vunpack.c.l.b16 %v1081
    %v1650 = vunpack.c.h.b16 %v1081
    %v1651 = vunpack.c.l.b16 %v1082
    %v1652 = vunpack.c.h.b16 %v1082
    %v1653 = vunpack.c.l.b16 %v1083
    %v1654 = vunpack.c.h.b16 %v1083
    %v1655 = vunpack.c.l.b16 %v1084
    %v1656 = vunpack.c.h.b16 %v1084
    %v1657 = vunpack.c.l.b16 %v1085
    %v1658 = vunpack.c.h.b16 %v1085
    %v1659 = vunpack.c.l.b16 %v1086
    %v1660 = vunpack.c.h.b16 %v1086
    %v1661 = vunpack.c.l.b16 %v1087
    %v1662 = vunpack.c.h.b16 %v1087
    %v1663 = vunpack.c.l.b16 %v1088
    %v1664 = vunpack.c.h.b16 %v1088
    %v1665 = vunpack.c.l.b16 %v1089
    %v1666 = vunpack.c.h.b16 %v1089
    %v1667 = vunpack.c.l.b16 %v1090
    %v1668 = vunpack.c.h.b16 %v1090
    %v1669 = vunpack.c.l.b16 %v1091
    %v1670 = vunpack.c.h.b16 %v1091
    %v1671 = vunpack.c.l.b16 %v1092
    %v1672 = vunpack.c.h.b16 %v1092
    %v1673 = vunpack.c.l.b16 %v1093
    %v1674 = vunpack.c.h.b16 %v1093
    %v1675 = vunpack.c.l.b16 %v1094
    %v1676 = vunpack.c.h.b16 %v1094
    %v1677 = vunpack.c.l.b16 %v1095
    %v1678 = vunpack.c.h.b16 %v1095
    %v1679 = vunpack.c.l.b16 %v1096
    %v1680 = vunpack.c.h.b16 %v1096
    %v1681 = vunpack.c.l.b16 %v1097
    %v1682 = vunpack.c.h.b16 %v1097
    %v1683 = vunpack.c.l.b16 %v1098
    %v1684 = vunpack.c.h.b16 %v1098
    %v1685 = vunpack.c.l.b16 %v1099
    %v1686 = vunpack.c.h.b16 %v1099
    %v1687 = vunpack.c.l.b16 %v1100
    %v1688 = vunpack.c.h.b16 %v1100
    %v1689 = vunpack.c.l.b16 %v1101
    %v1690 = vunpack.c.h.b16 %v1101
    %v1691 = vunpack.c.l.b16 %v1102
    %v1692 = vunpack.c.h.b16 %v1102
    %v1693 = vunpack.c.l.b16 %v1103
    %v1694 = vunpack.c.h.b16 %v1103
    %v1695 = vunpack.c.l.b16 %v1104
    %v1696 = vunpack.c.h.b16 %v1104
    %v1697 = vunpack.c.l.b16 %v1105
    %v1698 = vunpack.c.h.b16 %v1105
    %v1699 = vunpack.c.l.b16 %v1106
    %v1700 = vunpack.c.h.b16 %v1106
    %v1701 = vunpack.c.l.b16 %v1107
    %v1702 = vunpack.c.h.b16 %v1107
    %v1703 = vunpack.c.l.b16 %v1108
    %v1704 = vunpack.c.h.b16 %v1108
    %v1705 = vunpack.c.l.b16 %v1109
    %v1706 = vunpack.c.h.b16 %v1109
    %v1707 = vunpack.c.l.b16 %v1110
    %v1708 = vunpack.c.h.b16 %v1110
    %v1709 = vunpack.c.l.b16 %v1111
    %v1710 = vunpack.c.h.b16 %v1111
    %v1711 = vunpack.c.l.b16 %v1112
    %v1712 = vunpack.c.h.b16 %v1112
    %v1713 = vunpack.c.l.b16 %v1113
    %v1714 = vunpack.c.h.b16 %v1113
    %v1715 = vunpack.c.l.b16 %v1114
    %v1716 = vunpack.c.h.b16 %v1114
    %v1717 = vunpack.c.l.b16 %v1115
    %v1718 = vunpack.c.h.b16 %v1115
    %v1719 = vunpack.c.l.b16 %v1116
    %v1720 = vunpack.c.h.b16 %v1116
    %v1721 = vunpack.c.l.b16 %v1117
    %v1722 = vunpack.c.h.b16 %v1117
    %v1723 = vunpack.c.l.b16 %v1118
    %v1724 = vunpack.c.h.b16 %v1118
    %v1725 = vunpack.c.l.b16 %v1119
    %v1726 = vunpack.c.h.b16 %v1119
    %v1727 = vunpack.c.l.b16 %v1120
    %v1728 = vunpack.c.h.b16 %v1120
    %v1729 = vunpack.c.l.b16 %v1121
    %v1730 = vunpack.c.h.b16 %v1121
    %v1731 = vunpack.c.l.b16 %v1122
    %v1732 = vunpack.c.h.b16 %v1122
    %v1733 = vunpack.c.l.b16 %v1123
    %v1734 = vunpack.c.h.b16 %v1123
    %v1735 = vunpack.c.l.b16 %v1124
    %v1736 = vunpack.c.h.b16 %v1124
    %v1737 = vunpack.c.l.b16 %v1125
    %v1738 = vunpack.c.h.b16 %v1125
    %v1739 = vunpack.c.l.b16 %v1126
    %v1740 = vunpack.c.h.b16 %v1126
    %v1741 = vunpack.c.l.b16 %v1127
    %v1742 = vunpack.c.h.b16 %v1127
    %v1743 = vunpack.c.l.b16 %v1128
    %v1744 = vunpack.c.h.b16 %v1128
    %v1745 = vunpack.c.l.b16 %v1129
    %v1746 = vunpack.c.h.b16 %v1129
    %v1747 = vunpack.c.l.b16 %v1130
    %v1748 = vunpack.c.h.b16 %v1130
    %v1749 = vunpack.c.l.b16 %v1131
    %v1750 = vunpack.c.h.b16 %v1131
    %v1751 = vunpack.c.l.b16 %v1132
    %v1752 = vunpack.c.h.b16 %v1132
    %v1753 = vunpack.c.l.b16 %v1133
    %v1754 = vunpack.c.h.b16 %v1133
    %v1755 = vunpack.c.l.b16 %v1134
    %v1756 = vunpack.c.h.b16 %v1134
    %v1757 = vunpack.c.l.b16 %v1135
    %v1758 = vunpack.c.h.b16 %v1135
    %v1759 = vunpack.c.l.b16 %v1136
    %v1760 = vunpack.c.h.b16 %v1136
    %v1761 = vunpack.c.l.b16 %v1137
    %v1762 = vunpack.c.h.b16 %v1137
    %v1763 = vunpack.c.l.b16 %v1138
    %v1764 = vunpack.c.h.b16 %v1138
    %v1765 = vunpack.c.l.b16 %v1139
    %v1766 = vunpack.c.h.b16 %v1139
    %v1767 = vunpack.c.l.b16 %v1140
    %v1768 = vunpack.c.h.b16 %v1140
    %v1769 = vunpack.c.l.b16 %v1141
    %v1770 = vunpack.c.h.b16 %v1141
    %v1771 = vunpack.c.l.b16 %v1142
    %v1772 = vunpack.c.h.b16 %v1142
    %v1773 = vunpack.c.l.b16 %v1143
    %v1774 = vunpack.c.h.b16 %v1143
    %v1775 = vunpack.c.l.b16 %v1144
    %v1776 = vunpack.c.h.b16 %v1144
    %v1777 = vunpack.c.l.b16 %v1145
    %v1778 = vunpack.c.h.b16 %v1145
    %v1779 = vunpack.c.l.b16 %v1146
    %v1780 = vunpack.c.h.b16 %v1146
    %v1781 = vunpack.c.l.b16 %v1147
    %v1782 = vunpack.c.h.b16 %v1147
    %v1783 = vunpack.c.l.b16 %v1148
    %v1784 = vunpack.c.h.b16 %v1148
    %v1785 = vunpack.c.l.b16 %v1149
    %v1786 = vunpack.c.h.b16 %v1149
    %v1787 = vunpack.c.l.b16 %v1150
    %v1788 = vunpack.c.h.b16 %v1150
    %v1789 = vunpack.c.l.b16 %v1151
    %v1790 = vunpack.c.h.b16 %v1151
    %v1791 = vunpack.c.l.b16 %v1152
    %v1792 = vunpack.c.h.b16 %v1152
    %v1793 = vunpack.c.l.b16 %v1153
    %v1794 = vunpack.c.h.b16 %v1153
    %v1795 = vunpack.c.l.b16 %v1154
    %v1796 = vunpack.c.h.b16 %v1154
    %v1797 = vunpack.c.l.b16 %v1155
    %v1798 = vunpack.c.h.b16 %v1155
    %v1799 = vunpack.c.l.b16 %v1156
    %v1800 = vunpack.c.h.b16 %v1156
    %v1801 = vunpack.c.l.b16 %v1157
    %v1802 = vunpack.c.h.b16 %v1157
    %v1803 = vunpack.c.l.b16 %v1158
    %v1804 = vunpack.c.h.b16 %v1158
    %v1805 = vunpack.c.l.b16 %v1159
    %v1806 = vunpack.c.h.b16 %v1159
    %v1807 = vunpack.c.l.b16 %v1160
    %v1808 = vunpack.c.h.b16 %v1160
    %v1809 = vunpack.c.l.b16 %v1161
    %v1810 = vunpack.c.h.b16 %v1161
    %v1811 = vunpack.c.l.b16 %v1162
    %v1812 = vunpack.c.h.b16 %v1162
    %v1813 = vunpack.c.l.b16 %v1163
    %v1814 = vunpack.c.h.b16 %v1163
    %v1815 = vunpack.c.l.b16 %v1164
    %v1816 = vunpack.c.h.b16 %v1164
    %v1817 = vunpack.c.l.b16 %v1165
    %v1818 = vunpack.c.h.b16 %v1165
    %v1819 = vunpack.c.l.b16 %v1166
    %v1820 = vunpack.c.h.b16 %v1166
    %v1821 = vunpack.c.l.b16 %v1167
    %v1822 = vunpack.c.h.b16 %v1167
    %v1823 = vunpack.c.l.b16 %v1168
    %v1824 = vunpack.c.h.b16 %v1168
    %v1825 = vunpack.c.l.b16 %v1169
    %v1826 = vunpack.c.h.b16 %v1169
    %v1827 = vunpack.c.l.b16 %v1170
    %v1828 = vunpack.c.h.b16 %v1170
    %v1829 = vunpack.c.l.b16 %v1171
    %v1830 = vunpack.c.h.b16 %v1171
    %v1831 = vunpack.c.l.b16 %v1172
    %v1832 = vunpack.c.h.b16 %v1172
    %v1833 = vunpack.c.l.b16 %v1173
    %v1834 = vunpack.c.h.b16 %v1173
    %v1835 = vunpack.c.l.b16 %v1174
    %v1836 = vunpack.c.h.b16 %v1174
    %v1837 = vunpack.c.l.b16 %v1175
    %v1838 = vunpack.c.h.b16 %v1175
    %v1839 = vunpack.c.l.b16 %v1176
    %v1840 = vunpack.c.h.b16 %v1176
    %v1841 = vunpack.c.l.b16 %v1177
    %v1842 = vunpack.c.h.b16 %v1177
    %v1843 = vunpack.c.l.b16 %v1178
    %v1844 = vunpack.c.h.b16 %v1178
    %v1845 = vunpack.c.l.b16 %v1179
    %v1846 = vunpack.c.h.b16 %v1179
    %v1847 = vunpack.c.l.b16 %v1180
    %v1848 = vunpack.c.h.b16 %v1180
    %v1849 = vunpack.c.l.b16 %v1181
    %v1850 = vunpack.c.h.b16 %v1181
    %v1851 = vunpack.c.l.b16 %v1182
    %v1852 = vunpack.c.h.b16 %v1182
    %v1853 = vunpack.c.l.b16 %v1183
    %v1854 = vunpack.c.h.b16 %v1183
    %v1855 = vunpack.c.l.b16 %v1184
    %v1856 = vunpack.c.h.b16 %v1184
    %v1857 = vunpack.c.l.b16 %v1185
    %v1858 = vunpack.c.h.b16 %v1185
    %v1859 = vunpack.c.l.b16 %v1186
    %v1860 = vunpack.c.h.b16 %v1186
    %v1861 = vunpack.c.l.b16 %v1187
    %v1862 = vunpack.c.h.b16 %v1187
    %v1863 = vunpack.c.l.b16 %v1188
    %v1864 = vunpack.c.h.b16 %v1188
    %v1865 = vunpack.c.l.b16 %v1189
    %v1866 = vunpack.c.h.b16 %v1189
    %v1867 = vunpack.c.l.b16 %v1190
    %v1868 = vunpack.c.h.b16 %v1190
    %v1869 = vunpack.c.l.b16 %v1191
    %v1870 = vunpack.c.h.b16 %v1191
    %v1871 = vunpack.c.l.b16 %v1192
    %v1872 = vunpack.c.h.b16 %v1192
    %v1873 = vunpack.c.l.b16 %v1193
    %v1874 = vunpack.c.h.b16 %v1193
    %v1875 = vunpack.c.l.b16 %v1194
    %v1876 = vunpack.c.h.b16 %v1194
    %v1877 = vunpack.c.l.b16 %v1195
    %v1878 = vunpack.c.h.b16 %v1195
    %v1879 = vunpack.c.l.b16 %v1196
    %v1880 = vunpack.c.h.b16 %v1196
    %v1881 = vunpack.c.l.b16 %v1197
    %v1882 = vunpack.c.h.b16 %v1197
    %v1883 = vunpack.c.l.b16 %v1198
    %v1884 = vunpack.c.h.b16 %v1198
    %v1885 = vunpack.c.l.b16 %v1199
    %v1886 = vunpack.c.h.b16 %v1199
    %v1887 = vunpack.c.l.b16 %v1200
    %v1888 = vunpack.c.h.b16 %v1200
    %v1889 = vunpack.c.l.b16 %v1201
    %v1890 = vunpack.c.h.b16 %v1201
    %v1891 = vunpack.c.l.b16 %v1202
    %v1892 = vunpack.c.h.b16 %v1202
    %v1893 = vunpack.c.l.b16 %v1203
    %v1894 = vunpack.c.h.b16 %v1203
    %v1895 = vunpack.c.l.b16 %v1204
    %v1896 = vunpack.c.h.b16 %v1204
    %v1897 = vunpack.c.l.b16 %v1205
    %v1898 = vunpack.c.h.b16 %v1205
    %v1899 = vunpack.c.l.b16 %v1206
    %v1900 = vunpack.c.h.b16 %v1206
    %v1901 = vunpack.c.l.b16 %v1207
    %v1902 = vunpack.c.h.b16 %v1207
    %v1903 = vunpack.c.l.b16 %v1208
    %v1904 = vunpack.c.h.b16 %v1208
    %v1905 = vunpack.c.l.b16 %v1209
    %v1906 = vunpack.c.h.b16 %v1209
    %v1907 = vunpack.c.l.b16 %v1210
    %v1908 = vunpack.c.h.b16 %v1210
    %v1909 = vunpack.c.l.b16 %v1211
    %v1910 = vunpack.c.h.b16 %v1211
    %v1911 = vunpack.c.l.b16 %v1212
    %v1912 = vunpack.c.h.b16 %v1212
    %v1913 = vunpack.c.l.b16 %v1213
    %v1914 = vunpack.c.h.b16 %v1213
    %v1915 = vunpack.c.l.b16 %v1214
    %v1916 = vunpack.c.h.b16 %v1214
    %v1917 = vunpack.c.l.b16 %v1215
    %v1918 = vunpack.c.h.b16 %v1215
    %v1919 = vunpack.c.l.b16 %v1216
    %v1920 = vunpack.c.h.b16 %v1216
    %v1921 = vunpack.c.l.b16 %v1217
    %v1922 = vunpack.c.h.b16 %v1217
    %v1923 = vunpack.c.l.b16 %v1218
    %v1924 = vunpack.c.h.b16 %v1218
    %v1925 = vunpack.c.l.b16 %v1219
    %v1926 = vunpack.c.h.b16 %v1219
    %v1927 = vunpack.c.l.b16 %v1220
    %v1928 = vunpack.c.h.b16 %v1220
    %v1929 = vunpack.c.l.b16 %v1221
    %v1930 = vunpack.c.h.b16 %v1221
    %v1931 = vunpack.c.l.b16 %v1222
    %v1932 = vunpack.c.h.b16 %v1222
    %v1933 = vunpack.c.l.b16 %v1223
    %v1934 = vunpack.c.h.b16 %v1223
    %v1935 = vunpack.c.l.b16 %v1224
    %v1936 = vunpack.c.h.b16 %v1224
    %v1937 = vunpack.c.l.b16 %v1225
    %v1938 = vunpack.c.h.b16 %v1225
    %v1939 = vunpack.c.l.b16 %v1226
    %v1940 = vunpack.c.h.b16 %v1226
    %v1941 = vunpack.c.l.b16 %v1227
    %v1942 = vunpack.c.h.b16 %v1227
    %v1943 = vunpack.c.l.b16 %v1228
    %v1944 = vunpack.c.h.b16 %v1228
    %v1945 = vunpack.c.l.b16 %v1229
    %v1946 = vunpack.c.h.b16 %v1229
    %v1947 = vunpack.c.l.b16 %v1230
    %v1948 = vunpack.c.h.b16 %v1230
    %v1949 = vunpack.c.l.b16 %v1231
    %v1950 = vunpack.c.h.b16 %v1231
    %v1951 = vunpack.c.l.b16 %v1232
    %v1952 = vunpack.c.h.b16 %v1232
    %v1953 = vunpack.c.l.b16 %v1233
    %v1954 = vunpack.c.h.b16 %v1233
    %v1955 = vunpack.c.l.b16 %v1234
    %v1956 = vunpack.c.h.b16 %v1234
    %v1957 = vunpack.c.l.b16 %v1235
    %v1958 = vunpack.c.h.b16 %v1235
    %v1959 = vunpack.c.l.b16 %v1236
    %v1960 = vunpack.c.h.b16 %v1236
    %v1961 = vunpack.c.l.b16 %v1237
    %v1962 = vunpack.c.h.b16 %v1237
    %v1963 = vunpack.c.l.b16 %v1238
    %v1964 = vunpack.c.h.b16 %v1238
    %v1965 = vunpack.c.l.b16 %v1239
    %v1966 = vunpack.c.h.b16 %v1239
    %v1967 = vunpack.c.l.b16 %v1240
    %v1968 = vunpack.c.h.b16 %v1240
    %v1969 = vunpack.c.l.b16 %v1241
    %v1970 = vunpack.c.h.b16 %v1241
    %v1971 = vunpack.c.l.b16 %v1242
    %v1972 = vunpack.c.h.b16 %v1242
    %v1973 = vunpack.c.l.b16 %v1243
    %v1974 = vunpack.c.h.b16 %v1243
    %v1975 = vunpack.c.l.b16 %v1244
    %v1976 = vunpack.c.h.b16 %v1244
    %v1977 = vunpack.c.l.b16 %v1245
    %v1978 = vunpack.c.h.b16 %v1245
    %v1979 = vunpack.c.l.b16 %v1246
    %v1980 = vunpack.c.h.b16 %v1246
    %v1981 = vunpack.c.l.b16 %v1247
    %v1982 = vunpack.c.h.b16 %v1247
    %v1983 = vunpack.c.l.b16 %v1248
    %v1984 = vunpack.c.h.b16 %v1248
    %v1985 = vunpack.c.l.b16 %v1249
    %v1986 = vunpack.c.h.b16 %v1249
    %v1987 = vunpack.c.l.b16 %v1250
    %v1988 = vunpack.c.h.b16 %v1250
    %v1989 = vunpack.c.l.b16 %v1251
    %v1990 = vunpack.c.h.b16 %v1251
    %v1991 = vunpack.c.l.b16 %v1252
    %v1992 = vunpack.c.h.b16 %v1252
    %v1993 = vunpack.c.l.b16 %v1253
    %v1994 = vunpack.c.h.b16 %v1253
    %v1995 = vunpack.c.l.b16 %v1254
    %v1996 = vunpack.c.h.b16 %v1254
    %v1997 = vunpack.c.l.b16 %v1255
    %v1998 = vunpack.c.h.b16 %v1255
    %v1999 = vunpack.c.l.b16 %v1256
    %v2000 = vunpack.c.h.b16 %v1256
    %v2001 = vunpack.c.l.b16 %v1257
    %v2002 = vunpack.c.h.b16 %v1257
    %v2003 = vunpack.c.l.b16 %v1258
    %v2004 = vunpack.c.h.b16 %v1258
    %v2005 = vunpack.c.l.b16 %v1259
    %v2006 = vunpack.c.h.b16 %v1259
    %v2007 = vunpack.c.l.b16 %v1260
    %v2008 = vunpack.c.h.b16 %v1260
    %v2009 = vunpack.c.l.b16 %v1261
    %v2010 = vunpack.c.h.b16 %v1261
    %v2011 = vunpack.c.l.b16 %v1262
    %v2012 = vunpack.c.h.b16 %v1262
    %v2013 = vunpack.c.l.b16 %v1263
    %v2014 = vunpack.c.h.b16 %v1263
    %v2015 = vunpack.c.l.b16 %v1264
    %v2016 = vunpack.c.h.b16 %v1264
    %v2017 = vunpack.c.l.b16 %v1265
    %v2018 = vunpack.c.h.b16 %v1265
    %v2019 = vunpack.c.l.b16 %v1266
    %v2020 = vunpack.c.h.b16 %v1266
    %v2021 = vunpack.c.l.b16 %v1267
    %v2022 = vunpack.c.h.b16 %v1267
    %v2023 = vunpack.c.l.b16 %v1268
    %v2024 = vunpack.c.h.b16 %v1268
    %v2025 = vunpack.c.l.b16 %v1269
    %v2026 = vunpack.c.h.b16 %v1269
    %v2027 = vunpack.c.l.b16 %v1270
    %v2028 = vunpack.c.h.b16 %v1270
    %v2029 = vunpack.c.l.b16 %v1271
    %v2030 = vunpack.c.h.b16 %v1271
    %v2031 = vunpack.c.l.b16 %v1272
    %v2032 = vunpack.c.h.b16 %v1272
    %v2033 = vunpack.c.l.b16 %v1273
    %v2034 = vunpack.c.h.b16 %v1273
    %v2035 = vunpack.c.l.b16 %v1274
    %v2036 = vunpack.c.h.b16 %v1274
    %v2037 = vunpack.c.l.b16 %v1275
    %v2038 = vunpack.c.h.b16 %v1275
    %v2039 = vunpack.c.l.b16 %v1276
    %v2040 = vunpack.c.h.b16 %v1276
    %v2041 = vunpack.c.l.b16 %v1277
    %v2042 = vunpack.c.h.b16 %v1277
    %v2043 = vunpack.c.l.b16 %v1278
    %v2044 = vunpack.c.h.b16 %v1278
    %v2045 = vunpack.c.l.b16 %v1279
    %v2046 = vunpack.c.h.b16 %v1279
    %v2047 = vunpack.c.l.b16 %v1280
    %v2048 = vunpack.c.h.b16 %v1280
    %v2049 = vunpack.c.l.b16 %v1281
    %v2050 = vunpack.c.h.b16 %v1281
    %v2051 = vunpack.c.l.b16 %v1282
    %v2052 = vunpack.c.h.b16 %v1282
    %v2053 = vunpack.c.l.b16 %v1283
    %v2054 = vunpack.c.h.b16 %v1283
    %v2055 = vunpack.c.l.b16 %v1284
    %v2056 = vunpack.c.h.b16 %v1284
    %v2057 = vunpack.c.l.b16 %v1285
    %v2058 = vunpack.c.h.b16 %v1285
    %v2059 = vunpack.c.l.b16 %v1286
    %v2060 = vunpack.c.h.b16 %v1286
    %v2061 = vunpack.c.l.b16 %v1287
    %v2062 = vunpack.c.h.b16 %v1287
    %v2063 = vunpack.c.l.b16 %v1288
    %v2064 = vunpack.c.h.b16 %v1288
    %v2065 = vunpack.c.l.b16 %v1289
    %v2066 = vunpack.c.h.b16 %v1289
    %v2067 = vunpack.c.l.b16 %v1290
    %v2068 = vunpack.c.h.b16 %v1290
    %v2069 = vunpack.c.l.b16 %v1291
    %v2070 = vunpack.c.h.b16 %v1291
    %v2071 = vunpack.c.l.b16 %v1292
    %v2072 = vunpack.c.h.b16 %v1292
    %v2073 = vunpack.c.l.b16 %v1293
    %v2074 = vunpack.c.h.b16 %v1293
    %v2075 = vunpack.c.l.b16 %v1294
    %v2076 = vunpack.c.h.b16 %v1294
    %v2077 = vunpack.c.l.b16 %v1295
    %v2078 = vunpack.c.h.b16 %v1295
    %v2079 = vunpack.c.l.b16 %v1296
    %v2080 = vunpack.c.h.b16 %v1296
    %v2081 = vunpack.c.l.b16 %v1297
    %v2082 = vunpack.c.h.b16 %v1297
    %v2083 = vunpack.c.l.b16 %v1298
    %v2084 = vunpack.c.h.b16 %v1298
    %v2085 = vunpack.c.l.b16 %v1299
    %v2086 = vunpack.c.h.b16 %v1299
    %v2087 = vunpack.c.l.b16 %v1300
    %v2088 = vunpack.c.h.b16 %v1300
    %v2089 = vunpack.c.l.b16 %v1301
    %v2090 = vunpack.c.h.b16 %v1301
    %v2091 = vunpack.c.l.b16 %v1302
    %v2092 = vunpack.c.h.b16 %v1302
    %v2093 = vunpack.c.l.b16 %v1303
    %v2094 = vunpack.c.h.b16 %v1303
    %v2095 = vunpack.c.l.b16 %v1304
    %v2096 = vunpack.c.h.b16 %v1304
    %v2097 = vunpack.c.l.b16 %v1305
    %v2098 = vunpack.c.h.b16 %v1305
    %v2099 = vunpack.c.l.b16 %v1306
    %v2100 = vunpack.c.h.b16 %v1306
    %v2101 = vunpack.c.l.b16 %v1307
    %v2102 = vunpack.c.h.b16 %v1307
    %v2103 = vunpack.c.l.b16 %v1308
    %v2104 = vunpack.c.h.b16 %v1308
    %v2105 = vunpack.c.l.b16 %v1309
    %v2106 = vunpack.c.h.b16 %v1309
    %v2107 = vunpack.c.l.b16 %v1310
    %v2108 = vunpack.c.h.b16 %v1310
    %v2109 = vunpack.c.l.b16 %v1311
    %v2110 = vunpack.c.h.b16 %v1311
    %v2111 = vunpack.c.l.b16 %v1312
    %v2112 = vunpack.c.h.b16 %v1312
    %v2113 = vunpack.c.l.b16 %v1313
    %v2114 = vunpack.c.h.b16 %v1313
    %v2115 = vunpack.c.l.b16 %v1314
    %v2116 = vunpack.c.h.b16 %v1314
    %v2117 = vunpack.c.l.b16 %v1315
    %v2118 = vunpack.c.h.b16 %v1315
    %v2119 = vunpack.c.l.b16 %v1316
    %v2120 = vunpack.c.h.b16 %v1316
    %v2121 = vunpack.c.l.b16 %v1317
    %v2122 = vunpack.c.h.b16 %v1317
    %v2123 = vunpack.c.l.b16 %v1318
    %v2124 = vunpack.c.h.b16 %v1318
    %v2125 = vunpack.c.l.b16 %v1319
    %v2126 = vunpack.c.h.b16 %v1319
    %v2127 = vunpack.c.l.b16 %v1320
    %v2128 = vunpack.c.h.b16 %v1320
    %v2129 = vunpack.c.l.b16 %v1321
    %v2130 = vunpack.c.h.b16 %v1321
    %v2131 = vunpack.c.l.b16 %v1322
    %v2132 = vunpack.c.h.b16 %v1322
    %v2133 = vpack.c.b16 %v1629, %v1621
    %v2134 = vpack.c.b16 %v1630, %v1622
    %v2135 = vpack.c.b16 %v1631, %v1623
    %v2136 = vpack.c.b16 %v1632, %v1624
    %v2137 = vpack.c.b16 %v1633, %v1625
    %v2138 = vpack.c.b16 %v1634, %v1626
    %v2139 = vpack.c.b16 %v1635, %v1627
    %v2140 = vpack.c.b16 %v1636, %v1628
    %v2141 = vpack.c.b16 %v1645, %v1637
    %v2142 = vpack.c.b16 %v1646, %v1638
    %v2143 = vpack.c.b16 %v1647, %v1639
    %v2144 = vpack.c.b16 %v1648, %v1640
    %v2145 = vpack.c.b16 %v1649, %v1641
    %v2146 = vpack.c.b16 %v1650, %v1642
    %v2147 = vpack.c.b16 %v1651, %v1643
    %v2148 = vpack.c.b16 %v1652, %v1644
    %v2149 = vpack.c.b16 %v1661, %v1653
    %v2150 = vpack.c.b16 %v1662, %v1654
    %v2151 = vpack.c.b16 %v1663, %v1655
    %v2152 = vpack.c.b16 %v1664, %v1656
    %v2153 = vpack.c.b16 %v1665, %v1657
    %v2154 = vpack.c.b16 %v1666, %v1658
    %v2155 = vpack.c.b16 %v1667, %v1659
    %v2156 = vpack.c.b16 %v1668, %v1660
    %v2157 = vpack.c.b16 %v1677, %v1669
    %v2158 = vpack.c.b16 %v1678, %v1670
    %v2159 = vpack.c.b16 %v1679, %v1671
    %v2160 = vpack.c.b16 %v1680, %v1672
    %v2161 = vpack.c.b16 %v1681, %v1673
    %v2162 = vpack.c.b16 %v1682, %v1674
    %v2163 = vpack.c.b16 %v1683, %v1675
    %v2164 = vpack.c.b16 %v1684, %v1676
    %v2165 = vpack.c.b16 %v1693, %v1685
    %v2166 = vpack.c.b16 %v1694, %v1686
    %v2167 = vpack.c.b16 %v1695, %v1687
    %v2168 = vpack.c.b16 %v1696, %v1688
    %v2169 = vpack.c.b16 %v1697, %v1689
    %v2170 = vpack.c.b16 %v1698, %v1690
    %v2171 = vpack.c.b16 %v1699, %v1691
    %v2172 = vpack.c.b16 %v1700, %v1692
    %v2173 = vpack.c.b16 %v1709, %v1701
    %v2174 = vpack.c.b16 %v1710, %v1702
    %v2175 = vpack.c.b16 %v1711, %v1703
    %v2176 = vpack.c.b16 %v1712, %v1704
    %v2177 = vpack.c.b16 %v1713, %v1705
    %v2178 = vpack.c.b16 %v1714, %v1706
    %v2179 = vpack.c.b16 %v1715, %v1707
    %v2180 = vpack.c.b16 %v1716, %v1708
    %v2181 = vpack.c.b16 %v1725, %v1717
    %v2182 = vpack.c.b16 %v1726, %v1718
    %v2183 = vpack.c.b16 %v1727, %v1719
    %v2184 = vpack.c.b16 %v1728, %v1720
    %v2185 = vpack.c.b16 %v1729, %v1721
    %v2186 = vpack.c.b16 %v1730, %v1722
    %v2187 = vpack.c.b16 %v1731, %v1723
    %v2188 = vpack.c.b16 %v1732, %v1724
    %v2189 = vpack.c.b16 %v1741, %v1733
    %v2190 = vpack.c.b16 %v1742, %v1734
    %v2191 = vpack.c.b16 %v1743, %v1735
    %v2192 = vpack.c.b16 %v1744, %v1736
    %v2193 = vpack.c.b16 %v1745, %v1737
    %v2194 = vpack.c.b16 %v1746, %v1738
    %v2195 = vpack.c.b16 %v1747, %v1739
    %v2196 = vpack.c.b16 %v1748, %v1740
    %v2197 = vpack.c.b16 %v1757, %v1749
    %v2198 = vpack.c.b16 %v1758, %v1750
    %v2199 = vpack.c.b16 %v1759, %v1751
    %v2200 = vpack.c.b16 %v1760, %v1752
    %v2201 = vpack.c.b16 %v1761, %v1753
    %v2202 = vpack.c.b16 %v1762, %v1754
    %v2203 = vpack.c.b16 %v1763, %v1755
    %v2204 = vpack.c.b16 %v1764, %v1756
    %v2205 = vpack.c.b16 %v1773, %v1765
    %v2206 = vpack.c.b16 %v1774, %v1766
    %v2207 = vpack.c.b16 %v1775, %v1767
    %v2208 = vpack.c.b16 %v1776, %v1768
    %v2209 = vpack.c.b16 %v1777, %v1769
    %v2210 = vpack.c.b16 %v1778, %v1770
    %v2211 = vpack.c.b16 %v1779, %v1771
    %v2212 = vpack.c.b16 %v1780, %v1772
    %v2213 = vpack.c.b16 %v1789, %v1781
    %v2214 = vpack.c.b16 %v1790, %v1782
    %v2215 = vpack.c.b16 %v1791, %v1783
    %v2216 = vpack.c.b16 %v1792, %v1784
    %v2217 = vpack.c.b16 %v1793, %v1785
    %v2218 = vpack.c.b16 %v1794, %v1786
    %v2219 = vpack.c.b16 %v1795, %v1787
    %v2220 = vpack.c.b16 %v1796, %v1788
    %v2221 = vpack.c.b16 %v1805, %v1797
    %v2222 = vpack.c.b16 %v1806, %v1798
    %v2223 = vpack.c.b16 %v1807, %v1799
    %v2224 = vpack.c.b16 %v1808, %v1800
    %v2225 = vpack.c.b16 %v1809, %v1801
    %v2226 = vpack.c.b16 %v1810, %v1802
    %v2227 = vpack.c.b16 %v1811, %v1803
    %v2228 = vpack.c.b16 %v1812, %v1804
    %v2229 = vpack.c.b16 %v1821, %v1813
    %v2230 = vpack.c.b16 %v1822, %v1814
    %v2231 = vpack.c.b16 %v1823, %v1815
    %v2232 = vpack.c.b16 %v1824, %v1816
    %v2233 = vpack.c.b16 %v1825, %v1817
    %v2234 = vpack.c.b16 %v1826, %v1818
    %v2235 = vpack.c.b16 %v1827, %v1819
    %v2236 = vpack.c.b16 %v1828, %v1820
    %v2237 = vpack.c.b16 %v1837, %v1829
    %v2238 = vpack.c.b16 %v1838, %v1830
    %v2239 = vpack.c.b16 %v1839, %v1831
    %v2240 = vpack.c.b16 %v1840, %v1832
    %v2241 = vpack.c.b16 %v1841, %v1833
    %v2242 = vpack.c.b16 %v1842, %v1834
    %v2243 = vpack.c.b16 %v1843, %v1835
    %v2244 = vpack.c.b16 %v1844, %v1836
    %v2245 = vpack.c.b16 %v1853, %v1845
    %v2246 = vpack.c.b16 %v1854, %v1846
    %v2247 = vpack.c.b16 %v1855, %v1847
    %v2248 = vpack.c.b16 %v1856, %v1848
    %v2249 = vpack.c.b16 %v1857, %v1849
    %v2250 = vpack.c.b16 %v1858, %v1850
    %v2251 = vpack.c.b16 %v1859, %v1851
    %v2252 = vpack.c.b16 %v1860, %v1852
    %v2253 = vpack.c.b16 %v1869, %v1861
    %v2254 = vpack.c.b16 %v1870, %v1862
    %v2255 = vpack.c.b16 %v1871, %v1863
    %v2256 = vpack.c.b16 %v1872, %v1864
    %v2257 = vpack.c.b16 %v1873, %v1865
    %v2258 = vpack.c.b16 %v1874, %v1866
    %v2259 = vpack.c.b16 %v1875, %v1867
    %v2260 = vpack.c.b16 %v1876, %v1868
    %v2261 = vpack.c.b16 %v1885, %v1877
    %v2262 = vpack.c.b16 %v1886, %v1878
    %v2263 = vpack.c.b16 %v1887, %v1879
    %v2264 = vpack.c.b16 %v1888, %v1880
    %v2265 = vpack.c.b16 %v1889, %v1881
    %v2266 = vpack.c.b16 %v1890, %v1882
    %v2267 = vpack.c.b16 %v1891, %v1883
    %v2268 = vpack.c.b16 %v1892, %v1884
    %v2269 = vpack.c.b16 %v1901, %v1893
    %v2270 = vpack.c.b16 %v1902, %v1894
    %v2271 = vpack.c.b16 %v1903, %v1895
    %v2272 = vpack.c.b16 %v1904, %v1896
    %v2273 = vpack.c.b16 %v1905, %v1897
    %v2274 = vpack.c.b16 %v1906, %v1898
    %v2275 = vpack.c.b16 %v1907, %v1899
    %v2276 = vpack.c.b16 %v1908, %v1900
    %v2277 = vpack.c.b16 %v1917, %v1909
    %v2278 = vpack.c.b16 %v1918, %v1910
    %v2279 = vpack.c.b16 %v1919, %v1911
    %v2280 = vpack.c.b16 %v1920, %v1912
    %v2281 = vpack.c.b16 %v1921, %v1913
    %v2282 = vpack.c.b16 %v1922, %v1914
    %v2283 = vpack.c.b16 %v1923, %v1915
    %v2284 = vpack.c.b16 %v1924, %v1916
    %v2285 = vpack.c.b16 %v1933, %v1925
    %v2286 = vpack.c.b16 %v1934, %v1926
    %v2287 = vpack.c.b16 %v1935, %v1927
    %v2288 = vpack.c.b16 %v1936, %v1928
    %v2289 = vpack.c.b16 %v1937, %v1929
    %v2290 = vpack.c.b16 %v1938, %v1930
    %v2291 = vpack.c.b16 %v1939, %v1931
    %v2292 = vpack.c.b16 %v1940, %v1932
    %v2293 = vpack.c.b16 %v1949, %v1941
    %v2294 = vpack.c.b16 %v1950, %v1942
    %v2295 = vpack.c.b16 %v1951, %v1943
    %v2296 = vpack.c.b16 %v1952, %v1944
    %v2297 = vpack.c.b16 %v1953, %v1945
    %v2298 = vpack.c.b16 %v1954, %v1946
    %v2299 = vpack.c.b16 %v1955, %v1947
    %v2300 = vpack.c.b16 %v1956, %v1948
    %v2301 = vpack.c.b16 %v1965, %v1957
    %v2302 = vpack.c.b16 %v1966, %v1958
    %v2303 = vpack.c.b16 %v1967, %v1959
    %v2304 = vpack.c.b16 %v1968, %v1960
    %v2305 = vpack.c.b16 %v1969, %v1961
    %v2306 = vpack.c.b16 %v1970, %v1962
    %v2307 = vpack.c.b16 %v1971, %v1963
    %v2308 = vpack.c.b16 %v1972, %v1964
    %v2309 = vpack.c.b16 %v1981, %v1973
    %v2310 = vpack.c.b16 %v1982, %v1974
    %v2311 = vpack.c.b16 %v1983, %v1975
    %v2312 = vpack.c.b16 %v1984, %v1976
    %v2313 = vpack.c.b16 %v1985, %v1977
    %v2314 = vpack.c.b16 %v1986, %v1978
    %v2315 = vpack.c.b16 %v1987, %v1979
    %v2316 = vpack.c.b16 %v1988, %v1980
    %v2317 = vpack.c.b16 %v1997, %v1989
    %v2318 = vpack.c.b16 %v1998, %v1990
    %v2319 = vpack.c.b16 %v1999, %v1991
    %v2320 = vpack.c.b16 %v2000, %v1992
    %v2321 = vpack.c.b16 %v2001, %v1993
    %v2322 = vpack.c.b16 %v2002, %v1994
    %v2323 = vpack.c.b16 %v2003, %v1995
    %v2324 = vpack.c.b16 %v2004, %v1996
    %v2325 = vpack.c.b16 %v2013, %v2005
    %v2326 = vpack.c.b16 %v2014, %v2006
    %v2327 = vpack.c.b16 %v2015, %v2007
    %v2328 = vpack.c.b16 %v2016, %v2008
    %v2329 = vpack.c.b16 %v2017, %v2009
    %v2330 = vpack.c.b16 %v2018, %v2010
    %v2331 = vpack.c.b16 %v2019, %v2011
    %v2332 = vpack.c.b16 %v2020, %v2012
    %v2333 = vpack.c.b16 %v2029, %v2021
    %v2334 = vpack.c.b16 %v2030, %v2022
    %v2335 = vpack.c.b16 %v2031, %v2023
    %v2336 = vpack.c.b16 %v2032, %v2024
    %v2337 = vpack.c.b16 %v2033, %v2025
    %v2338 = vpack.c.b16 %v2034, %v2026
    %v2339 = vpack.c.b16 %v2035, %v2027
    %v2340 = vpack.c.b16 %v2036, %v2028
    %v2341 = vpack.c.b16 %v2045, %v2037
    %v2342 = vpack.c.b16 %v2046, %v2038
    %v2343 = vpack.c.b16 %v2047, %v2039
    %v2344 = vpack.c.b16 %v2048, %v2040
    %v2345 = vpack.c.b16 %v2049, %v2041
    %v2346 = vpack.c.b16 %v2050, %v2042
    %v2347 = vpack.c.b16 %v2051, %v2043
    %v2348 = vpack.c.b16 %v2052, %v2044
    %v2349 = vpack.c.b16 %v2061, %v2053
    %v2350 = vpack.c.b16 %v2062, %v2054
    %v2351 = vpack.c.b16 %v2063, %v2055
    %v2352 = vpack.c.b16 %v2064, %v2056
    %v2353 = vpack.c.b16 %v2065, %v2057
    %v2354 = vpack.c.b16 %v2066, %v2058
    %v2355 = vpack.c.b16 %v2067, %v2059
    %v2356 = vpack.c.b16 %v2068, %v2060
    %v2357 = vpack.c.b16 %v2077, %v2069
    %v2358 = vpack.c.b16 %v2078, %v2070
    %v2359 = vpack.c.b16 %v2079, %v2071
    %v2360 = vpack.c.b16 %v2080, %v2072
    %v2361 = vpack.c.b16 %v2081, %v2073
    %v2362 = vpack.c.b16 %v2082, %v2074
    %v2363 = vpack.c.b16 %v2083, %v2075
    %v2364 = vpack.c.b16 %v2084, %v2076
    %v2365 = vpack.c.b16 %v2093, %v2085
    %v2366 = vpack.c.b16 %v2094, %v2086
    %v2367 = vpack.c.b16 %v2095, %v2087
    %v2368 = vpack.c.b16 %v2096, %v2088
    %v2369 = vpack.c.b16 %v2097, %v2089
    %v2370 = vpack.c.b16 %v2098, %v2090
    %v2371 = vpack.c.b16 %v2099, %v2091
    %v2372 = vpack.c.b16 %v2100, %v2092
    %v2373 = vpack.c.b16 %v2109, %v2101
    %v2374 = vpack.c.b16 %v2110, %v2102
    %v2375 = vpack.c.b16 %v2111, %v2103
    %v2376 = vpack.c.b16 %v2112, %v2104
    %v2377 = vpack.c.b16 %v2113, %v2105
    %v2378 = vpack.c.b16 %v2114, %v2106
    %v2379 = vpack.c.b16 %v2115, %v2107
    %v2380 = vpack.c.b16 %v2116, %v2108
    %v2381 = vpack.c.b16 %v2125, %v2117
    %v2382 = vpack.c.b16 %v2126, %v2118
    %v2383 = vpack.c.b16 %v2127, %v2119
    %v2384 = vpack.c.b16 %v2128, %v2120
    %v2385 = vpack.c.b16 %v2129, %v2121
    %v2386 = vpack.c.b16 %v2130, %v2122
    %v2387 = vpack.c.b16 %v2131, %v2123
    %v2388 = vpack.c.b16 %v2132, %v2124
    %2645 = vmatprep.subr.bf16.mxu0 %v2134
    %2646 = vmatpush1.bf16.msra.mxu0 %v2133
    %2647 = vmatprep.subr.bf16.mxu0 %v2142
    %2648 = vmatpush1.bf16.msra.mxu0 %v2141
    %2649 = vmatprep.subr.bf16.mxu0 %v2150
    %2650 = vmatpush1.bf16.msra.mxu0 %v2149
    %2651 = vmatprep.subr.bf16.mxu0 %v2158
    %2652 = vmatpush1.bf16.msra.mxu0 %v2157
    %2653 = vmatprep.subr.bf16.mxu0 %v2166
    %2654 = vmatpush1.bf16.msra.mxu0 %v2165
    %2655 = vmatprep.subr.bf16.mxu0 %v2174
    %2656 = vmatpush1.bf16.msra.mxu0 %v2173
    %2657 = vmatprep.subr.bf16.mxu0 %v2182
    %2658 = vmatpush1.bf16.msra.mxu0 %v2181
    %2659 = vmatprep.subr.bf16.mxu0 %v2190
    %2660 = vmatpush1.bf16.msra.mxu0 %v2189
    %2661 = vmatprep.subr.bf16.mxu0 %v2198
    %2662 = vmatpush1.bf16.msra.mxu0 %v2197
    %2663 = vmatprep.subr.bf16.mxu0 %v2206
    %2664 = vmatpush1.bf16.msra.mxu0 %v2205
    %2665 = vmatprep.subr.bf16.mxu0 %v2214
    %2666 = vmatpush1.bf16.msra.mxu0 %v2213
    %2667 = vmatprep.subr.bf16.mxu0 %v2222
    %2668 = vmatpush1.bf16.msra.mxu0 %v2221
    %2669 = vmatprep.subr.bf16.mxu0 %v2230
    %2670 = vmatpush1.bf16.msra.mxu0 %v2229
    %2671 = vmatprep.subr.bf16.mxu0 %v2238
    %2672 = vmatpush1.bf16.msra.mxu0 %v2237
    %2673 = vmatprep.subr.bf16.mxu0 %v2246
    %2674 = vmatpush1.bf16.msra.mxu0 %v2245
    %2675 = vmatprep.subr.bf16.mxu0 %v2254
    %2676 = vmatpush1.bf16.msra.mxu0 %v2253
    %2677 = vmatprep.mubr.bf16.mxu0 %v1052
    %2678 = vmatmul.mubr.bf16.gmra.mrb[0].mxu0 %v1051
    %v2679 = vpop.f32.mrb[0].mxu0
    %v2680 = vadd.f32 %v1328, %v2679
    %v2681 = vpop.f32.mrb[0].mxu0
    %v2682 = vadd.f32 %v1332, %v2681
    %v2683 = vpop.f32.mrb[0].mxu0
    %v2684 = vadd.f32 %v1328, %v2683
    %v2685 = vpop.f32.mrb[0].mxu0
    %v2686 = vadd.f32 %v1332, %v2685
    %2687 = vmatprep.mubr.bf16.mxu0 %v1056
    %2688 = vmatmul.mubr.bf16.gmra.mrb[0].mxu0 %v1055
    %v2689 = vpop.f32.mrb[0].mxu0
    %v2690 = vadd.f32 %v1328, %v2689
    %v2691 = vpop.f32.mrb[0].mxu0
    %v2692 = vadd.f32 %v1332, %v2691
    %v2693 = vpop.f32.mrb[0].mxu0
    %v2694 = vadd.f32 %v1328, %v2693
    %v2695 = vpop.f32.mrb[0].mxu0
    %v2696 = vadd.f32 %v1332, %v2695
    %2697 = vmatprep.mubr.bf16.mxu0 %v1060
    %2698 = vmatmul.mubr.bf16.gmra.mrb[0].mxu0 %v1059
    %v2699 = vpop.f32.mrb[0].mxu0
    %v2700 = vadd.f32 %v1328, %v2699
    %v2701 = vpop.f32.mrb[0].mxu0
    %v2702 = vadd.f32 %v1332, %v2701
    %v2703 = vpop.f32.mrb[0].mxu0
    %v2704 = vadd.f32 %v1328, %v2703
    %v2705 = vpop.f32.mrb[0].mxu0
    %v2706 = vadd.f32 %v1332, %v2705
    %2707 = vmatprep.mubr.bf16.mxu0 %v1064
    %2708 = vmatmul.mubr.bf16.gmra.mrb[0].mxu0 %v1063
    %v2709 = vpop.f32.mrb[0].mxu0
    %v2710 = vadd.f32 %v1328, %v2709
    %v2711 = vpop.f32.mrb[0].mxu0
    %v2712 = vadd.f32 %v1332, %v2711
    %v2713 = vpop.f32.mrb[0].mxu0
    %v2714 = vadd.f32 %v1328, %v2713
    %v2715 = vpop.f32.mrb[0].mxu0
    %v2716 = vadd.f32 %v1332, %v2715
    %2717 = vdwg.mxu0
    %2718 = vmatprep.subr.bf16.mxu0 %v2262
    %2719 = vmatpush1.bf16.msra.mxu0 %v2261
    %2720 = vmatprep.subr.bf16.mxu0 %v2270
    %2721 = vmatpush1.bf16.msra.mxu0 %v2269
    %2722 = vmatprep.subr.bf16.mxu0 %v2278
    %2723 = vmatpush1.bf16.msra.mxu0 %v2277
    %2724 = vmatprep.subr.bf16.mxu0 %v2286
    %2725 = vmatpush1.bf16.msra.mxu0 %v2285
    %2726 = vmatprep.subr.bf16.mxu0 %v2294
    %2727 = vmatpush1.bf16.msra.mxu0 %v2293
    %2728 = vmatprep.subr.bf16.mxu0 %v2302
    %2729 = vmatpush1.bf16.msra.mxu0 %v2301
    %2730 = vmatprep.subr.bf16.mxu0 %v2310
    %2731 = vmatpush1.bf16.msra.mxu0 %v2309
    %2732 = vmatprep.subr.bf16.mxu0 %v2318
    %2733 = vmatpush1.bf16.msra.mxu0 %v2317
    %2734 = vmatprep.subr.bf16.mxu0 %v2326
    %2735 = vmatpush1.bf16.msra.mxu0 %v2325
    %2736 = vmatprep.subr.bf16.mxu0 %v2334
    %2737 = vmatpush1.bf16.msra.mxu0 %v2333
    %2738 = vmatprep.subr.bf16.mxu0 %v2342
    %2739 = vmatpush1.bf16.msra.mxu0 %v2341
    %2740 = vmatprep.subr.bf16.mxu0 %v2350
    %2741 = vmatpush1.bf16.msra.mxu0 %v2349
    %2742 = vmatprep.subr.bf16.mxu0 %v2358
    %2743 = vmatpush1.bf16.msra.mxu0 %v2357
    %2744 = vmatprep.subr.bf16.mxu0 %v2366
    %2745 = vmatpush1.bf16.msra.mxu0 %v2365
    %2746 = vmatprep.subr.bf16.mxu0 %v2374
    %2747 = vmatpush1.bf16.msra.mxu0 %v2373
    %2748 = vmatprep.subr.bf16.mxu0 %v2382
    %2749 = vmatpush1.bf16.msra.mxu0 %v2381
    %2750 = vmatprep.mubr.bf16.mxu0 %v1054
    %2751 = vmatmul.mubr.bf16.gmra.mrb[0].mxu0 %v1053
    %v2752 = vpop.f32.mrb[0].mxu0
    %v2753 = vadd.f32 %v2680, %v2752
    %v2754 = vpop.f32.mrb[0].mxu0
    %v2755 = vadd.f32 %v2682, %v2754
    %v2756 = vpop.f32.mrb[0].mxu0
    %v2757 = vadd.f32 %v2684, %v2756
    %v2758 = vpop.f32.mrb[0].mxu0
    %v2759 = vadd.f32 %v2686, %v2758
    %2760 = vmatprep.mubr.bf16.mxu0 %v1058
    %2761 = vmatmul.mubr.bf16.gmra.mrb[0].mxu0 %v1057
    %v2762 = vpop.f32.mrb[0].mxu0
    %v2763 = vadd.f32 %v2690, %v2762
    %v2764 = vpop.f32.mrb[0].mxu0
    %v2765 = vadd.f32 %v2692, %v2764
    %v2766 = vpop.f32.mrb[0].mxu0
    %v2767 = vadd.f32 %v2694, %v2766
    %v2768 = vpop.f32.mrb[0].mxu0
    %v2769 = vadd.f32 %v2696, %v2768
    %2770 = vmatprep.mubr.bf16.mxu0 %v1062
    %2771 = vmatmul.mubr.bf16.gmra.mrb[0].mxu0 %v1061
    %v2772 = vpop.f32.mrb[0].mxu0
    %v2773 = vadd.f32 %v2700, %v2772
    %v2774 = vpop.f32.mrb[0].mxu0
    %v2775 = vadd.f32 %v2702, %v2774
    %v2776 = vpop.f32.mrb[0].mxu0
    %v2777 = vadd.f32 %v2704, %v2776
    %v2778 = vpop.f32.mrb[0].mxu0
    %v2779 = vadd.f32 %v2706, %v2778
    %2780 = vmatprep.mubr.bf16.mxu0 %v1066
    %2781 = vmatmul.mubr.bf16.gmra.mrb[0].mxu0 %v1065
    %v2782 = vpop.f32.mrb[0].mxu0
    %v2783 = vadd.f32 %v2710, %v2782
    %v2784 = vpop.f32.mrb[0].mxu0
    %v2785 = vadd.f32 %v2712, %v2784
    %v2786 = vpop.f32.mrb[0].mxu0
    %v2787 = vadd.f32 %v2714, %v2786
    %v2788 = vpop.f32.mrb[0].mxu0
    %v2789 = vadd.f32 %v2716, %v2788
    %2790 = vdwg.mxu0
    %2791 = vmatprep.subr.bf16.mxu0 %v2136
    %2792 = vmatpush1.bf16.msra.mxu0 %v2135
    %2793 = vmatprep.subr.bf16.mxu0 %v2144
    %2794 = vmatpush1.bf16.msra.mxu0 %v2143
    %2795 = vmatprep.subr.bf16.mxu0 %v2152
    %2796 = vmatpush1.bf16.msra.mxu0 %v2151
    %2797 = vmatprep.subr.bf16.mxu0 %v2160
    %2798 = vmatpush1.bf16.msra.mxu0 %v2159
    %2799 = vmatprep.subr.bf16.mxu0 %v2168
    %2800 = vmatpush1.bf16.msra.mxu0 %v2167
    %2801 = vmatprep.subr.bf16.mxu0 %v2176
    %2802 = vmatpush1.bf16.msra.mxu0 %v2175
    %2803 = vmatprep.subr.bf16.mxu0 %v2184
    %2804 = vmatpush1.bf16.msra.mxu0 %v2183
    %2805 = vmatprep.subr.bf16.mxu0 %v2192
    %2806 = vmatpush1.bf16.msra.mxu0 %v2191
    %2807 = vmatprep.subr.bf16.mxu0 %v2200
    %2808 = vmatpush1.bf16.msra.mxu0 %v2199
    %2809 = vmatprep.subr.bf16.mxu0 %v2208
    %2810 = vmatpush1.bf16.msra.mxu0 %v2207
    %2811 = vmatprep.subr.bf16.mxu0 %v2216
    %2812 = vmatpush1.bf16.msra.mxu0 %v2215
    %2813 = vmatprep.subr.bf16.mxu0 %v2224
    %2814 = vmatpush1.bf16.msra.mxu0 %v2223
    %2815 = vmatprep.subr.bf16.mxu0 %v2232
    %2816 = vmatpush1.bf16.msra.mxu0 %v2231
    %2817 = vmatprep.subr.bf16.mxu0 %v2240
    %2818 = vmatpush1.bf16.msra.mxu0 %v2239
    %2819 = vmatprep.subr.bf16.mxu0 %v2248
    %2820 = vmatpush1.bf16.msra.mxu0 %v2247
    %2821 = vmatprep.subr.bf16.mxu0 %v2256
    %2822 = vmatpush1.bf16.msra.mxu0 %v2255
    %2823 = vmatprep.mubr.bf16.mxu0 %v1052
    %2824 = vmatmul.mubr.bf16.gmra.mrb[0].mxu0 %v1051
    %v2825 = vpop.f32.mrb[0].mxu0
    %v2826 = vadd.f32 %v1336, %v2825
    %v2827 = vpop.f32.mrb[0].mxu0
    %v2828 = vadd.f32 %v1340, %v2827
    %v2829 = vpop.f32.mrb[0].mxu0
    %v2830 = vadd.f32 %v1336, %v2829
    %v2831 = vpop.f32.mrb[0].mxu0
    %v2832 = vadd.f32 %v1340, %v2831
    %2833 = vmatprep.mubr.bf16.mxu0 %v1056
    %2834 = vmatmul.mubr.bf16.gmra.mrb[0].mxu0 %v1055
    %v2835 = vpop.f32.mrb[0].mxu0
    %v2836 = vadd.f32 %v1336, %v2835
    %v2837 = vpop.f32.mrb[0].mxu0
    %v2838 = vadd.f32 %v1340, %v2837
    %v2839 = vpop.f32.mrb[0].mxu0
    %v2840 = vadd.f32 %v1336, %v2839
    %v2841 = vpop.f32.mrb[0].mxu0
    %v2842 = vadd.f32 %v1340, %v2841
    %2843 = vmatprep.mubr.bf16.mxu0 %v1060
    %2844 = vmatmul.mubr.bf16.gmra.mrb[0].mxu0 %v1059
    %v2845 = vpop.f32.mrb[0].mxu0
    %v2846 = vadd.f32 %v1336, %v2845
    %v2847 = vpop.f32.mrb[0].mxu0
    %v2848 = vadd.f32 %v1340, %v2847
    %v2849 = vpop.f32.mrb[0].mxu0
    %v2850 = vadd.f32 %v1336, %v2849
    %v2851 = vpop.f32.mrb[0].mxu0
    %v2852 = vadd.f32 %v1340, %v2851
    %2853 = vmatprep.mubr.bf16.mxu0 %v1064
    %2854 = vmatmul.mubr.bf16.gmra.mrb[0].mxu0 %v1063
    %v2855 = vpop.f32.mrb[0].mxu0
    %v2856 = vadd.f32 %v1336, %v2855
    %v2857 = vpop.f32.mrb[0].mxu0
    %v2858 = vadd.f32 %v1340, %v2857
    %v2859 = vpop.f32.mrb[0].mxu0
    %v2860 = vadd.f32 %v1336, %v2859
    %v2861 = vpop.f32.mrb[0].mxu0
    %v2862 = vadd.f32 %v1340, %v2861
    %2863 = vdwg.mxu0
    %2864 = vmatprep.subr.bf16.mxu0 %v2264
    %2865 = vmatpush1.bf16.msra.mxu0 %v2263
    %2866 = vmatprep.subr.bf16.mxu0 %v2272
    %2867 = vmatpush1.bf16.msra.mxu0 %v2271
    %2868 = vmatprep.subr.bf16.mxu0 %v2280
    %2869 = vmatpush1.bf16.msra.mxu0 %v2279
    %2870 = vmatprep.subr.bf16.mxu0 %v2288
    %2871 = vmatpush1.bf16.msra.mxu0 %v2287
    %2872 = vmatprep.subr.bf16.mxu0 %v2296
    %2873 = vmatpush1.bf16.msra.mxu0 %v2295
    %2874 = vmatprep.subr.bf16.mxu0 %v2304
    %2875 = vmatpush1.bf16.msra.mxu0 %v2303
    %2876 = vmatprep.subr.bf16.mxu0 %v2312
    %2877 = vmatpush1.bf16.msra.mxu0 %v2311
    %2878 = vmatprep.subr.bf16.mxu0 %v2320
    %2879 = vmatpush1.bf16.msra.mxu0 %v2319
    %2880 = vmatprep.subr.bf16.mxu0 %v2328
    %2881 = vmatpush1.bf16.msra.mxu0 %v2327
    %2882 = vmatprep.subr.bf16.mxu0 %v2336
    %2883 = vmatpush1.bf16.msra.mxu0 %v2335
    %2884 = vmatprep.subr.bf16.mxu0 %v2344
    %2885 = vmatpush1.bf16.msra.mxu0 %v2343
    %2886 = vmatprep.subr.bf16.mxu0 %v2352
    %2887 = vmatpush1.bf16.msra.mxu0 %v2351
    %2888 = vmatprep.subr.bf16.mxu0 %v2360
    %2889 = vmatpush1.bf16.msra.mxu0 %v2359
    %2890 = vmatprep.subr.bf16.mxu0 %v2368
    %2891 = vmatpush1.bf16.msra.mxu0 %v2367
    %2892 = vmatprep.subr.bf16.mxu0 %v2376
    %2893 = vmatpush1.bf16.msra.mxu0 %v2375
    %2894 = vmatprep.subr.bf16.mxu0 %v2384
    %2895 = vmatpush1.bf16.msra.mxu0 %v2383
    %2896 = vmatprep.mubr.bf16.mxu0 %v1054
    %2897 = vmatmul.mubr.bf16.gmra.mrb[0].mxu0 %v1053
    %v2898 = vpop.f32.mrb[0].mxu0
    %v2899 = vadd.f32 %v2826, %v2898
    %v2900 = vpop.f32.mrb[0].mxu0
    %v2901 = vadd.f32 %v2828, %v2900
    %v2902 = vpop.f32.mrb[0].mxu0
    %v2903 = vadd.f32 %v2830, %v2902
    %v2904 = vpop.f32.mrb[0].mxu0
    %v2905 = vadd.f32 %v2832, %v2904
    %2906 = vmatprep.mubr.bf16.mxu0 %v1058
    %2907 = vmatmul.mubr.bf16.gmra.mrb[0].mxu0 %v1057
    %v2908 = vpop.f32.mrb[0].mxu0
    %v2909 = vadd.f32 %v2836, %v2908
    %v2910 = vpop.f32.mrb[0].mxu0
    %v2911 = vadd.f32 %v2838, %v2910
    %v2912 = vpop.f32.mrb[0].mxu0
    %v2913 = vadd.f32 %v2840, %v2912
    %v2914 = vpop.f32.mrb[0].mxu0
    %v2915 = vadd.f32 %v2842, %v2914
    %2916 = vmatprep.mubr.bf16.mxu0 %v1062
    %2917 = vmatmul.mubr.bf16.gmra.mrb[0].mxu0 %v1061
    %v2918 = vpop.f32.mrb[0].mxu0
    %v2919 = vadd.f32 %v2846, %v2918
    %v2920 = vpop.f32.mrb[0].mxu0
    %v2921 = vadd.f32 %v2848, %v2920
    %v2922 = vpop.f32.mrb[0].mxu0
    %v2923 = vadd.f32 %v2850, %v2922
    %v2924 = vpop.f32.mrb[0].mxu0
    %v2925 = vadd.f32 %v2852, %v2924
    %2926 = vmatprep.mubr.bf16.mxu0 %v1066
    %2927 = vmatmul.mubr.bf16.gmra.mrb[0].mxu0 %v1065
    %v2928 = vpop.f32.mrb[0].mxu0
    %v2929 = vadd.f32 %v2856, %v2928
    %v2930 = vpop.f32.mrb[0].mxu0
    %v2931 = vadd.f32 %v2858, %v2930
    %v2932 = vpop.f32.mrb[0].mxu0
    %v2933 = vadd.f32 %v2860, %v2932
    %v2934 = vpop.f32.mrb[0].mxu0
    %v2935 = vadd.f32 %v2862, %v2934
    %2936 = vdwg.mxu0
    %2937 = vmatprep.subr.bf16.mxu0 %v2138
    %2938 = vmatpush1.bf16.msra.mxu0 %v2137
    %2939 = vmatprep.subr.bf16.mxu0 %v2146
    %2940 = vmatpush1.bf16.msra.mxu0 %v2145
    %2941 = vmatprep.subr.bf16.mxu0 %v2154
    %2942 = vmatpush1.bf16.msra.mxu0 %v2153
    %2943 = vmatprep.subr.bf16.mxu0 %v2162
    %2944 = vmatpush1.bf16.msra.mxu0 %v2161
    %2945 = vmatprep.subr.bf16.mxu0 %v2170
    %2946 = vmatpush1.bf16.msra.mxu0 %v2169
    %2947 = vmatprep.subr.bf16.mxu0 %v2178
    %2948 = vmatpush1.bf16.msra.mxu0 %v2177
    %2949 = vmatprep.subr.bf16.mxu0 %v2186
    %2950 = vmatpush1.bf16.msra.mxu0 %v2185
    %2951 = vmatprep.subr.bf16.mxu0 %v2194
    %2952 = vmatpush1.bf16.msra.mxu0 %v2193
    %2953 = vmatprep.subr.bf16.mxu0 %v2202
    %2954 = vmatpush1.bf16.msra.mxu0 %v2201
    %2955 = vmatprep.subr.bf16.mxu0 %v2210
    %2956 = vmatpush1.bf16.msra.mxu0 %v2209
    %2957 = vmatprep.subr.bf16.mxu0 %v2218
    %2958 = vmatpush1.bf16.msra.mxu0 %v2217
    %2959 = vmatprep.subr.bf16.mxu0 %v2226
    %2960 = vmatpush1.bf16.msra.mxu0 %v2225
    %2961 = vmatprep.subr.bf16.mxu0 %v2234
    %2962 = vmatpush1.bf16.msra.mxu0 %v2233
    %2963 = vmatprep.subr.bf16.mxu0 %v2242
    %2964 = vmatpush1.bf16.msra.mxu0 %v2241
    %2965 = vmatprep.subr.bf16.mxu0 %v2250
    %2966 = vmatpush1.bf16.msra.mxu0 %v2249
    %2967 = vmatprep.subr.bf16.mxu0 %v2258
    %2968 = vmatpush1.bf16.msra.mxu0 %v2257
    %2969 = vmatprep.mubr.bf16.mxu0 %v1052
    %2970 = vmatmul.mubr.bf16.gmra.mrb[0].mxu0 %v1051
    %v2971 = vpop.f32.mrb[0].mxu0
    %v2972 = vadd.f32 %v1344, %v2971
    %v2973 = vpop.f32.mrb[0].mxu0
    %v2974 = vadd.f32 %v1348, %v2973
    %v2975 = vpop.f32.mrb[0].mxu0
    %v2976 = vadd.f32 %v1344, %v2975
    %v2977 = vpop.f32.mrb[0].mxu0
    %v2978 = vadd.f32 %v1348, %v2977
    %2979 = vmatprep.mubr.bf16.mxu0 %v1056
    %2980 = vmatmul.mubr.bf16.gmra.mrb[0].mxu0 %v1055
    %v2981 = vpop.f32.mrb[0].mxu0
    %v2982 = vadd.f32 %v1344, %v2981
    %v2983 = vpop.f32.mrb[0].mxu0
    %v2984 = vadd.f32 %v1348, %v2983
    %v2985 = vpop.f32.mrb[0].mxu0
    %v2986 = vadd.f32 %v1344, %v2985
    %v2987 = vpop.f32.mrb[0].mxu0
    %v2988 = vadd.f32 %v1348, %v2987
    %2989 = vmatprep.mubr.bf16.mxu0 %v1060
    %2990 = vmatmul.mubr.bf16.gmra.mrb[0].mxu0 %v1059
    %v2991 = vpop.f32.mrb[0].mxu0
    %v2992 = vadd.f32 %v1344, %v2991
    %v2993 = vpop.f32.mrb[0].mxu0
    %v2994 = vadd.f32 %v1348, %v2993
    %v2995 = vpop.f32.mrb[0].mxu0
    %v2996 = vadd.f32 %v1344, %v2995
    %v2997 = vpop.f32.mrb[0].mxu0
    %v2998 = vadd.f32 %v1348, %v2997
    %2999 = vmatprep.mubr.bf16.mxu0 %v1064
    %3000 = vmatmul.mubr.bf16.gmra.mrb[0].mxu0 %v1063
    %v3001 = vpop.f32.mrb[0].mxu0
    %v3002 = vadd.f32 %v1344, %v3001
    %v3003 = vpop.f32.mrb[0].mxu0
    %v3004 = vadd.f32 %v1348, %v3003
    %v3005 = vpop.f32.mrb[0].mxu0
    %v3006 = vadd.f32 %v1344, %v3005
    %v3007 = vpop.f32.mrb[0].mxu0
    %v3008 = vadd.f32 %v1348, %v3007
    %3009 = vdwg.mxu0
    %3010 = vmatprep.subr.bf16.mxu0 %v2266
    %3011 = vmatpush1.bf16.msra.mxu0 %v2265
    %3012 = vmatprep.subr.bf16.mxu0 %v2274
    %3013 = vmatpush1.bf16.msra.mxu0 %v2273
    %3014 = vmatprep.subr.bf16.mxu0 %v2282
    %3015 = vmatpush1.bf16.msra.mxu0 %v2281
    %3016 = vmatprep.subr.bf16.mxu0 %v2290
    %3017 = vmatpush1.bf16.msra.mxu0 %v2289
    %3018 = vmatprep.subr.bf16.mxu0 %v2298
    %3019 = vmatpush1.bf16.msra.mxu0 %v2297
    %3020 = vmatprep.subr.bf16.mxu0 %v2306
    %3021 = vmatpush1.bf16.msra.mxu0 %v2305
    %3022 = vmatprep.subr.bf16.mxu0 %v2314
    %3023 = vmatpush1.bf16.msra.mxu0 %v2313
    %3024 = vmatprep.subr.bf16.mxu0 %v2322
    %3025 = vmatpush1.bf16.msra.mxu0 %v2321
    %3026 = vmatprep.subr.bf16.mxu0 %v2330
    %3027 = vmatpush1.bf16.msra.mxu0 %v2329
    %3028 = vmatprep.subr.bf16.mxu0 %v2338
    %3029 = vmatpush1.bf16.msra.mxu0 %v2337
    %3030 = vmatprep.subr.bf16.mxu0 %v2346
    %3031 = vmatpush1.bf16.msra.mxu0 %v2345
    %3032 = vmatprep.subr.bf16.mxu0 %v2354
    %3033 = vmatpush1.bf16.msra.mxu0 %v2353
    %3034 = vmatprep.subr.bf16.mxu0 %v2362
    %3035 = vmatpush1.bf16.msra.mxu0 %v2361
    %3036 = vmatprep.subr.bf16.mxu0 %v2370
    %3037 = vmatpush1.bf16.msra.mxu0 %v2369
    %3038 = vmatprep.subr.bf16.mxu0 %v2378
    %3039 = vmatpush1.bf16.msra.mxu0 %v2377
    %3040 = vmatprep.subr.bf16.mxu0 %v2386
    %3041 = vmatpush1.bf16.msra.mxu0 %v2385
    %3042 = vmatprep.mubr.bf16.mxu0 %v1054
    %3043 = vmatmul.mubr.bf16.gmra.mrb[0].mxu0 %v1053
    %v3044 = vpop.f32.mrb[0].mxu0
    %v3045 = vadd.f32 %v2972, %v3044
    %v3046 = vpop.f32.mrb[0].mxu0
    %v3047 = vadd.f32 %v2974, %v3046
    %v3048 = vpop.f32.mrb[0].mxu0
    %v3049 = vadd.f32 %v2976, %v3048
    %v3050 = vpop.f32.mrb[0].mxu0
    %v3051 = vadd.f32 %v2978, %v3050
    %3052 = vmatprep.mubr.bf16.mxu0 %v1058
    %3053 = vmatmul.mubr.bf16.gmra.mrb[0].mxu0 %v1057
    %v3054 = vpop.f32.mrb[0].mxu0
    %v3055 = vadd.f32 %v2982, %v3054
    %v3056 = vpop.f32.mrb[0].mxu0
    %v3057 = vadd.f32 %v2984, %v3056
    %v3058 = vpop.f32.mrb[0].mxu0
    %v3059 = vadd.f32 %v2986, %v3058
    %v3060 = vpop.f32.mrb[0].mxu0
    %v3061 = vadd.f32 %v2988, %v3060
    %3062 = vmatprep.mubr.bf16.mxu0 %v1062
    %3063 = vmatmul.mubr.bf16.gmra.mrb[0].mxu0 %v1061
    %v3064 = vpop.f32.mrb[0].mxu0
    %v3065 = vadd.f32 %v2992, %v3064
    %v3066 = vpop.f32.mrb[0].mxu0
    %v3067 = vadd.f32 %v2994, %v3066
    %v3068 = vpop.f32.mrb[0].mxu0
    %v3069 = vadd.f32 %v2996, %v3068
    %v3070 = vpop.f32.mrb[0].mxu0
    %v3071 = vadd.f32 %v2998, %v3070
    %3072 = vmatprep.mubr.bf16.mxu0 %v1066
    %3073 = vmatmul.mubr.bf16.gmra.mrb[0].mxu0 %v1065
    %v3074 = vpop.f32.mrb[0].mxu0
    %v3075 = vadd.f32 %v3002, %v3074
    %v3076 = vpop.f32.mrb[0].mxu0
    %v3077 = vadd.f32 %v3004, %v3076
    %v3078 = vpop.f32.mrb[0].mxu0
    %v3079 = vadd.f32 %v3006, %v3078
    %v3080 = vpop.f32.mrb[0].mxu0
    %v3081 = vadd.f32 %v3008, %v3080
    %3082 = vdwg.mxu0
    %3083 = vmatprep.subr.bf16.mxu0 %v2140
    %3084 = vmatpush1.bf16.msra.mxu0 %v2139
    %3085 = vmatprep.subr.bf16.mxu0 %v2148
    %3086 = vmatpush1.bf16.msra.mxu0 %v2147
    %3087 = vmatprep.subr.bf16.mxu0 %v2156
    %3088 = vmatpush1.bf16.msra.mxu0 %v2155
    %3089 = vmatprep.subr.bf16.mxu0 %v2164
    %3090 = vmatpush1.bf16.msra.mxu0 %v2163
    %3091 = vmatprep.subr.bf16.mxu0 %v2172
    %3092 = vmatpush1.bf16.msra.mxu0 %v2171
    %3093 = vmatprep.subr.bf16.mxu0 %v2180
    %3094 = vmatpush1.bf16.msra.mxu0 %v2179
    %3095 = vmatprep.subr.bf16.mxu0 %v2188
    %3096 = vmatpush1.bf16.msra.mxu0 %v2187
    %3097 = vmatprep.subr.bf16.mxu0 %v2196
    %3098 = vmatpush1.bf16.msra.mxu0 %v2195
    %3099 = vmatprep.subr.bf16.mxu0 %v2204
    %3100 = vmatpush1.bf16.msra.mxu0 %v2203
    %3101 = vmatprep.subr.bf16.mxu0 %v2212
    %3102 = vmatpush1.bf16.msra.mxu0 %v2211
    %3103 = vmatprep.subr.bf16.mxu0 %v2220
    %3104 = vmatpush1.bf16.msra.mxu0 %v2219
    %3105 = vmatprep.subr.bf16.mxu0 %v2228
    %3106 = vmatpush1.bf16.msra.mxu0 %v2227
    %3107 = vmatprep.subr.bf16.mxu0 %v2236
    %3108 = vmatpush1.bf16.msra.mxu0 %v2235
    %3109 = vmatprep.subr.bf16.mxu0 %v2244
    %3110 = vmatpush1.bf16.msra.mxu0 %v2243
    %3111 = vmatprep.subr.bf16.mxu0 %v2252
    %3112 = vmatpush1.bf16.msra.mxu0 %v2251
    %3113 = vmatprep.subr.bf16.mxu0 %v2260
    %3114 = vmatpush1.bf16.msra.mxu0 %v2259
    %3115 = vmatprep.mubr.bf16.mxu0 %v1052
    %3116 = vmatmul.mubr.bf16.gmra.mrb[0].mxu0 %v1051
    %v3117 = vpop.f32.mrb[0].mxu0
    %v3118 = vadd.f32 %v1352, %v3117
    %v3119 = vpop.f32.mrb[0].mxu0
    %v3120 = vadd.f32 %v1356, %v3119
    %v3121 = vpop.f32.mrb[0].mxu0
    %v3122 = vadd.f32 %v1352, %v3121
    %v3123 = vpop.f32.mrb[0].mxu0
    %v3124 = vadd.f32 %v1356, %v3123
    %3125 = vmatprep.mubr.bf16.mxu0 %v1056
    %3126 = vmatmul.mubr.bf16.gmra.mrb[0].mxu0 %v1055
    %v3127 = vpop.f32.mrb[0].mxu0
    %v3128 = vadd.f32 %v1352, %v3127
    %v3129 = vpop.f32.mrb[0].mxu0
    %v3130 = vadd.f32 %v1356, %v3129
    %v3131 = vpop.f32.mrb[0].mxu0
    %v3132 = vadd.f32 %v1352, %v3131
    %v3133 = vpop.f32.mrb[0].mxu0
    %v3134 = vadd.f32 %v1356, %v3133
    %3135 = vmatprep.mubr.bf16.mxu0 %v1060
    %3136 = vmatmul.mubr.bf16.gmra.mrb[0].mxu0 %v1059
    %v3137 = vpop.f32.mrb[0].mxu0
    %v3138 = vadd.f32 %v1352, %v3137
    %v3139 = vpop.f32.mrb[0].mxu0
    %v3140 = vadd.f32 %v1356, %v3139
    %v3141 = vpop.f32.mrb[0].mxu0
    %v3142 = vadd.f32 %v1352, %v3141
    %v3143 = vpop.f32.mrb[0].mxu0
    %v3144 = vadd.f32 %v1356, %v3143
    %3145 = vmatprep.mubr.bf16.mxu0 %v1064
    %3146 = vmatmul.mubr.bf16.gmra.mrb[0].mxu0 %v1063
    %v3147 = vpop.f32.mrb[0].mxu0
    %v3148 = vadd.f32 %v1352, %v3147
    %v3149 = vpop.f32.mrb[0].mxu0
    %v3150 = vadd.f32 %v1356, %v3149
    %v3151 = vpop.f32.mrb[0].mxu0
    %v3152 = vadd.f32 %v1352, %v3151
    %v3153 = vpop.f32.mrb[0].mxu0
    %v3154 = vadd.f32 %v1356, %v3153
    %3155 = vdwg.mxu0
    %3156 = vmatprep.subr.bf16.mxu0 %v2268
    %3157 = vmatpush1.bf16.msra.mxu0 %v2267
    %3158 = vmatprep.subr.bf16.mxu0 %v2276
    %3159 = vmatpush1.bf16.msra.mxu0 %v2275
    %3160 = vmatprep.subr.bf16.mxu0 %v2284
    %3161 = vmatpush1.bf16.msra.mxu0 %v2283
    %3162 = vmatprep.subr.bf16.mxu0 %v2292
    %3163 = vmatpush1.bf16.msra.mxu0 %v2291
    %3164 = vmatprep.subr.bf16.mxu0 %v2300
    %3165 = vmatpush1.bf16.msra.mxu0 %v2299
    %3166 = vmatprep.subr.bf16.mxu0 %v2308
    %3167 = vmatpush1.bf16.msra.mxu0 %v2307
    %3168 = vmatprep.subr.bf16.mxu0 %v2316
    %3169 = vmatpush1.bf16.msra.mxu0 %v2315
    %3170 = vmatprep.subr.bf16.mxu0 %v2324
    %3171 = vmatpush1.bf16.msra.mxu0 %v2323
    %3172 = vmatprep.subr.bf16.mxu0 %v2332
    %3173 = vmatpush1.bf16.msra.mxu0 %v2331
    %3174 = vmatprep.subr.bf16.mxu0 %v2340
    %3175 = vmatpush1.bf16.msra.mxu0 %v2339
    %3176 = vmatprep.subr.bf16.mxu0 %v2348
    %3177 = vmatpush1.bf16.msra.mxu0 %v2347
    %3178 = vmatprep.subr.bf16.mxu0 %v2356
    %3179 = vmatpush1.bf16.msra.mxu0 %v2355
    %3180 = vmatprep.subr.bf16.mxu0 %v2364
    %3181 = vmatpush1.bf16.msra.mxu0 %v2363
    %3182 = vmatprep.subr.bf16.mxu0 %v2372
    %3183 = vmatpush1.bf16.msra.mxu0 %v2371
    %3184 = vmatprep.subr.bf16.mxu0 %v2380
    %3185 = vmatpush1.bf16.msra.mxu0 %v2379
    %3186 = vmatprep.subr.bf16.mxu0 %v2388
    %3187 = vmatpush1.bf16.msra.mxu0 %v2387
    %3188 = vmatprep.mubr.bf16.mxu0 %v1054
    %3189 = vmatmul.mubr.bf16.gmra.mrb[0].mxu0 %v1053
    %v3190 = vpop.f32.mrb[0].mxu0
    %v3191 = vadd.f32 %v3118, %v3190
    %v3192 = vpop.f32.mrb[0].mxu0
    %v3193 = vadd.f32 %v3120, %v3192
    %v3194 = vpop.f32.mrb[0].mxu0
    %v3195 = vadd.f32 %v3122, %v3194
    %v3196 = vpop.f32.mrb[0].mxu0
    %v3197 = vadd.f32 %v3124, %v3196
    %3198 = vmatprep.mubr.bf16.mxu0 %v1058
    %3199 = vmatmul.mubr.bf16.gmra.mrb[0].mxu0 %v1057
    %v3200 = vpop.f32.mrb[0].mxu0
    %v3201 = vadd.f32 %v3128, %v3200
    %v3202 = vpop.f32.mrb[0].mxu0
    %v3203 = vadd.f32 %v3130, %v3202
    %v3204 = vpop.f32.mrb[0].mxu0
    %v3205 = vadd.f32 %v3132, %v3204
    %v3206 = vpop.f32.mrb[0].mxu0
    %v3207 = vadd.f32 %v3134, %v3206
    %3208 = vmatprep.mubr.bf16.mxu0 %v1062
    %3209 = vmatmul.mubr.bf16.gmra.mrb[0].mxu0 %v1061
    %v3210 = vpop.f32.mrb[0].mxu0
    %v3211 = vadd.f32 %v3138, %v3210
    %v3212 = vpop.f32.mrb[0].mxu0
    %v3213 = vadd.f32 %v3140, %v3212
    %v3214 = vpop.f32.mrb[0].mxu0
    %v3215 = vadd.f32 %v3142, %v3214
    %v3216 = vpop.f32.mrb[0].mxu0
    %v3217 = vadd.f32 %v3144, %v3216
    %3218 = vmatprep.mubr.bf16.mxu0 %v1066
    %3219 = vmatmul.mubr.bf16.gmra.mrb[0].mxu0 %v1065
    %v3220 = vpop.f32.mrb[0].mxu0
    %v3221 = vadd.f32 %v3148, %v3220
    %v3222 = vpop.f32.mrb[0].mxu0
    %v3223 = vadd.f32 %v3150, %v3222
    %v3224 = vpop.f32.mrb[0].mxu0
    %v3225 = vadd.f32 %v3152, %v3224
    %v3226 = vpop.f32.mrb[0].mxu0
    %v3227 = vadd.f32 %v3154, %v3226
    %3228 = vdwg.mxu0
    %vm3229 = vcmp.gt.f32.partialorder %v2753, 0.0
    %vm3230 = vcmp.gt.f32.partialorder %v2755, 0.0
    %vm3231 = vcmp.gt.f32.partialorder %v2899, 0.0
    %vm3232 = vcmp.gt.f32.partialorder %v2901, 0.0
    %vm3233 = vcmp.gt.f32.partialorder %v3045, 0.0
    %vm3234 = vcmp.gt.f32.partialorder %v3047, 0.0
    %vm3235 = vcmp.gt.f32.partialorder %v3191, 0.0
    %vm3236 = vcmp.gt.f32.partialorder %v3193, 0.0
    %vm3237 = vcmp.gt.f32.partialorder %v2757, 0.0
    %vm3238 = vcmp.gt.f32.partialorder %v2759, 0.0
    %vm3239 = vcmp.gt.f32.partialorder %v2903, 0.0
    %vm3240 = vcmp.gt.f32.partialorder %v2905, 0.0
    %vm3241 = vcmp.gt.f32.partialorder %v3049, 0.0
    %vm3242 = vcmp.gt.f32.partialorder %v3051, 0.0
    %vm3243 = vcmp.gt.f32.partialorder %v3195, 0.0
    %vm3244 = vcmp.gt.f32.partialorder %v3197, 0.0
    %vm3245 = vcmp.gt.f32.partialorder %v2763, 0.0
    %vm3246 = vcmp.gt.f32.partialorder %v2765, 0.0
    %vm3247 = vcmp.gt.f32.partialorder %v2909, 0.0
    %vm3248 = vcmp.gt.f32.partialorder %v2911, 0.0
    %vm3249 = vcmp.gt.f32.partialorder %v3055, 0.0
    %vm3250 = vcmp.gt.f32.partialorder %v3057, 0.0
    %vm3251 = vcmp.gt.f32.partialorder %v3201, 0.0
    %vm3252 = vcmp.gt.f32.partialorder %v3203, 0.0
    %vm3253 = vcmp.gt.f32.partialorder %v2767, 0.0
    %vm3254 = vcmp.gt.f32.partialorder %v2769, 0.0
    %vm3255 = vcmp.gt.f32.partialorder %v2913, 0.0
    %vm3256 = vcmp.gt.f32.partialorder %v2915, 0.0
    %vm3257 = vcmp.gt.f32.partialorder %v3059, 0.0
    %vm3258 = vcmp.gt.f32.partialorder %v3061, 0.0
    %vm3259 = vcmp.gt.f32.partialorder %v3205, 0.0
    %vm3260 = vcmp.gt.f32.partialorder %v3207, 0.0
    %vm3261 = vcmp.gt.f32.partialorder %v2773, 0.0
    %vm3262 = vcmp.gt.f32.partialorder %v2775, 0.0
    %vm3263 = vcmp.gt.f32.partialorder %v2919, 0.0
    %vm3264 = vcmp.gt.f32.partialorder %v2921, 0.0
    %vm3265 = vcmp.gt.f32.partialorder %v3065, 0.0
    %vm3266 = vcmp.gt.f32.partialorder %v3067, 0.0
    %vm3267 = vcmp.gt.f32.partialorder %v3211, 0.0
    %vm3268 = vcmp.gt.f32.partialorder %v3213, 0.0
    %vm3269 = vcmp.gt.f32.partialorder %v2777, 0.0
    %vm3270 = vcmp.gt.f32.partialorder %v2779, 0.0
    %vm3271 = vcmp.gt.f32.partialorder %v2923, 0.0
    %vm3272 = vcmp.gt.f32.partialorder %v2925, 0.0
    %vm3273 = vcmp.gt.f32.partialorder %v3069, 0.0
    %vm3274 = vcmp.gt.f32.partialorder %v3071, 0.0
    %vm3275 = vcmp.gt.f32.partialorder %v3215, 0.0
    %vm3276 = vcmp.gt.f32.partialorder %v3217, 0.0
    %vm3277 = vcmp.gt.f32.partialorder %v2783, 0.0
    %vm3278 = vcmp.gt.f32.partialorder %v2785, 0.0
    %vm3279 = vcmp.gt.f32.partialorder %v2929, 0.0
    %vm3280 = vcmp.gt.f32.partialorder %v2931, 0.0
    %vm3281 = vcmp.gt.f32.partialorder %v3075, 0.0
    %vm3282 = vcmp.gt.f32.partialorder %v3077, 0.0
    %vm3283 = vcmp.gt.f32.partialorder %v3221, 0.0
    %vm3284 = vcmp.gt.f32.partialorder %v3223, 0.0
    %vm3285 = vcmp.gt.f32.partialorder %v2787, 0.0
    %vm3286 = vcmp.gt.f32.partialorder %v2789, 0.0
    %vm3287 = vcmp.gt.f32.partialorder %v2933, 0.0
    %vm3288 = vcmp.gt.f32.partialorder %v2935, 0.0
    %vm3289 = vcmp.gt.f32.partialorder %v3079, 0.0
    %vm3290 = vcmp.gt.f32.partialorder %v3081, 0.0
    %vm3291 = vcmp.gt.f32.partialorder %v3225, 0.0
    %vm3292 = vcmp.gt.f32.partialorder %v3227, 0.0
    %v3293 = vmul.f32 %v2753, 0.2
    %v3294 = vmul.f32 %v2755, 0.2
    %v3295 = vmul.f32 %v2899, 0.2
    %v3296 = vmul.f32 %v2901, 0.2
    %v3297 = vmul.f32 %v3045, 0.2
    %v3298 = vmul.f32 %v3047, 0.2
    %v3299 = vmul.f32 %v3191, 0.2
    %v3300 = vmul.f32 %v3193, 0.2
    %v3301 = vmul.f32 %v2757, 0.2
    %v3302 = vmul.f32 %v2759, 0.2
    %v3303 = vmul.f32 %v2903, 0.2
    %v3304 = vmul.f32 %v2905, 0.2
    %v3305 = vmul.f32 %v3049, 0.2
    %v3306 = vmul.f32 %v3051, 0.2
    %v3307 = vmul.f32 %v3195, 0.2
    %v3308 = vmul.f32 %v3197, 0.2
    %v3309 = vmul.f32 %v2763, 0.2
    %v3310 = vmul.f32 %v2765, 0.2
    %v3311 = vmul.f32 %v2909, 0.2
    %v3312 = vmul.f32 %v2911, 0.2
    %v3313 = vmul.f32 %v3055, 0.2
    %v3314 = vmul.f32 %v3057, 0.2
    %v3315 = vmul.f32 %v3201, 0.2
    %v3316 = vmul.f32 %v3203, 0.2
    %v3317 = vmul.f32 %v2767, 0.2
    %v3318 = vmul.f32 %v2769, 0.2
    %v3319 = vmul.f32 %v2913, 0.2
    %v3320 = vmul.f32 %v2915, 0.2
    %v3321 = vmul.f32 %v3059, 0.2
    %v3322 = vmul.f32 %v3061, 0.2
    %v3323 = vmul.f32 %v3205, 0.2
    %v3324 = vmul.f32 %v3207, 0.2
    %v3325 = vmul.f32 %v2773, 0.2
    %v3326 = vmul.f32 %v2775, 0.2
    %v3327 = vmul.f32 %v2919, 0.2
    %v3328 = vmul.f32 %v2921, 0.2
    %v3329 = vmul.f32 %v3065, 0.2
    %v3330 = vmul.f32 %v3067, 0.2
    %v3331 = vmul.f32 %v3211, 0.2
    %v3332 = vmul.f32 %v3213, 0.2
    %v3333 = vmul.f32 %v2777, 0.2
    %v3334 = vmul.f32 %v2779, 0.2
    %v3335 = vmul.f32 %v2923, 0.2
    %v3336 = vmul.f32 %v2925, 0.2
    %v3337 = vmul.f32 %v3069, 0.2
    %v3338 = vmul.f32 %v3071, 0.2
    %v3339 = vmul.f32 %v3215, 0.2
    %v3340 = vmul.f32 %v3217, 0.2
    %v3341 = vmul.f32 %v2783, 0.2
    %v3342 = vmul.f32 %v2785, 0.2
    %v3343 = vmul.f32 %v2929, 0.2
    %v3344 = vmul.f32 %v2931, 0.2
    %v3345 = vmul.f32 %v3075, 0.2
    %v3346 = vmul.f32 %v3077, 0.2
    %v3347 = vmul.f32 %v3221, 0.2
    %v3348 = vmul.f32 %v3223, 0.2
    %v3349 = vmul.f32 %v2787, 0.2
    %v3350 = vmul.f32 %v2789, 0.2
    %v3351 = vmul.f32 %v2933, 0.2
    %v3352 = vmul.f32 %v2935, 0.2
    %v3353 = vmul.f32 %v3079, 0.2
    %v3354 = vmul.f32 %v3081, 0.2
    %v3355 = vmul.f32 %v3225, 0.2
    %v3356 = vmul.f32 %v3227, 0.2
    %v3357 = vsel %vm3229, %v2753, %v3293
    %v3358 = vsel %vm3230, %v2755, %v3294
    %v3359 = vsel %vm3231, %v2899, %v3295
    %v3360 = vsel %vm3232, %v2901, %v3296
    %v3361 = vsel %vm3233, %v3045, %v3297
    %v3362 = vsel %vm3234, %v3047, %v3298
    %v3363 = vsel %vm3235, %v3191, %v3299
    %v3364 = vsel %vm3236, %v3193, %v3300
    %v3365 = vsel %vm3237, %v2757, %v3301
    %v3366 = vsel %vm3238, %v2759, %v3302
    %v3367 = vsel %vm3239, %v2903, %v3303
    %v3368 = vsel %vm3240, %v2905, %v3304
    %v3369 = vsel %vm3241, %v3049, %v3305
    %v3370 = vsel %vm3242, %v3051, %v3306
    %v3371 = vsel %vm3243, %v3195, %v3307
    %v3372 = vsel %vm3244, %v3197, %v3308
    %v3373 = vsel %vm3245, %v2763, %v3309
    %v3374 = vsel %vm3246, %v2765, %v3310
    %v3375 = vsel %vm3247, %v2909, %v3311
    %v3376 = vsel %vm3248, %v2911, %v3312
    %v3377 = vsel %vm3249, %v3055, %v3313
    %v3378 = vsel %vm3250, %v3057, %v3314
    %v3379 = vsel %vm3251, %v3201, %v3315
    %v3380 = vsel %vm3252, %v3203, %v3316
    %v3381 = vsel %vm3253, %v2767, %v3317
    %v3382 = vsel %vm3254, %v2769, %v3318
    %v3383 = vsel %vm3255, %v2913, %v3319
    %v3384 = vsel %vm3256, %v2915, %v3320
    %v3385 = vsel %vm3257, %v3059, %v3321
    %v3386 = vsel %vm3258, %v3061, %v3322
    %v3387 = vsel %vm3259, %v3205, %v3323
    %v3388 = vsel %vm3260, %v3207, %v3324
    %v3389 = vsel %vm3261, %v2773, %v3325
    %v3390 = vsel %vm3262, %v2775, %v3326
    %v3391 = vsel %vm3263, %v2919, %v3327
    %v3392 = vsel %vm3264, %v2921, %v3328
    %v3393 = vsel %vm3265, %v3065, %v3329
    %v3394 = vsel %vm3266, %v3067, %v3330
    %v3395 = vsel %vm3267, %v3211, %v3331
    %v3396 = vsel %vm3268, %v3213, %v3332
    %v3397 = vsel %vm3269, %v2777, %v3333
    %v3398 = vsel %vm3270, %v2779, %v3334
    %v3399 = vsel %vm3271, %v2923, %v3335
    %v3400 = vsel %vm3272, %v2925, %v3336
    %v3401 = vsel %vm3273, %v3069, %v3337
    %v3402 = vsel %vm3274, %v3071, %v3338
    %v3403 = vsel %vm3275, %v3215, %v3339
    %v3404 = vsel %vm3276, %v3217, %v3340
    %v3405 = vsel %vm3277, %v2783, %v3341
    %v3406 = vsel %vm3278, %v2785, %v3342
    %v3407 = vsel %vm3279, %v2929, %v3343
    %v3408 = vsel %vm3280, %v2931, %v3344
    %v3409 = vsel %vm3281, %v3075, %v3345
    %v3410 = vsel %vm3282, %v3077, %v3346
    %v3411 = vsel %vm3283, %v3221, %v3347
    %v3412 = vsel %vm3284, %v3223, %v3348
    %v3413 = vsel %vm3285, %v2787, %v3349
    %v3414 = vsel %vm3286, %v2789, %v3350
    %v3415 = vsel %vm3287, %v2933, %v3351
    %v3416 = vsel %vm3288, %v2935, %v3352
    %v3417 = vsel %vm3289, %v3079, %v3353
    %v3418 = vsel %vm3290, %v3081, %v3354
    %v3419 = vsel %vm3291, %v3225, %v3355
    %v3420 = vsel %vm3292, %v3227, %v3356
    %v3421 = vpack.c.bf16 %v3365, %v3357
    %v3422 = vpack.c.bf16 %v3366, %v3358
    %v3423 = vpack.c.bf16 %v3367, %v3359
    %v3424 = vpack.c.bf16 %v3368, %v3360
    %v3425 = vpack.c.bf16 %v3369, %v3361
    %v3426 = vpack.c.bf16 %v3370, %v3362
    %v3427 = vpack.c.bf16 %v3371, %v3363
    %v3428 = vpack.c.bf16 %v3372, %v3364
    %v3429 = vpack.c.bf16 %v3381, %v3373
    %v3430 = vpack.c.bf16 %v3382, %v3374
    %v3431 = vpack.c.bf16 %v3383, %v3375
    %v3432 = vpack.c.bf16 %v3384, %v3376
    %v3433 = vpack.c.bf16 %v3385, %v3377
    %v3434 = vpack.c.bf16 %v3386, %v3378
    %v3435 = vpack.c.bf16 %v3387, %v3379
    %v3436 = vpack.c.bf16 %v3388, %v3380
    %v3437 = vpack.c.bf16 %v3397, %v3389
    %v3438 = vpack.c.bf16 %v3398, %v3390
    %v3439 = vpack.c.bf16 %v3399, %v3391
    %v3440 = vpack.c.bf16 %v3400, %v3392
    %v3441 = vpack.c.bf16 %v3401, %v3393
    %v3442 = vpack.c.bf16 %v3402, %v3394
    %v3443 = vpack.c.bf16 %v3403, %v3395
    %v3444 = vpack.c.bf16 %v3404, %v3396
    %v3445 = vpack.c.bf16 %v3413, %v3405
    %v3446 = vpack.c.bf16 %v3414, %v3406
    %v3447 = vpack.c.bf16 %v3415, %v3407
    %v3448 = vpack.c.bf16 %v3416, %v3408
    %v3449 = vpack.c.bf16 %v3417, %v3409
    %v3450 = vpack.c.bf16 %v3418, %v3410
    %v3451 = vpack.c.bf16 %v3419, %v3411
    %v3452 = vpack.c.bf16 %v3420, %v3412
    %v3453 = vld [vmem:[#allocation12] sm:$0xff]
    %v3454 = vld [vmem:[#allocation12 + $0x8] sm:$0xff]
    %v3455 = vld [vmem:[#allocation12 + $0x10] sm:$0xff]
    %v3456 = vld [vmem:[#allocation12 + $0x18] sm:$0xf]
    %v3457 = vld [vmem:[#allocation12 + $0x1c] sm:$0xff]
    %v3458 = vld [vmem:[#allocation12 + $0x24] sm:$0xff]
    %v3459 = vld [vmem:[#allocation12 + $0x2c] sm:$0xff]
    %v3460 = vld [vmem:[#allocation12 + $0x34] sm:$0xf]
    %v3461 = vld [vmem:[#allocation12 + $0x38] sm:$0xff]
    %v3462 = vld [vmem:[#allocation12 + $0x40] sm:$0xff]
    %v3463 = vld [vmem:[#allocation12 + $0x48] sm:$0xff]
    %v3464 = vld [vmem:[#allocation12 + $0x50] sm:$0xf]
    %v3465 = vld [vmem:[#allocation12 + $0x54] sm:$0xff]
    %v3466 = vld [vmem:[#allocation12 + $0x5c] sm:$0xff]
    %v3467 = vld [vmem:[#allocation12 + $0x64] sm:$0xff]
    %v3468 = vld [vmem:[#allocation12 + $0x6c] sm:$0xf]
    %v3469 = vld [vmem:[#allocation12 + $0x70] sm:$0xff]
    %v3470 = vld [vmem:[#allocation12 + $0x78] sm:$0xff]
    %v3471 = vld [vmem:[#allocation12 + $0x80] sm:$0xff]
    %v3472 = vld [vmem:[#allocation12 + $0x88] sm:$0xf]
    %v3473 = vld [vmem:[#allocation12 + $0x8c] sm:$0xff]
    %v3474 = vld [vmem:[#allocation12 + $0x94] sm:$0xff]
    %v3475 = vld [vmem:[#allocation12 + $0x9c] sm:$0xff]
    %v3476 = vld [vmem:[#allocation12 + $0xa4] sm:$0xf]
    %v3477 = vld [vmem:[#allocation12 + $0xa8] sm:$0xff]
    %v3478 = vld [vmem:[#allocation12 + $0xb0] sm:$0xff]
    %v3479 = vld [vmem:[#allocation12 + $0xb8] sm:$0xff]
    %v3480 = vld [vmem:[#allocation12 + $0xc0] sm:$0xf]
    %v3481 = vld [vmem:[#allocation12 + $0xc4] sm:$0xff]
    %v3482 = vld [vmem:[#allocation12 + $0xcc] sm:$0xff]
    %v3483 = vld [vmem:[#allocation12 + $0xd4] sm:$0xff]
    %v3484 = vld [vmem:[#allocation12 + $0xdc] sm:$0xf]
    %v3485 = vld [vmem:[#allocation12 + $0xe0] sm:$0xff]
    %v3486 = vld [vmem:[#allocation12 + $0xe8] sm:$0xff]
    %v3487 = vld [vmem:[#allocation12 + $0xf0] sm:$0xff]
    %v3488 = vld [vmem:[#allocation12 + $0xf8] sm:$0xf]
    %v3489 = vld [vmem:[#allocation12 + $0xfc] sm:$0xff]
    %v3490 = vld [vmem:[#allocation12 + $0x104] sm:$0xff]
    %v3491 = vld [vmem:[#allocation12 + $0x10c] sm:$0xff]
    %v3492 = vld [vmem:[#allocation12 + $0x114] sm:$0xf]
    %v3493 = vld [vmem:[#allocation12 + $0x118] sm:$0xff]
    %v3494 = vld [vmem:[#allocation12 + $0x120] sm:$0xff]
    %v3495 = vld [vmem:[#allocation12 + $0x128] sm:$0xff]
    %v3496 = vld [vmem:[#allocation12 + $0x130] sm:$0xf]
    %v3497 = vld [vmem:[#allocation12 + $0x134] sm:$0xff]
    %v3498 = vld [vmem:[#allocation12 + $0x13c] sm:$0xff]
    %v3499 = vld [vmem:[#allocation12 + $0x144] sm:$0xff]
    %v3500 = vld [vmem:[#allocation12 + $0x14c] sm:$0xf]
    %v3501 = vld [vmem:[#allocation12 + $0x150] sm:$0xff]
    %v3502 = vld [vmem:[#allocation12 + $0x158] sm:$0xff]
    %v3503 = vld [vmem:[#allocation12 + $0x160] sm:$0xff]
    %v3504 = vld [vmem:[#allocation12 + $0x168] sm:$0xf]
    %v3505 = vld [vmem:[#allocation12 + $0x16c] sm:$0xff]
    %v3506 = vld [vmem:[#allocation12 + $0x174] sm:$0xff]
    %v3507 = vld [vmem:[#allocation12 + $0x17c] sm:$0xff]
    %v3508 = vld [vmem:[#allocation12 + $0x184] sm:$0xf]
    %v3509 = vld [vmem:[#allocation12 + $0x188] sm:$0xff]
    %v3510 = vld [vmem:[#allocation12 + $0x190] sm:$0xff]
    %v3511 = vld [vmem:[#allocation12 + $0x198] sm:$0xff]
    %v3512 = vld [vmem:[#allocation12 + $0x1a0] sm:$0xf]
    %v3513 = vld [vmem:[#allocation12 + $0x1a4] sm:$0xff]
    %v3514 = vld [vmem:[#allocation12 + $0x1ac] sm:$0xff]
    %v3515 = vld [vmem:[#allocation12 + $0x1b4] sm:$0xff]
    %v3516 = vld [vmem:[#allocation12 + $0x1bc] sm:$0xf]
    %v3517 = vld [vmem:[#allocation12 + $0x1c0] sm:$0xff]
    %v3518 = vld [vmem:[#allocation12 + $0x1c8] sm:$0xff]
    %v3519 = vld [vmem:[#allocation12 + $0x1d0] sm:$0xff]
    %v3520 = vld [vmem:[#allocation12 + $0x1d8] sm:$0xf]
    %v3521 = vld [vmem:[#allocation12 + $0x1dc] sm:$0xff]
    %v3522 = vld [vmem:[#allocation12 + $0x1e4] sm:$0xff]
    %v3523 = vld [vmem:[#allocation12 + $0x1ec] sm:$0xff]
    %v3524 = vld [vmem:[#allocation12 + $0x1f4] sm:$0xf]
    %v3525 = vld [vmem:[#allocation12 + $0x1f8] sm:$0xff]
    %v3526 = vld [vmem:[#allocation12 + $0x200] sm:$0xff]
    %v3527 = vld [vmem:[#allocation12 + $0x208] sm:$0xff]
    %v3528 = vld [vmem:[#allocation12 + $0x210] sm:$0xf]
    %v3529 = vld [vmem:[#allocation12 + $0x214] sm:$0xff]
    %v3530 = vld [vmem:[#allocation12 + $0x21c] sm:$0xff]
    %v3531 = vld [vmem:[#allocation12 + $0x224] sm:$0xff]
    %v3532 = vld [vmem:[#allocation12 + $0x22c] sm:$0xf]
    %v3533 = vld [vmem:[#allocation12 + $0x230] sm:$0xff]
    %v3534 = vld [vmem:[#allocation12 + $0x238] sm:$0xff]
    %v3535 = vld [vmem:[#allocation12 + $0x240] sm:$0xff]
    %v3536 = vld [vmem:[#allocation12 + $0x248] sm:$0xf]
    %v3537 = vld [vmem:[#allocation12 + $0x24c] sm:$0xff]
    %v3538 = vld [vmem:[#allocation12 + $0x254] sm:$0xff]
    %v3539 = vld [vmem:[#allocation12 + $0x25c] sm:$0xff]
    %v3540 = vld [vmem:[#allocation12 + $0x264] sm:$0xf]
    %v3541 = vld [vmem:[#allocation12 + $0x268] sm:$0xff]
    %v3542 = vld [vmem:[#allocation12 + $0x270] sm:$0xff]
    %v3543 = vld [vmem:[#allocation12 + $0x278] sm:$0xff]
    %v3544 = vld [vmem:[#allocation12 + $0x280] sm:$0xf]
    %v3545 = vld [vmem:[#allocation12 + $0x284] sm:$0xff]
    %v3546 = vld [vmem:[#allocation12 + $0x28c] sm:$0xff]
    %v3547 = vld [vmem:[#allocation12 + $0x294] sm:$0xff]
    %v3548 = vld [vmem:[#allocation12 + $0x29c] sm:$0xf]
    %v3549 = vld [vmem:[#allocation12 + $0x2a0] sm:$0xff]
    %v3550 = vld [vmem:[#allocation12 + $0x2a8] sm:$0xff]
    %v3551 = vld [vmem:[#allocation12 + $0x2b0] sm:$0xff]
    %v3552 = vld [vmem:[#allocation12 + $0x2b8] sm:$0xf]
    %v3553 = vld [vmem:[#allocation12 + $0x2bc] sm:$0xff]
    %v3554 = vld [vmem:[#allocation12 + $0x2c4] sm:$0xff]
    %v3555 = vld [vmem:[#allocation12 + $0x2cc] sm:$0xff]
    %v3556 = vld [vmem:[#allocation12 + $0x2d4] sm:$0xf]
    %v3557 = vld [vmem:[#allocation12 + $0x2d8] sm:$0xff]
    %v3558 = vld [vmem:[#allocation12 + $0x2e0] sm:$0xff]
    %v3559 = vld [vmem:[#allocation12 + $0x2e8] sm:$0xff]
    %v3560 = vld [vmem:[#allocation12 + $0x2f0] sm:$0xf]
    %v3561 = vld [vmem:[#allocation12 + $0x2f4] sm:$0xff]
    %v3562 = vld [vmem:[#allocation12 + $0x2fc] sm:$0xff]
    %v3563 = vld [vmem:[#allocation12 + $0x304] sm:$0xff]
    %v3564 = vld [vmem:[#allocation12 + $0x30c] sm:$0xf]
    %v3565 = vld [vmem:[#allocation12 + $0x310] sm:$0xff]
    %v3566 = vld [vmem:[#allocation12 + $0x318] sm:$0xff]
    %v3567 = vld [vmem:[#allocation12 + $0x320] sm:$0xff]
    %v3568 = vld [vmem:[#allocation12 + $0x328] sm:$0xf]
    %v3569 = vld [vmem:[#allocation12 + $0x32c] sm:$0xff]
    %v3570 = vld [vmem:[#allocation12 + $0x334] sm:$0xff]
    %v3571 = vld [vmem:[#allocation12 + $0x33c] sm:$0xff]
    %v3572 = vld [vmem:[#allocation12 + $0x344] sm:$0xf]
    %v3573 = vld [vmem:[#allocation12 + $0x348] sm:$0xff]
    %v3574 = vld [vmem:[#allocation12 + $0x350] sm:$0xff]
    %v3575 = vld [vmem:[#allocation12 + $0x358] sm:$0xff]
    %v3576 = vld [vmem:[#allocation12 + $0x360] sm:$0xf]
    %v3577 = vld [vmem:[#allocation12 + $0x364] sm:$0xff]
    %v3578 = vld [vmem:[#allocation12 + $0x36c] sm:$0xff]
    %v3579 = vld [vmem:[#allocation12 + $0x374] sm:$0xff]
    %v3580 = vld [vmem:[#allocation12 + $0x37c] sm:$0xf]
    %v3581 = vld [vmem:[#allocation12 + $0x380] sm:$0xff]
    %v3582 = vld [vmem:[#allocation12 + $0x388] sm:$0xff]
    %v3583 = vld [vmem:[#allocation12 + $0x390] sm:$0xff]
    %v3584 = vld [vmem:[#allocation12 + $0x398] sm:$0xf]
    %v3585 = vld [vmem:[#allocation12 + $0x39c] sm:$0xff]
    %v3586 = vld [vmem:[#allocation12 + $0x3a4] sm:$0xff]
    %v3587 = vld [vmem:[#allocation12 + $0x3ac] sm:$0xff]
    %v3588 = vld [vmem:[#allocation12 + $0x3b4] sm:$0xf]
    %v3589 = vld [vmem:[#allocation12 + $0x3b8] sm:$0xff]
    %v3590 = vld [vmem:[#allocation12 + $0x3c0] sm:$0xff]
    %v3591 = vld [vmem:[#allocation12 + $0x3c8] sm:$0xff]
    %v3592 = vld [vmem:[#allocation12 + $0x3d0] sm:$0xf]
    %v3593 = vld [vmem:[#allocation12 + $0x3d4] sm:$0xff]
    %v3594 = vld [vmem:[#allocation12 + $0x3dc] sm:$0xff]
    %v3595 = vld [vmem:[#allocation12 + $0x3e4] sm:$0xff]
    %v3596 = vld [vmem:[#allocation12 + $0x3ec] sm:$0xf]
    %v3597 = vld [vmem:[#allocation12 + $0x3f0] sm:$0xff]
    %v3598 = vld [vmem:[#allocation12 + $0x3f8] sm:$0xff]
    %v3599 = vld [vmem:[#allocation12 + $0x400] sm:$0xff]
    %v3600 = vld [vmem:[#allocation12 + $0x408] sm:$0xf]
    %v3601 = vld [vmem:[#allocation12 + $0x40c] sm:$0xff]
    %v3602 = vld [vmem:[#allocation12 + $0x414] sm:$0xff]
    %v3603 = vld [vmem:[#allocation12 + $0x41c] sm:$0xff]
    %v3604 = vld [vmem:[#allocation12 + $0x424] sm:$0xf]
    %v3605 = vld [vmem:[#allocation12 + $0x428] sm:$0xff]
    %v3606 = vld [vmem:[#allocation12 + $0x430] sm:$0xff]
    %v3607 = vld [vmem:[#allocation12 + $0x438] sm:$0xff]
    %v3608 = vld [vmem:[#allocation12 + $0x440] sm:$0xf]
    %v3609 = vld [vmem:[#allocation12 + $0x444] sm:$0xff]
    %v3610 = vld [vmem:[#allocation12 + $0x44c] sm:$0xff]
    %v3611 = vld [vmem:[#allocation12 + $0x454] sm:$0xff]
    %v3612 = vld [vmem:[#allocation12 + $0x45c] sm:$0xf]
    %v3613 = vld [vmem:[#allocation12 + $0x460] sm:$0xff]
    %v3614 = vld [vmem:[#allocation12 + $0x468] sm:$0xff]
    %v3615 = vld [vmem:[#allocation12 + $0x470] sm:$0xff]
    %v3616 = vld [vmem:[#allocation12 + $0x478] sm:$0xf]
    %v3617 = vld [vmem:[#allocation12 + $0x47c] sm:$0xff]
    %v3618 = vld [vmem:[#allocation12 + $0x484] sm:$0xff]
    %v3619 = vld [vmem:[#allocation12 + $0x48c] sm:$0xff]
    %v3620 = vld [vmem:[#allocation12 + $0x494] sm:$0xf]
    %v3621 = vld [vmem:[#allocation12 + $0x498] sm:$0xff]
    %v3622 = vld [vmem:[#allocation12 + $0x4a0] sm:$0xff]
    %v3623 = vld [vmem:[#allocation12 + $0x4a8] sm:$0xff]
    %v3624 = vld [vmem:[#allocation12 + $0x4b0] sm:$0xf]
    %v3625 = vld [vmem:[#allocation12 + $0x4b4] sm:$0xff]
    %v3626 = vld [vmem:[#allocation12 + $0x4bc] sm:$0xff]
    %v3627 = vld [vmem:[#allocation12 + $0x4c4] sm:$0xff]
    %v3628 = vld [vmem:[#allocation12 + $0x4cc] sm:$0xf]
    %v3629 = vld [vmem:[#allocation12 + $0x4d0] sm:$0xff]
    %v3630 = vld [vmem:[#allocation12 + $0x4d8] sm:$0xff]
    %v3631 = vld [vmem:[#allocation12 + $0x4e0] sm:$0xff]
    %v3632 = vld [vmem:[#allocation12 + $0x4e8] sm:$0xf]
    %v3633 = vld [vmem:[#allocation12 + $0x4ec] sm:$0xff]
    %v3634 = vld [vmem:[#allocation12 + $0x4f4] sm:$0xff]
    %v3635 = vld [vmem:[#allocation12 + $0x4fc] sm:$0xff]
    %v3636 = vld [vmem:[#allocation12 + $0x504] sm:$0xf]
    %v3637 = vld [vmem:[#allocation12 + $0x508] sm:$0xff]
    %v3638 = vld [vmem:[#allocation12 + $0x510] sm:$0xff]
    %v3639 = vld [vmem:[#allocation12 + $0x518] sm:$0xff]
    %v3640 = vld [vmem:[#allocation12 + $0x520] sm:$0xf]
    %v3641 = vld [vmem:[#allocation12 + $0x524] sm:$0xff]
    %v3642 = vld [vmem:[#allocation12 + $0x52c] sm:$0xff]
    %v3643 = vld [vmem:[#allocation12 + $0x534] sm:$0xff]
    %v3644 = vld [vmem:[#allocation12 + $0x53c] sm:$0xf]
    %v3645 = vld [vmem:[#allocation12 + $0x540] sm:$0xff]
    %v3646 = vld [vmem:[#allocation12 + $0x548] sm:$0xff]
    %v3647 = vld [vmem:[#allocation12 + $0x550] sm:$0xff]
    %v3648 = vld [vmem:[#allocation12 + $0x558] sm:$0xf]
    %v3649 = vld [vmem:[#allocation12 + $0x55c] sm:$0xff]
    %v3650 = vld [vmem:[#allocation12 + $0x564] sm:$0xff]
    %v3651 = vld [vmem:[#allocation12 + $0x56c] sm:$0xff]
    %v3652 = vld [vmem:[#allocation12 + $0x574] sm:$0xf]
    %v3653 = vld [vmem:[#allocation12 + $0x578] sm:$0xff]
    %v3654 = vld [vmem:[#allocation12 + $0x580] sm:$0xff]
    %v3655 = vld [vmem:[#allocation12 + $0x588] sm:$0xff]
    %v3656 = vld [vmem:[#allocation12 + $0x590] sm:$0xf]
    %v3657 = vld [vmem:[#allocation12 + $0x594] sm:$0xff]
    %v3658 = vld [vmem:[#allocation12 + $0x59c] sm:$0xff]
    %v3659 = vld [vmem:[#allocation12 + $0x5a4] sm:$0xff]
    %v3660 = vld [vmem:[#allocation12 + $0x5ac] sm:$0xf]
    %v3661 = vld [vmem:[#allocation12 + $0x5b0] sm:$0xff]
    %v3662 = vld [vmem:[#allocation12 + $0x5b8] sm:$0xff]
    %v3663 = vld [vmem:[#allocation12 + $0x5c0] sm:$0xff]
    %v3664 = vld [vmem:[#allocation12 + $0x5c8] sm:$0xf]
    %v3665 = vld [vmem:[#allocation12 + $0x5cc] sm:$0xff]
    %v3666 = vld [vmem:[#allocation12 + $0x5d4] sm:$0xff]
    %v3667 = vld [vmem:[#allocation12 + $0x5dc] sm:$0xff]
    %v3668 = vld [vmem:[#allocation12 + $0x5e4] sm:$0xf]
    %v3669 = vld [vmem:[#allocation12 + $0x5e8] sm:$0xff]
    %v3670 = vld [vmem:[#allocation12 + $0x5f0] sm:$0xff]
    %v3671 = vld [vmem:[#allocation12 + $0x5f8] sm:$0xff]
    %v3672 = vld [vmem:[#allocation12 + $0x600] sm:$0xf]
    %v3673 = vld [vmem:[#allocation12 + $0x604] sm:$0xff]
    %v3674 = vld [vmem:[#allocation12 + $0x60c] sm:$0xff]
    %v3675 = vld [vmem:[#allocation12 + $0x614] sm:$0xff]
    %v3676 = vld [vmem:[#allocation12 + $0x61c] sm:$0xf]
    %v3677 = vld [vmem:[#allocation12 + $0x620] sm:$0xff]
    %v3678 = vld [vmem:[#allocation12 + $0x628] sm:$0xff]
    %v3679 = vld [vmem:[#allocation12 + $0x630] sm:$0xff]
    %v3680 = vld [vmem:[#allocation12 + $0x638] sm:$0xf]
    %v3681 = vld [vmem:[#allocation12 + $0x63c] sm:$0xff]
    %v3682 = vld [vmem:[#allocation12 + $0x644] sm:$0xff]
    %v3683 = vld [vmem:[#allocation12 + $0x64c] sm:$0xff]
    %v3684 = vld [vmem:[#allocation12 + $0x654] sm:$0xf]
    %v3685 = vld [vmem:[#allocation12 + $0x658] sm:$0xff]
    %v3686 = vld [vmem:[#allocation12 + $0x660] sm:$0xff]
    %v3687 = vld [vmem:[#allocation12 + $0x668] sm:$0xff]
    %v3688 = vld [vmem:[#allocation12 + $0x670] sm:$0xf]
    %v3689 = vld [vmem:[#allocation12 + $0x674] sm:$0xff]
    %v3690 = vld [vmem:[#allocation12 + $0x67c] sm:$0xff]
    %v3691 = vld [vmem:[#allocation12 + $0x684] sm:$0xff]
    %v3692 = vld [vmem:[#allocation12 + $0x68c] sm:$0xf]
    %v3693 = vld [vmem:[#allocation12 + $0x690] sm:$0xff]
    %v3694 = vld [vmem:[#allocation12 + $0x698] sm:$0xff]
    %v3695 = vld [vmem:[#allocation12 + $0x6a0] sm:$0xff]
    %v3696 = vld [vmem:[#allocation12 + $0x6a8] sm:$0xf]
    %v3697 = vld [vmem:[#allocation12 + $0x6ac] sm:$0xff]
    %v3698 = vld [vmem:[#allocation12 + $0x6b4] sm:$0xff]
    %v3699 = vld [vmem:[#allocation12 + $0x6bc] sm:$0xff]
    %v3700 = vld [vmem:[#allocation12 + $0x6c4] sm:$0xf]
    %v3701 = vld [vmem:[#allocation12 + $0x6c8] sm:$0xff]
    %v3702 = vld [vmem:[#allocation12 + $0x6d0] sm:$0xff]
    %v3703 = vld [vmem:[#allocation12 + $0x6d8] sm:$0xff]
    %v3704 = vld [vmem:[#allocation12 + $0x6e0] sm:$0xf]
    %v3705 = vld [vmem:[#allocation12 + $0x6e4] sm:$0xff]
    %v3706 = vld [vmem:[#allocation12 + $0x6ec] sm:$0xff]
    %v3707 = vld [vmem:[#allocation12 + $0x6f4] sm:$0xff]
    %v3708 = vld [vmem:[#allocation12 + $0x6fc] sm:$0xf]
    %v3709 = vld [vmem:[#allocation12 + $0x700] sm:$0xff]
    %v3710 = vld [vmem:[#allocation12 + $0x708] sm:$0xff]
    %v3711 = vld [vmem:[#allocation12 + $0x710] sm:$0xff]
    %v3712 = vld [vmem:[#allocation12 + $0x718] sm:$0xf]
    %v3713 = vld [vmem:[#allocation12 + $0x71c] sm:$0xff]
    %v3714 = vld [vmem:[#allocation12 + $0x724] sm:$0xff]
    %v3715 = vld [vmem:[#allocation12 + $0x72c] sm:$0xff]
    %v3716 = vld [vmem:[#allocation12 + $0x734] sm:$0xf]
    %v3717 = vld [vmem:[#allocation12 + $0x738] sm:$0xff]
    %v3718 = vld [vmem:[#allocation12 + $0x740] sm:$0xff]
    %v3719 = vld [vmem:[#allocation12 + $0x748] sm:$0xff]
    %v3720 = vld [vmem:[#allocation12 + $0x750] sm:$0xf]
    %v3721 = vld [vmem:[#allocation12 + $0x754] sm:$0xff]
    %v3722 = vld [vmem:[#allocation12 + $0x75c] sm:$0xff]
    %v3723 = vld [vmem:[#allocation12 + $0x764] sm:$0xff]
    %v3724 = vld [vmem:[#allocation12 + $0x76c] sm:$0xf]
    %v3725 = vld [vmem:[#allocation12 + $0x770] sm:$0xff]
    %v3726 = vld [vmem:[#allocation12 + $0x778] sm:$0xff]
    %v3727 = vld [vmem:[#allocation12 + $0x780] sm:$0xff]
    %v3728 = vld [vmem:[#allocation12 + $0x788] sm:$0xf]
    %v3729 = vld [vmem:[#allocation12 + $0x78c] sm:$0xff]
    %v3730 = vld [vmem:[#allocation12 + $0x794] sm:$0xff]
    %v3731 = vld [vmem:[#allocation12 + $0x79c] sm:$0xff]
    %v3732 = vld [vmem:[#allocation12 + $0x7a4] sm:$0xf]
    %v3733 = vld [vmem:[#allocation12 + $0x7a8] sm:$0xff]
    %v3734 = vld [vmem:[#allocation12 + $0x7b0] sm:$0xff]
    %v3735 = vld [vmem:[#allocation12 + $0x7b8] sm:$0xff]
    %v3736 = vld [vmem:[#allocation12 + $0x7c0] sm:$0xf]
    %v3737 = vld [vmem:[#allocation12 + $0x7c4] sm:$0xff]
    %v3738 = vld [vmem:[#allocation12 + $0x7cc] sm:$0xff]
    %v3739 = vld [vmem:[#allocation12 + $0x7d4] sm:$0xff]
    %v3740 = vld [vmem:[#allocation12 + $0x7dc] sm:$0xf]
    %v3741 = vld [vmem:[#allocation12 + $0x7e0] sm:$0xff]
    %v3742 = vld [vmem:[#allocation12 + $0x7e8] sm:$0xff]
    %v3743 = vld [vmem:[#allocation12 + $0x7f0] sm:$0xff]
    %v3744 = vld [vmem:[#allocation12 + $0x7f8] sm:$0xf]
    %v3745 = vld [vmem:[#allocation12 + $0x7fc] sm:$0xff]
    %v3746 = vld [vmem:[#allocation12 + $0x804] sm:$0xff]
    %v3747 = vld [vmem:[#allocation12 + $0x80c] sm:$0xff]
    %v3748 = vld [vmem:[#allocation12 + $0x814] sm:$0xf]
    %v3749 = vld [vmem:[#allocation12 + $0x818] sm:$0xff]
    %v3750 = vld [vmem:[#allocation12 + $0x820] sm:$0xff]
    %v3751 = vld [vmem:[#allocation12 + $0x828] sm:$0xff]
    %v3752 = vld [vmem:[#allocation12 + $0x830] sm:$0xf]
    %v3753 = vld [vmem:[#allocation12 + $0x834] sm:$0xff]
    %v3754 = vld [vmem:[#allocation12 + $0x83c] sm:$0xff]
    %v3755 = vld [vmem:[#allocation12 + $0x844] sm:$0xff]
    %v3756 = vld [vmem:[#allocation12 + $0x84c] sm:$0xf]
    %v3757 = vld [vmem:[#allocation12 + $0x850] sm:$0xff]
    %v3758 = vld [vmem:[#allocation12 + $0x858] sm:$0xff]
    %v3759 = vld [vmem:[#allocation12 + $0x860] sm:$0xff]
    %v3760 = vld [vmem:[#allocation12 + $0x868] sm:$0xf]
    %v3761 = vld [vmem:[#allocation12 + $0x86c] sm:$0xff]
    %v3762 = vld [vmem:[#allocation12 + $0x874] sm:$0xff]
    %v3763 = vld [vmem:[#allocation12 + $0x87c] sm:$0xff]
    %v3764 = vld [vmem:[#allocation12 + $0x884] sm:$0xf]
    %v3765 = vld [vmem:[#allocation12 + $0x888] sm:$0xff]
    %v3766 = vld [vmem:[#allocation12 + $0x890] sm:$0xff]
    %v3767 = vld [vmem:[#allocation12 + $0x898] sm:$0xff]
    %v3768 = vld [vmem:[#allocation12 + $0x8a0] sm:$0xf]
    %v3769 = vld [vmem:[#allocation12 + $0x8a4] sm:$0xff]
    %v3770 = vld [vmem:[#allocation12 + $0x8ac] sm:$0xff]
    %v3771 = vld [vmem:[#allocation12 + $0x8b4] sm:$0xff]
    %v3772 = vld [vmem:[#allocation12 + $0x8bc] sm:$0xf]
    %v3773 = vld [vmem:[#allocation12 + $0x8c0] sm:$0xff]
    %v3774 = vld [vmem:[#allocation12 + $0x8c8] sm:$0xff]
    %v3775 = vld [vmem:[#allocation12 + $0x8d0] sm:$0xff]
    %v3776 = vld [vmem:[#allocation12 + $0x8d8] sm:$0xf]
    %v3777 = vld [vmem:[#allocation12 + $0x8dc] sm:$0xff]
    %v3778 = vld [vmem:[#allocation12 + $0x8e4] sm:$0xff]
    %v3779 = vld [vmem:[#allocation12 + $0x8ec] sm:$0xff]
    %v3780 = vld [vmem:[#allocation12 + $0x8f4] sm:$0xf]
    %v3781 = vld [vmem:[#allocation12 + $0x8f8] sm:$0xff]
    %v3782 = vld [vmem:[#allocation12 + $0x900] sm:$0xff]
    %v3783 = vld [vmem:[#allocation12 + $0x908] sm:$0xff]
    %v3784 = vld [vmem:[#allocation12 + $0x910] sm:$0xf]
    %v3785 = vld [vmem:[#allocation12 + $0x914] sm:$0xff]
    %v3786 = vld [vmem:[#allocation12 + $0x91c] sm:$0xff]
    %v3787 = vld [vmem:[#allocation12 + $0x924] sm:$0xff]
    %v3788 = vld [vmem:[#allocation12 + $0x92c] sm:$0xf]
    %v3789 = vld [vmem:[#allocation12 + $0x930] sm:$0xff]
    %v3790 = vld [vmem:[#allocation12 + $0x938] sm:$0xff]
    %v3791 = vld [vmem:[#allocation12 + $0x940] sm:$0xff]
    %v3792 = vld [vmem:[#allocation12 + $0x948] sm:$0xf]
    %v3793 = vld [vmem:[#allocation12 + $0x94c] sm:$0xff]
    %v3794 = vld [vmem:[#allocation12 + $0x954] sm:$0xff]
    %v3795 = vld [vmem:[#allocation12 + $0x95c] sm:$0xff]
    %v3796 = vld [vmem:[#allocation12 + $0x964] sm:$0xf]
    %v3797 = vld [vmem:[#allocation12 + $0x968] sm:$0xff]
    %v3798 = vld [vmem:[#allocation12 + $0x970] sm:$0xff]
    %v3799 = vld [vmem:[#allocation12 + $0x978] sm:$0xff]
    %v3800 = vld [vmem:[#allocation12 + $0x980] sm:$0xf]
    %v3801 = vld [vmem:[#allocation12 + $0x984] sm:$0xff]
    %v3802 = vld [vmem:[#allocation12 + $0x98c] sm:$0xff]
    %v3803 = vld [vmem:[#allocation12 + $0x994] sm:$0xff]
    %v3804 = vld [vmem:[#allocation12 + $0x99c] sm:$0xf]
    %v3805 = vld [vmem:[#allocation12 + $0x9a0] sm:$0xff]
    %v3806 = vld [vmem:[#allocation12 + $0x9a8] sm:$0xff]
    %v3807 = vld [vmem:[#allocation12 + $0x9b0] sm:$0xff]
    %v3808 = vld [vmem:[#allocation12 + $0x9b8] sm:$0xf]
    %v3809 = vld [vmem:[#allocation12 + $0x9bc] sm:$0xff]
    %v3810 = vld [vmem:[#allocation12 + $0x9c4] sm:$0xff]
    %v3811 = vld [vmem:[#allocation12 + $0x9cc] sm:$0xff]
    %v3812 = vld [vmem:[#allocation12 + $0x9d4] sm:$0xf]
    %v3813 = vld [vmem:[#allocation12 + $0x9d8] sm:$0xff]
    %v3814 = vld [vmem:[#allocation12 + $0x9e0] sm:$0xff]
    %v3815 = vld [vmem:[#allocation12 + $0x9e8] sm:$0xff]
    %v3816 = vld [vmem:[#allocation12 + $0x9f0] sm:$0xf]
    %v3817 = vld [vmem:[#allocation12 + $0x9f4] sm:$0xff]
    %v3818 = vld [vmem:[#allocation12 + $0x9fc] sm:$0xff]
    %v3819 = vld [vmem:[#allocation12 + $0xa04] sm:$0xff]
    %v3820 = vld [vmem:[#allocation12 + $0xa0c] sm:$0xf]
    %v3821 = vld [vmem:[#allocation12 + $0xa10] sm:$0xff]
    %v3822 = vld [vmem:[#allocation12 + $0xa18] sm:$0xff]
    %v3823 = vld [vmem:[#allocation12 + $0xa20] sm:$0xff]
    %v3824 = vld [vmem:[#allocation12 + $0xa28] sm:$0xf]
    %v3825 = vld [vmem:[#allocation12 + $0xa2c] sm:$0xff]
    %v3826 = vld [vmem:[#allocation12 + $0xa34] sm:$0xff]
    %v3827 = vld [vmem:[#allocation12 + $0xa3c] sm:$0xff]
    %v3828 = vld [vmem:[#allocation12 + $0xa44] sm:$0xf]
    %v3829 = vld [vmem:[#allocation12 + $0xa48] sm:$0xff]
    %v3830 = vld [vmem:[#allocation12 + $0xa50] sm:$0xff]
    %v3831 = vld [vmem:[#allocation12 + $0xa58] sm:$0xff]
    %v3832 = vld [vmem:[#allocation12 + $0xa60] sm:$0xf]
    %v3833 = vld [vmem:[#allocation12 + $0xa64] sm:$0xff]
    %v3834 = vld [vmem:[#allocation12 + $0xa6c] sm:$0xff]
    %v3835 = vld [vmem:[#allocation12 + $0xa74] sm:$0xff]
    %v3836 = vld [vmem:[#allocation12 + $0xa7c] sm:$0xf]
    %v3837 = vld [vmem:[#allocation12 + $0xa80] sm:$0xff]
    %v3838 = vld [vmem:[#allocation12 + $0xa88] sm:$0xff]
    %v3839 = vld [vmem:[#allocation12 + $0xa90] sm:$0xff]
    %v3840 = vld [vmem:[#allocation12 + $0xa98] sm:$0xf]
    %v3841 = vld [vmem:[#allocation12 + $0xa9c] sm:$0xff]
    %v3842 = vld [vmem:[#allocation12 + $0xaa4] sm:$0xff]
    %v3843 = vld [vmem:[#allocation12 + $0xaac] sm:$0xff]
    %v3844 = vld [vmem:[#allocation12 + $0xab4] sm:$0xf]
    %v3845 = vld [vmem:[#allocation12 + $0xab8] sm:$0xff]
    %v3846 = vld [vmem:[#allocation12 + $0xac0] sm:$0xff]
    %v3847 = vld [vmem:[#allocation12 + $0xac8] sm:$0xff]
    %v3848 = vld [vmem:[#allocation12 + $0xad0] sm:$0xf]
    %v3849 = vld [vmem:[#allocation12 + $0xad4] sm:$0xff]
    %v3850 = vld [vmem:[#allocation12 + $0xadc] sm:$0xff]
    %v3851 = vld [vmem:[#allocation12 + $0xae4] sm:$0xff]
    %v3852 = vld [vmem:[#allocation12 + $0xaec] sm:$0xf]
    %v3853 = vld [vmem:[#allocation12 + $0xaf0] sm:$0xff]
    %v3854 = vld [vmem:[#allocation12 + $0xaf8] sm:$0xff]
    %v3855 = vld [vmem:[#allocation12 + $0xb00] sm:$0xff]
    %v3856 = vld [vmem:[#allocation12 + $0xb08] sm:$0xf]
    %v3857 = vld [vmem:[#allocation12 + $0xb0c] sm:$0xff]
    %v3858 = vld [vmem:[#allocation12 + $0xb14] sm:$0xff]
    %v3859 = vld [vmem:[#allocation12 + $0xb1c] sm:$0xff]
    %v3860 = vld [vmem:[#allocation12 + $0xb24] sm:$0xf]
    %v3861 = vld [vmem:[#allocation12 + $0xb28] sm:$0xff]
    %v3862 = vld [vmem:[#allocation12 + $0xb30] sm:$0xff]
    %v3863 = vld [vmem:[#allocation12 + $0xb38] sm:$0xff]
    %v3864 = vld [vmem:[#allocation12 + $0xb40] sm:$0xf]
    %v3865 = vld [vmem:[#allocation12 + $0xb44] sm:$0xff]
    %v3866 = vld [vmem:[#allocation12 + $0xb4c] sm:$0xff]
    %v3867 = vld [vmem:[#allocation12 + $0xb54] sm:$0xff]
    %v3868 = vld [vmem:[#allocation12 + $0xb5c] sm:$0xf]
    %v3869 = vld [vmem:[#allocation12 + $0xb60] sm:$0xff]
    %v3870 = vld [vmem:[#allocation12 + $0xb68] sm:$0xff]
    %v3871 = vld [vmem:[#allocation12 + $0xb70] sm:$0xff]
    %v3872 = vld [vmem:[#allocation12 + $0xb78] sm:$0xf]
    %v3873 = vld [vmem:[#allocation12 + $0xb7c] sm:$0xff]
    %v3874 = vld [vmem:[#allocation12 + $0xb84] sm:$0xff]
    %v3875 = vld [vmem:[#allocation12 + $0xb8c] sm:$0xff]
    %v3876 = vld [vmem:[#allocation12 + $0xb94] sm:$0xf]
    %v3877 = vld [vmem:[#allocation12 + $0xb98] sm:$0xff]
    %v3878 = vld [vmem:[#allocation12 + $0xba0] sm:$0xff]
    %v3879 = vld [vmem:[#allocation12 + $0xba8] sm:$0xff]
    %v3880 = vld [vmem:[#allocation12 + $0xbb0] sm:$0xf]
    %v3881 = vld [vmem:[#allocation12 + $0xbb4] sm:$0xff]
    %v3882 = vld [vmem:[#allocation12 + $0xbbc] sm:$0xff]
    %v3883 = vld [vmem:[#allocation12 + $0xbc4] sm:$0xff]
    %v3884 = vld [vmem:[#allocation12 + $0xbcc] sm:$0xf]
    %v3885 = vld [vmem:[#allocation12 + $0xbd0] sm:$0xff]
    %v3886 = vld [vmem:[#allocation12 + $0xbd8] sm:$0xff]
    %v3887 = vld [vmem:[#allocation12 + $0xbe0] sm:$0xff]
    %v3888 = vld [vmem:[#allocation12 + $0xbe8] sm:$0xf]
    %v3889 = vld [vmem:[#allocation12 + $0xbec] sm:$0xff]
    %v3890 = vld [vmem:[#allocation12 + $0xbf4] sm:$0xff]
    %v3891 = vld [vmem:[#allocation12 + $0xbfc] sm:$0xff]
    %v3892 = vld [vmem:[#allocation12 + $0xc04] sm:$0xf]
    %v3893 = vld [vmem:[#allocation12 + $0xc08] sm:$0xff]
    %v3894 = vld [vmem:[#allocation12 + $0xc10] sm:$0xff]
    %v3895 = vld [vmem:[#allocation12 + $0xc18] sm:$0xff]
    %v3896 = vld [vmem:[#allocation12 + $0xc20] sm:$0xf]
    %v3897 = vld [vmem:[#allocation12 + $0xc24] sm:$0xff]
    %v3898 = vld [vmem:[#allocation12 + $0xc2c] sm:$0xff]
    %v3899 = vld [vmem:[#allocation12 + $0xc34] sm:$0xff]
    %v3900 = vld [vmem:[#allocation12 + $0xc3c] sm:$0xf]
    %v3901 = vld [vmem:[#allocation12 + $0xc40] sm:$0xff]
    %v3902 = vld [vmem:[#allocation12 + $0xc48] sm:$0xff]
    %v3903 = vld [vmem:[#allocation12 + $0xc50] sm:$0xff]
    %v3904 = vld [vmem:[#allocation12 + $0xc58] sm:$0xf]
    %v3905 = vld [vmem:[#allocation12 + $0xc5c] sm:$0xff]
    %v3906 = vld [vmem:[#allocation12 + $0xc64] sm:$0xff]
    %v3907 = vld [vmem:[#allocation12 + $0xc6c] sm:$0xff]
    %v3908 = vld [vmem:[#allocation12 + $0xc74] sm:$0xf]
    %v3909 = vld [vmem:[#allocation12 + $0xc78] sm:$0xff]
    %v3910 = vld [vmem:[#allocation12 + $0xc80] sm:$0xff]
    %v3911 = vld [vmem:[#allocation12 + $0xc88] sm:$0xff]
    %v3912 = vld [vmem:[#allocation12 + $0xc90] sm:$0xf]
    %v3913 = vld [vmem:[#allocation12 + $0xc94] sm:$0xff]
    %v3914 = vld [vmem:[#allocation12 + $0xc9c] sm:$0xff]
    %v3915 = vld [vmem:[#allocation12 + $0xca4] sm:$0xff]
    %v3916 = vld [vmem:[#allocation12 + $0xcac] sm:$0xf]
    %v3917 = vld [vmem:[#allocation12 + $0xcb0] sm:$0xff]
    %v3918 = vld [vmem:[#allocation12 + $0xcb8] sm:$0xff]
    %v3919 = vld [vmem:[#allocation12 + $0xcc0] sm:$0xff]
    %v3920 = vld [vmem:[#allocation12 + $0xcc8] sm:$0xf]
    %v3921 = vld [vmem:[#allocation12 + $0xccc] sm:$0xff]
    %v3922 = vld [vmem:[#allocation12 + $0xcd4] sm:$0xff]
    %v3923 = vld [vmem:[#allocation12 + $0xcdc] sm:$0xff]
    %v3924 = vld [vmem:[#allocation12 + $0xce4] sm:$0xf]
    %v3925 = vld [vmem:[#allocation12 + $0xce8] sm:$0xff]
    %v3926 = vld [vmem:[#allocation12 + $0xcf0] sm:$0xff]
    %v3927 = vld [vmem:[#allocation12 + $0xcf8] sm:$0xff]
    %v3928 = vld [vmem:[#allocation12 + $0xd00] sm:$0xf]
    %v3929 = vld [vmem:[#allocation12 + $0xd04] sm:$0xff]
    %v3930 = vld [vmem:[#allocation12 + $0xd0c] sm:$0xff]
    %v3931 = vld [vmem:[#allocation12 + $0xd14] sm:$0xff]
    %v3932 = vld [vmem:[#allocation12 + $0xd1c] sm:$0xf]
    %v3933 = vld [vmem:[#allocation12 + $0xd20] sm:$0xff]
    %v3934 = vld [vmem:[#allocation12 + $0xd28] sm:$0xff]
    %v3935 = vld [vmem:[#allocation12 + $0xd30] sm:$0xff]
    %v3936 = vld [vmem:[#allocation12 + $0xd38] sm:$0xf]
    %v3937 = vld [vmem:[#allocation12 + $0xd3c] sm:$0xff]
    %v3938 = vld [vmem:[#allocation12 + $0xd44] sm:$0xff]
    %v3939 = vld [vmem:[#allocation12 + $0xd4c] sm:$0xff]
    %v3940 = vld [vmem:[#allocation12 + $0xd54] sm:$0xf]
    %v3941 = vld [vmem:[#allocation12 + $0xd58] sm:$0xff]
    %v3942 = vld [vmem:[#allocation12 + $0xd60] sm:$0xff]
    %v3943 = vld [vmem:[#allocation12 + $0xd68] sm:$0xff]
    %v3944 = vld [vmem:[#allocation12 + $0xd70] sm:$0xf]
    %v3945 = vld [vmem:[#allocation12 + $0xd74] sm:$0xff]
    %v3946 = vld [vmem:[#allocation12 + $0xd7c] sm:$0xff]
    %v3947 = vld [vmem:[#allocation12 + $0xd84] sm:$0xff]
    %v3948 = vld [vmem:[#allocation12 + $0xd8c] sm:$0xf]
    %v3949 = vld [vmem:[#allocation12 + $0xd90] sm:$0xff]
    %v3950 = vld [vmem:[#allocation12 + $0xd98] sm:$0xff]
    %v3951 = vld [vmem:[#allocation12 + $0xda0] sm:$0xff]
    %v3952 = vld [vmem:[#allocation12 + $0xda8] sm:$0xf]
    %v3953 = vld [vmem:[#allocation12 + $0xdac] sm:$0xff]
    %v3954 = vld [vmem:[#allocation12 + $0xdb4] sm:$0xff]
    %v3955 = vld [vmem:[#allocation12 + $0xdbc] sm:$0xff]
    %v3956 = vld [vmem:[#allocation12 + $0xdc4] sm:$0xf]
    %v3957 = vld [vmem:[#allocation12 + $0xdc8] sm:$0xff]
    %v3958 = vld [vmem:[#allocation12 + $0xdd0] sm:$0xff]
    %v3959 = vld [vmem:[#allocation12 + $0xdd8] sm:$0xff]
    %v3960 = vld [vmem:[#allocation12 + $0xde0] sm:$0xf]
    %v3961 = vld [vmem:[#allocation12 + $0xde4] sm:$0xff]
    %v3962 = vld [vmem:[#allocation12 + $0xdec] sm:$0xff]
    %v3963 = vld [vmem:[#allocation12 + $0xdf4] sm:$0xff]
    %v3964 = vld [vmem:[#allocation12 + $0xdfc] sm:$0xf]
    %v3965 = vld [vmem:[#allocation13] sm:$0xff]
    %v3967 = vlaneseq
    %v3968 = vshrl.u32 %v3967, 7
    %v3969 = vsub.s32 0, %v3968
    %v3970 = vrot.slane %v3965, %v3969
    %v3971 = vlaneseq
    %v3972 = vshrl.u32 %v3971, 7
    %v3973 = vsub.s32 1, %v3972
    %v3974 = vrot.slane %v3965, %v3973
    %v3975 = vlaneseq
    %v3976 = vshrl.u32 %v3975, 7
    %v3977 = vsub.s32 2, %v3976
    %v3978 = vrot.slane %v3965, %v3977
    %v3979 = vlaneseq
    %v3980 = vshrl.u32 %v3979, 7
    %v3981 = vsub.s32 3, %v3980
    %v3982 = vrot.slane %v3965, %v3981
    %v3983 = vlaneseq
    %v3984 = vshrl.u32 %v3983, 7
    %v3985 = vsub.s32 4, %v3984
    %v3986 = vrot.slane %v3965, %v3985
    %v3987 = vlaneseq
    %v3988 = vshrl.u32 %v3987, 7
    %v3989 = vsub.s32 5, %v3988
    %v3990 = vrot.slane %v3965, %v3989
    %v3991 = vlaneseq
    %v3992 = vshrl.u32 %v3991, 7
    %v3993 = vsub.s32 6, %v3992
    %v3994 = vrot.slane %v3965, %v3993
    %v4514 = vunpack.c.l.b16 %v3453
    %v4515 = vunpack.c.h.b16 %v3453
    %v4516 = vunpack.c.l.b16 %v3454
    %v4517 = vunpack.c.h.b16 %v3454
    %v4518 = vunpack.c.l.b16 %v3455
    %v4519 = vunpack.c.h.b16 %v3455
    %v4520 = vunpack.c.l.b16 %v3456
    %v4521 = vunpack.c.l.b16 %v3457
    %v4522 = vunpack.c.h.b16 %v3457
    %v4523 = vunpack.c.l.b16 %v3458
    %v4524 = vunpack.c.h.b16 %v3458
    %v4525 = vunpack.c.l.b16 %v3459
    %v4526 = vunpack.c.h.b16 %v3459
    %v4527 = vunpack.c.l.b16 %v3460
    %v4528 = vunpack.c.l.b16 %v3461
    %v4529 = vunpack.c.h.b16 %v3461
    %v4530 = vunpack.c.l.b16 %v3462
    %v4531 = vunpack.c.h.b16 %v3462
    %v4532 = vunpack.c.l.b16 %v3463
    %v4533 = vunpack.c.h.b16 %v3463
    %v4534 = vunpack.c.l.b16 %v3464
    %v4535 = vunpack.c.l.b16 %v3465
    %v4536 = vunpack.c.h.b16 %v3465
    %v4537 = vunpack.c.l.b16 %v3466
    %v4538 = vunpack.c.h.b16 %v3466
    %v4539 = vunpack.c.l.b16 %v3467
    %v4540 = vunpack.c.h.b16 %v3467
    %v4541 = vunpack.c.l.b16 %v3468
    %v4542 = vunpack.c.l.b16 %v3469
    %v4543 = vunpack.c.h.b16 %v3469
    %v4544 = vunpack.c.l.b16 %v3470
    %v4545 = vunpack.c.h.b16 %v3470
    %v4546 = vunpack.c.l.b16 %v3471
    %v4547 = vunpack.c.h.b16 %v3471
    %v4548 = vunpack.c.l.b16 %v3472
    %v4549 = vunpack.c.l.b16 %v3473
    %v4550 = vunpack.c.h.b16 %v3473
    %v4551 = vunpack.c.l.b16 %v3474
    %v4552 = vunpack.c.h.b16 %v3474
    %v4553 = vunpack.c.l.b16 %v3475
    %v4554 = vunpack.c.h.b16 %v3475
    %v4555 = vunpack.c.l.b16 %v3476
    %v4556 = vunpack.c.l.b16 %v3477
    %v4557 = vunpack.c.h.b16 %v3477
    %v4558 = vunpack.c.l.b16 %v3478
    %v4559 = vunpack.c.h.b16 %v3478
    %v4560 = vunpack.c.l.b16 %v3479
    %v4561 = vunpack.c.h.b16 %v3479
    %v4562 = vunpack.c.l.b16 %v3480
    %v4563 = vunpack.c.l.b16 %v3481
    %v4564 = vunpack.c.h.b16 %v3481
    %v4565 = vunpack.c.l.b16 %v3482
    %v4566 = vunpack.c.h.b16 %v3482
    %v4567 = vunpack.c.l.b16 %v3483
    %v4568 = vunpack.c.h.b16 %v3483
    %v4569 = vunpack.c.l.b16 %v3484
    %v4570 = vunpack.c.l.b16 %v3485
    %v4571 = vunpack.c.h.b16 %v3485
    %v4572 = vunpack.c.l.b16 %v3486
    %v4573 = vunpack.c.h.b16 %v3486
    %v4574 = vunpack.c.l.b16 %v3487
    %v4575 = vunpack.c.h.b16 %v3487
    %v4576 = vunpack.c.l.b16 %v3488
    %v4577 = vunpack.c.l.b16 %v3489
    %v4578 = vunpack.c.h.b16 %v3489
    %v4579 = vunpack.c.l.b16 %v3490
    %v4580 = vunpack.c.h.b16 %v3490
    %v4581 = vunpack.c.l.b16 %v3491
    %v4582 = vunpack.c.h.b16 %v3491
    %v4583 = vunpack.c.l.b16 %v3492
    %v4584 = vunpack.c.l.b16 %v3493
    %v4585 = vunpack.c.h.b16 %v3493
    %v4586 = vunpack.c.l.b16 %v3494
    %v4587 = vunpack.c.h.b16 %v3494
    %v4588 = vunpack.c.l.b16 %v3495
    %v4589 = vunpack.c.h.b16 %v3495
    %v4590 = vunpack.c.l.b16 %v3496
    %v4591 = vunpack.c.l.b16 %v3497
    %v4592 = vunpack.c.h.b16 %v3497
    %v4593 = vunpack.c.l.b16 %v3498
    %v4594 = vunpack.c.h.b16 %v3498
    %v4595 = vunpack.c.l.b16 %v3499
    %v4596 = vunpack.c.h.b16 %v3499
    %v4597 = vunpack.c.l.b16 %v3500
    %v4598 = vunpack.c.l.b16 %v3501
    %v4599 = vunpack.c.h.b16 %v3501
    %v4600 = vunpack.c.l.b16 %v3502
    %v4601 = vunpack.c.h.b16 %v3502
    %v4602 = vunpack.c.l.b16 %v3503
    %v4603 = vunpack.c.h.b16 %v3503
    %v4604 = vunpack.c.l.b16 %v3504
    %v4605 = vunpack.c.l.b16 %v3505
    %v4606 = vunpack.c.h.b16 %v3505
    %v4607 = vunpack.c.l.b16 %v3506
    %v4608 = vunpack.c.h.b16 %v3506
    %v4609 = vunpack.c.l.b16 %v3507
    %v4610 = vunpack.c.h.b16 %v3507
    %v4611 = vunpack.c.l.b16 %v3508
    %v4612 = vunpack.c.l.b16 %v3509
    %v4613 = vunpack.c.h.b16 %v3509
    %v4614 = vunpack.c.l.b16 %v3510
    %v4615 = vunpack.c.h.b16 %v3510
    %v4616 = vunpack.c.l.b16 %v3511
    %v4617 = vunpack.c.h.b16 %v3511
    %v4618 = vunpack.c.l.b16 %v3512
    %v4619 = vunpack.c.l.b16 %v3513
    %v4620 = vunpack.c.h.b16 %v3513
    %v4621 = vunpack.c.l.b16 %v3514
    %v4622 = vunpack.c.h.b16 %v3514
    %v4623 = vunpack.c.l.b16 %v3515
    %v4624 = vunpack.c.h.b16 %v3515
    %v4625 = vunpack.c.l.b16 %v3516
    %v4626 = vunpack.c.l.b16 %v3517
    %v4627 = vunpack.c.h.b16 %v3517
    %v4628 = vunpack.c.l.b16 %v3518
    %v4629 = vunpack.c.h.b16 %v3518
    %v4630 = vunpack.c.l.b16 %v3519
    %v4631 = vunpack.c.h.b16 %v3519
    %v4632 = vunpack.c.l.b16 %v3520
    %v4633 = vunpack.c.l.b16 %v3521
    %v4634 = vunpack.c.h.b16 %v3521
    %v4635 = vunpack.c.l.b16 %v3522
    %v4636 = vunpack.c.h.b16 %v3522
    %v4637 = vunpack.c.l.b16 %v3523
    %v4638 = vunpack.c.h.b16 %v3523
    %v4639 = vunpack.c.l.b16 %v3524
    %v4640 = vunpack.c.l.b16 %v3525
    %v4641 = vunpack.c.h.b16 %v3525
    %v4642 = vunpack.c.l.b16 %v3526
    %v4643 = vunpack.c.h.b16 %v3526
    %v4644 = vunpack.c.l.b16 %v3527
    %v4645 = vunpack.c.h.b16 %v3527
    %v4646 = vunpack.c.l.b16 %v3528
    %v4647 = vunpack.c.l.b16 %v3529
    %v4648 = vunpack.c.h.b16 %v3529
    %v4649 = vunpack.c.l.b16 %v3530
    %v4650 = vunpack.c.h.b16 %v3530
    %v4651 = vunpack.c.l.b16 %v3531
    %v4652 = vunpack.c.h.b16 %v3531
    %v4653 = vunpack.c.l.b16 %v3532
    %v4654 = vunpack.c.l.b16 %v3533
    %v4655 = vunpack.c.h.b16 %v3533
    %v4656 = vunpack.c.l.b16 %v3534
    %v4657 = vunpack.c.h.b16 %v3534
    %v4658 = vunpack.c.l.b16 %v3535
    %v4659 = vunpack.c.h.b16 %v3535
    %v4660 = vunpack.c.l.b16 %v3536
    %v4661 = vunpack.c.l.b16 %v3537
    %v4662 = vunpack.c.h.b16 %v3537
    %v4663 = vunpack.c.l.b16 %v3538
    %v4664 = vunpack.c.h.b16 %v3538
    %v4665 = vunpack.c.l.b16 %v3539
    %v4666 = vunpack.c.h.b16 %v3539
    %v4667 = vunpack.c.l.b16 %v3540
    %v4668 = vunpack.c.l.b16 %v3541
    %v4669 = vunpack.c.h.b16 %v3541
    %v4670 = vunpack.c.l.b16 %v3542
    %v4671 = vunpack.c.h.b16 %v3542
    %v4672 = vunpack.c.l.b16 %v3543
    %v4673 = vunpack.c.h.b16 %v3543
    %v4674 = vunpack.c.l.b16 %v3544
    %v4675 = vunpack.c.l.b16 %v3545
    %v4676 = vunpack.c.h.b16 %v3545
    %v4677 = vunpack.c.l.b16 %v3546
    %v4678 = vunpack.c.h.b16 %v3546
    %v4679 = vunpack.c.l.b16 %v3547
    %v4680 = vunpack.c.h.b16 %v3547
    %v4681 = vunpack.c.l.b16 %v3548
    %v4682 = vunpack.c.l.b16 %v3549
    %v4683 = vunpack.c.h.b16 %v3549
    %v4684 = vunpack.c.l.b16 %v3550
    %v4685 = vunpack.c.h.b16 %v3550
    %v4686 = vunpack.c.l.b16 %v3551
    %v4687 = vunpack.c.h.b16 %v3551
    %v4688 = vunpack.c.l.b16 %v3552
    %v4689 = vunpack.c.l.b16 %v3553
    %v4690 = vunpack.c.h.b16 %v3553
    %v4691 = vunpack.c.l.b16 %v3554
    %v4692 = vunpack.c.h.b16 %v3554
    %v4693 = vunpack.c.l.b16 %v3555
    %v4694 = vunpack.c.h.b16 %v3555
    %v4695 = vunpack.c.l.b16 %v3556
    %v4696 = vunpack.c.l.b16 %v3557
    %v4697 = vunpack.c.h.b16 %v3557
    %v4698 = vunpack.c.l.b16 %v3558
    %v4699 = vunpack.c.h.b16 %v3558
    %v4700 = vunpack.c.l.b16 %v3559
    %v4701 = vunpack.c.h.b16 %v3559
    %v4702 = vunpack.c.l.b16 %v3560
    %v4703 = vunpack.c.l.b16 %v3561
    %v4704 = vunpack.c.h.b16 %v3561
    %v4705 = vunpack.c.l.b16 %v3562
    %v4706 = vunpack.c.h.b16 %v3562
    %v4707 = vunpack.c.l.b16 %v3563
    %v4708 = vunpack.c.h.b16 %v3563
    %v4709 = vunpack.c.l.b16 %v3564
    %v4710 = vunpack.c.l.b16 %v3565
    %v4711 = vunpack.c.h.b16 %v3565
    %v4712 = vunpack.c.l.b16 %v3566
    %v4713 = vunpack.c.h.b16 %v3566
    %v4714 = vunpack.c.l.b16 %v3567
    %v4715 = vunpack.c.h.b16 %v3567
    %v4716 = vunpack.c.l.b16 %v3568
    %v4717 = vunpack.c.l.b16 %v3569
    %v4718 = vunpack.c.h.b16 %v3569
    %v4719 = vunpack.c.l.b16 %v3570
    %v4720 = vunpack.c.h.b16 %v3570
    %v4721 = vunpack.c.l.b16 %v3571
    %v4722 = vunpack.c.h.b16 %v3571
    %v4723 = vunpack.c.l.b16 %v3572
    %v4724 = vunpack.c.l.b16 %v3573
    %v4725 = vunpack.c.h.b16 %v3573
    %v4726 = vunpack.c.l.b16 %v3574
    %v4727 = vunpack.c.h.b16 %v3574
    %v4728 = vunpack.c.l.b16 %v3575
    %v4729 = vunpack.c.h.b16 %v3575
    %v4730 = vunpack.c.l.b16 %v3576
    %v4731 = vunpack.c.l.b16 %v3577
    %v4732 = vunpack.c.h.b16 %v3577
    %v4733 = vunpack.c.l.b16 %v3578
    %v4734 = vunpack.c.h.b16 %v3578
    %v4735 = vunpack.c.l.b16 %v3579
    %v4736 = vunpack.c.h.b16 %v3579
    %v4737 = vunpack.c.l.b16 %v3580
    %v4738 = vunpack.c.l.b16 %v3581
    %v4739 = vunpack.c.h.b16 %v3581
    %v4740 = vunpack.c.l.b16 %v3582
    %v4741 = vunpack.c.h.b16 %v3582
    %v4742 = vunpack.c.l.b16 %v3583
    %v4743 = vunpack.c.h.b16 %v3583
    %v4744 = vunpack.c.l.b16 %v3584
    %v4745 = vunpack.c.l.b16 %v3585
    %v4746 = vunpack.c.h.b16 %v3585
    %v4747 = vunpack.c.l.b16 %v3586
    %v4748 = vunpack.c.h.b16 %v3586
    %v4749 = vunpack.c.l.b16 %v3587
    %v4750 = vunpack.c.h.b16 %v3587
    %v4751 = vunpack.c.l.b16 %v3588
    %v4752 = vunpack.c.l.b16 %v3589
    %v4753 = vunpack.c.h.b16 %v3589
    %v4754 = vunpack.c.l.b16 %v3590
    %v4755 = vunpack.c.h.b16 %v3590
    %v4756 = vunpack.c.l.b16 %v3591
    %v4757 = vunpack.c.h.b16 %v3591
    %v4758 = vunpack.c.l.b16 %v3592
    %v4759 = vunpack.c.l.b16 %v3593
    %v4760 = vunpack.c.h.b16 %v3593
    %v4761 = vunpack.c.l.b16 %v3594
    %v4762 = vunpack.c.h.b16 %v3594
    %v4763 = vunpack.c.l.b16 %v3595
    %v4764 = vunpack.c.h.b16 %v3595
    %v4765 = vunpack.c.l.b16 %v3596
    %v4766 = vunpack.c.l.b16 %v3597
    %v4767 = vunpack.c.h.b16 %v3597
    %v4768 = vunpack.c.l.b16 %v3598
    %v4769 = vunpack.c.h.b16 %v3598
    %v4770 = vunpack.c.l.b16 %v3599
    %v4771 = vunpack.c.h.b16 %v3599
    %v4772 = vunpack.c.l.b16 %v3600
    %v4773 = vunpack.c.l.b16 %v3601
    %v4774 = vunpack.c.h.b16 %v3601
    %v4775 = vunpack.c.l.b16 %v3602
    %v4776 = vunpack.c.h.b16 %v3602
    %v4777 = vunpack.c.l.b16 %v3603
    %v4778 = vunpack.c.h.b16 %v3603
    %v4779 = vunpack.c.l.b16 %v3604
    %v4780 = vunpack.c.l.b16 %v3605
    %v4781 = vunpack.c.h.b16 %v3605
    %v4782 = vunpack.c.l.b16 %v3606
    %v4783 = vunpack.c.h.b16 %v3606
    %v4784 = vunpack.c.l.b16 %v3607
    %v4785 = vunpack.c.h.b16 %v3607
    %v4786 = vunpack.c.l.b16 %v3608
    %v4787 = vunpack.c.l.b16 %v3609
    %v4788 = vunpack.c.h.b16 %v3609
    %v4789 = vunpack.c.l.b16 %v3610
    %v4790 = vunpack.c.h.b16 %v3610
    %v4791 = vunpack.c.l.b16 %v3611
    %v4792 = vunpack.c.h.b16 %v3611
    %v4793 = vunpack.c.l.b16 %v3612
    %v4794 = vunpack.c.l.b16 %v3613
    %v4795 = vunpack.c.h.b16 %v3613
    %v4796 = vunpack.c.l.b16 %v3614
    %v4797 = vunpack.c.h.b16 %v3614
    %v4798 = vunpack.c.l.b16 %v3615
    %v4799 = vunpack.c.h.b16 %v3615
    %v4800 = vunpack.c.l.b16 %v3616
    %v4801 = vunpack.c.l.b16 %v3617
    %v4802 = vunpack.c.h.b16 %v3617
    %v4803 = vunpack.c.l.b16 %v3618
    %v4804 = vunpack.c.h.b16 %v3618
    %v4805 = vunpack.c.l.b16 %v3619
    %v4806 = vunpack.c.h.b16 %v3619
    %v4807 = vunpack.c.l.b16 %v3620
    %v4808 = vunpack.c.l.b16 %v3621
    %v4809 = vunpack.c.h.b16 %v3621
    %v4810 = vunpack.c.l.b16 %v3622
    %v4811 = vunpack.c.h.b16 %v3622
    %v4812 = vunpack.c.l.b16 %v3623
    %v4813 = vunpack.c.h.b16 %v3623
    %v4814 = vunpack.c.l.b16 %v3624
    %v4815 = vunpack.c.l.b16 %v3625
    %v4816 = vunpack.c.h.b16 %v3625
    %v4817 = vunpack.c.l.b16 %v3626
    %v4818 = vunpack.c.h.b16 %v3626
    %v4819 = vunpack.c.l.b16 %v3627
    %v4820 = vunpack.c.h.b16 %v3627
    %v4821 = vunpack.c.l.b16 %v3628
    %v4822 = vunpack.c.l.b16 %v3629
    %v4823 = vunpack.c.h.b16 %v3629
    %v4824 = vunpack.c.l.b16 %v3630
    %v4825 = vunpack.c.h.b16 %v3630
    %v4826 = vunpack.c.l.b16 %v3631
    %v4827 = vunpack.c.h.b16 %v3631
    %v4828 = vunpack.c.l.b16 %v3632
    %v4829 = vunpack.c.l.b16 %v3633
    %v4830 = vunpack.c.h.b16 %v3633
    %v4831 = vunpack.c.l.b16 %v3634
    %v4832 = vunpack.c.h.b16 %v3634
    %v4833 = vunpack.c.l.b16 %v3635
    %v4834 = vunpack.c.h.b16 %v3635
    %v4835 = vunpack.c.l.b16 %v3636
    %v4836 = vunpack.c.l.b16 %v3637
    %v4837 = vunpack.c.h.b16 %v3637
    %v4838 = vunpack.c.l.b16 %v3638
    %v4839 = vunpack.c.h.b16 %v3638
    %v4840 = vunpack.c.l.b16 %v3639
    %v4841 = vunpack.c.h.b16 %v3639
    %v4842 = vunpack.c.l.b16 %v3640
    %v4843 = vunpack.c.l.b16 %v3641
    %v4844 = vunpack.c.h.b16 %v3641
    %v4845 = vunpack.c.l.b16 %v3642
    %v4846 = vunpack.c.h.b16 %v3642
    %v4847 = vunpack.c.l.b16 %v3643
    %v4848 = vunpack.c.h.b16 %v3643
    %v4849 = vunpack.c.l.b16 %v3644
    %v4850 = vunpack.c.l.b16 %v3645
    %v4851 = vunpack.c.h.b16 %v3645
    %v4852 = vunpack.c.l.b16 %v3646
    %v4853 = vunpack.c.h.b16 %v3646
    %v4854 = vunpack.c.l.b16 %v3647
    %v4855 = vunpack.c.h.b16 %v3647
    %v4856 = vunpack.c.l.b16 %v3648
    %v4857 = vunpack.c.l.b16 %v3649
    %v4858 = vunpack.c.h.b16 %v3649
    %v4859 = vunpack.c.l.b16 %v3650
    %v4860 = vunpack.c.h.b16 %v3650
    %v4861 = vunpack.c.l.b16 %v3651
    %v4862 = vunpack.c.h.b16 %v3651
    %v4863 = vunpack.c.l.b16 %v3652
    %v4864 = vunpack.c.l.b16 %v3653
    %v4865 = vunpack.c.h.b16 %v3653
    %v4866 = vunpack.c.l.b16 %v3654
    %v4867 = vunpack.c.h.b16 %v3654
    %v4868 = vunpack.c.l.b16 %v3655
    %v4869 = vunpack.c.h.b16 %v3655
    %v4870 = vunpack.c.l.b16 %v3656
    %v4871 = vunpack.c.l.b16 %v3657
    %v4872 = vunpack.c.h.b16 %v3657
    %v4873 = vunpack.c.l.b16 %v3658
    %v4874 = vunpack.c.h.b16 %v3658
    %v4875 = vunpack.c.l.b16 %v3659
    %v4876 = vunpack.c.h.b16 %v3659
    %v4877 = vunpack.c.l.b16 %v3660
    %v4878 = vunpack.c.l.b16 %v3661
    %v4879 = vunpack.c.h.b16 %v3661
    %v4880 = vunpack.c.l.b16 %v3662
    %v4881 = vunpack.c.h.b16 %v3662
    %v4882 = vunpack.c.l.b16 %v3663
    %v4883 = vunpack.c.h.b16 %v3663
    %v4884 = vunpack.c.l.b16 %v3664
    %v4885 = vunpack.c.l.b16 %v3665
    %v4886 = vunpack.c.h.b16 %v3665
    %v4887 = vunpack.c.l.b16 %v3666
    %v4888 = vunpack.c.h.b16 %v3666
    %v4889 = vunpack.c.l.b16 %v3667
    %v4890 = vunpack.c.h.b16 %v3667
    %v4891 = vunpack.c.l.b16 %v3668
    %v4892 = vunpack.c.l.b16 %v3669
    %v4893 = vunpack.c.h.b16 %v3669
    %v4894 = vunpack.c.l.b16 %v3670
    %v4895 = vunpack.c.h.b16 %v3670
    %v4896 = vunpack.c.l.b16 %v3671
    %v4897 = vunpack.c.h.b16 %v3671
    %v4898 = vunpack.c.l.b16 %v3672
    %v4899 = vunpack.c.l.b16 %v3673
    %v4900 = vunpack.c.h.b16 %v3673
    %v4901 = vunpack.c.l.b16 %v3674
    %v4902 = vunpack.c.h.b16 %v3674
    %v4903 = vunpack.c.l.b16 %v3675
    %v4904 = vunpack.c.h.b16 %v3675
    %v4905 = vunpack.c.l.b16 %v3676
    %v4906 = vunpack.c.l.b16 %v3677
    %v4907 = vunpack.c.h.b16 %v3677
    %v4908 = vunpack.c.l.b16 %v3678
    %v4909 = vunpack.c.h.b16 %v3678
    %v4910 = vunpack.c.l.b16 %v3679
    %v4911 = vunpack.c.h.b16 %v3679
    %v4912 = vunpack.c.l.b16 %v3680
    %v4913 = vunpack.c.l.b16 %v3681
    %v4914 = vunpack.c.h.b16 %v3681
    %v4915 = vunpack.c.l.b16 %v3682
    %v4916 = vunpack.c.h.b16 %v3682
    %v4917 = vunpack.c.l.b16 %v3683
    %v4918 = vunpack.c.h.b16 %v3683
    %v4919 = vunpack.c.l.b16 %v3684
    %v4920 = vunpack.c.l.b16 %v3685
    %v4921 = vunpack.c.h.b16 %v3685
    %v4922 = vunpack.c.l.b16 %v3686
    %v4923 = vunpack.c.h.b16 %v3686
    %v4924 = vunpack.c.l.b16 %v3687
    %v4925 = vunpack.c.h.b16 %v3687
    %v4926 = vunpack.c.l.b16 %v3688
    %v4927 = vunpack.c.l.b16 %v3689
    %v4928 = vunpack.c.h.b16 %v3689
    %v4929 = vunpack.c.l.b16 %v3690
    %v4930 = vunpack.c.h.b16 %v3690
    %v4931 = vunpack.c.l.b16 %v3691
    %v4932 = vunpack.c.h.b16 %v3691
    %v4933 = vunpack.c.l.b16 %v3692
    %v4934 = vunpack.c.l.b16 %v3693
    %v4935 = vunpack.c.h.b16 %v3693
    %v4936 = vunpack.c.l.b16 %v3694
    %v4937 = vunpack.c.h.b16 %v3694
    %v4938 = vunpack.c.l.b16 %v3695
    %v4939 = vunpack.c.h.b16 %v3695
    %v4940 = vunpack.c.l.b16 %v3696
    %v4941 = vunpack.c.l.b16 %v3697
    %v4942 = vunpack.c.h.b16 %v3697
    %v4943 = vunpack.c.l.b16 %v3698
    %v4944 = vunpack.c.h.b16 %v3698
    %v4945 = vunpack.c.l.b16 %v3699
    %v4946 = vunpack.c.h.b16 %v3699
    %v4947 = vunpack.c.l.b16 %v3700
    %v4948 = vunpack.c.l.b16 %v3701
    %v4949 = vunpack.c.h.b16 %v3701
    %v4950 = vunpack.c.l.b16 %v3702
    %v4951 = vunpack.c.h.b16 %v3702
    %v4952 = vunpack.c.l.b16 %v3703
    %v4953 = vunpack.c.h.b16 %v3703
    %v4954 = vunpack.c.l.b16 %v3704
    %v4955 = vunpack.c.l.b16 %v3705
    %v4956 = vunpack.c.h.b16 %v3705
    %v4957 = vunpack.c.l.b16 %v3706
    %v4958 = vunpack.c.h.b16 %v3706
    %v4959 = vunpack.c.l.b16 %v3707
    %v4960 = vunpack.c.h.b16 %v3707
    %v4961 = vunpack.c.l.b16 %v3708
    %v4962 = vunpack.c.l.b16 %v3709
    %v4963 = vunpack.c.h.b16 %v3709
    %v4964 = vunpack.c.l.b16 %v3710
    %v4965 = vunpack.c.h.b16 %v3710
    %v4966 = vunpack.c.l.b16 %v3711
    %v4967 = vunpack.c.h.b16 %v3711
    %v4968 = vunpack.c.l.b16 %v3712
    %v4969 = vunpack.c.l.b16 %v3713
    %v4970 = vunpack.c.h.b16 %v3713
    %v4971 = vunpack.c.l.b16 %v3714
    %v4972 = vunpack.c.h.b16 %v3714
    %v4973 = vunpack.c.l.b16 %v3715
    %v4974 = vunpack.c.h.b16 %v3715
    %v4975 = vunpack.c.l.b16 %v3716
    %v4976 = vunpack.c.l.b16 %v3717
    %v4977 = vunpack.c.h.b16 %v3717
    %v4978 = vunpack.c.l.b16 %v3718
    %v4979 = vunpack.c.h.b16 %v3718
    %v4980 = vunpack.c.l.b16 %v3719
    %v4981 = vunpack.c.h.b16 %v3719
    %v4982 = vunpack.c.l.b16 %v3720
    %v4983 = vunpack.c.l.b16 %v3721
    %v4984 = vunpack.c.h.b16 %v3721
    %v4985 = vunpack.c.l.b16 %v3722
    %v4986 = vunpack.c.h.b16 %v3722
    %v4987 = vunpack.c.l.b16 %v3723
    %v4988 = vunpack.c.h.b16 %v3723
    %v4989 = vunpack.c.l.b16 %v3724
    %v4990 = vunpack.c.l.b16 %v3725
    %v4991 = vunpack.c.h.b16 %v3725
    %v4992 = vunpack.c.l.b16 %v3726
    %v4993 = vunpack.c.h.b16 %v3726
    %v4994 = vunpack.c.l.b16 %v3727
    %v4995 = vunpack.c.h.b16 %v3727
    %v4996 = vunpack.c.l.b16 %v3728
    %v4997 = vunpack.c.l.b16 %v3729
    %v4998 = vunpack.c.h.b16 %v3729
    %v4999 = vunpack.c.l.b16 %v3730
    %v5000 = vunpack.c.h.b16 %v3730
    %v5001 = vunpack.c.l.b16 %v3731
    %v5002 = vunpack.c.h.b16 %v3731
    %v5003 = vunpack.c.l.b16 %v3732
    %v5004 = vunpack.c.l.b16 %v3733
    %v5005 = vunpack.c.h.b16 %v3733
    %v5006 = vunpack.c.l.b16 %v3734
    %v5007 = vunpack.c.h.b16 %v3734
    %v5008 = vunpack.c.l.b16 %v3735
    %v5009 = vunpack.c.h.b16 %v3735
    %v5010 = vunpack.c.l.b16 %v3736
    %v5011 = vunpack.c.l.b16 %v3737
    %v5012 = vunpack.c.h.b16 %v3737
    %v5013 = vunpack.c.l.b16 %v3738
    %v5014 = vunpack.c.h.b16 %v3738
    %v5015 = vunpack.c.l.b16 %v3739
    %v5016 = vunpack.c.h.b16 %v3739
    %v5017 = vunpack.c.l.b16 %v3740
    %v5018 = vunpack.c.l.b16 %v3741
    %v5019 = vunpack.c.h.b16 %v3741
    %v5020 = vunpack.c.l.b16 %v3742
    %v5021 = vunpack.c.h.b16 %v3742
    %v5022 = vunpack.c.l.b16 %v3743
    %v5023 = vunpack.c.h.b16 %v3743
    %v5024 = vunpack.c.l.b16 %v3744
    %v5025 = vunpack.c.l.b16 %v3745
    %v5026 = vunpack.c.h.b16 %v3745
    %v5027 = vunpack.c.l.b16 %v3746
    %v5028 = vunpack.c.h.b16 %v3746
    %v5029 = vunpack.c.l.b16 %v3747
    %v5030 = vunpack.c.h.b16 %v3747
    %v5031 = vunpack.c.l.b16 %v3748
    %v5032 = vunpack.c.l.b16 %v3749
    %v5033 = vunpack.c.h.b16 %v3749
    %v5034 = vunpack.c.l.b16 %v3750
    %v5035 = vunpack.c.h.b16 %v3750
    %v5036 = vunpack.c.l.b16 %v3751
    %v5037 = vunpack.c.h.b16 %v3751
    %v5038 = vunpack.c.l.b16 %v3752
    %v5039 = vunpack.c.l.b16 %v3753
    %v5040 = vunpack.c.h.b16 %v3753
    %v5041 = vunpack.c.l.b16 %v3754
    %v5042 = vunpack.c.h.b16 %v3754
    %v5043 = vunpack.c.l.b16 %v3755
    %v5044 = vunpack.c.h.b16 %v3755
    %v5045 = vunpack.c.l.b16 %v3756
    %v5046 = vunpack.c.l.b16 %v3757
    %v5047 = vunpack.c.h.b16 %v3757
    %v5048 = vunpack.c.l.b16 %v3758
    %v5049 = vunpack.c.h.b16 %v3758
    %v5050 = vunpack.c.l.b16 %v3759
    %v5051 = vunpack.c.h.b16 %v3759
    %v5052 = vunpack.c.l.b16 %v3760
    %v5053 = vunpack.c.l.b16 %v3761
    %v5054 = vunpack.c.h.b16 %v3761
    %v5055 = vunpack.c.l.b16 %v3762
    %v5056 = vunpack.c.h.b16 %v3762
    %v5057 = vunpack.c.l.b16 %v3763
    %v5058 = vunpack.c.h.b16 %v3763
    %v5059 = vunpack.c.l.b16 %v3764
    %v5060 = vunpack.c.l.b16 %v3765
    %v5061 = vunpack.c.h.b16 %v3765
    %v5062 = vunpack.c.l.b16 %v3766
    %v5063 = vunpack.c.h.b16 %v3766
    %v5064 = vunpack.c.l.b16 %v3767
    %v5065 = vunpack.c.h.b16 %v3767
    %v5066 = vunpack.c.l.b16 %v3768
    %v5067 = vunpack.c.l.b16 %v3769
    %v5068 = vunpack.c.h.b16 %v3769
    %v5069 = vunpack.c.l.b16 %v3770
    %v5070 = vunpack.c.h.b16 %v3770
    %v5071 = vunpack.c.l.b16 %v3771
    %v5072 = vunpack.c.h.b16 %v3771
    %v5073 = vunpack.c.l.b16 %v3772
    %v5074 = vunpack.c.l.b16 %v3773
    %v5075 = vunpack.c.h.b16 %v3773
    %v5076 = vunpack.c.l.b16 %v3774
    %v5077 = vunpack.c.h.b16 %v3774
    %v5078 = vunpack.c.l.b16 %v3775
    %v5079 = vunpack.c.h.b16 %v3775
    %v5080 = vunpack.c.l.b16 %v3776
    %v5081 = vunpack.c.l.b16 %v3777
    %v5082 = vunpack.c.h.b16 %v3777
    %v5083 = vunpack.c.l.b16 %v3778
    %v5084 = vunpack.c.h.b16 %v3778
    %v5085 = vunpack.c.l.b16 %v3779
    %v5086 = vunpack.c.h.b16 %v3779
    %v5087 = vunpack.c.l.b16 %v3780
    %v5088 = vunpack.c.l.b16 %v3781
    %v5089 = vunpack.c.h.b16 %v3781
    %v5090 = vunpack.c.l.b16 %v3782
    %v5091 = vunpack.c.h.b16 %v3782
    %v5092 = vunpack.c.l.b16 %v3783
    %v5093 = vunpack.c.h.b16 %v3783
    %v5094 = vunpack.c.l.b16 %v3784
    %v5095 = vunpack.c.l.b16 %v3785
    %v5096 = vunpack.c.h.b16 %v3785
    %v5097 = vunpack.c.l.b16 %v3786
    %v5098 = vunpack.c.h.b16 %v3786
    %v5099 = vunpack.c.l.b16 %v3787
    %v5100 = vunpack.c.h.b16 %v3787
    %v5101 = vunpack.c.l.b16 %v3788
    %v5102 = vunpack.c.l.b16 %v3789
    %v5103 = vunpack.c.h.b16 %v3789
    %v5104 = vunpack.c.l.b16 %v3790
    %v5105 = vunpack.c.h.b16 %v3790
    %v5106 = vunpack.c.l.b16 %v3791
    %v5107 = vunpack.c.h.b16 %v3791
    %v5108 = vunpack.c.l.b16 %v3792
    %v5109 = vunpack.c.l.b16 %v3793
    %v5110 = vunpack.c.h.b16 %v3793
    %v5111 = vunpack.c.l.b16 %v3794
    %v5112 = vunpack.c.h.b16 %v3794
    %v5113 = vunpack.c.l.b16 %v3795
    %v5114 = vunpack.c.h.b16 %v3795
    %v5115 = vunpack.c.l.b16 %v3796
    %v5116 = vunpack.c.l.b16 %v3797
    %v5117 = vunpack.c.h.b16 %v3797
    %v5118 = vunpack.c.l.b16 %v3798
    %v5119 = vunpack.c.h.b16 %v3798
    %v5120 = vunpack.c.l.b16 %v3799
    %v5121 = vunpack.c.h.b16 %v3799
    %v5122 = vunpack.c.l.b16 %v3800
    %v5123 = vunpack.c.l.b16 %v3801
    %v5124 = vunpack.c.h.b16 %v3801
    %v5125 = vunpack.c.l.b16 %v3802
    %v5126 = vunpack.c.h.b16 %v3802
    %v5127 = vunpack.c.l.b16 %v3803
    %v5128 = vunpack.c.h.b16 %v3803
    %v5129 = vunpack.c.l.b16 %v3804
    %v5130 = vunpack.c.l.b16 %v3805
    %v5131 = vunpack.c.h.b16 %v3805
    %v5132 = vunpack.c.l.b16 %v3806
    %v5133 = vunpack.c.h.b16 %v3806
    %v5134 = vunpack.c.l.b16 %v3807
    %v5135 = vunpack.c.h.b16 %v3807
    %v5136 = vunpack.c.l.b16 %v3808
    %v5137 = vunpack.c.l.b16 %v3809
    %v5138 = vunpack.c.h.b16 %v3809
    %v5139 = vunpack.c.l.b16 %v3810
    %v5140 = vunpack.c.h.b16 %v3810
    %v5141 = vunpack.c.l.b16 %v3811
    %v5142 = vunpack.c.h.b16 %v3811
    %v5143 = vunpack.c.l.b16 %v3812
    %v5144 = vunpack.c.l.b16 %v3813
    %v5145 = vunpack.c.h.b16 %v3813
    %v5146 = vunpack.c.l.b16 %v3814
    %v5147 = vunpack.c.h.b16 %v3814
    %v5148 = vunpack.c.l.b16 %v3815
    %v5149 = vunpack.c.h.b16 %v3815
    %v5150 = vunpack.c.l.b16 %v3816
    %v5151 = vunpack.c.l.b16 %v3817
    %v5152 = vunpack.c.h.b16 %v3817
    %v5153 = vunpack.c.l.b16 %v3818
    %v5154 = vunpack.c.h.b16 %v3818
    %v5155 = vunpack.c.l.b16 %v3819
    %v5156 = vunpack.c.h.b16 %v3819
    %v5157 = vunpack.c.l.b16 %v3820
    %v5158 = vunpack.c.l.b16 %v3821
    %v5159 = vunpack.c.h.b16 %v3821
    %v5160 = vunpack.c.l.b16 %v3822
    %v5161 = vunpack.c.h.b16 %v3822
    %v5162 = vunpack.c.l.b16 %v3823
    %v5163 = vunpack.c.h.b16 %v3823
    %v5164 = vunpack.c.l.b16 %v3824
    %v5165 = vunpack.c.l.b16 %v3825
    %v5166 = vunpack.c.h.b16 %v3825
    %v5167 = vunpack.c.l.b16 %v3826
    %v5168 = vunpack.c.h.b16 %v3826
    %v5169 = vunpack.c.l.b16 %v3827
    %v5170 = vunpack.c.h.b16 %v3827
    %v5171 = vunpack.c.l.b16 %v3828
    %v5172 = vunpack.c.l.b16 %v3829
    %v5173 = vunpack.c.h.b16 %v3829
    %v5174 = vunpack.c.l.b16 %v3830
    %v5175 = vunpack.c.h.b16 %v3830
    %v5176 = vunpack.c.l.b16 %v3831
    %v5177 = vunpack.c.h.b16 %v3831
    %v5178 = vunpack.c.l.b16 %v3832
    %v5179 = vunpack.c.l.b16 %v3833
    %v5180 = vunpack.c.h.b16 %v3833
    %v5181 = vunpack.c.l.b16 %v3834
    %v5182 = vunpack.c.h.b16 %v3834
    %v5183 = vunpack.c.l.b16 %v3835
    %v5184 = vunpack.c.h.b16 %v3835
    %v5185 = vunpack.c.l.b16 %v3836
    %v5186 = vunpack.c.l.b16 %v3837
    %v5187 = vunpack.c.h.b16 %v3837
    %v5188 = vunpack.c.l.b16 %v3838
    %v5189 = vunpack.c.h.b16 %v3838
    %v5190 = vunpack.c.l.b16 %v3839
    %v5191 = vunpack.c.h.b16 %v3839
    %v5192 = vunpack.c.l.b16 %v3840
    %v5193 = vunpack.c.l.b16 %v3841
    %v5194 = vunpack.c.h.b16 %v3841
    %v5195 = vunpack.c.l.b16 %v3842
    %v5196 = vunpack.c.h.b16 %v3842
    %v5197 = vunpack.c.l.b16 %v3843
    %v5198 = vunpack.c.h.b16 %v3843
    %v5199 = vunpack.c.l.b16 %v3844
    %v5200 = vunpack.c.l.b16 %v3845
    %v5201 = vunpack.c.h.b16 %v3845
    %v5202 = vunpack.c.l.b16 %v3846
    %v5203 = vunpack.c.h.b16 %v3846
    %v5204 = vunpack.c.l.b16 %v3847
    %v5205 = vunpack.c.h.b16 %v3847
    %v5206 = vunpack.c.l.b16 %v3848
    %v5207 = vunpack.c.l.b16 %v3849
    %v5208 = vunpack.c.h.b16 %v3849
    %v5209 = vunpack.c.l.b16 %v3850
    %v5210 = vunpack.c.h.b16 %v3850
    %v5211 = vunpack.c.l.b16 %v3851
    %v5212 = vunpack.c.h.b16 %v3851
    %v5213 = vunpack.c.l.b16 %v3852
    %v5214 = vunpack.c.l.b16 %v3853
    %v5215 = vunpack.c.h.b16 %v3853
    %v5216 = vunpack.c.l.b16 %v3854
    %v5217 = vunpack.c.h.b16 %v3854
    %v5218 = vunpack.c.l.b16 %v3855
    %v5219 = vunpack.c.h.b16 %v3855
    %v5220 = vunpack.c.l.b16 %v3856
    %v5221 = vunpack.c.l.b16 %v3857
    %v5222 = vunpack.c.h.b16 %v3857
    %v5223 = vunpack.c.l.b16 %v3858
    %v5224 = vunpack.c.h.b16 %v3858
    %v5225 = vunpack.c.l.b16 %v3859
    %v5226 = vunpack.c.h.b16 %v3859
    %v5227 = vunpack.c.l.b16 %v3860
    %v5228 = vunpack.c.l.b16 %v3861
    %v5229 = vunpack.c.h.b16 %v3861
    %v5230 = vunpack.c.l.b16 %v3862
    %v5231 = vunpack.c.h.b16 %v3862
    %v5232 = vunpack.c.l.b16 %v3863
    %v5233 = vunpack.c.h.b16 %v3863
    %v5234 = vunpack.c.l.b16 %v3864
    %v5235 = vunpack.c.l.b16 %v3865
    %v5236 = vunpack.c.h.b16 %v3865
    %v5237 = vunpack.c.l.b16 %v3866
    %v5238 = vunpack.c.h.b16 %v3866
    %v5239 = vunpack.c.l.b16 %v3867
    %v5240 = vunpack.c.h.b16 %v3867
    %v5241 = vunpack.c.l.b16 %v3868
    %v5242 = vunpack.c.l.b16 %v3869
    %v5243 = vunpack.c.h.b16 %v3869
    %v5244 = vunpack.c.l.b16 %v3870
    %v5245 = vunpack.c.h.b16 %v3870
    %v5246 = vunpack.c.l.b16 %v3871
    %v5247 = vunpack.c.h.b16 %v3871
    %v5248 = vunpack.c.l.b16 %v3872
    %v5249 = vunpack.c.l.b16 %v3873
    %v5250 = vunpack.c.h.b16 %v3873
    %v5251 = vunpack.c.l.b16 %v3874
    %v5252 = vunpack.c.h.b16 %v3874
    %v5253 = vunpack.c.l.b16 %v3875
    %v5254 = vunpack.c.h.b16 %v3875
    %v5255 = vunpack.c.l.b16 %v3876
    %v5256 = vunpack.c.l.b16 %v3877
    %v5257 = vunpack.c.h.b16 %v3877
    %v5258 = vunpack.c.l.b16 %v3878
    %v5259 = vunpack.c.h.b16 %v3878
    %v5260 = vunpack.c.l.b16 %v3879
    %v5261 = vunpack.c.h.b16 %v3879
    %v5262 = vunpack.c.l.b16 %v3880
    %v5263 = vunpack.c.l.b16 %v3881
    %v5264 = vunpack.c.h.b16 %v3881
    %v5265 = vunpack.c.l.b16 %v3882
    %v5266 = vunpack.c.h.b16 %v3882
    %v5267 = vunpack.c.l.b16 %v3883
    %v5268 = vunpack.c.h.b16 %v3883
    %v5269 = vunpack.c.l.b16 %v3884
    %v5270 = vunpack.c.l.b16 %v3885
    %v5271 = vunpack.c.h.b16 %v3885
    %v5272 = vunpack.c.l.b16 %v3886
    %v5273 = vunpack.c.h.b16 %v3886
    %v5274 = vunpack.c.l.b16 %v3887
    %v5275 = vunpack.c.h.b16 %v3887
    %v5276 = vunpack.c.l.b16 %v3888
    %v5277 = vunpack.c.l.b16 %v3889
    %v5278 = vunpack.c.h.b16 %v3889
    %v5279 = vunpack.c.l.b16 %v3890
    %v5280 = vunpack.c.h.b16 %v3890
    %v5281 = vunpack.c.l.b16 %v3891
    %v5282 = vunpack.c.h.b16 %v3891
    %v5283 = vunpack.c.l.b16 %v3892
    %v5284 = vunpack.c.l.b16 %v3893
    %v5285 = vunpack.c.h.b16 %v3893
    %v5286 = vunpack.c.l.b16 %v3894
    %v5287 = vunpack.c.h.b16 %v3894
    %v5288 = vunpack.c.l.b16 %v3895
    %v5289 = vunpack.c.h.b16 %v3895
    %v5290 = vunpack.c.l.b16 %v3896
    %v5291 = vunpack.c.l.b16 %v3897
    %v5292 = vunpack.c.h.b16 %v3897
    %v5293 = vunpack.c.l.b16 %v3898
    %v5294 = vunpack.c.h.b16 %v3898
    %v5295 = vunpack.c.l.b16 %v3899
    %v5296 = vunpack.c.h.b16 %v3899
    %v5297 = vunpack.c.l.b16 %v3900
    %v5298 = vunpack.c.l.b16 %v3901
    %v5299 = vunpack.c.h.b16 %v3901
    %v5300 = vunpack.c.l.b16 %v3902
    %v5301 = vunpack.c.h.b16 %v3902
    %v5302 = vunpack.c.l.b16 %v3903
    %v5303 = vunpack.c.h.b16 %v3903
    %v5304 = vunpack.c.l.b16 %v3904
    %v5305 = vunpack.c.l.b16 %v3905
    %v5306 = vunpack.c.h.b16 %v3905
    %v5307 = vunpack.c.l.b16 %v3906
    %v5308 = vunpack.c.h.b16 %v3906
    %v5309 = vunpack.c.l.b16 %v3907
    %v5310 = vunpack.c.h.b16 %v3907
    %v5311 = vunpack.c.l.b16 %v3908
    %v5312 = vunpack.c.l.b16 %v3909
    %v5313 = vunpack.c.h.b16 %v3909
    %v5314 = vunpack.c.l.b16 %v3910
    %v5315 = vunpack.c.h.b16 %v3910
    %v5316 = vunpack.c.l.b16 %v3911
    %v5317 = vunpack.c.h.b16 %v3911
    %v5318 = vunpack.c.l.b16 %v3912
    %v5319 = vunpack.c.l.b16 %v3913
    %v5320 = vunpack.c.h.b16 %v3913
    %v5321 = vunpack.c.l.b16 %v3914
    %v5322 = vunpack.c.h.b16 %v3914
    %v5323 = vunpack.c.l.b16 %v3915
    %v5324 = vunpack.c.h.b16 %v3915
    %v5325 = vunpack.c.l.b16 %v3916
    %v5326 = vunpack.c.l.b16 %v3917
    %v5327 = vunpack.c.h.b16 %v3917
    %v5328 = vunpack.c.l.b16 %v3918
    %v5329 = vunpack.c.h.b16 %v3918
    %v5330 = vunpack.c.l.b16 %v3919
    %v5331 = vunpack.c.h.b16 %v3919
    %v5332 = vunpack.c.l.b16 %v3920
    %v5333 = vunpack.c.l.b16 %v3921
    %v5334 = vunpack.c.h.b16 %v3921
    %v5335 = vunpack.c.l.b16 %v3922
    %v5336 = vunpack.c.h.b16 %v3922
    %v5337 = vunpack.c.l.b16 %v3923
    %v5338 = vunpack.c.h.b16 %v3923
    %v5339 = vunpack.c.l.b16 %v3924
    %v5340 = vunpack.c.l.b16 %v3925
    %v5341 = vunpack.c.h.b16 %v3925
    %v5342 = vunpack.c.l.b16 %v3926
    %v5343 = vunpack.c.h.b16 %v3926
    %v5344 = vunpack.c.l.b16 %v3927
    %v5345 = vunpack.c.h.b16 %v3927
    %v5346 = vunpack.c.l.b16 %v3928
    %v5347 = vunpack.c.l.b16 %v3929
    %v5348 = vunpack.c.h.b16 %v3929
    %v5349 = vunpack.c.l.b16 %v3930
    %v5350 = vunpack.c.h.b16 %v3930
    %v5351 = vunpack.c.l.b16 %v3931
    %v5352 = vunpack.c.h.b16 %v3931
    %v5353 = vunpack.c.l.b16 %v3932
    %v5354 = vunpack.c.l.b16 %v3933
    %v5355 = vunpack.c.h.b16 %v3933
    %v5356 = vunpack.c.l.b16 %v3934
    %v5357 = vunpack.c.h.b16 %v3934
    %v5358 = vunpack.c.l.b16 %v3935
    %v5359 = vunpack.c.h.b16 %v3935
    %v5360 = vunpack.c.l.b16 %v3936
    %v5361 = vunpack.c.l.b16 %v3937
    %v5362 = vunpack.c.h.b16 %v3937
    %v5363 = vunpack.c.l.b16 %v3938
    %v5364 = vunpack.c.h.b16 %v3938
    %v5365 = vunpack.c.l.b16 %v3939
    %v5366 = vunpack.c.h.b16 %v3939
    %v5367 = vunpack.c.l.b16 %v3940
    %v5368 = vunpack.c.l.b16 %v3941
    %v5369 = vunpack.c.h.b16 %v3941
    %v5370 = vunpack.c.l.b16 %v3942
    %v5371 = vunpack.c.h.b16 %v3942
    %v5372 = vunpack.c.l.b16 %v3943
    %v5373 = vunpack.c.h.b16 %v3943
    %v5374 = vunpack.c.l.b16 %v3944
    %v5375 = vunpack.c.l.b16 %v3945
    %v5376 = vunpack.c.h.b16 %v3945
    %v5377 = vunpack.c.l.b16 %v3946
    %v5378 = vunpack.c.h.b16 %v3946
    %v5379 = vunpack.c.l.b16 %v3947
    %v5380 = vunpack.c.h.b16 %v3947
    %v5381 = vunpack.c.l.b16 %v3948
    %v5382 = vunpack.c.l.b16 %v3949
    %v5383 = vunpack.c.h.b16 %v3949
    %v5384 = vunpack.c.l.b16 %v3950
    %v5385 = vunpack.c.h.b16 %v3950
    %v5386 = vunpack.c.l.b16 %v3951
    %v5387 = vunpack.c.h.b16 %v3951
    %v5388 = vunpack.c.l.b16 %v3952
    %v5389 = vunpack.c.l.b16 %v3953
    %v5390 = vunpack.c.h.b16 %v3953
    %v5391 = vunpack.c.l.b16 %v3954
    %v5392 = vunpack.c.h.b16 %v3954
    %v5393 = vunpack.c.l.b16 %v3955
    %v5394 = vunpack.c.h.b16 %v3955
    %v5395 = vunpack.c.l.b16 %v3956
    %v5396 = vunpack.c.l.b16 %v3957
    %v5397 = vunpack.c.h.b16 %v3957
    %v5398 = vunpack.c.l.b16 %v3958
    %v5399 = vunpack.c.h.b16 %v3958
    %v5400 = vunpack.c.l.b16 %v3959
    %v5401 = vunpack.c.h.b16 %v3959
    %v5402 = vunpack.c.l.b16 %v3960
    %v5403 = vunpack.c.l.b16 %v3961
    %v5404 = vunpack.c.h.b16 %v3961
    %v5405 = vunpack.c.l.b16 %v3962
    %v5406 = vunpack.c.h.b16 %v3962
    %v5407 = vunpack.c.l.b16 %v3963
    %v5408 = vunpack.c.h.b16 %v3963
    %v5409 = vunpack.c.l.b16 %v3964
    %v5410 = vpack.c.b16 %v4521, %v4514
    %v5411 = vpack.c.b16 %v4522, %v4515
    %v5412 = vpack.c.b16 %v4523, %v4516
    %v5413 = vpack.c.b16 %v4524, %v4517
    %v5414 = vpack.c.b16 %v4525, %v4518
    %v5415 = vpack.c.b16 %v4526, %v4519
    %v5416 = vpack.c.b16 %v4527, %v4520
    %v5417 = vpack.c.b16 %v4535, %v4528
    %v5418 = vpack.c.b16 %v4536, %v4529
    %v5419 = vpack.c.b16 %v4537, %v4530
    %v5420 = vpack.c.b16 %v4538, %v4531
    %v5421 = vpack.c.b16 %v4539, %v4532
    %v5422 = vpack.c.b16 %v4540, %v4533
    %v5423 = vpack.c.b16 %v4541, %v4534
    %v5424 = vpack.c.b16 %v4549, %v4542
    %v5425 = vpack.c.b16 %v4550, %v4543
    %v5426 = vpack.c.b16 %v4551, %v4544
    %v5427 = vpack.c.b16 %v4552, %v4545
    %v5428 = vpack.c.b16 %v4553, %v4546
    %v5429 = vpack.c.b16 %v4554, %v4547
    %v5430 = vpack.c.b16 %v4555, %v4548
    %v5431 = vpack.c.b16 %v4563, %v4556
    %v5432 = vpack.c.b16 %v4564, %v4557
    %v5433 = vpack.c.b16 %v4565, %v4558
    %v5434 = vpack.c.b16 %v4566, %v4559
    %v5435 = vpack.c.b16 %v4567, %v4560
    %v5436 = vpack.c.b16 %v4568, %v4561
    %v5437 = vpack.c.b16 %v4569, %v4562
    %v5438 = vpack.c.b16 %v4577, %v4570
    %v5439 = vpack.c.b16 %v4578, %v4571
    %v5440 = vpack.c.b16 %v4579, %v4572
    %v5441 = vpack.c.b16 %v4580, %v4573
    %v5442 = vpack.c.b16 %v4581, %v4574
    %v5443 = vpack.c.b16 %v4582, %v4575
    %v5444 = vpack.c.b16 %v4583, %v4576
    %v5445 = vpack.c.b16 %v4591, %v4584
    %v5446 = vpack.c.b16 %v4592, %v4585
    %v5447 = vpack.c.b16 %v4593, %v4586
    %v5448 = vpack.c.b16 %v4594, %v4587
    %v5449 = vpack.c.b16 %v4595, %v4588
    %v5450 = vpack.c.b16 %v4596, %v4589
    %v5451 = vpack.c.b16 %v4597, %v4590
    %v5452 = vpack.c.b16 %v4605, %v4598
    %v5453 = vpack.c.b16 %v4606, %v4599
    %v5454 = vpack.c.b16 %v4607, %v4600
    %v5455 = vpack.c.b16 %v4608, %v4601
    %v5456 = vpack.c.b16 %v4609, %v4602
    %v5457 = vpack.c.b16 %v4610, %v4603
    %v5458 = vpack.c.b16 %v4611, %v4604
    %v5459 = vpack.c.b16 %v4619, %v4612
    %v5460 = vpack.c.b16 %v4620, %v4613
    %v5461 = vpack.c.b16 %v4621, %v4614
    %v5462 = vpack.c.b16 %v4622, %v4615
    %v5463 = vpack.c.b16 %v4623, %v4616
    %v5464 = vpack.c.b16 %v4624, %v4617
    %v5465 = vpack.c.b16 %v4625, %v4618
    %v5466 = vpack.c.b16 %v4633, %v4626
    %v5467 = vpack.c.b16 %v4634, %v4627
    %v5468 = vpack.c.b16 %v4635, %v4628
    %v5469 = vpack.c.b16 %v4636, %v4629
    %v5470 = vpack.c.b16 %v4637, %v4630
    %v5471 = vpack.c.b16 %v4638, %v4631
    %v5472 = vpack.c.b16 %v4639, %v4632
    %v5473 = vpack.c.b16 %v4647, %v4640
    %v5474 = vpack.c.b16 %v4648, %v4641
    %v5475 = vpack.c.b16 %v4649, %v4642
    %v5476 = vpack.c.b16 %v4650, %v4643
    %v5477 = vpack.c.b16 %v4651, %v4644
    %v5478 = vpack.c.b16 %v4652, %v4645
    %v5479 = vpack.c.b16 %v4653, %v4646
    %v5480 = vpack.c.b16 %v4661, %v4654
    %v5481 = vpack.c.b16 %v4662, %v4655
    %v5482 = vpack.c.b16 %v4663, %v4656
    %v5483 = vpack.c.b16 %v4664, %v4657
    %v5484 = vpack.c.b16 %v4665, %v4658
    %v5485 = vpack.c.b16 %v4666, %v4659
    %v5486 = vpack.c.b16 %v4667, %v4660
    %v5487 = vpack.c.b16 %v4675, %v4668
    %v5488 = vpack.c.b16 %v4676, %v4669
    %v5489 = vpack.c.b16 %v4677, %v4670
    %v5490 = vpack.c.b16 %v4678, %v4671
    %v5491 = vpack.c.b16 %v4679, %v4672
    %v5492 = vpack.c.b16 %v4680, %v4673
    %v5493 = vpack.c.b16 %v4681, %v4674
    %v5494 = vpack.c.b16 %v4689, %v4682
    %v5495 = vpack.c.b16 %v4690, %v4683
    %v5496 = vpack.c.b16 %v4691, %v4684
    %v5497 = vpack.c.b16 %v4692, %v4685
    %v5498 = vpack.c.b16 %v4693, %v4686
    %v5499 = vpack.c.b16 %v4694, %v4687
    %v5500 = vpack.c.b16 %v4695, %v4688
    %v5501 = vpack.c.b16 %v4703, %v4696
    %v5502 = vpack.c.b16 %v4704, %v4697
    %v5503 = vpack.c.b16 %v4705, %v4698
    %v5504 = vpack.c.b16 %v4706, %v4699
    %v5505 = vpack.c.b16 %v4707, %v4700
    %v5506 = vpack.c.b16 %v4708, %v4701
    %v5507 = vpack.c.b16 %v4709, %v4702
    %v5508 = vpack.c.b16 %v4717, %v4710
    %v5509 = vpack.c.b16 %v4718, %v4711
    %v5510 = vpack.c.b16 %v4719, %v4712
    %v5511 = vpack.c.b16 %v4720, %v4713
    %v5512 = vpack.c.b16 %v4721, %v4714
    %v5513 = vpack.c.b16 %v4722, %v4715
    %v5514 = vpack.c.b16 %v4723, %v4716
    %v5515 = vpack.c.b16 %v4731, %v4724
    %v5516 = vpack.c.b16 %v4732, %v4725
    %v5517 = vpack.c.b16 %v4733, %v4726
    %v5518 = vpack.c.b16 %v4734, %v4727
    %v5519 = vpack.c.b16 %v4735, %v4728
    %v5520 = vpack.c.b16 %v4736, %v4729
    %v5521 = vpack.c.b16 %v4737, %v4730
    %v5522 = vpack.c.b16 %v4745, %v4738
    %v5523 = vpack.c.b16 %v4746, %v4739
    %v5524 = vpack.c.b16 %v4747, %v4740
    %v5525 = vpack.c.b16 %v4748, %v4741
    %v5526 = vpack.c.b16 %v4749, %v4742
    %v5527 = vpack.c.b16 %v4750, %v4743
    %v5528 = vpack.c.b16 %v4751, %v4744
    %v5529 = vpack.c.b16 %v4759, %v4752
    %v5530 = vpack.c.b16 %v4760, %v4753
    %v5531 = vpack.c.b16 %v4761, %v4754
    %v5532 = vpack.c.b16 %v4762, %v4755
    %v5533 = vpack.c.b16 %v4763, %v4756
    %v5534 = vpack.c.b16 %v4764, %v4757
    %v5535 = vpack.c.b16 %v4765, %v4758
    %v5536 = vpack.c.b16 %v4773, %v4766
    %v5537 = vpack.c.b16 %v4774, %v4767
    %v5538 = vpack.c.b16 %v4775, %v4768
    %v5539 = vpack.c.b16 %v4776, %v4769
    %v5540 = vpack.c.b16 %v4777, %v4770
    %v5541 = vpack.c.b16 %v4778, %v4771
    %v5542 = vpack.c.b16 %v4779, %v4772
    %v5543 = vpack.c.b16 %v4787, %v4780
    %v5544 = vpack.c.b16 %v4788, %v4781
    %v5545 = vpack.c.b16 %v4789, %v4782
    %v5546 = vpack.c.b16 %v4790, %v4783
    %v5547 = vpack.c.b16 %v4791, %v4784
    %v5548 = vpack.c.b16 %v4792, %v4785
    %v5549 = vpack.c.b16 %v4793, %v4786
    %v5550 = vpack.c.b16 %v4801, %v4794
    %v5551 = vpack.c.b16 %v4802, %v4795
    %v5552 = vpack.c.b16 %v4803, %v4796
    %v5553 = vpack.c.b16 %v4804, %v4797
    %v5554 = vpack.c.b16 %v4805, %v4798
    %v5555 = vpack.c.b16 %v4806, %v4799
    %v5556 = vpack.c.b16 %v4807, %v4800
    %v5557 = vpack.c.b16 %v4815, %v4808
    %v5558 = vpack.c.b16 %v4816, %v4809
    %v5559 = vpack.c.b16 %v4817, %v4810
    %v5560 = vpack.c.b16 %v4818, %v4811
    %v5561 = vpack.c.b16 %v4819, %v4812
    %v5562 = vpack.c.b16 %v4820, %v4813
    %v5563 = vpack.c.b16 %v4821, %v4814
    %v5564 = vpack.c.b16 %v4829, %v4822
    %v5565 = vpack.c.b16 %v4830, %v4823
    %v5566 = vpack.c.b16 %v4831, %v4824
    %v5567 = vpack.c.b16 %v4832, %v4825
    %v5568 = vpack.c.b16 %v4833, %v4826
    %v5569 = vpack.c.b16 %v4834, %v4827
    %v5570 = vpack.c.b16 %v4835, %v4828
    %v5571 = vpack.c.b16 %v4843, %v4836
    %v5572 = vpack.c.b16 %v4844, %v4837
    %v5573 = vpack.c.b16 %v4845, %v4838
    %v5574 = vpack.c.b16 %v4846, %v4839
    %v5575 = vpack.c.b16 %v4847, %v4840
    %v5576 = vpack.c.b16 %v4848, %v4841
    %v5577 = vpack.c.b16 %v4849, %v4842
    %v5578 = vpack.c.b16 %v4857, %v4850
    %v5579 = vpack.c.b16 %v4858, %v4851
    %v5580 = vpack.c.b16 %v4859, %v4852
    %v5581 = vpack.c.b16 %v4860, %v4853
    %v5582 = vpack.c.b16 %v4861, %v4854
    %v5583 = vpack.c.b16 %v4862, %v4855
    %v5584 = vpack.c.b16 %v4863, %v4856
    %v5585 = vpack.c.b16 %v4871, %v4864
    %v5586 = vpack.c.b16 %v4872, %v4865
    %v5587 = vpack.c.b16 %v4873, %v4866
    %v5588 = vpack.c.b16 %v4874, %v4867
    %v5589 = vpack.c.b16 %v4875, %v4868
    %v5590 = vpack.c.b16 %v4876, %v4869
    %v5591 = vpack.c.b16 %v4877, %v4870
    %v5592 = vpack.c.b16 %v4885, %v4878
    %v5593 = vpack.c.b16 %v4886, %v4879
    %v5594 = vpack.c.b16 %v4887, %v4880
    %v5595 = vpack.c.b16 %v4888, %v4881
    %v5596 = vpack.c.b16 %v4889, %v4882
    %v5597 = vpack.c.b16 %v4890, %v4883
    %v5598 = vpack.c.b16 %v4891, %v4884
    %v5599 = vpack.c.b16 %v4899, %v4892
    %v5600 = vpack.c.b16 %v4900, %v4893
    %v5601 = vpack.c.b16 %v4901, %v4894
    %v5602 = vpack.c.b16 %v4902, %v4895
    %v5603 = vpack.c.b16 %v4903, %v4896
    %v5604 = vpack.c.b16 %v4904, %v4897
    %v5605 = vpack.c.b16 %v4905, %v4898
    %v5606 = vpack.c.b16 %v4913, %v4906
    %v5607 = vpack.c.b16 %v4914, %v4907
    %v5608 = vpack.c.b16 %v4915, %v4908
    %v5609 = vpack.c.b16 %v4916, %v4909
    %v5610 = vpack.c.b16 %v4917, %v4910
    %v5611 = vpack.c.b16 %v4918, %v4911
    %v5612 = vpack.c.b16 %v4919, %v4912
    %v5613 = vpack.c.b16 %v4927, %v4920
    %v5614 = vpack.c.b16 %v4928, %v4921
    %v5615 = vpack.c.b16 %v4929, %v4922
    %v5616 = vpack.c.b16 %v4930, %v4923
    %v5617 = vpack.c.b16 %v4931, %v4924
    %v5618 = vpack.c.b16 %v4932, %v4925
    %v5619 = vpack.c.b16 %v4933, %v4926
    %v5620 = vpack.c.b16 %v4941, %v4934
    %v5621 = vpack.c.b16 %v4942, %v4935
    %v5622 = vpack.c.b16 %v4943, %v4936
    %v5623 = vpack.c.b16 %v4944, %v4937
    %v5624 = vpack.c.b16 %v4945, %v4938
    %v5625 = vpack.c.b16 %v4946, %v4939
    %v5626 = vpack.c.b16 %v4947, %v4940
    %v5627 = vpack.c.b16 %v4955, %v4948
    %v5628 = vpack.c.b16 %v4956, %v4949
    %v5629 = vpack.c.b16 %v4957, %v4950
    %v5630 = vpack.c.b16 %v4958, %v4951
    %v5631 = vpack.c.b16 %v4959, %v4952
    %v5632 = vpack.c.b16 %v4960, %v4953
    %v5633 = vpack.c.b16 %v4961, %v4954
    %v5634 = vpack.c.b16 %v4969, %v4962
    %v5635 = vpack.c.b16 %v4970, %v4963
    %v5636 = vpack.c.b16 %v4971, %v4964
    %v5637 = vpack.c.b16 %v4972, %v4965
    %v5638 = vpack.c.b16 %v4973, %v4966
    %v5639 = vpack.c.b16 %v4974, %v4967
    %v5640 = vpack.c.b16 %v4975, %v4968
    %v5641 = vpack.c.b16 %v4983, %v4976
    %v5642 = vpack.c.b16 %v4984, %v4977
    %v5643 = vpack.c.b16 %v4985, %v4978
    %v5644 = vpack.c.b16 %v4986, %v4979
    %v5645 = vpack.c.b16 %v4987, %v4980
    %v5646 = vpack.c.b16 %v4988, %v4981
    %v5647 = vpack.c.b16 %v4989, %v4982
    %v5648 = vpack.c.b16 %v4997, %v4990
    %v5649 = vpack.c.b16 %v4998, %v4991
    %v5650 = vpack.c.b16 %v4999, %v4992
    %v5651 = vpack.c.b16 %v5000, %v4993
    %v5652 = vpack.c.b16 %v5001, %v4994
    %v5653 = vpack.c.b16 %v5002, %v4995
    %v5654 = vpack.c.b16 %v5003, %v4996
    %v5655 = vpack.c.b16 %v5011, %v5004
    %v5656 = vpack.c.b16 %v5012, %v5005
    %v5657 = vpack.c.b16 %v5013, %v5006
    %v5658 = vpack.c.b16 %v5014, %v5007
    %v5659 = vpack.c.b16 %v5015, %v5008
    %v5660 = vpack.c.b16 %v5016, %v5009
    %v5661 = vpack.c.b16 %v5017, %v5010
    %v5662 = vpack.c.b16 %v5025, %v5018
    %v5663 = vpack.c.b16 %v5026, %v5019
    %v5664 = vpack.c.b16 %v5027, %v5020
    %v5665 = vpack.c.b16 %v5028, %v5021
    %v5666 = vpack.c.b16 %v5029, %v5022
    %v5667 = vpack.c.b16 %v5030, %v5023
    %v5668 = vpack.c.b16 %v5031, %v5024
    %v5669 = vpack.c.b16 %v5039, %v5032
    %v5670 = vpack.c.b16 %v5040, %v5033
    %v5671 = vpack.c.b16 %v5041, %v5034
    %v5672 = vpack.c.b16 %v5042, %v5035
    %v5673 = vpack.c.b16 %v5043, %v5036
    %v5674 = vpack.c.b16 %v5044, %v5037
    %v5675 = vpack.c.b16 %v5045, %v5038
    %v5676 = vpack.c.b16 %v5053, %v5046
    %v5677 = vpack.c.b16 %v5054, %v5047
    %v5678 = vpack.c.b16 %v5055, %v5048
    %v5679 = vpack.c.b16 %v5056, %v5049
    %v5680 = vpack.c.b16 %v5057, %v5050
    %v5681 = vpack.c.b16 %v5058, %v5051
    %v5682 = vpack.c.b16 %v5059, %v5052
    %v5683 = vpack.c.b16 %v5067, %v5060
    %v5684 = vpack.c.b16 %v5068, %v5061
    %v5685 = vpack.c.b16 %v5069, %v5062
    %v5686 = vpack.c.b16 %v5070, %v5063
    %v5687 = vpack.c.b16 %v5071, %v5064
    %v5688 = vpack.c.b16 %v5072, %v5065
    %v5689 = vpack.c.b16 %v5073, %v5066
    %v5690 = vpack.c.b16 %v5081, %v5074
    %v5691 = vpack.c.b16 %v5082, %v5075
    %v5692 = vpack.c.b16 %v5083, %v5076
    %v5693 = vpack.c.b16 %v5084, %v5077
    %v5694 = vpack.c.b16 %v5085, %v5078
    %v5695 = vpack.c.b16 %v5086, %v5079
    %v5696 = vpack.c.b16 %v5087, %v5080
    %v5697 = vpack.c.b16 %v5095, %v5088
    %v5698 = vpack.c.b16 %v5096, %v5089
    %v5699 = vpack.c.b16 %v5097, %v5090
    %v5700 = vpack.c.b16 %v5098, %v5091
    %v5701 = vpack.c.b16 %v5099, %v5092
    %v5702 = vpack.c.b16 %v5100, %v5093
    %v5703 = vpack.c.b16 %v5101, %v5094
    %v5704 = vpack.c.b16 %v5109, %v5102
    %v5705 = vpack.c.b16 %v5110, %v5103
    %v5706 = vpack.c.b16 %v5111, %v5104
    %v5707 = vpack.c.b16 %v5112, %v5105
    %v5708 = vpack.c.b16 %v5113, %v5106
    %v5709 = vpack.c.b16 %v5114, %v5107
    %v5710 = vpack.c.b16 %v5115, %v5108
    %v5711 = vpack.c.b16 %v5123, %v5116
    %v5712 = vpack.c.b16 %v5124, %v5117
    %v5713 = vpack.c.b16 %v5125, %v5118
    %v5714 = vpack.c.b16 %v5126, %v5119
    %v5715 = vpack.c.b16 %v5127, %v5120
    %v5716 = vpack.c.b16 %v5128, %v5121
    %v5717 = vpack.c.b16 %v5129, %v5122
    %v5718 = vpack.c.b16 %v5137, %v5130
    %v5719 = vpack.c.b16 %v5138, %v5131
    %v5720 = vpack.c.b16 %v5139, %v5132
    %v5721 = vpack.c.b16 %v5140, %v5133
    %v5722 = vpack.c.b16 %v5141, %v5134
    %v5723 = vpack.c.b16 %v5142, %v5135
    %v5724 = vpack.c.b16 %v5143, %v5136
    %v5725 = vpack.c.b16 %v5151, %v5144
    %v5726 = vpack.c.b16 %v5152, %v5145
    %v5727 = vpack.c.b16 %v5153, %v5146
    %v5728 = vpack.c.b16 %v5154, %v5147
    %v5729 = vpack.c.b16 %v5155, %v5148
    %v5730 = vpack.c.b16 %v5156, %v5149
    %v5731 = vpack.c.b16 %v5157, %v5150
    %v5732 = vpack.c.b16 %v5165, %v5158
    %v5733 = vpack.c.b16 %v5166, %v5159
    %v5734 = vpack.c.b16 %v5167, %v5160
    %v5735 = vpack.c.b16 %v5168, %v5161
    %v5736 = vpack.c.b16 %v5169, %v5162
    %v5737 = vpack.c.b16 %v5170, %v5163
    %v5738 = vpack.c.b16 %v5171, %v5164
    %v5739 = vpack.c.b16 %v5179, %v5172
    %v5740 = vpack.c.b16 %v5180, %v5173
    %v5741 = vpack.c.b16 %v5181, %v5174
    %v5742 = vpack.c.b16 %v5182, %v5175
    %v5743 = vpack.c.b16 %v5183, %v5176
    %v5744 = vpack.c.b16 %v5184, %v5177
    %v5745 = vpack.c.b16 %v5185, %v5178
    %v5746 = vpack.c.b16 %v5193, %v5186
    %v5747 = vpack.c.b16 %v5194, %v5187
    %v5748 = vpack.c.b16 %v5195, %v5188
    %v5749 = vpack.c.b16 %v5196, %v5189
    %v5750 = vpack.c.b16 %v5197, %v5190
    %v5751 = vpack.c.b16 %v5198, %v5191
    %v5752 = vpack.c.b16 %v5199, %v5192
    %v5753 = vpack.c.b16 %v5207, %v5200
    %v5754 = vpack.c.b16 %v5208, %v5201
    %v5755 = vpack.c.b16 %v5209, %v5202
    %v5756 = vpack.c.b16 %v5210, %v5203
    %v5757 = vpack.c.b16 %v5211, %v5204
    %v5758 = vpack.c.b16 %v5212, %v5205
    %v5759 = vpack.c.b16 %v5213, %v5206
    %v5760 = vpack.c.b16 %v5221, %v5214
    %v5761 = vpack.c.b16 %v5222, %v5215
    %v5762 = vpack.c.b16 %v5223, %v5216
    %v5763 = vpack.c.b16 %v5224, %v5217
    %v5764 = vpack.c.b16 %v5225, %v5218
    %v5765 = vpack.c.b16 %v5226, %v5219
    %v5766 = vpack.c.b16 %v5227, %v5220
    %v5767 = vpack.c.b16 %v5235, %v5228
    %v5768 = vpack.c.b16 %v5236, %v5229
    %v5769 = vpack.c.b16 %v5237, %v5230
    %v5770 = vpack.c.b16 %v5238, %v5231
    %v5771 = vpack.c.b16 %v5239, %v5232
    %v5772 = vpack.c.b16 %v5240, %v5233
    %v5773 = vpack.c.b16 %v5241, %v5234
    %v5774 = vpack.c.b16 %v5249, %v5242
    %v5775 = vpack.c.b16 %v5250, %v5243
    %v5776 = vpack.c.b16 %v5251, %v5244
    %v5777 = vpack.c.b16 %v5252, %v5245
    %v5778 = vpack.c.b16 %v5253, %v5246
    %v5779 = vpack.c.b16 %v5254, %v5247
    %v5780 = vpack.c.b16 %v5255, %v5248
    %v5781 = vpack.c.b16 %v5263, %v5256
    %v5782 = vpack.c.b16 %v5264, %v5257
    %v5783 = vpack.c.b16 %v5265, %v5258
    %v5784 = vpack.c.b16 %v5266, %v5259
    %v5785 = vpack.c.b16 %v5267, %v5260
    %v5786 = vpack.c.b16 %v5268, %v5261
    %v5787 = vpack.c.b16 %v5269, %v5262
    %v5788 = vpack.c.b16 %v5277, %v5270
    %v5789 = vpack.c.b16 %v5278, %v5271
    %v5790 = vpack.c.b16 %v5279, %v5272
    %v5791 = vpack.c.b16 %v5280, %v5273
    %v5792 = vpack.c.b16 %v5281, %v5274
    %v5793 = vpack.c.b16 %v5282, %v5275
    %v5794 = vpack.c.b16 %v5283, %v5276
    %v5795 = vpack.c.b16 %v5291, %v5284
    %v5796 = vpack.c.b16 %v5292, %v5285
    %v5797 = vpack.c.b16 %v5293, %v5286
    %v5798 = vpack.c.b16 %v5294, %v5287
    %v5799 = vpack.c.b16 %v5295, %v5288
    %v5800 = vpack.c.b16 %v5296, %v5289
    %v5801 = vpack.c.b16 %v5297, %v5290
    %v5802 = vpack.c.b16 %v5305, %v5298
    %v5803 = vpack.c.b16 %v5306, %v5299
    %v5804 = vpack.c.b16 %v5307, %v5300
    %v5805 = vpack.c.b16 %v5308, %v5301
    %v5806 = vpack.c.b16 %v5309, %v5302
    %v5807 = vpack.c.b16 %v5310, %v5303
    %v5808 = vpack.c.b16 %v5311, %v5304
    %v5809 = vpack.c.b16 %v5319, %v5312
    %v5810 = vpack.c.b16 %v5320, %v5313
    %v5811 = vpack.c.b16 %v5321, %v5314
    %v5812 = vpack.c.b16 %v5322, %v5315
    %v5813 = vpack.c.b16 %v5323, %v5316
    %v5814 = vpack.c.b16 %v5324, %v5317
    %v5815 = vpack.c.b16 %v5325, %v5318
    %v5816 = vpack.c.b16 %v5333, %v5326
    %v5817 = vpack.c.b16 %v5334, %v5327
    %v5818 = vpack.c.b16 %v5335, %v5328
    %v5819 = vpack.c.b16 %v5336, %v5329
    %v5820 = vpack.c.b16 %v5337, %v5330
    %v5821 = vpack.c.b16 %v5338, %v5331
    %v5822 = vpack.c.b16 %v5339, %v5332
    %v5823 = vpack.c.b16 %v5347, %v5340
    %v5824 = vpack.c.b16 %v5348, %v5341
    %v5825 = vpack.c.b16 %v5349, %v5342
    %v5826 = vpack.c.b16 %v5350, %v5343
    %v5827 = vpack.c.b16 %v5351, %v5344
    %v5828 = vpack.c.b16 %v5352, %v5345
    %v5829 = vpack.c.b16 %v5353, %v5346
    %v5830 = vpack.c.b16 %v5361, %v5354
    %v5831 = vpack.c.b16 %v5362, %v5355
    %v5832 = vpack.c.b16 %v5363, %v5356
    %v5833 = vpack.c.b16 %v5364, %v5357
    %v5834 = vpack.c.b16 %v5365, %v5358
    %v5835 = vpack.c.b16 %v5366, %v5359
    %v5836 = vpack.c.b16 %v5367, %v5360
    %v5837 = vpack.c.b16 %v5375, %v5368
    %v5838 = vpack.c.b16 %v5376, %v5369
    %v5839 = vpack.c.b16 %v5377, %v5370
    %v5840 = vpack.c.b16 %v5378, %v5371
    %v5841 = vpack.c.b16 %v5379, %v5372
    %v5842 = vpack.c.b16 %v5380, %v5373
    %v5843 = vpack.c.b16 %v5381, %v5374
    %v5844 = vpack.c.b16 %v5389, %v5382
    %v5845 = vpack.c.b16 %v5390, %v5383
    %v5846 = vpack.c.b16 %v5391, %v5384
    %v5847 = vpack.c.b16 %v5392, %v5385
    %v5848 = vpack.c.b16 %v5393, %v5386
    %v5849 = vpack.c.b16 %v5394, %v5387
    %v5850 = vpack.c.b16 %v5395, %v5388
    %v5851 = vpack.c.b16 %v5403, %v5396
    %v5852 = vpack.c.b16 %v5404, %v5397
    %v5853 = vpack.c.b16 %v5405, %v5398
    %v5854 = vpack.c.b16 %v5406, %v5399
    %v5855 = vpack.c.b16 %v5407, %v5400
    %v5856 = vpack.c.b16 %v5408, %v5401
    %v5857 = vpack.c.b16 %v5409, %v5402
    %6306 = vmatprep.subr.bf16.mxu0 %v5411
    %6307 = vmatpush1.bf16.msra.mxu0 %v5410
    %6308 = vmatprep.subr.bf16.mxu0 %v5418
    %6309 = vmatpush1.bf16.msra.mxu0 %v5417
    %6310 = vmatprep.subr.bf16.mxu0 %v5425
    %6311 = vmatpush1.bf16.msra.mxu0 %v5424
    %6312 = vmatprep.subr.bf16.mxu0 %v5432
    %6313 = vmatpush1.bf16.msra.mxu0 %v5431
    %6314 = vmatprep.subr.bf16.mxu0 %v5439
    %6315 = vmatpush1.bf16.msra.mxu0 %v5438
    %6316 = vmatprep.subr.bf16.mxu0 %v5446
    %6317 = vmatpush1.bf16.msra.mxu0 %v5445
    %6318 = vmatprep.subr.bf16.mxu0 %v5453
    %6319 = vmatpush1.bf16.msra.mxu0 %v5452
    %6320 = vmatprep.subr.bf16.mxu0 %v5460
    %6321 = vmatpush1.bf16.msra.mxu0 %v5459
    %6322 = vmatprep.subr.bf16.mxu0 %v5467
    %6323 = vmatpush1.bf16.msra.mxu0 %v5466
    %6324 = vmatprep.subr.bf16.mxu0 %v5474
    %6325 = vmatpush1.bf16.msra.mxu0 %v5473
    %6326 = vmatprep.subr.bf16.mxu0 %v5481
    %6327 = vmatpush1.bf16.msra.mxu0 %v5480
    %6328 = vmatprep.subr.bf16.mxu0 %v5488
    %6329 = vmatpush1.bf16.msra.mxu0 %v5487
    %6330 = vmatprep.subr.bf16.mxu0 %v5495
    %6331 = vmatpush1.bf16.msra.mxu0 %v5494
    %6332 = vmatprep.subr.bf16.mxu0 %v5502
    %6333 = vmatpush1.bf16.msra.mxu0 %v5501
    %6334 = vmatprep.subr.bf16.mxu0 %v5509
    %6335 = vmatpush1.bf16.msra.mxu0 %v5508
    %6336 = vmatprep.subr.bf16.mxu0 %v5516
    %6337 = vmatpush1.bf16.msra.mxu0 %v5515
    %6338 = vmatprep.mubr.bf16.mxu0 %v3422
    %6339 = vmatmul.mubr.bf16.gmra.mrb[0].mxu0 %v3421
    %v6340 = vpop.f32.mrb[0].mxu0
    %v6341 = vadd.f32 %v3970, %v6340
    %v6342 = vpop.f32.mrb[0].mxu0
    %v6343 = vadd.f32 %v3974, %v6342
    %v6344 = vpop.f32.mrb[0].mxu0
    %v6345 = vadd.f32 %v3970, %v6344
    %v6346 = vpop.f32.mrb[0].mxu0
    %v6347 = vadd.f32 %v3974, %v6346
    %6348 = vmatprep.mubr.bf16.mxu0 %v3430
    %6349 = vmatmul.mubr.bf16.gmra.mrb[0].mxu0 %v3429
    %v6350 = vpop.f32.mrb[0].mxu0
    %v6351 = vadd.f32 %v3970, %v6350
    %v6352 = vpop.f32.mrb[0].mxu0
    %v6353 = vadd.f32 %v3974, %v6352
    %v6354 = vpop.f32.mrb[0].mxu0
    %v6355 = vadd.f32 %v3970, %v6354
    %v6356 = vpop.f32.mrb[0].mxu0
    %v6357 = vadd.f32 %v3974, %v6356
    %6358 = vmatprep.mubr.bf16.mxu0 %v3438
    %6359 = vmatmul.mubr.bf16.gmra.mrb[0].mxu0 %v3437
    %v6360 = vpop.f32.mrb[0].mxu0
    %v6361 = vadd.f32 %v3970, %v6360
    %v6362 = vpop.f32.mrb[0].mxu0
    %v6363 = vadd.f32 %v3974, %v6362
    %v6364 = vpop.f32.mrb[0].mxu0
    %v6365 = vadd.f32 %v3970, %v6364
    %v6366 = vpop.f32.mrb[0].mxu0
    %v6367 = vadd.f32 %v3974, %v6366
    %6368 = vmatprep.mubr.bf16.mxu0 %v3446
    %6369 = vmatmul.mubr.bf16.gmra.mrb[0].mxu0 %v3445
    %v6370 = vpop.f32.mrb[0].mxu0
    %v6371 = vadd.f32 %v3970, %v6370
    %v6372 = vpop.f32.mrb[0].mxu0
    %v6373 = vadd.f32 %v3974, %v6372
    %v6374 = vpop.f32.mrb[0].mxu0
    %v6375 = vadd.f32 %v3970, %v6374
    %v6376 = vpop.f32.mrb[0].mxu0
    %v6377 = vadd.f32 %v3974, %v6376
    %6378 = vdwg.mxu0
    %6379 = vmatprep.subr.bf16.mxu0 %v5523
    %6380 = vmatpush1.bf16.msra.mxu0 %v5522
    %6381 = vmatprep.subr.bf16.mxu0 %v5530
    %6382 = vmatpush1.bf16.msra.mxu0 %v5529
    %6383 = vmatprep.subr.bf16.mxu0 %v5537
    %6384 = vmatpush1.bf16.msra.mxu0 %v5536
    %6385 = vmatprep.subr.bf16.mxu0 %v5544
    %6386 = vmatpush1.bf16.msra.mxu0 %v5543
    %6387 = vmatprep.subr.bf16.mxu0 %v5551
    %6388 = vmatpush1.bf16.msra.mxu0 %v5550
    %6389 = vmatprep.subr.bf16.mxu0 %v5558
    %6390 = vmatpush1.bf16.msra.mxu0 %v5557
    %6391 = vmatprep.subr.bf16.mxu0 %v5565
    %6392 = vmatpush1.bf16.msra.mxu0 %v5564
    %6393 = vmatprep.subr.bf16.mxu0 %v5572
    %6394 = vmatpush1.bf16.msra.mxu0 %v5571
    %6395 = vmatprep.subr.bf16.mxu0 %v5579
    %6396 = vmatpush1.bf16.msra.mxu0 %v5578
    %6397 = vmatprep.subr.bf16.mxu0 %v5586
    %6398 = vmatpush1.bf16.msra.mxu0 %v5585
    %6399 = vmatprep.subr.bf16.mxu0 %v5593
    %6400 = vmatpush1.bf16.msra.mxu0 %v5592
    %6401 = vmatprep.subr.bf16.mxu0 %v5600
    %6402 = vmatpush1.bf16.msra.mxu0 %v5599
    %6403 = vmatprep.subr.bf16.mxu0 %v5607
    %6404 = vmatpush1.bf16.msra.mxu0 %v5606
    %6405 = vmatprep.subr.bf16.mxu0 %v5614
    %6406 = vmatpush1.bf16.msra.mxu0 %v5613
    %6407 = vmatprep.subr.bf16.mxu0 %v5621
    %6408 = vmatpush1.bf16.msra.mxu0 %v5620
    %6409 = vmatprep.subr.bf16.mxu0 %v5628
    %6410 = vmatpush1.bf16.msra.mxu0 %v5627
    %6411 = vmatprep.mubr.bf16.mxu0 %v3424
    %6412 = vmatmul.mubr.bf16.gmra.mrb[0].mxu0 %v3423
    %v6413 = vpop.f32.mrb[0].mxu0
    %v6414 = vadd.f32 %v6341, %v6413
    %v6415 = vpop.f32.mrb[0].mxu0
    %v6416 = vadd.f32 %v6343, %v6415
    %v6417 = vpop.f32.mrb[0].mxu0
    %v6418 = vadd.f32 %v6345, %v6417
    %v6419 = vpop.f32.mrb[0].mxu0
    %v6420 = vadd.f32 %v6347, %v6419
    %6421 = vmatprep.mubr.bf16.mxu0 %v3432
    %6422 = vmatmul.mubr.bf16.gmra.mrb[0].mxu0 %v3431
    %v6423 = vpop.f32.mrb[0].mxu0
    %v6424 = vadd.f32 %v6351, %v6423
    %v6425 = vpop.f32.mrb[0].mxu0
    %v6426 = vadd.f32 %v6353, %v6425
    %v6427 = vpop.f32.mrb[0].mxu0
    %v6428 = vadd.f32 %v6355, %v6427
    %v6429 = vpop.f32.mrb[0].mxu0
    %v6430 = vadd.f32 %v6357, %v6429
    %6431 = vmatprep.mubr.bf16.mxu0 %v3440
    %6432 = vmatmul.mubr.bf16.gmra.mrb[0].mxu0 %v3439
    %v6433 = vpop.f32.mrb[0].mxu0
    %v6434 = vadd.f32 %v6361, %v6433
    %v6435 = vpop.f32.mrb[0].mxu0
    %v6436 = vadd.f32 %v6363, %v6435
    %v6437 = vpop.f32.mrb[0].mxu0
    %v6438 = vadd.f32 %v6365, %v6437
    %v6439 = vpop.f32.mrb[0].mxu0
    %v6440 = vadd.f32 %v6367, %v6439
    %6441 = vmatprep.mubr.bf16.mxu0 %v3448
    %6442 = vmatmul.mubr.bf16.gmra.mrb[0].mxu0 %v3447
    %v6443 = vpop.f32.mrb[0].mxu0
    %v6444 = vadd.f32 %v6371, %v6443
    %v6445 = vpop.f32.mrb[0].mxu0
    %v6446 = vadd.f32 %v6373, %v6445
    %v6447 = vpop.f32.mrb[0].mxu0
    %v6448 = vadd.f32 %v6375, %v6447
    %v6449 = vpop.f32.mrb[0].mxu0
    %v6450 = vadd.f32 %v6377, %v6449
    %6451 = vdwg.mxu0
    %6452 = vmatprep.subr.bf16.mxu0 %v5635
    %6453 = vmatpush1.bf16.msra.mxu0 %v5634
    %6454 = vmatprep.subr.bf16.mxu0 %v5642
    %6455 = vmatpush1.bf16.msra.mxu0 %v5641
    %6456 = vmatprep.subr.bf16.mxu0 %v5649
    %6457 = vmatpush1.bf16.msra.mxu0 %v5648
    %6458 = vmatprep.subr.bf16.mxu0 %v5656
    %6459 = vmatpush1.bf16.msra.mxu0 %v5655
    %6460 = vmatprep.subr.bf16.mxu0 %v5663
    %6461 = vmatpush1.bf16.msra.mxu0 %v5662
    %6462 = vmatprep.subr.bf16.mxu0 %v5670
    %6463 = vmatpush1.bf16.msra.mxu0 %v5669
    %6464 = vmatprep.subr.bf16.mxu0 %v5677
    %6465 = vmatpush1.bf16.msra.mxu0 %v5676
    %6466 = vmatprep.subr.bf16.mxu0 %v5684
    %6467 = vmatpush1.bf16.msra.mxu0 %v5683
    %6468 = vmatprep.subr.bf16.mxu0 %v5691
    %6469 = vmatpush1.bf16.msra.mxu0 %v5690
    %6470 = vmatprep.subr.bf16.mxu0 %v5698
    %6471 = vmatpush1.bf16.msra.mxu0 %v5697
    %6472 = vmatprep.subr.bf16.mxu0 %v5705
    %6473 = vmatpush1.bf16.msra.mxu0 %v5704
    %6474 = vmatprep.subr.bf16.mxu0 %v5712
    %6475 = vmatpush1.bf16.msra.mxu0 %v5711
    %6476 = vmatprep.subr.bf16.mxu0 %v5719
    %6477 = vmatpush1.bf16.msra.mxu0 %v5718
    %6478 = vmatprep.subr.bf16.mxu0 %v5726
    %6479 = vmatpush1.bf16.msra.mxu0 %v5725
    %6480 = vmatprep.subr.bf16.mxu0 %v5733
    %6481 = vmatpush1.bf16.msra.mxu0 %v5732
    %6482 = vmatprep.subr.bf16.mxu0 %v5740
    %6483 = vmatpush1.bf16.msra.mxu0 %v5739
    %6484 = vmatprep.mubr.bf16.mxu0 %v3426
    %6485 = vmatmul.mubr.bf16.gmra.mrb[0].mxu0 %v3425
    %v6486 = vpop.f32.mrb[0].mxu0
    %v6487 = vadd.f32 %v6414, %v6486
    %v6488 = vpop.f32.mrb[0].mxu0
    %v6489 = vadd.f32 %v6416, %v6488
    %v6490 = vpop.f32.mrb[0].mxu0
    %v6491 = vadd.f32 %v6418, %v6490
    %v6492 = vpop.f32.mrb[0].mxu0
    %v6493 = vadd.f32 %v6420, %v6492
    %6494 = vmatprep.mubr.bf16.mxu0 %v3434
    %6495 = vmatmul.mubr.bf16.gmra.mrb[0].mxu0 %v3433
    %v6496 = vpop.f32.mrb[0].mxu0
    %v6497 = vadd.f32 %v6424, %v6496
    %v6498 = vpop.f32.mrb[0].mxu0
    %v6499 = vadd.f32 %v6426, %v6498
    %v6500 = vpop.f32.mrb[0].mxu0
    %v6501 = vadd.f32 %v6428, %v6500
    %v6502 = vpop.f32.mrb[0].mxu0
    %v6503 = vadd.f32 %v6430, %v6502
    %6504 = vmatprep.mubr.bf16.mxu0 %v3442
    %6505 = vmatmul.mubr.bf16.gmra.mrb[0].mxu0 %v3441
    %v6506 = vpop.f32.mrb[0].mxu0
    %v6507 = vadd.f32 %v6434, %v6506
    %v6508 = vpop.f32.mrb[0].mxu0
    %v6509 = vadd.f32 %v6436, %v6508
    %v6510 = vpop.f32.mrb[0].mxu0
    %v6511 = vadd.f32 %v6438, %v6510
    %v6512 = vpop.f32.mrb[0].mxu0
    %v6513 = vadd.f32 %v6440, %v6512
    %6514 = vmatprep.mubr.bf16.mxu0 %v3450
    %6515 = vmatmul.mubr.bf16.gmra.mrb[0].mxu0 %v3449
    %v6516 = vpop.f32.mrb[0].mxu0
    %v6517 = vadd.f32 %v6444, %v6516
    %v6518 = vpop.f32.mrb[0].mxu0
    %v6519 = vadd.f32 %v6446, %v6518
    %v6520 = vpop.f32.mrb[0].mxu0
    %v6521 = vadd.f32 %v6448, %v6520
    %v6522 = vpop.f32.mrb[0].mxu0
    %v6523 = vadd.f32 %v6450, %v6522
    %6524 = vdwg.mxu0
    %6525 = vmatprep.subr.bf16.mxu0 %v5747
    %6526 = vmatpush1.bf16.msra.mxu0 %v5746
    %6527 = vmatprep.subr.bf16.mxu0 %v5754
    %6528 = vmatpush1.bf16.msra.mxu0 %v5753
    %6529 = vmatprep.subr.bf16.mxu0 %v5761
    %6530 = vmatpush1.bf16.msra.mxu0 %v5760
    %6531 = vmatprep.subr.bf16.mxu0 %v5768
    %6532 = vmatpush1.bf16.msra.mxu0 %v5767
    %6533 = vmatprep.subr.bf16.mxu0 %v5775
    %6534 = vmatpush1.bf16.msra.mxu0 %v5774
    %6535 = vmatprep.subr.bf16.mxu0 %v5782
    %6536 = vmatpush1.bf16.msra.mxu0 %v5781
    %6537 = vmatprep.subr.bf16.mxu0 %v5789
    %6538 = vmatpush1.bf16.msra.mxu0 %v5788
    %6539 = vmatprep.subr.bf16.mxu0 %v5796
    %6540 = vmatpush1.bf16.msra.mxu0 %v5795
    %6541 = vmatprep.subr.bf16.mxu0 %v5803
    %6542 = vmatpush1.bf16.msra.mxu0 %v5802
    %6543 = vmatprep.subr.bf16.mxu0 %v5810
    %6544 = vmatpush1.bf16.msra.mxu0 %v5809
    %6545 = vmatprep.subr.bf16.mxu0 %v5817
    %6546 = vmatpush1.bf16.msra.mxu0 %v5816
    %6547 = vmatprep.subr.bf16.mxu0 %v5824
    %6548 = vmatpush1.bf16.msra.mxu0 %v5823
    %6549 = vmatprep.subr.bf16.mxu0 %v5831
    %6550 = vmatpush1.bf16.msra.mxu0 %v5830
    %6551 = vmatprep.subr.bf16.mxu0 %v5838
    %6552 = vmatpush1.bf16.msra.mxu0 %v5837
    %6553 = vmatprep.subr.bf16.mxu0 %v5845
    %6554 = vmatpush1.bf16.msra.mxu0 %v5844
    %6555 = vmatprep.subr.bf16.mxu0 %v5852
    %6556 = vmatpush1.bf16.msra.mxu0 %v5851
    %6557 = vmatprep.mubr.bf16.mxu0 %v3428
    %6558 = vmatmul.mubr.bf16.gmra.mrb[0].mxu0 %v3427
    %v6559 = vpop.f32.mrb[0].mxu0
    %v6560 = vadd.f32 %v6487, %v6559
    %v6561 = vpop.f32.mrb[0].mxu0
    %v6562 = vadd.f32 %v6489, %v6561
    %v6563 = vpop.f32.mrb[0].mxu0
    %v6564 = vadd.f32 %v6491, %v6563
    %v6565 = vpop.f32.mrb[0].mxu0
    %v6566 = vadd.f32 %v6493, %v6565
    %6567 = vmatprep.mubr.bf16.mxu0 %v3436
    %6568 = vmatmul.mubr.bf16.gmra.mrb[0].mxu0 %v3435
    %v6569 = vpop.f32.mrb[0].mxu0
    %v6570 = vadd.f32 %v6497, %v6569
    %v6571 = vpop.f32.mrb[0].mxu0
    %v6572 = vadd.f32 %v6499, %v6571
    %v6573 = vpop.f32.mrb[0].mxu0
    %v6574 = vadd.f32 %v6501, %v6573
    %v6575 = vpop.f32.mrb[0].mxu0
    %v6576 = vadd.f32 %v6503, %v6575
    %6577 = vmatprep.mubr.bf16.mxu0 %v3444
    %6578 = vmatmul.mubr.bf16.gmra.mrb[0].mxu0 %v3443
    %v6579 = vpop.f32.mrb[0].mxu0
    %v6580 = vadd.f32 %v6507, %v6579
    %v6581 = vpop.f32.mrb[0].mxu0
    %v6582 = vadd.f32 %v6509, %v6581
    %v6583 = vpop.f32.mrb[0].mxu0
    %v6584 = vadd.f32 %v6511, %v6583
    %v6585 = vpop.f32.mrb[0].mxu0
    %v6586 = vadd.f32 %v6513, %v6585
    %6587 = vmatprep.mubr.bf16.mxu0 %v3452
    %6588 = vmatmul.mubr.bf16.gmra.mrb[0].mxu0 %v3451
    %v6589 = vpop.f32.mrb[0].mxu0
    %v6590 = vadd.f32 %v6517, %v6589
    %v6591 = vpop.f32.mrb[0].mxu0
    %v6592 = vadd.f32 %v6519, %v6591
    %v6593 = vpop.f32.mrb[0].mxu0
    %v6594 = vadd.f32 %v6521, %v6593
    %v6595 = vpop.f32.mrb[0].mxu0
    %v6596 = vadd.f32 %v6523, %v6595
    %6597 = vdwg.mxu0
    %6598 = vmatprep.subr.bf16.mxu0 %v5413
    %6599 = vmatpush1.bf16.msra.mxu0 %v5412
    %6600 = vmatprep.subr.bf16.mxu0 %v5420
    %6601 = vmatpush1.bf16.msra.mxu0 %v5419
    %6602 = vmatprep.subr.bf16.mxu0 %v5427
    %6603 = vmatpush1.bf16.msra.mxu0 %v5426
    %6604 = vmatprep.subr.bf16.mxu0 %v5434
    %6605 = vmatpush1.bf16.msra.mxu0 %v5433
    %6606 = vmatprep.subr.bf16.mxu0 %v5441
    %6607 = vmatpush1.bf16.msra.mxu0 %v5440
    %6608 = vmatprep.subr.bf16.mxu0 %v5448
    %6609 = vmatpush1.bf16.msra.mxu0 %v5447
    %6610 = vmatprep.subr.bf16.mxu0 %v5455
    %6611 = vmatpush1.bf16.msra.mxu0 %v5454
    %6612 = vmatprep.subr.bf16.mxu0 %v5462
    %6613 = vmatpush1.bf16.msra.mxu0 %v5461
    %6614 = vmatprep.subr.bf16.mxu0 %v5469
    %6615 = vmatpush1.bf16.msra.mxu0 %v5468
    %6616 = vmatprep.subr.bf16.mxu0 %v5476
    %6617 = vmatpush1.bf16.msra.mxu0 %v5475
    %6618 = vmatprep.subr.bf16.mxu0 %v5483
    %6619 = vmatpush1.bf16.msra.mxu0 %v5482
    %6620 = vmatprep.subr.bf16.mxu0 %v5490
    %6621 = vmatpush1.bf16.msra.mxu0 %v5489
    %6622 = vmatprep.subr.bf16.mxu0 %v5497
    %6623 = vmatpush1.bf16.msra.mxu0 %v5496
    %6624 = vmatprep.subr.bf16.mxu0 %v5504
    %6625 = vmatpush1.bf16.msra.mxu0 %v5503
    %6626 = vmatprep.subr.bf16.mxu0 %v5511
    %6627 = vmatpush1.bf16.msra.mxu0 %v5510
    %6628 = vmatprep.subr.bf16.mxu0 %v5518
    %6629 = vmatpush1.bf16.msra.mxu0 %v5517
    %6630 = vmatprep.mubr.bf16.mxu0 %v3422
    %6631 = vmatmul.mubr.bf16.gmra.mrb[0].mxu0 %v3421
    %v6632 = vpop.f32.mrb[0].mxu0
    %v6633 = vadd.f32 %v3978, %v6632
    %v6634 = vpop.f32.mrb[0].mxu0
    %v6635 = vadd.f32 %v3982, %v6634
    %v6636 = vpop.f32.mrb[0].mxu0
    %v6637 = vadd.f32 %v3978, %v6636
    %v6638 = vpop.f32.mrb[0].mxu0
    %v6639 = vadd.f32 %v3982, %v6638
    %6640 = vmatprep.mubr.bf16.mxu0 %v3430
    %6641 = vmatmul.mubr.bf16.gmra.mrb[0].mxu0 %v3429
    %v6642 = vpop.f32.mrb[0].mxu0
    %v6643 = vadd.f32 %v3978, %v6642
    %v6644 = vpop.f32.mrb[0].mxu0
    %v6645 = vadd.f32 %v3982, %v6644
    %v6646 = vpop.f32.mrb[0].mxu0
    %v6647 = vadd.f32 %v3978, %v6646
    %v6648 = vpop.f32.mrb[0].mxu0
    %v6649 = vadd.f32 %v3982, %v6648
    %6650 = vmatprep.mubr.bf16.mxu0 %v3438
    %6651 = vmatmul.mubr.bf16.gmra.mrb[0].mxu0 %v3437
    %v6652 = vpop.f32.mrb[0].mxu0
    %v6653 = vadd.f32 %v3978, %v6652
    %v6654 = vpop.f32.mrb[0].mxu0
    %v6655 = vadd.f32 %v3982, %v6654
    %v6656 = vpop.f32.mrb[0].mxu0
    %v6657 = vadd.f32 %v3978, %v6656
    %v6658 = vpop.f32.mrb[0].mxu0
    %v6659 = vadd.f32 %v3982, %v6658
    %6660 = vmatprep.mubr.bf16.mxu0 %v3446
    %6661 = vmatmul.mubr.bf16.gmra.mrb[0].mxu0 %v3445
    %v6662 = vpop.f32.mrb[0].mxu0
    %v6663 = vadd.f32 %v3978, %v6662
    %v6664 = vpop.f32.mrb[0].mxu0
    %v6665 = vadd.f32 %v3982, %v6664
    %v6666 = vpop.f32.mrb[0].mxu0
    %v6667 = vadd.f32 %v3978, %v6666
    %v6668 = vpop.f32.mrb[0].mxu0
    %v6669 = vadd.f32 %v3982, %v6668
    %6670 = vdwg.mxu0
    %6671 = vmatprep.subr.bf16.mxu0 %v5525
    %6672 = vmatpush1.bf16.msra.mxu0 %v5524
    %6673 = vmatprep.subr.bf16.mxu0 %v5532
    %6674 = vmatpush1.bf16.msra.mxu0 %v5531
    %6675 = vmatprep.subr.bf16.mxu0 %v5539
    %6676 = vmatpush1.bf16.msra.mxu0 %v5538
    %6677 = vmatprep.subr.bf16.mxu0 %v5546
    %6678 = vmatpush1.bf16.msra.mxu0 %v5545
    %6679 = vmatprep.subr.bf16.mxu0 %v5553
    %6680 = vmatpush1.bf16.msra.mxu0 %v5552
    %6681 = vmatprep.subr.bf16.mxu0 %v5560
    %6682 = vmatpush1.bf16.msra.mxu0 %v5559
    %6683 = vmatprep.subr.bf16.mxu0 %v5567
    %6684 = vmatpush1.bf16.msra.mxu0 %v5566
    %6685 = vmatprep.subr.bf16.mxu0 %v5574
    %6686 = vmatpush1.bf16.msra.mxu0 %v5573
    %6687 = vmatprep.subr.bf16.mxu0 %v5581
    %6688 = vmatpush1.bf16.msra.mxu0 %v5580
    %6689 = vmatprep.subr.bf16.mxu0 %v5588
    %6690 = vmatpush1.bf16.msra.mxu0 %v5587
    %6691 = vmatprep.subr.bf16.mxu0 %v5595
    %6692 = vmatpush1.bf16.msra.mxu0 %v5594
    %6693 = vmatprep.subr.bf16.mxu0 %v5602
    %6694 = vmatpush1.bf16.msra.mxu0 %v5601
    %6695 = vmatprep.subr.bf16.mxu0 %v5609
    %6696 = vmatpush1.bf16.msra.mxu0 %v5608
    %6697 = vmatprep.subr.bf16.mxu0 %v5616
    %6698 = vmatpush1.bf16.msra.mxu0 %v5615
    %6699 = vmatprep.subr.bf16.mxu0 %v5623
    %6700 = vmatpush1.bf16.msra.mxu0 %v5622
    %6701 = vmatprep.subr.bf16.mxu0 %v5630
    %6702 = vmatpush1.bf16.msra.mxu0 %v5629
    %6703 = vmatprep.mubr.bf16.mxu0 %v3424
    %6704 = vmatmul.mubr.bf16.gmra.mrb[0].mxu0 %v3423
    %v6705 = vpop.f32.mrb[0].mxu0
    %v6706 = vadd.f32 %v6633, %v6705
    %v6707 = vpop.f32.mrb[0].mxu0
    %v6708 = vadd.f32 %v6635, %v6707
    %v6709 = vpop.f32.mrb[0].mxu0
    %v6710 = vadd.f32 %v6637, %v6709
    %v6711 = vpop.f32.mrb[0].mxu0
    %v6712 = vadd.f32 %v6639, %v6711
    %6713 = vmatprep.mubr.bf16.mxu0 %v3432
    %6714 = vmatmul.mubr.bf16.gmra.mrb[0].mxu0 %v3431
    %v6715 = vpop.f32.mrb[0].mxu0
    %v6716 = vadd.f32 %v6643, %v6715
    %v6717 = vpop.f32.mrb[0].mxu0
    %v6718 = vadd.f32 %v6645, %v6717
    %v6719 = vpop.f32.mrb[0].mxu0
    %v6720 = vadd.f32 %v6647, %v6719
    %v6721 = vpop.f32.mrb[0].mxu0
    %v6722 = vadd.f32 %v6649, %v6721
    %6723 = vmatprep.mubr.bf16.mxu0 %v3440
    %6724 = vmatmul.mubr.bf16.gmra.mrb[0].mxu0 %v3439
    %v6725 = vpop.f32.mrb[0].mxu0
    %v6726 = vadd.f32 %v6653, %v6725
    %v6727 = vpop.f32.mrb[0].mxu0
    %v6728 = vadd.f32 %v6655, %v6727
    %v6729 = vpop.f32.mrb[0].mxu0
    %v6730 = vadd.f32 %v6657, %v6729
    %v6731 = vpop.f32.mrb[0].mxu0
    %v6732 = vadd.f32 %v6659, %v6731
    %6733 = vmatprep.mubr.bf16.mxu0 %v3448
    %6734 = vmatmul.mubr.bf16.gmra.mrb[0].mxu0 %v3447
    %v6735 = vpop.f32.mrb[0].mxu0
    %v6736 = vadd.f32 %v6663, %v6735
    %v6737 = vpop.f32.mrb[0].mxu0
    %v6738 = vadd.f32 %v6665, %v6737
    %v6739 = vpop.f32.mrb[0].mxu0
    %v6740 = vadd.f32 %v6667, %v6739
    %v6741 = vpop.f32.mrb[0].mxu0
    %v6742 = vadd.f32 %v6669, %v6741
    %6743 = vdwg.mxu0
    %6744 = vmatprep.subr.bf16.mxu0 %v5637
    %6745 = vmatpush1.bf16.msra.mxu0 %v5636
    %6746 = vmatprep.subr.bf16.mxu0 %v5644
    %6747 = vmatpush1.bf16.msra.mxu0 %v5643
    %6748 = vmatprep.subr.bf16.mxu0 %v5651
    %6749 = vmatpush1.bf16.msra.mxu0 %v5650
    %6750 = vmatprep.subr.bf16.mxu0 %v5658
    %6751 = vmatpush1.bf16.msra.mxu0 %v5657
    %6752 = vmatprep.subr.bf16.mxu0 %v5665
    %6753 = vmatpush1.bf16.msra.mxu0 %v5664
    %6754 = vmatprep.subr.bf16.mxu0 %v5672
    %6755 = vmatpush1.bf16.msra.mxu0 %v5671
    %6756 = vmatprep.subr.bf16.mxu0 %v5679
    %6757 = vmatpush1.bf16.msra.mxu0 %v5678
    %6758 = vmatprep.subr.bf16.mxu0 %v5686
    %6759 = vmatpush1.bf16.msra.mxu0 %v5685
    %6760 = vmatprep.subr.bf16.mxu0 %v5693
    %6761 = vmatpush1.bf16.msra.mxu0 %v5692
    %6762 = vmatprep.subr.bf16.mxu0 %v5700
    %6763 = vmatpush1.bf16.msra.mxu0 %v5699
    %6764 = vmatprep.subr.bf16.mxu0 %v5707
    %6765 = vmatpush1.bf16.msra.mxu0 %v5706
    %6766 = vmatprep.subr.bf16.mxu0 %v5714
    %6767 = vmatpush1.bf16.msra.mxu0 %v5713
    %6768 = vmatprep.subr.bf16.mxu0 %v5721
    %6769 = vmatpush1.bf16.msra.mxu0 %v5720
    %6770 = vmatprep.subr.bf16.mxu0 %v5728
    %6771 = vmatpush1.bf16.msra.mxu0 %v5727
    %6772 = vmatprep.subr.bf16.mxu0 %v5735
    %6773 = vmatpush1.bf16.msra.mxu0 %v5734
    %6774 = vmatprep.subr.bf16.mxu0 %v5742
    %6775 = vmatpush1.bf16.msra.mxu0 %v5741
    %6776 = vmatprep.mubr.bf16.mxu0 %v3426
    %6777 = vmatmul.mubr.bf16.gmra.mrb[0].mxu0 %v3425
    %v6778 = vpop.f32.mrb[0].mxu0
    %v6779 = vadd.f32 %v6706, %v6778
    %v6780 = vpop.f32.mrb[0].mxu0
    %v6781 = vadd.f32 %v6708, %v6780
    %v6782 = vpop.f32.mrb[0].mxu0
    %v6783 = vadd.f32 %v6710, %v6782
    %v6784 = vpop.f32.mrb[0].mxu0
    %v6785 = vadd.f32 %v6712, %v6784
    %6786 = vmatprep.mubr.bf16.mxu0 %v3434
    %6787 = vmatmul.mubr.bf16.gmra.mrb[0].mxu0 %v3433
    %v6788 = vpop.f32.mrb[0].mxu0
    %v6789 = vadd.f32 %v6716, %v6788
    %v6790 = vpop.f32.mrb[0].mxu0
    %v6791 = vadd.f32 %v6718, %v6790
    %v6792 = vpop.f32.mrb[0].mxu0
    %v6793 = vadd.f32 %v6720, %v6792
    %v6794 = vpop.f32.mrb[0].mxu0
    %v6795 = vadd.f32 %v6722, %v6794
    %6796 = vmatprep.mubr.bf16.mxu0 %v3442
    %6797 = vmatmul.mubr.bf16.gmra.mrb[0].mxu0 %v3441
    %v6798 = vpop.f32.mrb[0].mxu0
    %v6799 = vadd.f32 %v6726, %v6798
    %v6800 = vpop.f32.mrb[0].mxu0
    %v6801 = vadd.f32 %v6728, %v6800
    %v6802 = vpop.f32.mrb[0].mxu0
    %v6803 = vadd.f32 %v6730, %v6802
    %v6804 = vpop.f32.mrb[0].mxu0
    %v6805 = vadd.f32 %v6732, %v6804
    %6806 = vmatprep.mubr.bf16.mxu0 %v3450
    %6807 = vmatmul.mubr.bf16.gmra.mrb[0].mxu0 %v3449
    %v6808 = vpop.f32.mrb[0].mxu0
    %v6809 = vadd.f32 %v6736, %v6808
    %v6810 = vpop.f32.mrb[0].mxu0
    %v6811 = vadd.f32 %v6738, %v6810
    %v6812 = vpop.f32.mrb[0].mxu0
    %v6813 = vadd.f32 %v6740, %v6812
    %v6814 = vpop.f32.mrb[0].mxu0
    %v6815 = vadd.f32 %v6742, %v6814
    %6816 = vdwg.mxu0
    %6817 = vmatprep.subr.bf16.mxu0 %v5749
    %6818 = vmatpush1.bf16.msra.mxu0 %v5748
    %6819 = vmatprep.subr.bf16.mxu0 %v5756
    %6820 = vmatpush1.bf16.msra.mxu0 %v5755
    %6821 = vmatprep.subr.bf16.mxu0 %v5763
    %6822 = vmatpush1.bf16.msra.mxu0 %v5762
    %6823 = vmatprep.subr.bf16.mxu0 %v5770
    %6824 = vmatpush1.bf16.msra.mxu0 %v5769
    %6825 = vmatprep.subr.bf16.mxu0 %v5777
    %6826 = vmatpush1.bf16.msra.mxu0 %v5776
    %6827 = vmatprep.subr.bf16.mxu0 %v5784
    %6828 = vmatpush1.bf16.msra.mxu0 %v5783
    %6829 = vmatprep.subr.bf16.mxu0 %v5791
    %6830 = vmatpush1.bf16.msra.mxu0 %v5790
    %6831 = vmatprep.subr.bf16.mxu0 %v5798
    %6832 = vmatpush1.bf16.msra.mxu0 %v5797
    %6833 = vmatprep.subr.bf16.mxu0 %v5805
    %6834 = vmatpush1.bf16.msra.mxu0 %v5804
    %6835 = vmatprep.subr.bf16.mxu0 %v5812
    %6836 = vmatpush1.bf16.msra.mxu0 %v5811
    %6837 = vmatprep.subr.bf16.mxu0 %v5819
    %6838 = vmatpush1.bf16.msra.mxu0 %v5818
    %6839 = vmatprep.subr.bf16.mxu0 %v5826
    %6840 = vmatpush1.bf16.msra.mxu0 %v5825
    %6841 = vmatprep.subr.bf16.mxu0 %v5833
    %6842 = vmatpush1.bf16.msra.mxu0 %v5832
    %6843 = vmatprep.subr.bf16.mxu0 %v5840
    %6844 = vmatpush1.bf16.msra.mxu0 %v5839
    %6845 = vmatprep.subr.bf16.mxu0 %v5847
    %6846 = vmatpush1.bf16.msra.mxu0 %v5846
    %6847 = vmatprep.subr.bf16.mxu0 %v5854
    %6848 = vmatpush1.bf16.msra.mxu0 %v5853
    %6849 = vmatprep.mubr.bf16.mxu0 %v3428
    %6850 = vmatmul.mubr.bf16.gmra.mrb[0].mxu0 %v3427
    %v6851 = vpop.f32.mrb[0].mxu0
    %v6852 = vadd.f32 %v6779, %v6851
    %v6853 = vpop.f32.mrb[0].mxu0
    %v6854 = vadd.f32 %v6781, %v6853
    %v6855 = vpop.f32.mrb[0].mxu0
    %v6856 = vadd.f32 %v6783, %v6855
    %v6857 = vpop.f32.mrb[0].mxu0
    %v6858 = vadd.f32 %v6785, %v6857
    %6859 = vmatprep.mubr.bf16.mxu0 %v3436
    %6860 = vmatmul.mubr.bf16.gmra.mrb[0].mxu0 %v3435
    %v6861 = vpop.f32.mrb[0].mxu0
    %v6862 = vadd.f32 %v6789, %v6861
    %v6863 = vpop.f32.mrb[0].mxu0
    %v6864 = vadd.f32 %v6791, %v6863
    %v6865 = vpop.f32.mrb[0].mxu0
    %v6866 = vadd.f32 %v6793, %v6865
    %v6867 = vpop.f32.mrb[0].mxu0
    %v6868 = vadd.f32 %v6795, %v6867
    %6869 = vmatprep.mubr.bf16.mxu0 %v3444
    %6870 = vmatmul.mubr.bf16.gmra.mrb[0].mxu0 %v3443
    %v6871 = vpop.f32.mrb[0].mxu0
    %v6872 = vadd.f32 %v6799, %v6871
    %v6873 = vpop.f32.mrb[0].mxu0
    %v6874 = vadd.f32 %v6801, %v6873
    %v6875 = vpop.f32.mrb[0].mxu0
    %v6876 = vadd.f32 %v6803, %v6875
    %v6877 = vpop.f32.mrb[0].mxu0
    %v6878 = vadd.f32 %v6805, %v6877
    %6879 = vmatprep.mubr.bf16.mxu0 %v3452
    %6880 = vmatmul.mubr.bf16.gmra.mrb[0].mxu0 %v3451
    %v6881 = vpop.f32.mrb[0].mxu0
    %v6882 = vadd.f32 %v6809, %v6881
    %v6883 = vpop.f32.mrb[0].mxu0
    %v6884 = vadd.f32 %v6811, %v6883
    %v6885 = vpop.f32.mrb[0].mxu0
    %v6886 = vadd.f32 %v6813, %v6885
    %v6887 = vpop.f32.mrb[0].mxu0
    %v6888 = vadd.f32 %v6815, %v6887
    %6889 = vdwg.mxu0
    %6890 = vmatprep.subr.bf16.mxu0 %v5415
    %6891 = vmatpush1.bf16.msra.mxu0 %v5414
    %6892 = vmatprep.subr.bf16.mxu0 %v5422
    %6893 = vmatpush1.bf16.msra.mxu0 %v5421
    %6894 = vmatprep.subr.bf16.mxu0 %v5429
    %6895 = vmatpush1.bf16.msra.mxu0 %v5428
    %6896 = vmatprep.subr.bf16.mxu0 %v5436
    %6897 = vmatpush1.bf16.msra.mxu0 %v5435
    %6898 = vmatprep.subr.bf16.mxu0 %v5443
    %6899 = vmatpush1.bf16.msra.mxu0 %v5442
    %6900 = vmatprep.subr.bf16.mxu0 %v5450
    %6901 = vmatpush1.bf16.msra.mxu0 %v5449
    %6902 = vmatprep.subr.bf16.mxu0 %v5457
    %6903 = vmatpush1.bf16.msra.mxu0 %v5456
    %6904 = vmatprep.subr.bf16.mxu0 %v5464
    %6905 = vmatpush1.bf16.msra.mxu0 %v5463
    %6906 = vmatprep.subr.bf16.mxu0 %v5471
    %6907 = vmatpush1.bf16.msra.mxu0 %v5470
    %6908 = vmatprep.subr.bf16.mxu0 %v5478
    %6909 = vmatpush1.bf16.msra.mxu0 %v5477
    %6910 = vmatprep.subr.bf16.mxu0 %v5485
    %6911 = vmatpush1.bf16.msra.mxu0 %v5484
    %6912 = vmatprep.subr.bf16.mxu0 %v5492
    %6913 = vmatpush1.bf16.msra.mxu0 %v5491
    %6914 = vmatprep.subr.bf16.mxu0 %v5499
    %6915 = vmatpush1.bf16.msra.mxu0 %v5498
    %6916 = vmatprep.subr.bf16.mxu0 %v5506
    %6917 = vmatpush1.bf16.msra.mxu0 %v5505
    %6918 = vmatprep.subr.bf16.mxu0 %v5513
    %6919 = vmatpush1.bf16.msra.mxu0 %v5512
    %6920 = vmatprep.subr.bf16.mxu0 %v5520
    %6921 = vmatpush1.bf16.msra.mxu0 %v5519
    %6922 = vmatprep.mubr.bf16.mxu0 %v3422
    %6923 = vmatmul.mubr.bf16.gmra.mrb[0].mxu0 %v3421
    %v6924 = vpop.f32.mrb[0].mxu0
    %v6925 = vadd.f32 %v3986, %v6924
    %v6926 = vpop.f32.mrb[0].mxu0
    %v6927 = vadd.f32 %v3990, %v6926
    %v6928 = vpop.f32.mrb[0].mxu0
    %v6929 = vadd.f32 %v3986, %v6928
    %v6930 = vpop.f32.mrb[0].mxu0
    %v6931 = vadd.f32 %v3990, %v6930
    %6932 = vmatprep.mubr.bf16.mxu0 %v3430
    %6933 = vmatmul.mubr.bf16.gmra.mrb[0].mxu0 %v3429
    %v6934 = vpop.f32.mrb[0].mxu0
    %v6935 = vadd.f32 %v3986, %v6934
    %v6936 = vpop.f32.mrb[0].mxu0
    %v6937 = vadd.f32 %v3990, %v6936
    %v6938 = vpop.f32.mrb[0].mxu0
    %v6939 = vadd.f32 %v3986, %v6938
    %v6940 = vpop.f32.mrb[0].mxu0
    %v6941 = vadd.f32 %v3990, %v6940
    %6942 = vmatprep.mubr.bf16.mxu0 %v3438
    %6943 = vmatmul.mubr.bf16.gmra.mrb[0].mxu0 %v3437
    %v6944 = vpop.f32.mrb[0].mxu0
    %v6945 = vadd.f32 %v3986, %v6944
    %v6946 = vpop.f32.mrb[0].mxu0
    %v6947 = vadd.f32 %v3990, %v6946
    %v6948 = vpop.f32.mrb[0].mxu0
    %v6949 = vadd.f32 %v3986, %v6948
    %v6950 = vpop.f32.mrb[0].mxu0
    %v6951 = vadd.f32 %v3990, %v6950
    %6952 = vmatprep.mubr.bf16.mxu0 %v3446
    %6953 = vmatmul.mubr.bf16.gmra.mrb[0].mxu0 %v3445
    %v6954 = vpop.f32.mrb[0].mxu0
    %v6955 = vadd.f32 %v3986, %v6954
    %v6956 = vpop.f32.mrb[0].mxu0
    %v6957 = vadd.f32 %v3990, %v6956
    %v6958 = vpop.f32.mrb[0].mxu0
    %v6959 = vadd.f32 %v3986, %v6958
    %v6960 = vpop.f32.mrb[0].mxu0
    %v6961 = vadd.f32 %v3990, %v6960
    %6962 = vdwg.mxu0
    %6963 = vmatprep.subr.bf16.mxu0 %v5527
    %6964 = vmatpush1.bf16.msra.mxu0 %v5526
    %6965 = vmatprep.subr.bf16.mxu0 %v5534
    %6966 = vmatpush1.bf16.msra.mxu0 %v5533
    %6967 = vmatprep.subr.bf16.mxu0 %v5541
    %6968 = vmatpush1.bf16.msra.mxu0 %v5540
    %6969 = vmatprep.subr.bf16.mxu0 %v5548
    %6970 = vmatpush1.bf16.msra.mxu0 %v5547
    %6971 = vmatprep.subr.bf16.mxu0 %v5555
    %6972 = vmatpush1.bf16.msra.mxu0 %v5554
    %6973 = vmatprep.subr.bf16.mxu0 %v5562
    %6974 = vmatpush1.bf16.msra.mxu0 %v5561
    %6975 = vmatprep.subr.bf16.mxu0 %v5569
    %6976 = vmatpush1.bf16.msra.mxu0 %v5568
    %6977 = vmatprep.subr.bf16.mxu0 %v5576
    %6978 = vmatpush1.bf16.msra.mxu0 %v5575
    %6979 = vmatprep.subr.bf16.mxu0 %v5583
    %6980 = vmatpush1.bf16.msra.mxu0 %v5582
    %6981 = vmatprep.subr.bf16.mxu0 %v5590
    %6982 = vmatpush1.bf16.msra.mxu0 %v5589
    %6983 = vmatprep.subr.bf16.mxu0 %v5597
    %6984 = vmatpush1.bf16.msra.mxu0 %v5596
    %6985 = vmatprep.subr.bf16.mxu0 %v5604
    %6986 = vmatpush1.bf16.msra.mxu0 %v5603
    %6987 = vmatprep.subr.bf16.mxu0 %v5611
    %6988 = vmatpush1.bf16.msra.mxu0 %v5610
    %6989 = vmatprep.subr.bf16.mxu0 %v5618
    %6990 = vmatpush1.bf16.msra.mxu0 %v5617
    %6991 = vmatprep.subr.bf16.mxu0 %v5625
    %6992 = vmatpush1.bf16.msra.mxu0 %v5624
    %6993 = vmatprep.subr.bf16.mxu0 %v5632
    %6994 = vmatpush1.bf16.msra.mxu0 %v5631
    %6995 = vmatprep.mubr.bf16.mxu0 %v3424
    %6996 = vmatmul.mubr.bf16.gmra.mrb[0].mxu0 %v3423
    %v6997 = vpop.f32.mrb[0].mxu0
    %v6998 = vadd.f32 %v6925, %v6997
    %v6999 = vpop.f32.mrb[0].mxu0
    %v7000 = vadd.f32 %v6927, %v6999
    %v7001 = vpop.f32.mrb[0].mxu0
    %v7002 = vadd.f32 %v6929, %v7001
    %v7003 = vpop.f32.mrb[0].mxu0
    %v7004 = vadd.f32 %v6931, %v7003
    %7005 = vmatprep.mubr.bf16.mxu0 %v3432
    %7006 = vmatmul.mubr.bf16.gmra.mrb[0].mxu0 %v3431
    %v7007 = vpop.f32.mrb[0].mxu0
    %v7008 = vadd.f32 %v6935, %v7007
    %v7009 = vpop.f32.mrb[0].mxu0
    %v7010 = vadd.f32 %v6937, %v7009
    %v7011 = vpop.f32.mrb[0].mxu0
    %v7012 = vadd.f32 %v6939, %v7011
    %v7013 = vpop.f32.mrb[0].mxu0
    %v7014 = vadd.f32 %v6941, %v7013
    %7015 = vmatprep.mubr.bf16.mxu0 %v3440
    %7016 = vmatmul.mubr.bf16.gmra.mrb[0].mxu0 %v3439
    %v7017 = vpop.f32.mrb[0].mxu0
    %v7018 = vadd.f32 %v6945, %v7017
    %v7019 = vpop.f32.mrb[0].mxu0
    %v7020 = vadd.f32 %v6947, %v7019
    %v7021 = vpop.f32.mrb[0].mxu0
    %v7022 = vadd.f32 %v6949, %v7021
    %v7023 = vpop.f32.mrb[0].mxu0
    %v7024 = vadd.f32 %v6951, %v7023
    %7025 = vmatprep.mubr.bf16.mxu0 %v3448
    %7026 = vmatmul.mubr.bf16.gmra.mrb[0].mxu0 %v3447
    %v7027 = vpop.f32.mrb[0].mxu0
    %v7028 = vadd.f32 %v6955, %v7027
    %v7029 = vpop.f32.mrb[0].mxu0
    %v7030 = vadd.f32 %v6957, %v7029
    %v7031 = vpop.f32.mrb[0].mxu0
    %v7032 = vadd.f32 %v6959, %v7031
    %v7033 = vpop.f32.mrb[0].mxu0
    %v7034 = vadd.f32 %v6961, %v7033
    %7035 = vdwg.mxu0
    %7036 = vmatprep.subr.bf16.mxu0 %v5639
    %7037 = vmatpush1.bf16.msra.mxu0 %v5638
    %7038 = vmatprep.subr.bf16.mxu0 %v5646
    %7039 = vmatpush1.bf16.msra.mxu0 %v5645
    %7040 = vmatprep.subr.bf16.mxu0 %v5653
    %7041 = vmatpush1.bf16.msra.mxu0 %v5652
    %7042 = vmatprep.subr.bf16.mxu0 %v5660
    %7043 = vmatpush1.bf16.msra.mxu0 %v5659
    %7044 = vmatprep.subr.bf16.mxu0 %v5667
    %7045 = vmatpush1.bf16.msra.mxu0 %v5666
    %7046 = vmatprep.subr.bf16.mxu0 %v5674
    %7047 = vmatpush1.bf16.msra.mxu0 %v5673
    %7048 = vmatprep.subr.bf16.mxu0 %v5681
    %7049 = vmatpush1.bf16.msra.mxu0 %v5680
    %7050 = vmatprep.subr.bf16.mxu0 %v5688
    %7051 = vmatpush1.bf16.msra.mxu0 %v5687
    %7052 = vmatprep.subr.bf16.mxu0 %v5695
    %7053 = vmatpush1.bf16.msra.mxu0 %v5694
    %7054 = vmatprep.subr.bf16.mxu0 %v5702
    %7055 = vmatpush1.bf16.msra.mxu0 %v5701
    %7056 = vmatprep.subr.bf16.mxu0 %v5709
    %7057 = vmatpush1.bf16.msra.mxu0 %v5708
    %7058 = vmatprep.subr.bf16.mxu0 %v5716
    %7059 = vmatpush1.bf16.msra.mxu0 %v5715
    %7060 = vmatprep.subr.bf16.mxu0 %v5723
    %7061 = vmatpush1.bf16.msra.mxu0 %v5722
    %7062 = vmatprep.subr.bf16.mxu0 %v5730
    %7063 = vmatpush1.bf16.msra.mxu0 %v5729
    %7064 = vmatprep.subr.bf16.mxu0 %v5737
    %7065 = vmatpush1.bf16.msra.mxu0 %v5736
    %7066 = vmatprep.subr.bf16.mxu0 %v5744
    %7067 = vmatpush1.bf16.msra.mxu0 %v5743
    %7068 = vmatprep.mubr.bf16.mxu0 %v3426
    %7069 = vmatmul.mubr.bf16.gmra.mrb[0].mxu0 %v3425
    %v7070 = vpop.f32.mrb[0].mxu0
    %v7071 = vadd.f32 %v6998, %v7070
    %v7072 = vpop.f32.mrb[0].mxu0
    %v7073 = vadd.f32 %v7000, %v7072
    %v7074 = vpop.f32.mrb[0].mxu0
    %v7075 = vadd.f32 %v7002, %v7074
    %v7076 = vpop.f32.mrb[0].mxu0
    %v7077 = vadd.f32 %v7004, %v7076
    %7078 = vmatprep.mubr.bf16.mxu0 %v3434
    %7079 = vmatmul.mubr.bf16.gmra.mrb[0].mxu0 %v3433
    %v7080 = vpop.f32.mrb[0].mxu0
    %v7081 = vadd.f32 %v7008, %v7080
    %v7082 = vpop.f32.mrb[0].mxu0
    %v7083 = vadd.f32 %v7010, %v7082
    %v7084 = vpop.f32.mrb[0].mxu0
    %v7085 = vadd.f32 %v7012, %v7084
    %v7086 = vpop.f32.mrb[0].mxu0
    %v7087 = vadd.f32 %v7014, %v7086
    %7088 = vmatprep.mubr.bf16.mxu0 %v3442
    %7089 = vmatmul.mubr.bf16.gmra.mrb[0].mxu0 %v3441
    %v7090 = vpop.f32.mrb[0].mxu0
    %v7091 = vadd.f32 %v7018, %v7090
    %v7092 = vpop.f32.mrb[0].mxu0
    %v7093 = vadd.f32 %v7020, %v7092
    %v7094 = vpop.f32.mrb[0].mxu0
    %v7095 = vadd.f32 %v7022, %v7094
    %v7096 = vpop.f32.mrb[0].mxu0
    %v7097 = vadd.f32 %v7024, %v7096
    %7098 = vmatprep.mubr.bf16.mxu0 %v3450
    %7099 = vmatmul.mubr.bf16.gmra.mrb[0].mxu0 %v3449
    %v7100 = vpop.f32.mrb[0].mxu0
    %v7101 = vadd.f32 %v7028, %v7100
    %v7102 = vpop.f32.mrb[0].mxu0
    %v7103 = vadd.f32 %v7030, %v7102
    %v7104 = vpop.f32.mrb[0].mxu0
    %v7105 = vadd.f32 %v7032, %v7104
    %v7106 = vpop.f32.mrb[0].mxu0
    %v7107 = vadd.f32 %v7034, %v7106
    %7108 = vdwg.mxu0
    %7109 = vmatprep.subr.bf16.mxu0 %v5751
    %7110 = vmatpush1.bf16.msra.mxu0 %v5750
    %7111 = vmatprep.subr.bf16.mxu0 %v5758
    %7112 = vmatpush1.bf16.msra.mxu0 %v5757
    %7113 = vmatprep.subr.bf16.mxu0 %v5765
    %7114 = vmatpush1.bf16.msra.mxu0 %v5764
    %7115 = vmatprep.subr.bf16.mxu0 %v5772
    %7116 = vmatpush1.bf16.msra.mxu0 %v5771
    %7117 = vmatprep.subr.bf16.mxu0 %v5779
    %7118 = vmatpush1.bf16.msra.mxu0 %v5778
    %7119 = vmatprep.subr.bf16.mxu0 %v5786
    %7120 = vmatpush1.bf16.msra.mxu0 %v5785
    %7121 = vmatprep.subr.bf16.mxu0 %v5793
    %7122 = vmatpush1.bf16.msra.mxu0 %v5792
    %7123 = vmatprep.subr.bf16.mxu0 %v5800
    %7124 = vmatpush1.bf16.msra.mxu0 %v5799
    %7125 = vmatprep.subr.bf16.mxu0 %v5807
    %7126 = vmatpush1.bf16.msra.mxu0 %v5806
    %7127 = vmatprep.subr.bf16.mxu0 %v5814
    %7128 = vmatpush1.bf16.msra.mxu0 %v5813
    %7129 = vmatprep.subr.bf16.mxu0 %v5821
    %7130 = vmatpush1.bf16.msra.mxu0 %v5820
    %7131 = vmatprep.subr.bf16.mxu0 %v5828
    %7132 = vmatpush1.bf16.msra.mxu0 %v5827
    %7133 = vmatprep.subr.bf16.mxu0 %v5835
    %7134 = vmatpush1.bf16.msra.mxu0 %v5834
    %7135 = vmatprep.subr.bf16.mxu0 %v5842
    %7136 = vmatpush1.bf16.msra.mxu0 %v5841
    %7137 = vmatprep.subr.bf16.mxu0 %v5849
    %7138 = vmatpush1.bf16.msra.mxu0 %v5848
    %7139 = vmatprep.subr.bf16.mxu0 %v5856
    %7140 = vmatpush1.bf16.msra.mxu0 %v5855
    %7141 = vmatprep.mubr.bf16.mxu0 %v3428
    %7142 = vmatmul.mubr.bf16.gmra.mrb[0].mxu0 %v3427
    %v7143 = vpop.f32.mrb[0].mxu0
    %v7144 = vadd.f32 %v7071, %v7143
    %v7145 = vpop.f32.mrb[0].mxu0
    %v7146 = vadd.f32 %v7073, %v7145
    %v7147 = vpop.f32.mrb[0].mxu0
    %v7148 = vadd.f32 %v7075, %v7147
    %v7149 = vpop.f32.mrb[0].mxu0
    %v7150 = vadd.f32 %v7077, %v7149
    %7151 = vmatprep.mubr.bf16.mxu0 %v3436
    %7152 = vmatmul.mubr.bf16.gmra.mrb[0].mxu0 %v3435
    %v7153 = vpop.f32.mrb[0].mxu0
    %v7154 = vadd.f32 %v7081, %v7153
    %v7155 = vpop.f32.mrb[0].mxu0
    %v7156 = vadd.f32 %v7083, %v7155
    %v7157 = vpop.f32.mrb[0].mxu0
    %v7158 = vadd.f32 %v7085, %v7157
    %v7159 = vpop.f32.mrb[0].mxu0
    %v7160 = vadd.f32 %v7087, %v7159
    %7161 = vmatprep.mubr.bf16.mxu0 %v3444
    %7162 = vmatmul.mubr.bf16.gmra.mrb[0].mxu0 %v3443
    %v7163 = vpop.f32.mrb[0].mxu0
    %v7164 = vadd.f32 %v7091, %v7163
    %v7165 = vpop.f32.mrb[0].mxu0
    %v7166 = vadd.f32 %v7093, %v7165
    %v7167 = vpop.f32.mrb[0].mxu0
    %v7168 = vadd.f32 %v7095, %v7167
    %v7169 = vpop.f32.mrb[0].mxu0
    %v7170 = vadd.f32 %v7097, %v7169
    %7171 = vmatprep.mubr.bf16.mxu0 %v3452
    %7172 = vmatmul.mubr.bf16.gmra.mrb[0].mxu0 %v3451
    %v7173 = vpop.f32.mrb[0].mxu0
    %v7174 = vadd.f32 %v7101, %v7173
    %v7175 = vpop.f32.mrb[0].mxu0
    %v7176 = vadd.f32 %v7103, %v7175
    %v7177 = vpop.f32.mrb[0].mxu0
    %v7178 = vadd.f32 %v7105, %v7177
    %v7179 = vpop.f32.mrb[0].mxu0
    %v7180 = vadd.f32 %v7107, %v7179
    %7181 = vdwg.mxu0
    %7182 = vmatprep.subr.bf16.mxu0 0
    %7183 = vmatpush1.bf16.msra.mxu0 %v5416
    %7184 = vmatprep.subr.bf16.mxu0 0
    %7185 = vmatpush1.bf16.msra.mxu0 %v5423
    %7186 = vmatprep.subr.bf16.mxu0 0
    %7187 = vmatpush1.bf16.msra.mxu0 %v5430
    %7188 = vmatprep.subr.bf16.mxu0 0
    %7189 = vmatpush1.bf16.msra.mxu0 %v5437
    %7190 = vmatprep.subr.bf16.mxu0 0
    %7191 = vmatpush1.bf16.msra.mxu0 %v5444
    %7192 = vmatprep.subr.bf16.mxu0 0
    %7193 = vmatpush1.bf16.msra.mxu0 %v5451
    %7194 = vmatprep.subr.bf16.mxu0 0
    %7195 = vmatpush1.bf16.msra.mxu0 %v5458
    %7196 = vmatprep.subr.bf16.mxu0 0
    %7197 = vmatpush1.bf16.msra.mxu0 %v5465
    %7198 = vmatprep.subr.bf16.mxu0 0
    %7199 = vmatpush1.bf16.msra.mxu0 %v5472
    %7200 = vmatprep.subr.bf16.mxu0 0
    %7201 = vmatpush1.bf16.msra.mxu0 %v5479
    %7202 = vmatprep.subr.bf16.mxu0 0
    %7203 = vmatpush1.bf16.msra.mxu0 %v5486
    %7204 = vmatprep.subr.bf16.mxu0 0
    %7205 = vmatpush1.bf16.msra.mxu0 %v5493
    %7206 = vmatprep.subr.bf16.mxu0 0
    %7207 = vmatpush1.bf16.msra.mxu0 %v5500
    %7208 = vmatprep.subr.bf16.mxu0 0
    %7209 = vmatpush1.bf16.msra.mxu0 %v5507
    %7210 = vmatprep.subr.bf16.mxu0 0
    %7211 = vmatpush1.bf16.msra.mxu0 %v5514
    %7212 = vmatprep.subr.bf16.mxu0 0
    %7213 = vmatpush1.bf16.msra.mxu0 %v5521
    %7214 = vmatprep.mubr.bf16.mxu0 %v3422
    %7215 = vmatmul.mubr.bf16.gmra.mrb[0].mxu0 %v3421
    %v7216 = vpop.f32.mrb[0].mxu0
    %v7217 = vadd.f32 %v3994, %v7216
    %v7218 = vpop.f32.mrb[0].mxu0
    %v7219 = vpop.f32.mrb[0].mxu0
    %v7220 = vadd.f32 %v3994, %v7219
    %v7221 = vpop.f32.mrb[0].mxu0
    %7222 = vmatprep.mubr.bf16.mxu0 %v3430
    %7223 = vmatmul.mubr.bf16.gmra.mrb[0].mxu0 %v3429
    %v7224 = vpop.f32.mrb[0].mxu0
    %v7225 = vadd.f32 %v3994, %v7224
    %v7226 = vpop.f32.mrb[0].mxu0
    %v7227 = vpop.f32.mrb[0].mxu0
    %v7228 = vadd.f32 %v3994, %v7227
    %v7229 = vpop.f32.mrb[0].mxu0
    %7230 = vmatprep.mubr.bf16.mxu0 %v3438
    %7231 = vmatmul.mubr.bf16.gmra.mrb[0].mxu0 %v3437
    %v7232 = vpop.f32.mrb[0].mxu0
    %v7233 = vadd.f32 %v3994, %v7232
    %v7234 = vpop.f32.mrb[0].mxu0
    %v7235 = vpop.f32.mrb[0].mxu0
    %v7236 = vadd.f32 %v3994, %v7235
    %v7237 = vpop.f32.mrb[0].mxu0
    %7238 = vmatprep.mubr.bf16.mxu0 %v3446
    %7239 = vmatmul.mubr.bf16.gmra.mrb[0].mxu0 %v3445
    %v7240 = vpop.f32.mrb[0].mxu0
    %v7241 = vadd.f32 %v3994, %v7240
    %v7242 = vpop.f32.mrb[0].mxu0
    %v7243 = vpop.f32.mrb[0].mxu0
    %v7244 = vadd.f32 %v3994, %v7243
    %v7245 = vpop.f32.mrb[0].mxu0
    %7246 = vdwg.mxu0
    %7247 = vmatprep.subr.bf16.mxu0 0
    %7248 = vmatpush1.bf16.msra.mxu0 %v5528
    %7249 = vmatprep.subr.bf16.mxu0 0
    %7250 = vmatpush1.bf16.msra.mxu0 %v5535
    %7251 = vmatprep.subr.bf16.mxu0 0
    %7252 = vmatpush1.bf16.msra.mxu0 %v5542
    %7253 = vmatprep.subr.bf16.mxu0 0
    %7254 = vmatpush1.bf16.msra.mxu0 %v5549
    %7255 = vmatprep.subr.bf16.mxu0 0
    %7256 = vmatpush1.bf16.msra.mxu0 %v5556
    %7257 = vmatprep.subr.bf16.mxu0 0
    %7258 = vmatpush1.bf16.msra.mxu0 %v5563
    %7259 = vmatprep.subr.bf16.mxu0 0
    %7260 = vmatpush1.bf16.msra.mxu0 %v5570
    %7261 = vmatprep.subr.bf16.mxu0 0
    %7262 = vmatpush1.bf16.msra.mxu0 %v5577
    %7263 = vmatprep.subr.bf16.mxu0 0
    %7264 = vmatpush1.bf16.msra.mxu0 %v5584
    %7265 = vmatprep.subr.bf16.mxu0 0
    %7266 = vmatpush1.bf16.msra.mxu0 %v5591
    %7267 = vmatprep.subr.bf16.mxu0 0
    %7268 = vmatpush1.bf16.msra.mxu0 %v5598
    %7269 = vmatprep.subr.bf16.mxu0 0
    %7270 = vmatpush1.bf16.msra.mxu0 %v5605
    %7271 = vmatprep.subr.bf16.mxu0 0
    %7272 = vmatpush1.bf16.msra.mxu0 %v5612
    %7273 = vmatprep.subr.bf16.mxu0 0
    %7274 = vmatpush1.bf16.msra.mxu0 %v5619
    %7275 = vmatprep.subr.bf16.mxu0 0
    %7276 = vmatpush1.bf16.msra.mxu0 %v5626
    %7277 = vmatprep.subr.bf16.mxu0 0
    %7278 = vmatpush1.bf16.msra.mxu0 %v5633
    %7279 = vmatprep.mubr.bf16.mxu0 %v3424
    %7280 = vmatmul.mubr.bf16.gmra.mrb[0].mxu0 %v3423
    %v7281 = vpop.f32.mrb[0].mxu0
    %v7282 = vadd.f32 %v7217, %v7281
    %v7283 = vpop.f32.mrb[0].mxu0
    %v7284 = vpop.f32.mrb[0].mxu0
    %v7285 = vadd.f32 %v7220, %v7284
    %v7286 = vpop.f32.mrb[0].mxu0
    %7287 = vmatprep.mubr.bf16.mxu0 %v3432
    %7288 = vmatmul.mubr.bf16.gmra.mrb[0].mxu0 %v3431
    %v7289 = vpop.f32.mrb[0].mxu0
    %v7290 = vadd.f32 %v7225, %v7289
    %v7291 = vpop.f32.mrb[0].mxu0
    %v7292 = vpop.f32.mrb[0].mxu0
    %v7293 = vadd.f32 %v7228, %v7292
    %v7294 = vpop.f32.mrb[0].mxu0
    %7295 = vmatprep.mubr.bf16.mxu0 %v3440
    %7296 = vmatmul.mubr.bf16.gmra.mrb[0].mxu0 %v3439
    %v7297 = vpop.f32.mrb[0].mxu0
    %v7298 = vadd.f32 %v7233, %v7297
    %v7299 = vpop.f32.mrb[0].mxu0
    %v7300 = vpop.f32.mrb[0].mxu0
    %v7301 = vadd.f32 %v7236, %v7300
    %v7302 = vpop.f32.mrb[0].mxu0
    %7303 = vmatprep.mubr.bf16.mxu0 %v3448
    %7304 = vmatmul.mubr.bf16.gmra.mrb[0].mxu0 %v3447
    %v7305 = vpop.f32.mrb[0].mxu0
    %v7306 = vadd.f32 %v7241, %v7305
    %v7307 = vpop.f32.mrb[0].mxu0
    %v7308 = vpop.f32.mrb[0].mxu0
    %v7309 = vadd.f32 %v7244, %v7308
    %v7310 = vpop.f32.mrb[0].mxu0
    %7311 = vdwg.mxu0
    %7312 = vmatprep.subr.bf16.mxu0 0
    %7313 = vmatpush1.bf16.msra.mxu0 %v5640
    %7314 = vmatprep.subr.bf16.mxu0 0
    %7315 = vmatpush1.bf16.msra.mxu0 %v5647
    %7316 = vmatprep.subr.bf16.mxu0 0
    %7317 = vmatpush1.bf16.msra.mxu0 %v5654
    %7318 = vmatprep.subr.bf16.mxu0 0
    %7319 = vmatpush1.bf16.msra.mxu0 %v5661
    %7320 = vmatprep.subr.bf16.mxu0 0
    %7321 = vmatpush1.bf16.msra.mxu0 %v5668
    %7322 = vmatprep.subr.bf16.mxu0 0
    %7323 = vmatpush1.bf16.msra.mxu0 %v5675
    %7324 = vmatprep.subr.bf16.mxu0 0
    %7325 = vmatpush1.bf16.msra.mxu0 %v5682
    %7326 = vmatprep.subr.bf16.mxu0 0
    %7327 = vmatpush1.bf16.msra.mxu0 %v5689
    %7328 = vmatprep.subr.bf16.mxu0 0
    %7329 = vmatpush1.bf16.msra.mxu0 %v5696
    %7330 = vmatprep.subr.bf16.mxu0 0
    %7331 = vmatpush1.bf16.msra.mxu0 %v5703
    %7332 = vmatprep.subr.bf16.mxu0 0
    %7333 = vmatpush1.bf16.msra.mxu0 %v5710
    %7334 = vmatprep.subr.bf16.mxu0 0
    %7335 = vmatpush1.bf16.msra.mxu0 %v5717
    %7336 = vmatprep.subr.bf16.mxu0 0
    %7337 = vmatpush1.bf16.msra.mxu0 %v5724
    %7338 = vmatprep.subr.bf16.mxu0 0
    %7339 = vmatpush1.bf16.msra.mxu0 %v5731
    %7340 = vmatprep.subr.bf16.mxu0 0
    %7341 = vmatpush1.bf16.msra.mxu0 %v5738
    %7342 = vmatprep.subr.bf16.mxu0 0
    %7343 = vmatpush1.bf16.msra.mxu0 %v5745
    %7344 = vmatprep.mubr.bf16.mxu0 %v3426
    %7345 = vmatmul.mubr.bf16.gmra.mrb[0].mxu0 %v3425
    %v7346 = vpop.f32.mrb[0].mxu0
    %v7347 = vadd.f32 %v7282, %v7346
    %v7348 = vpop.f32.mrb[0].mxu0
    %v7349 = vpop.f32.mrb[0].mxu0
    %v7350 = vadd.f32 %v7285, %v7349
    %v7351 = vpop.f32.mrb[0].mxu0
    %7352 = vmatprep.mubr.bf16.mxu0 %v3434
    %7353 = vmatmul.mubr.bf16.gmra.mrb[0].mxu0 %v3433
    %v7354 = vpop.f32.mrb[0].mxu0
    %v7355 = vadd.f32 %v7290, %v7354
    %v7356 = vpop.f32.mrb[0].mxu0
    %v7357 = vpop.f32.mrb[0].mxu0
    %v7358 = vadd.f32 %v7293, %v7357
    %v7359 = vpop.f32.mrb[0].mxu0
    %7360 = vmatprep.mubr.bf16.mxu0 %v3442
    %7361 = vmatmul.mubr.bf16.gmra.mrb[0].mxu0 %v3441
    %v7362 = vpop.f32.mrb[0].mxu0
    %v7363 = vadd.f32 %v7298, %v7362
    %v7364 = vpop.f32.mrb[0].mxu0
    %v7365 = vpop.f32.mrb[0].mxu0
    %v7366 = vadd.f32 %v7301, %v7365
    %v7367 = vpop.f32.mrb[0].mxu0
    %7368 = vmatprep.mubr.bf16.mxu0 %v3450
    %7369 = vmatmul.mubr.bf16.gmra.mrb[0].mxu0 %v3449
    %v7370 = vpop.f32.mrb[0].mxu0
    %v7371 = vadd.f32 %v7306, %v7370
    %v7372 = vpop.f32.mrb[0].mxu0
    %v7373 = vpop.f32.mrb[0].mxu0
    %v7374 = vadd.f32 %v7309, %v7373
    %v7375 = vpop.f32.mrb[0].mxu0
    %7376 = vdwg.mxu0
    %7377 = vmatprep.subr.bf16.mxu0 0
    %7378 = vmatpush1.bf16.msra.mxu0 %v5752
    %7379 = vmatprep.subr.bf16.mxu0 0
    %7380 = vmatpush1.bf16.msra.mxu0 %v5759
    %7381 = vmatprep.subr.bf16.mxu0 0
    %7382 = vmatpush1.bf16.msra.mxu0 %v5766
    %7383 = vmatprep.subr.bf16.mxu0 0
    %7384 = vmatpush1.bf16.msra.mxu0 %v5773
    %7385 = vmatprep.subr.bf16.mxu0 0
    %7386 = vmatpush1.bf16.msra.mxu0 %v5780
    %7387 = vmatprep.subr.bf16.mxu0 0
    %7388 = vmatpush1.bf16.msra.mxu0 %v5787
    %7389 = vmatprep.subr.bf16.mxu0 0
    %7390 = vmatpush1.bf16.msra.mxu0 %v5794
    %7391 = vmatprep.subr.bf16.mxu0 0
    %7392 = vmatpush1.bf16.msra.mxu0 %v5801
    %7393 = vmatprep.subr.bf16.mxu0 0
    %7394 = vmatpush1.bf16.msra.mxu0 %v5808
    %7395 = vmatprep.subr.bf16.mxu0 0
    %7396 = vmatpush1.bf16.msra.mxu0 %v5815
    %7397 = vmatprep.subr.bf16.mxu0 0
    %7398 = vmatpush1.bf16.msra.mxu0 %v5822
    %7399 = vmatprep.subr.bf16.mxu0 0
    %7400 = vmatpush1.bf16.msra.mxu0 %v5829
    %7401 = vmatprep.subr.bf16.mxu0 0
    %7402 = vmatpush1.bf16.msra.mxu0 %v5836
    %7403 = vmatprep.subr.bf16.mxu0 0
    %7404 = vmatpush1.bf16.msra.mxu0 %v5843
    %7405 = vmatprep.subr.bf16.mxu0 0
    %7406 = vmatpush1.bf16.msra.mxu0 %v5850
    %7407 = vmatprep.subr.bf16.mxu0 0
    %7408 = vmatpush1.bf16.msra.mxu0 %v5857
    %7409 = vmatprep.mubr.bf16.mxu0 %v3428
    %7410 = vmatmul.mubr.bf16.gmra.mrb[0].mxu0 %v3427
    %v7411 = vpop.f32.mrb[0].mxu0
    %v7412 = vadd.f32 %v7347, %v7411
    %v7413 = vpop.f32.mrb[0].mxu0
    %v7414 = vpop.f32.mrb[0].mxu0
    %v7415 = vadd.f32 %v7350, %v7414
    %v7416 = vpop.f32.mrb[0].mxu0
    %7417 = vmatprep.mubr.bf16.mxu0 %v3436
    %7418 = vmatmul.mubr.bf16.gmra.mrb[0].mxu0 %v3435
    %v7419 = vpop.f32.mrb[0].mxu0
    %v7420 = vadd.f32 %v7355, %v7419
    %v7421 = vpop.f32.mrb[0].mxu0
    %v7422 = vpop.f32.mrb[0].mxu0
    %v7423 = vadd.f32 %v7358, %v7422
    %v7424 = vpop.f32.mrb[0].mxu0
    %7425 = vmatprep.mubr.bf16.mxu0 %v3444
    %7426 = vmatmul.mubr.bf16.gmra.mrb[0].mxu0 %v3443
    %v7427 = vpop.f32.mrb[0].mxu0
    %v7428 = vadd.f32 %v7363, %v7427
    %v7429 = vpop.f32.mrb[0].mxu0
    %v7430 = vpop.f32.mrb[0].mxu0
    %v7431 = vadd.f32 %v7366, %v7430
    %v7432 = vpop.f32.mrb[0].mxu0
    %7433 = vmatprep.mubr.bf16.mxu0 %v3452
    %7434 = vmatmul.mubr.bf16.gmra.mrb[0].mxu0 %v3451
    %v7435 = vpop.f32.mrb[0].mxu0
    %v7436 = vadd.f32 %v7371, %v7435
    %v7437 = vpop.f32.mrb[0].mxu0
    %v7438 = vpop.f32.mrb[0].mxu0
    %v7439 = vadd.f32 %v7374, %v7438
    %v7440 = vpop.f32.mrb[0].mxu0
    %7441 = vdwg.mxu0
    %v7442 = vtanh.pop %v6560
    %v7443 = vtanh.pop %v6562
    %v7444 = vtanh.pop %v6852
    %v7445 = vtanh.pop %v6854
    %v7446 = vtanh.pop %v7144
    %v7447 = vtanh.pop %v7146
    %v7448 = vtanh.pop %v7412
    %v7449 = vtanh.pop %v6564
    %v7450 = vtanh.pop %v6566
    %v7451 = vtanh.pop %v6856
    %v7452 = vtanh.pop %v6858
    %v7453 = vtanh.pop %v7148
    %v7454 = vtanh.pop %v7150
    %v7455 = vtanh.pop %v7415
    %v7456 = vtanh.pop %v6570
    %v7457 = vtanh.pop %v6572
    %v7458 = vtanh.pop %v6862
    %v7459 = vtanh.pop %v6864
    %v7460 = vtanh.pop %v7154
    %v7461 = vtanh.pop %v7156
    %v7462 = vtanh.pop %v7420
    %v7463 = vtanh.pop %v6574
    %v7464 = vtanh.pop %v6576
    %v7465 = vtanh.pop %v6866
    %v7466 = vtanh.pop %v6868
    %v7467 = vtanh.pop %v7158
    %v7468 = vtanh.pop %v7160
    %v7469 = vtanh.pop %v7423
    %v7470 = vtanh.pop %v6580
    %v7471 = vtanh.pop %v6582
    %v7472 = vtanh.pop %v6872
    %v7473 = vtanh.pop %v6874
    %v7474 = vtanh.pop %v7164
    %v7475 = vtanh.pop %v7166
    %v7476 = vtanh.pop %v7428
    %v7477 = vtanh.pop %v6584
    %v7478 = vtanh.pop %v6586
    %v7479 = vtanh.pop %v6876
    %v7480 = vtanh.pop %v6878
    %v7481 = vtanh.pop %v7168
    %v7482 = vtanh.pop %v7170
    %v7483 = vtanh.pop %v7431
    %v7484 = vtanh.pop %v6590
    %v7485 = vtanh.pop %v6592
    %v7486 = vtanh.pop %v6882
    %v7487 = vtanh.pop %v6884
    %v7488 = vtanh.pop %v7174
    %v7489 = vtanh.pop %v7176
    %v7490 = vtanh.pop %v7436
    %v7491 = vtanh.pop %v6594
    %v7492 = vtanh.pop %v6596
    %v7493 = vtanh.pop %v6886
    %v7494 = vtanh.pop %v6888
    %v7495 = vtanh.pop %v7178
    %v7496 = vtanh.pop %v7180
    %v7497 = vtanh.pop %v7439
    %v7498 = vpack.c.bf16 %v7449, %v7442
    %v7499 = vpack.c.bf16 %v7450, %v7443
    %v7500 = vpack.c.bf16 %v7451, %v7444
    %v7501 = vpack.c.bf16 %v7452, %v7445
    %v7502 = vpack.c.bf16 %v7453, %v7446
    %v7503 = vpack.c.bf16 %v7454, %v7447
    %v7504 = vpack.c.bf16 %v7455, %v7448
    %v7505 = vpack.c.bf16 %v7463, %v7456
    %v7506 = vpack.c.bf16 %v7464, %v7457
    %v7507 = vpack.c.bf16 %v7465, %v7458
    %v7508 = vpack.c.bf16 %v7466, %v7459
    %v7509 = vpack.c.bf16 %v7467, %v7460
    %v7510 = vpack.c.bf16 %v7468, %v7461
    %v7511 = vpack.c.bf16 %v7469, %v7462
    %v7512 = vpack.c.bf16 %v7477, %v7470
    %v7513 = vpack.c.bf16 %v7478, %v7471
    %v7514 = vpack.c.bf16 %v7479, %v7472
    %v7515 = vpack.c.bf16 %v7480, %v7473
    %v7516 = vpack.c.bf16 %v7481, %v7474
    %v7517 = vpack.c.bf16 %v7482, %v7475
    %v7518 = vpack.c.bf16 %v7483, %v7476
    %v7519 = vpack.c.bf16 %v7491, %v7484
    %v7520 = vpack.c.bf16 %v7492, %v7485
    %v7521 = vpack.c.bf16 %v7493, %v7486
    %v7522 = vpack.c.bf16 %v7494, %v7487
    %v7523 = vpack.c.bf16 %v7495, %v7488
    %v7524 = vpack.c.bf16 %v7496, %v7489
    %v7525 = vpack.c.bf16 %v7497, %v7490
    %v7554 = vunpack.c.l.b16 %v7498
    %v7555 = vunpack.c.l.b16 %v7499
    %v7556 = vunpack.c.l.b16 %v7500
    %v7557 = vunpack.c.l.b16 %v7501
    %v7558 = vunpack.c.l.b16 %v7502
    %v7559 = vunpack.c.l.b16 %v7503
    %v7560 = vunpack.c.l.b16 %v7504
    %v7561 = vunpack.c.h.b16 %v7498
    %v7562 = vunpack.c.h.b16 %v7499
    %v7563 = vunpack.c.h.b16 %v7500
    %v7564 = vunpack.c.h.b16 %v7501
    %v7565 = vunpack.c.h.b16 %v7502
    %v7566 = vunpack.c.h.b16 %v7503
    %v7567 = vunpack.c.h.b16 %v7504
    %v7568 = vunpack.c.l.b16 %v7505
    %v7569 = vunpack.c.l.b16 %v7506
    %v7570 = vunpack.c.l.b16 %v7507
    %v7571 = vunpack.c.l.b16 %v7508
    %v7572 = vunpack.c.l.b16 %v7509
    %v7573 = vunpack.c.l.b16 %v7510
    %v7574 = vunpack.c.l.b16 %v7511
    %v7575 = vunpack.c.h.b16 %v7505
    %v7576 = vunpack.c.h.b16 %v7506
    %v7577 = vunpack.c.h.b16 %v7507
    %v7578 = vunpack.c.h.b16 %v7508
    %v7579 = vunpack.c.h.b16 %v7509
    %v7580 = vunpack.c.h.b16 %v7510
    %v7581 = vunpack.c.h.b16 %v7511
    %v7582 = vunpack.c.l.b16 %v7512
    %v7583 = vunpack.c.l.b16 %v7513
    %v7584 = vunpack.c.l.b16 %v7514
    %v7585 = vunpack.c.l.b16 %v7515
    %v7586 = vunpack.c.l.b16 %v7516
    %v7587 = vunpack.c.l.b16 %v7517
    %v7588 = vunpack.c.l.b16 %v7518
    %v7589 = vunpack.c.h.b16 %v7512
    %v7590 = vunpack.c.h.b16 %v7513
    %v7591 = vunpack.c.h.b16 %v7514
    %v7592 = vunpack.c.h.b16 %v7515
    %v7593 = vunpack.c.h.b16 %v7516
    %v7594 = vunpack.c.h.b16 %v7517
    %v7595 = vunpack.c.h.b16 %v7518
    %v7596 = vunpack.c.l.b16 %v7519
    %v7597 = vunpack.c.l.b16 %v7520
    %v7598 = vunpack.c.l.b16 %v7521
    %v7599 = vunpack.c.l.b16 %v7522
    %v7600 = vunpack.c.l.b16 %v7523
    %v7601 = vunpack.c.l.b16 %v7524
    %v7602 = vunpack.c.l.b16 %v7525
    %v7603 = vunpack.c.h.b16 %v7519
    %v7604 = vunpack.c.h.b16 %v7520
    %v7605 = vunpack.c.h.b16 %v7521
    %v7606 = vunpack.c.h.b16 %v7522
    %v7607 = vunpack.c.h.b16 %v7523
    %v7608 = vunpack.c.h.b16 %v7524
    %v7609 = vunpack.c.h.b16 %v7525
    %v7610 = vpack.c.b16 %v7555, %v7554
    %v7611 = vpack.c.b16 %v7557, %v7556
    %v7612 = vpack.c.b16 %v7559, %v7558
    %v7613 = vpack.c.b16 %v7560, %v7560
    %v7614 = vpack.c.b16 %v7562, %v7561
    %v7615 = vpack.c.b16 %v7564, %v7563
    %v7616 = vpack.c.b16 %v7566, %v7565
    %v7617 = vpack.c.b16 %v7567, %v7567
    %v7618 = vpack.c.b16 %v7569, %v7568
    %v7619 = vpack.c.b16 %v7571, %v7570
    %v7620 = vpack.c.b16 %v7573, %v7572
    %v7621 = vpack.c.b16 %v7574, %v7574
    %v7622 = vpack.c.b16 %v7576, %v7575
    %v7623 = vpack.c.b16 %v7578, %v7577
    %v7624 = vpack.c.b16 %v7580, %v7579
    %v7625 = vpack.c.b16 %v7581, %v7581
    %v7626 = vpack.c.b16 %v7583, %v7582
    %v7627 = vpack.c.b16 %v7585, %v7584
    %v7628 = vpack.c.b16 %v7587, %v7586
    %v7629 = vpack.c.b16 %v7588, %v7588
    %v7630 = vpack.c.b16 %v7590, %v7589
    %v7631 = vpack.c.b16 %v7592, %v7591
    %v7632 = vpack.c.b16 %v7594, %v7593
    %v7633 = vpack.c.b16 %v7595, %v7595
    %v7634 = vpack.c.b16 %v7597, %v7596
    %v7635 = vpack.c.b16 %v7599, %v7598
    %v7636 = vpack.c.b16 %v7601, %v7600
    %v7637 = vpack.c.b16 %v7602, %v7602
    %v7638 = vpack.c.b16 %v7604, %v7603
    %v7639 = vpack.c.b16 %v7606, %v7605
    %v7640 = vpack.c.b16 %v7608, %v7607
    %v7641 = vpack.c.b16 %v7609, %v7609
    %7674 = vst [vmem:[%s9] sm:$0xff] %v7610
    %7675 = vst [vmem:[%s9 + $0x8] sm:$0xff] %v7611
    %7676 = vst [vmem:[%s9 + $0x10] sm:$0xff] %v7612
    %7677 = vst [vmem:[%s9 + $0x18] sm:$0xf] %v7613
    %7678 = vst [vmem:[%s9 + $0x1c] sm:$0xff] %v7614
    %7679 = vst [vmem:[%s9 + $0x24] sm:$0xff] %v7615
    %7680 = vst [vmem:[%s9 + $0x2c] sm:$0xff] %v7616
    %7681 = vst [vmem:[%s9 + $0x34] sm:$0xf] %v7617
    %7682 = vst [vmem:[%s9 + $0x38] sm:$0xff] %v7618
    %7683 = vst [vmem:[%s9 + $0x40] sm:$0xff] %v7619
    %7684 = vst [vmem:[%s9 + $0x48] sm:$0xff] %v7620
    %7685 = vst [vmem:[%s9 + $0x50] sm:$0xf] %v7621
    %7686 = vst [vmem:[%s9 + $0x54] sm:$0xff] %v7622
    %7687 = vst [vmem:[%s9 + $0x5c] sm:$0xff] %v7623
    %7688 = vst [vmem:[%s9 + $0x64] sm:$0xff] %v7624
    %7689 = vst [vmem:[%s9 + $0x6c] sm:$0xf] %v7625
    %7690 = vst [vmem:[%s9 + $0x70] sm:$0xff] %v7626
    %7691 = vst [vmem:[%s9 + $0x78] sm:$0xff] %v7627
    %7692 = vst [vmem:[%s9 + $0x80] sm:$0xff] %v7628
    %7693 = vst [vmem:[%s9 + $0x88] sm:$0xf] %v7629
    %7694 = vst [vmem:[%s9 + $0x8c] sm:$0xff] %v7630
    %7695 = vst [vmem:[%s9 + $0x94] sm:$0xff] %v7631
    %7696 = vst [vmem:[%s9 + $0x9c] sm:$0xff] %v7632
    %7697 = vst [vmem:[%s9 + $0xa4] sm:$0xf] %v7633
    %7698 = vst [vmem:[%s9 + $0xa8] sm:$0xff] %v7634
    %7699 = vst [vmem:[%s9 + $0xb0] sm:$0xff] %v7635
    %7700 = vst [vmem:[%s9 + $0xb8] sm:$0xff] %v7636
    %7701 = vst [vmem:[%s9 + $0xc0] sm:$0xf] %v7637
    %7702 = vst [vmem:[%s9 + $0xc4] sm:$0xff] %v7638
    %7703 = vst [vmem:[%s9 + $0xcc] sm:$0xff] %v7639
    %7704 = vst [vmem:[%s9 + $0xd4] sm:$0xff] %v7640
    %7705 = vst [vmem:[%s9 + $0xdc] sm:$0xf] %v7641
    // Predicated region
    $region70: #{_generator_forward_impl.1} parent=1 // pred_check
      _
    $region71: #{_generator_forward_impl.1} parent=1 // pred_check_branch
      %7707 = sbr.rel (0) target = $region73
    $region72: #{_generator_forward_impl.1} parent=1 // pred_region
      _
    $region73: #{_generator_forward_impl.1} parent=1 // pred_fallthru
      _
    // Predicated region
    $region74: #{_generator_forward_impl.1} parent=1 // pred_check
      _
    $region75: #{_generator_forward_impl.1} parent=1 // pred_check_branch
      %7709 = sbr.rel (0) target = $region77
    $region76: #{_generator_forward_impl.1} parent=1 // pred_region
      _
    $region77: #{_generator_forward_impl.1} parent=1 // pred_fallthru
      _
    %7710 = vsyncpa [#allocation3], 1
    %7711 = vsyncpa [#allocation5], 1
    %7712 = vsyncpa [#allocation8], 1
    %7713 = vsyncpa [#allocation11], 1
    %7714 = vsyncpa [#allocation14], 1

</llo_original>
